<compile_context>
chip_gen: v5e
topology: v5e:2x2
jax: 0.10.0
libtpu: 0.0.40
codegen_flags: <defaults>
</compile_context>

<pallas_src>
import jax
import jax.numpy as jnp
from jax.experimental import pallas as pl
from jax.experimental.pallas import tpu as pltpu


# ----------------------------- Pallas kernels ------------------------------ #

def conv_block_kernel(p_ref, w_ref, b_ref, scale_ref, shift_ref, o_ref):
    """Fused Conv3x3(+bias) -> ReLU -> MaxPool2x2 -> BatchNorm(eval).

    p_ref:     (4, TM, K)   bf16 im2col patches; dim 0 enumerates the 2x2 pool window
    w_ref:     (K, Cout)    bf16 conv weights reshaped, K = 9 * Cin(_padded)
    b_ref:     (1, Cout)    f32 conv bias
    scale_ref: (1, Cout)    f32 folded BN scale = gamma / sqrt(running_var + eps)
    shift_ref: (1, Cout)    f32 folded BN shift = beta - running_mean * scale
    o_ref:     (TM, Cout)   bf16 pooled, normalized output rows
    """
    d4, tm, k = p_ref.shape
    p = p_ref[...].reshape(d4 * tm, k)                     # one tall MXU operand
    y = jnp.dot(p, w_ref[...], preferred_element_type=jnp.float32)   # (4*TM, Cout)
    y = y.reshape(d4, tm, -1)
    pooled = jnp.max(y, axis=0)                            # MaxPool 2x2 (pre bias/ReLU: exact)
    act = jnp.maximum(pooled + b_ref[...], 0.0)            # bias + ReLU, applied once
    o_ref[...] = (act * scale_ref[...] + shift_ref[...]).astype(o_ref.dtype)


def conv_block(patches, w9, bias, scale, shift):
    """patches: (4, M, K) with M = B * (H//2) * (W//2). Returns (M, Cout) bf16."""
    _, M, K = patches.shape
    Cout = w9.shape[1]
    # 2-way row split: uses both TensorCores on v7x; just pipelining on v5e/v6e.
    tm = M // 2 if (M % 2 == 0 and (M // 2) % 8 == 0) else M
    grid = (M // tm,)
    # Note: Cout=32/64 last dims lower to masked stores; outputs are tiny so the
    # lane-densification rewrite was skipped (perf-review item 9).
    return pl.pallas_call(
        conv_block_kernel,
        out_shape=jax.ShapeDtypeStruct((M, Cout), jnp.bfloat16),
        grid=grid,
        in_specs=[
            pl.BlockSpec((4, tm, K), lambda i: (0, i, 0)),
            pl.BlockSpec((K, Cout), lambda i: (0, 0)),
            pl.BlockSpec((1, Cout), lambda i: (0, 0)),
            pl.BlockSpec((1, Cout), lambda i: (0, 0)),
            pl.BlockSpec((1, Cout), lambda i: (0, 0)),
        ],
        out_specs=pl.BlockSpec((tm, Cout), lambda i: (i, 0)),
        compiler_params=pltpu.CompilerParams(
            dimension_semantics=("parallel",)),
    )(patches, w9, bias, scale, shift)


def fc1_kernel(x_ref, w_ref, b_ref, o_ref):
    """Linear(2048 -> column tile) + ReLU. Dropout is identity in eval mode."""
    h = jnp.dot(x_ref[...], w_ref[...], preferred_element_type=jnp.float32) + b_ref[...]
    o_ref[...] = jnp.maximum(h, 0.0).astype(o_ref.dtype)


def fc1_layer(x, w, b, tn=256):
    """x: (B, 2048) bf16, w: (2048, 1024) bf16 -> (B, 1024) bf16.

    Tiled over the 1024 output columns (parallel grid): pipelines the dominant
    w1 weight DMA and lets v7x split it across its two TensorCores."""
    B, K = x.shape
    N = w.shape[1]
    assert N % tn == 0
    return pl.pallas_call(
        fc1_kernel,
        out_shape=jax.ShapeDtypeStruct((B, N), jnp.bfloat16),
        grid=(N // tn,),
        in_specs=[
            pl.BlockSpec((B, K), lambda j: (0, 0)),
            pl.BlockSpec((K, tn), lambda j: (0, j)),
            pl.BlockSpec((1, tn), lambda j: (0, j)),
        ],
        out_specs=pl.BlockSpec((B, tn), lambda j: (0, j)),
        compiler_params=pltpu.CompilerParams(
            dimension_semantics=("parallel",)),
    )(x, w, b)


def mlp_head_kernel(h_ref, w2_ref, b2_ref, w3_ref, b3_ref, o_ref):
    """Linear(1024->256) -> ReLU -> Linear(256->10)."""
    h2 = jnp.dot(h_ref[...], w2_ref[...], preferred_element_type=jnp.float32) + b2_ref[...]
    h2 = jnp.maximum(h2, 0.0).astype(w3_ref.dtype)
    o_ref[...] = jnp.dot(h2, w3_ref[...], preferred_element_type=jnp.float32) + b3_ref[...]


def mlp_head(h1, w2, b2, w3, b3):
    B = h1.shape[0]
    # Whole-array call (weights here total < 1 MiB in bf16).
    return pl.pallas_call(
        mlp_head_kernel,
        out_shape=jax.ShapeDtypeStruct((B, w3.shape[1]), jnp.float32),
    )(h1, w2, b2, w3, b3)


# ------------------------------- JAX glue ---------------------------------- #

def im2col_pool_patches(x, cin_pad=None):
    """x: (B, H, W, C) NHWC -> (4, B*(H//2)*(W//2), 9*Cp), pool-window-major dim 0.

    Patch feature index k = (kh*3 + kw)*Cp + c, matching w.reshape(9*Cp, Cout)
    for HWIO weights (with the same Cin zero-padding)."""
    B, H, W, C = x.shape
    if cin_pad is not None and cin_pad != C:
        x = jnp.pad(x, ((0, 0), (0, 0), (0, 0), (0, cin_pad - C)))
        C = cin_pad
    xp = jnp.pad(x, ((0, 0), (1, 1), (1, 1), (0, 0)))
    cols = [xp[:, kh:kh + H, kw:kw + W, :] for kh in range(3) for kw in range(3)]
    patches = jnp.concatenate(cols, axis=-1)                 # (B, H, W, 9*Cp)
    Hp, Wp = H // 2, W // 2
    K = 9 * C
    patches = patches.reshape(B, Hp, 2, Wp, 2, K)
    patches = patches.transpose(2, 4, 0, 1, 3, 5)            # (2, 2, B, Hp, Wp, K)
    return patches.reshape(4, B * Hp * Wp, K)                # row = b*Hp*Wp + hp*Wp + wp


def init_params(key):
    ks = jax.random.split(key, 6)

    def conv_params(k, cin, cout, cin_pad=None):
        k1, k2, k3, k4, k5, k6 = jax.random.split(k, 6)
        w = jax.random.normal(k1, (3, 3, cin, cout), jnp.float32) / jnp.sqrt(9.0 * cin)
        if cin_pad is not None and cin_pad != cin:
            # Zero-pad the input-channel dim so K = 9*cin_pad is sublane-aligned;
            # the padded input channels are zero, so the result is exact.
            w = jnp.pad(w, ((0, 0), (0, 0), (0, cin_pad - cin), (0, 0)))
            cin = cin_pad
        b = 0.05 * jax.random.normal(k2, (1, cout), jnp.float32)
        gamma = 1.0 + 0.1 * jax.random.normal(k3, (1, cout), jnp.float32)
        beta = 0.1 * jax.random.normal(k4, (1, cout), jnp.float32)
        rmean = 0.1 * jax.random.normal(k5, (1, cout), jnp.float32)
        rvar = 1.0 + 0.5 * jax.nn.sigmoid(jax.random.normal(k6, (1, cout), jnp.float32))
        eps = 1e-5
        scale = gamma / jnp.sqrt(rvar + eps)
        shift = beta - rmean * scale
        return dict(w9=w.reshape(9 * cin, cout).astype(jnp.bfloat16),
                    b=b, scale=scale, shift=shift)

    def linear_params(k, din, dout, nhwc_perm=None):
        k1, k2 = jax.random.split(k)
        w = jax.random.normal(k1, (din, dout), jnp.float32) / jnp.sqrt(float(din))
        if nhwc_perm is not None:
            # PyTorch nn.Flatten on NCHW flattens in (C, H, W) order; we feed
            # NHWC-flattened features, so permute the weight rows once at init
            # (exact, one-time host-side cost).
            C, H, W = nhwc_perm
            w = w.reshape(C, H, W, dout).transpose(1, 2, 0, 3).reshape(din, dout)
        b = 0.05 * jax.random.normal(k2, (1, dout), jnp.float32)
        return dict(w=w.astype(jnp.bfloat16), b=b)

    return dict(
        conv1=conv_params(ks[0], 3, 32, cin_pad=8),
        conv2=conv_params(ks[1], 32, 64),
        conv3=conv_params(ks[2], 64, 128),
        fc1=linear_params(ks[3], 128 * 4 * 4, 1024, nhwc_perm=(128, 4, 4)),
        fc2=linear_params(ks[4], 1024, 256),
        fc3=linear_params(ks[5], 256, 10),
    )


@jax.jit
def mynet_forward(params, x_nchw):
    x = jnp.transpose(x_nchw, (0, 2, 3, 1)).astype(jnp.bfloat16)   # NCHW -> NHWC
    B = x.shape[0]
    for name, cin_pad in (("conv1", 8), ("conv2", None), ("conv3", None)):
        p = params[name]
        _, H, W, _ = x.shape
        patches = im2col_pool_patches(x, cin_pad)                  # (4, B*N, K) bf16
        y = conv_block(patches, p["w9"], p["b"], p["scale"], p["shift"])
        x = y.reshape(B, H // 2, W // 2, -1)                       # back to NHWC
    # NHWC flatten; fc1 weight rows were permuted at init to match PyTorch's
    # (C, H, W) flatten order, so no transpose is needed here.
    feat = x.reshape(B, -1)                                        # (B, 2048) bf16
    h1 = fc1_layer(feat, params["fc1"]["w"], params["fc1"]["b"])
    return mlp_head(h1,
                    params["fc2"]["w"], params["fc2"]["b"],
                    params["fc3"]["w"], params["fc3"]["b"])


if __name__ == "__main__":
    key = jax.random.PRNGKey(0)
    pkey, xkey = jax.random.split(key)
    params = init_params(pkey)
    x = jax.random.normal(xkey, (2, 3, 32, 32), jnp.float32)       # NCHW, like PyTorch
    out = jax.block_until_ready(mynet_forward(params, x))
    assert out.shape == (2, 10), out.shape
    assert bool(jnp.all(jnp.isfinite(out)))
    print("KERNEL_OK")
</pallas_src>

<mosaic_0001>
module attributes {stable_mosaic.version = 11 : i64} {
  func.func @conv_block_kernel(%arg0: i32, %arg1: memref<4x256x72xbf16, #tpu.memory_space<vmem>>, %arg2: memref<72x32xbf16, #tpu.memory_space<vmem>>, %arg3: memref<1x32xf32, #tpu.memory_space<vmem>>, %arg4: memref<1x32xf32, #tpu.memory_space<vmem>>, %arg5: memref<1x32xf32, #tpu.memory_space<vmem>>, %arg6: memref<256x32xbf16, #tpu.memory_space<vmem>>) attributes {dimension_semantics = [#tpu.dimension_semantics<parallel>], iteration_bounds = array<i64: 2>, scalar_prefetch = 0 : i64, scratch_operands = 0 : i64, tpu.core_type = #tpu.core_type<tc>, window_params = [{transform_indices = @transform_0, window_bounds = array<i64: 4, 256, 72>}, {pipeline_mode = #tpu.pipeline_mode<synchronous>, transform_indices = @transform_1, window_bounds = array<i64: 72, 32>}, {pipeline_mode = #tpu.pipeline_mode<synchronous>, transform_indices = @transform_2, window_bounds = array<i64: 1, 32>}, {pipeline_mode = #tpu.pipeline_mode<synchronous>, transform_indices = @transform_3, window_bounds = array<i64: 1, 32>}, {pipeline_mode = #tpu.pipeline_mode<synchronous>, transform_indices = @transform_4, window_bounds = array<i64: 1, 32>}, {transform_indices = @transform_5, window_bounds = array<i64: 256, 32>}]} {
    %c0 = arith.constant 0 : index
    %c0_0 = arith.constant 0 : index
    %c0_1 = arith.constant 0 : index
    %0 = vector.load %arg1[%c0, %c0_0, %c0_1] : memref<4x256x72xbf16, #tpu.memory_space<vmem>>, vector<4x256x72xbf16>
    %1 = vector.shape_cast %0 : vector<4x256x72xbf16> to vector<1024x72xbf16>
    %c0_2 = arith.constant 0 : index
    %c0_3 = arith.constant 0 : index
    %2 = vector.load %arg2[%c0_2, %c0_3] : memref<72x32xbf16, #tpu.memory_space<vmem>>, vector<72x32xbf16>
    %cst = arith.constant dense<0.000000e+00> : vector<1024x32xf32>
    %3 = tpu.matmul %1, %2, %cst {dimension_numbers = #tpu.dot_dimension_numbers<[1], [0], [0], [1], [0, 0, 1, 1], [], []>} : vector<1024x72xbf16>, vector<72x32xbf16>, vector<1024x32xf32> -> vector<1024x32xf32>
    %4 = vector.shape_cast %3 : vector<1024x32xf32> to vector<4x256x32xf32>
    %cst_4 = arith.constant dense<0xFF800000> : vector<256x32xf32>
    %5 = vector.multi_reduction <maximumf>, %4, %cst_4 [0] : vector<4x256x32xf32> to vector<256x32xf32>
    %c0_5 = arith.constant 0 : index
    %c0_6 = arith.constant 0 : index
    %6 = vector.load %arg3[%c0_5, %c0_6] : memref<1x32xf32, #tpu.memory_space<vmem>>, vector<1x32xf32>
    %7 = vector.broadcast %6 : vector<1x32xf32> to vector<256x32xf32>
    %8 = arith.addf %5, %7 : vector<256x32xf32>
    %cst_7 = arith.constant 0.000000e+00 : f32
    %9 = vector.broadcast %cst_7 : f32 to vector<256x32xf32>
    %10 = arith.maximumf %8, %9 : vector<256x32xf32>
    %c0_8 = arith.constant 0 : index
    %c0_9 = arith.constant 0 : index
    %11 = vector.load %arg4[%c0_8, %c0_9] : memref<1x32xf32, #tpu.memory_space<vmem>>, vector<1x32xf32>
    %12 = vector.broadcast %11 : vector<1x32xf32> to vector<256x32xf32>
    %13 = arith.mulf %10, %12 : vector<256x32xf32>
    %c0_10 = arith.constant 0 : index
    %c0_11 = arith.constant 0 : index
    %14 = vector.load %arg5[%c0_10, %c0_11] : memref<1x32xf32, #tpu.memory_space<vmem>>, vector<1x32xf32>
    %15 = vector.broadcast %14 : vector<1x32xf32> to vector<256x32xf32>
    %16 = arith.addf %13, %15 : vector<256x32xf32>
    %17 = arith.truncf %16 : vector<256x32xf32> to vector<256x32xbf16>
    %c0_12 = arith.constant 0 : index
    %c0_13 = arith.constant 0 : index
    %18 = vector.load %arg6[%c0_12, %c0_13] : memref<256x32xbf16, #tpu.memory_space<vmem>>, vector<256x32xbf16>
    tpu.vector_store %arg6[%c0_12, %c0_13], %17 {strides = array<i32>} : memref<256x32xbf16, #tpu.memory_space<vmem>>, vector<256x32xbf16>,
    return
  }
  func.func @transform_0(%arg0: i32) -> (i32, i32, i32) {
    %c0_i32 = arith.constant 0 : i32
    %c0_i32_0 = arith.constant 0 : i32
    %c0_i32_1 = arith.constant 0 : i32
    return %c0_i32, %arg0, %c0_i32_0 : i32, i32, i32
  }
  func.func @transform_1(%arg0: i32) -> (i32, i32) {
    %c0_i32 = arith.constant 0 : i32
    %c0_i32_0 = arith.constant 0 : i32
    %c0_i32_1 = arith.constant 0 : i32
    return %c0_i32, %c0_i32_0 : i32, i32
  }
  func.func @transform_2(%arg0: i32) -> (i32, i32) {
    %c0_i32 = arith.constant 0 : i32
    %c0_i32_0 = arith.constant 0 : i32
    %c0_i32_1 = arith.constant 0 : i32
    return %c0_i32, %c0_i32_0 : i32, i32
  }
  func.func @transform_3(%arg0: i32) -> (i32, i32) {
    %c0_i32 = arith.constant 0 : i32
    %c0_i32_0 = arith.constant 0 : i32
    %c0_i32_1 = arith.constant 0 : i32
    return %c0_i32, %c0_i32_0 : i32, i32
  }
  func.func @transform_4(%arg0: i32) -> (i32, i32) {
    %c0_i32 = arith.constant 0 : i32
    %c0_i32_0 = arith.constant 0 : i32
    %c0_i32_1 = arith.constant 0 : i32
    return %c0_i32, %c0_i32_0 : i32, i32
  }
  func.func @transform_5(%arg0: i32) -> (i32, i32) {
    %c0_i32 = arith.constant 0 : i32
    %c0_i32_0 = arith.constant 0 : i32
    return %arg0, %c0_i32 : i32, i32
  }
}

module attributes {stable_mosaic.version = 11 : i64} {
  func.func @conv_block_kernel(%arg0: i32, %arg1: memref<4x64x288xbf16, #tpu.memory_space<vmem>>, %arg2: memref<288x64xbf16, #tpu.memory_space<vmem>>, %arg3: memref<1x64xf32, #tpu.memory_space<vmem>>, %arg4: memref<1x64xf32, #tpu.memory_space<vmem>>, %arg5: memref<1x64xf32, #tpu.memory_space<vmem>>, %arg6: memref<64x64xbf16, #tpu.memory_space<vmem>>) attributes {dimension_semantics = [#tpu.dimension_semantics<parallel>], iteration_bounds = array<i64: 2>, scalar_prefetch = 0 : i64, scratch_operands = 0 : i64, tpu.core_type = #tpu.core_type<tc>, window_params = [{transform_indices = @transform_0, window_bounds = array<i64: 4, 64, 288>}, {pipeline_mode = #tpu.pipeline_mode<synchronous>, transform_indices = @transform_1, window_bounds = array<i64: 288, 64>}, {pipeline_mode = #tpu.pipeline_mode<synchronous>, transform_indices = @transform_2, window_bounds = array<i64: 1, 64>}, {pipeline_mode = #tpu.pipeline_mode<synchronous>, transform_indices = @transform_3, window_bounds = array<i64: 1, 64>}, {pipeline_mode = #tpu.pipeline_mode<synchronous>, transform_indices = @transform_4, window_bounds = array<i64: 1, 64>}, {transform_indices = @transform_5, window_bounds = array<i64: 64, 64>}]} {
    %c0 = arith.constant 0 : index
    %c0_0 = arith.constant 0 : index
    %c0_1 = arith.constant 0 : index
    %0 = vector.load %arg1[%c0, %c0_0, %c0_1] : memref<4x64x288xbf16, #tpu.memory_space<vmem>>, vector<4x64x288xbf16>
    %1 = vector.shape_cast %0 : vector<4x64x288xbf16> to vector<256x288xbf16>
    %c0_2 = arith.constant 0 : index
    %c0_3 = arith.constant 0 : index
    %2 = vector.load %arg2[%c0_2, %c0_3] : memref<288x64xbf16, #tpu.memory_space<vmem>>, vector<288x64xbf16>
    %cst = arith.constant dense<0.000000e+00> : vector<256x64xf32>
    %3 = tpu.matmul %1, %2, %cst {dimension_numbers = #tpu.dot_dimension_numbers<[1], [0], [0], [1], [0, 0, 1, 1], [], []>} : vector<256x288xbf16>, vector<288x64xbf16>, vector<256x64xf32> -> vector<256x64xf32>
    %4 = vector.shape_cast %3 : vector<256x64xf32> to vector<4x64x64xf32>
    %cst_4 = arith.constant dense<0xFF800000> : vector<64x64xf32>
    %5 = vector.multi_reduction <maximumf>, %4, %cst_4 [0] : vector<4x64x64xf32> to vector<64x64xf32>
    %c0_5 = arith.constant 0 : index
    %c0_6 = arith.constant 0 : index
    %6 = vector.load %arg3[%c0_5, %c0_6] : memref<1x64xf32, #tpu.memory_space<vmem>>, vector<1x64xf32>
    %7 = vector.broadcast %6 : vector<1x64xf32> to vector<64x64xf32>
    %8 = arith.addf %5, %7 : vector<64x64xf32>
    %cst_7 = arith.constant 0.000000e+00 : f32
    %9 = vector.broadcast %cst_7 : f32 to vector<64x64xf32>
    %10 = arith.maximumf %8, %9 : vector<64x64xf32>
    %c0_8 = arith.constant 0 : index
    %c0_9 = arith.constant 0 : index
    %11 = vector.load %arg4[%c0_8, %c0_9] : memref<1x64xf32, #tpu.memory_space<vmem>>, vector<1x64xf32>
    %12 = vector.broadcast %11 : vector<1x64xf32> to vector<64x64xf32>
    %13 = arith.mulf %10, %12 : vector<64x64xf32>
    %c0_10 = arith.constant 0 : index
    %c0_11 = arith.constant 0 : index
    %14 = vector.load %arg5[%c0_10, %c0_11] : memref<1x64xf32, #tpu.memory_space<vmem>>, vector<1x64xf32>
    %15 = vector.broadcast %14 : vector<1x64xf32> to vector<64x64xf32>
    %16 = arith.addf %13, %15 : vector<64x64xf32>
    %17 = arith.truncf %16 : vector<64x64xf32> to vector<64x64xbf16>
    %c0_12 = arith.constant 0 : index
    %c0_13 = arith.constant 0 : index
    %18 = vector.load %arg6[%c0_12, %c0_13] : memref<64x64xbf16, #tpu.memory_space<vmem>>, vector<64x64xbf16>
    tpu.vector_store %arg6[%c0_12, %c0_13], %17 {strides = array<i32>} : memref<64x64xbf16, #tpu.memory_space<vmem>>, vector<64x64xbf16>,
    return
  }
  func.func @transform_0(%arg0: i32) -> (i32, i32, i32) {
    %c0_i32 = arith.constant 0 : i32
    %c0_i32_0 = arith.constant 0 : i32
    %c0_i32_1 = arith.constant 0 : i32
    return %c0_i32, %arg0, %c0_i32_0 : i32, i32, i32
  }
  func.func @transform_1(%arg0: i32) -> (i32, i32) {
    %c0_i32 = arith.constant 0 : i32
    %c0_i32_0 = arith.constant 0 : i32
    %c0_i32_1 = arith.constant 0 : i32
    return %c0_i32, %c0_i32_0 : i32, i32
  }
  func.func @transform_2(%arg0: i32) -> (i32, i32) {
    %c0_i32 = arith.constant 0 : i32
    %c0_i32_0 = arith.constant 0 : i32
    %c0_i32_1 = arith.constant 0 : i32
    return %c0_i32, %c0_i32_0 : i32, i32
  }
  func.func @transform_3(%arg0: i32) -> (i32, i32) {
    %c0_i32 = arith.constant 0 : i32
    %c0_i32_0 = arith.constant 0 : i32
    %c0_i32_1 = arith.constant 0 : i32
    return %c0_i32, %c0_i32_0 : i32, i32
  }
  func.func @transform_4(%arg0: i32) -> (i32, i32) {
    %c0_i32 = arith.constant 0 : i32
    %c0_i32_0 = arith.constant 0 : i32
    %c0_i32_1 = arith.constant 0 : i32
    return %c0_i32, %c0_i32_0 : i32, i32
  }
  func.func @transform_5(%arg0: i32) -> (i32, i32) {
    %c0_i32 = arith.constant 0 : i32
    %c0_i32_0 = arith.constant 0 : i32
    return %arg0, %c0_i32 : i32, i32
  }
}

module attributes {stable_mosaic.version = 11 : i64} {
  func.func @conv_block_kernel(%arg0: i32, %arg1: memref<4x16x576xbf16, #tpu.memory_space<vmem>>, %arg2: memref<576x128xbf16, #tpu.memory_space<vmem>>, %arg3: memref<1x128xf32, #tpu.memory_space<vmem>>, %arg4: memref<1x128xf32, #tpu.memory_space<vmem>>, %arg5: memref<1x128xf32, #tpu.memory_space<vmem>>, %arg6: memref<16x128xbf16, #tpu.memory_space<vmem>>) attributes {dimension_semantics = [#tpu.dimension_semantics<parallel>], iteration_bounds = array<i64: 2>, scalar_prefetch = 0 : i64, scratch_operands = 0 : i64, tpu.core_type = #tpu.core_type<tc>, window_params = [{transform_indices = @transform_0, window_bounds = array<i64: 4, 16, 576>}, {pipeline_mode = #tpu.pipeline_mode<synchronous>, transform_indices = @transform_1, window_bounds = array<i64: 576, 128>}, {pipeline_mode = #tpu.pipeline_mode<synchronous>, transform_indices = @transform_2, window_bounds = array<i64: 1, 128>}, {pipeline_mode = #tpu.pipeline_mode<synchronous>, transform_indices = @transform_3, window_bounds = array<i64: 1, 128>}, {pipeline_mode = #tpu.pipeline_mode<synchronous>, transform_indices = @transform_4, window_bounds = array<i64: 1, 128>}, {transform_indices = @transform_5, window_bounds = array<i64: 16, 128>}]} {
    %c0 = arith.constant 0 : index
    %c0_0 = arith.constant 0 : index
    %c0_1 = arith.constant 0 : index
    %0 = vector.load %arg1[%c0, %c0_0, %c0_1] : memref<4x16x576xbf16, #tpu.memory_space<vmem>>, vector<4x16x576xbf16>
    %1 = vector.shape_cast %0 : vector<4x16x576xbf16> to vector<64x576xbf16>
    %c0_2 = arith.constant 0 : index
    %c0_3 = arith.constant 0 : index
    %2 = vector.load %arg2[%c0_2, %c0_3] : memref<576x128xbf16, #tpu.memory_space<vmem>>, vector<576x128xbf16>
    %cst = arith.constant dense<0.000000e+00> : vector<64x128xf32>
    %3 = tpu.matmul %1, %2, %cst {dimension_numbers = #tpu.dot_dimension_numbers<[1], [0], [0], [1], [0, 0, 1, 1], [], []>} : vector<64x576xbf16>, vector<576x128xbf16>, vector<64x128xf32> -> vector<64x128xf32>
    %4 = vector.shape_cast %3 : vector<64x128xf32> to vector<4x16x128xf32>
    %cst_4 = arith.constant dense<0xFF800000> : vector<16x128xf32>
    %5 = vector.multi_reduction <maximumf>, %4, %cst_4 [0] : vector<4x16x128xf32> to vector<16x128xf32>
    %c0_5 = arith.constant 0 : index
    %c0_6 = arith.constant 0 : index
    %6 = vector.load %arg3[%c0_5, %c0_6] : memref<1x128xf32, #tpu.memory_space<vmem>>, vector<1x128xf32>
    %7 = vector.broadcast %6 : vector<1x128xf32> to vector<16x128xf32>
    %8 = arith.addf %5, %7 : vector<16x128xf32>
    %cst_7 = arith.constant 0.000000e+00 : f32
    %9 = vector.broadcast %cst_7 : f32 to vector<16x128xf32>
    %10 = arith.maximumf %8, %9 : vector<16x128xf32>
    %c0_8 = arith.constant 0 : index
    %c0_9 = arith.constant 0 : index
    %11 = vector.load %arg4[%c0_8, %c0_9] : memref<1x128xf32, #tpu.memory_space<vmem>>, vector<1x128xf32>
    %12 = vector.broadcast %11 : vector<1x128xf32> to vector<16x128xf32>
    %13 = arith.mulf %10, %12 : vector<16x128xf32>
    %c0_10 = arith.constant 0 : index
    %c0_11 = arith.constant 0 : index
    %14 = vector.load %arg5[%c0_10, %c0_11] : memref<1x128xf32, #tpu.memory_space<vmem>>, vector<1x128xf32>
    %15 = vector.broadcast %14 : vector<1x128xf32> to vector<16x128xf32>
    %16 = arith.addf %13, %15 : vector<16x128xf32>
    %17 = arith.truncf %16 : vector<16x128xf32> to vector<16x128xbf16>
    %c0_12 = arith.constant 0 : index
    %c0_13 = arith.constant 0 : index
    %18 = vector.load %arg6[%c0_12, %c0_13] : memref<16x128xbf16, #tpu.memory_space<vmem>>, vector<16x128xbf16>
    tpu.vector_store %arg6[%c0_12, %c0_13], %17 {strides = array<i32>} : memref<16x128xbf16, #tpu.memory_space<vmem>>, vector<16x128xbf16>,
    return
  }
  func.func @transform_0(%arg0: i32) -> (i32, i32, i32) {
    %c0_i32 = arith.constant 0 : i32
    %c0_i32_0 = arith.constant 0 : i32
    %c0_i32_1 = arith.constant 0 : i32
    return %c0_i32, %arg0, %c0_i32_0 : i32, i32, i32
  }
  func.func @transform_1(%arg0: i32) -> (i32, i32) {
    %c0_i32 = arith.constant 0 : i32
    %c0_i32_0 = arith.constant 0 : i32
    %c0_i32_1 = arith.constant 0 : i32
    return %c0_i32, %c0_i32_0 : i32, i32
  }
  func.func @transform_2(%arg0: i32) -> (i32, i32) {
    %c0_i32 = arith.constant 0 : i32
    %c0_i32_0 = arith.constant 0 : i32
    %c0_i32_1 = arith.constant 0 : i32
    return %c0_i32, %c0_i32_0 : i32, i32
  }
  func.func @transform_3(%arg0: i32) -> (i32, i32) {
    %c0_i32 = arith.constant 0 : i32
    %c0_i32_0 = arith.constant 0 : i32
    %c0_i32_1 = arith.constant 0 : i32
    return %c0_i32, %c0_i32_0 : i32, i32
  }
  func.func @transform_4(%arg0: i32) -> (i32, i32) {
    %c0_i32 = arith.constant 0 : i32
    %c0_i32_0 = arith.constant 0 : i32
    %c0_i32_1 = arith.constant 0 : i32
    return %c0_i32, %c0_i32_0 : i32, i32
  }
  func.func @transform_5(%arg0: i32) -> (i32, i32) {
    %c0_i32 = arith.constant 0 : i32
    %c0_i32_0 = arith.constant 0 : i32
    return %arg0, %c0_i32 : i32, i32
  }
}

module attributes {stable_mosaic.version = 11 : i64} {
  func.func @fc1_kernel(%arg0: i32, %arg1: memref<2x2048xbf16, #tpu.memory_space<vmem>>, %arg2: memref<2048x256xbf16, #tpu.memory_space<vmem>>, %arg3: memref<1x256xf32, #tpu.memory_space<vmem>>, %arg4: memref<2x256xbf16, #tpu.memory_space<vmem>>) attributes {dimension_semantics = [#tpu.dimension_semantics<parallel>], iteration_bounds = array<i64: 4>, scalar_prefetch = 0 : i64, scratch_operands = 0 : i64, tpu.core_type = #tpu.core_type<tc>, window_params = [{pipeline_mode = #tpu.pipeline_mode<synchronous>, transform_indices = @transform_0, window_bounds = array<i64: 2, 2048>}, {transform_indices = @transform_1, window_bounds = array<i64: 2048, 256>}, {transform_indices = @transform_2, window_bounds = array<i64: 1, 256>}, {transform_indices = @transform_3, window_bounds = array<i64: 2, 256>}]} {
    %c0 = arith.constant 0 : index
    %c0_0 = arith.constant 0 : index
    %0 = vector.load %arg1[%c0, %c0_0] : memref<2x2048xbf16, #tpu.memory_space<vmem>>, vector<2x2048xbf16>
    %c0_1 = arith.constant 0 : index
    %c0_2 = arith.constant 0 : index
    %1 = vector.load %arg2[%c0_1, %c0_2] : memref<2048x256xbf16, #tpu.memory_space<vmem>>, vector<2048x256xbf16>
    %cst = arith.constant dense<0.000000e+00> : vector<2x256xf32>
    %2 = tpu.matmul %0, %1, %cst {dimension_numbers = #tpu.dot_dimension_numbers<[1], [0], [0], [1], [0, 0, 1, 1], [], []>} : vector<2x2048xbf16>, vector<2048x256xbf16>, vector<2x256xf32> -> vector<2x256xf32>
    %c0_3 = arith.constant 0 : index
    %c0_4 = arith.constant 0 : index
    %3 = vector.load %arg3[%c0_3, %c0_4] : memref<1x256xf32, #tpu.memory_space<vmem>>, vector<1x256xf32>
    %4 = vector.broadcast %3 : vector<1x256xf32> to vector<2x256xf32>
    %5 = arith.addf %2, %4 : vector<2x256xf32>
    %cst_5 = arith.constant 0.000000e+00 : f32
    %6 = vector.broadcast %cst_5 : f32 to vector<2x256xf32>
    %7 = arith.maximumf %5, %6 : vector<2x256xf32>
    %8 = arith.truncf %7 : vector<2x256xf32> to vector<2x256xbf16>
    %c0_6 = arith.constant 0 : index
    %c0_7 = arith.constant 0 : index
    %9 = vector.load %arg4[%c0_6, %c0_7] : memref<2x256xbf16, #tpu.memory_space<vmem>>, vector<2x256xbf16>
    tpu.vector_store %arg4[%c0_6, %c0_7], %8 {strides = array<i32>} : memref<2x256xbf16, #tpu.memory_space<vmem>>, vector<2x256xbf16>,
    return
  }
  func.func @transform_0(%arg0: i32) -> (i32, i32) {
    %c0_i32 = arith.constant 0 : i32
    %c0_i32_0 = arith.constant 0 : i32
    %c0_i32_1 = arith.constant 0 : i32
    return %c0_i32, %c0_i32_0 : i32, i32
  }
  func.func @transform_1(%arg0: i32) -> (i32, i32) {
    %c0_i32 = arith.constant 0 : i32
    %c0_i32_0 = arith.constant 0 : i32
    return %c0_i32, %arg0 : i32, i32
  }
  func.func @transform_2(%arg0: i32) -> (i32, i32) {
    %c0_i32 = arith.constant 0 : i32
    %c0_i32_0 = arith.constant 0 : i32
    return %c0_i32, %arg0 : i32, i32
  }
  func.func @transform_3(%arg0: i32) -> (i32, i32) {
    %c0_i32 = arith.constant 0 : i32
    %c0_i32_0 = arith.constant 0 : i32
    return %c0_i32, %arg0 : i32, i32
  }
}

module attributes {stable_mosaic.version = 11 : i64} {
  func.func @mlp_head_kernel(%arg0: memref<2x1024xbf16, #tpu.memory_space<vmem>>, %arg1: memref<1024x256xbf16, #tpu.memory_space<vmem>>, %arg2: memref<1x256xf32, #tpu.memory_space<vmem>>, %arg3: memref<256x10xbf16, #tpu.memory_space<vmem>>, %arg4: memref<1x10xf32, #tpu.memory_space<vmem>>, %arg5: memref<2x10xf32, #tpu.memory_space<vmem>>) attributes {dimension_semantics = [], scalar_prefetch = 0 : i64, scratch_operands = 0 : i64, tpu.core_type = #tpu.core_type<tc>} {
    %c0 = arith.constant 0 : index
    %c0_0 = arith.constant 0 : index
    %0 = vector.load %arg0[%c0, %c0_0] : memref<2x1024xbf16, #tpu.memory_space<vmem>>, vector<2x1024xbf16>
    %c0_1 = arith.constant 0 : index
    %c0_2 = arith.constant 0 : index
    %1 = vector.load %arg1[%c0_1, %c0_2] : memref<1024x256xbf16, #tpu.memory_space<vmem>>, vector<1024x256xbf16>
    %cst = arith.constant dense<0.000000e+00> : vector<2x256xf32>
    %2 = tpu.matmul %0, %1, %cst {dimension_numbers = #tpu.dot_dimension_numbers<[1], [0], [0], [1], [0, 0, 1, 1], [], []>} : vector<2x1024xbf16>, vector<1024x256xbf16>, vector<2x256xf32> -> vector<2x256xf32>
    %c0_3 = arith.constant 0 : index
    %c0_4 = arith.constant 0 : index
    %3 = vector.load %arg2[%c0_3, %c0_4] : memref<1x256xf32, #tpu.memory_space<vmem>>, vector<1x256xf32>
    %4 = vector.broadcast %3 : vector<1x256xf32> to vector<2x256xf32>
    %5 = arith.addf %2, %4 : vector<2x256xf32>
    %cst_5 = arith.constant 0.000000e+00 : f32
    %6 = vector.broadcast %cst_5 : f32 to vector<2x256xf32>
    %7 = arith.maximumf %5, %6 : vector<2x256xf32>
    %8 = arith.truncf %7 : vector<2x256xf32> to vector<2x256xbf16>
    %c0_6 = arith.constant 0 : index
    %c0_7 = arith.constant 0 : index
    %9 = vector.load %arg3[%c0_6, %c0_7] : memref<256x10xbf16, #tpu.memory_space<vmem>>, vector<256x10xbf16>
    %cst_8 = arith.constant dense<0.000000e+00> : vector<2x10xf32>
    %10 = tpu.matmul %8, %9, %cst_8 {dimension_numbers = #tpu.dot_dimension_numbers<[1], [0], [0], [1], [0, 0, 1, 1], [], []>} : vector<2x256xbf16>, vector<256x10xbf16>, vector<2x10xf32> -> vector<2x10xf32>
    %c0_9 = arith.constant 0 : index
    %c0_10 = arith.constant 0 : index
    %11 = vector.load %arg4[%c0_9, %c0_10] : memref<1x10xf32, #tpu.memory_space<vmem>>, vector<1x10xf32>
    %12 = vector.broadcast %11 : vector<1x10xf32> to vector<2x10xf32>
    %13 = arith.addf %10, %12 : vector<2x10xf32>
    %c0_11 = arith.constant 0 : index
    %c0_12 = arith.constant 0 : index
    %14 = vector.load %arg5[%c0_11, %c0_12] : memref<2x10xf32, #tpu.memory_space<vmem>>, vector<2x10xf32>
    tpu.vector_store %arg5[%c0_11, %c0_12], %13 {strides = array<i32>} : memref<2x10xf32, #tpu.memory_space<vmem>>, vector<2x10xf32>,
    return
  }
}

</mosaic_0001>

<llo_original>
// kernel: mynet_forward.5
$region0: #{mynet_forward.5}
  #allocation0 [shape = 'u32[]', space=smem, size = 0x4, offset = 0x4, fixed_abs, tag = 'smem constant byte address 0x4 - core index']
  #allocation1 [shape = 'u32[72,128]{1,0:T(1,128)}', space=vmem, size = 0x9000, scoped, tag = 'internal scratch']
  %s0 = inlined_call_operand.vmem [shape: bf16[4,512,72], index: 0, kind: input, shape index: {}]
  %s1 = inlined_call_operand.vmem [shape: bf16[72,32], index: 1, kind: input, shape index: {}]
  %s2 = inlined_call_operand.vmem [shape: f32[1,32], index: 2, kind: input, shape index: {}]
  %s3 = inlined_call_operand.vmem [shape: f32[1,32], index: 3, kind: input, shape index: {}]
  %s4 = inlined_call_operand.vmem [shape: f32[1,32], index: 4, kind: input, shape index: {}]
  %s5 = inlined_call_operand.vmem [shape: bf16[512,32], index: 5, kind: output, shape index: {}]
  %s6 = sld [smem:[#allocation0]]
  $region94: #{mynet_forward.5} parent=0
    _
  %s8 = ssub.s32 1, %s6
  %s9 = scalar_select 0, %s8, %s6
  $region1: #{mynet_forward.5} parent=0
    #allocation2 [shape = 'u8[524288]{0}', space=vmem, size = 0x80000, scoped, tag = 'input window, operand 0']
    loop: start=0, step=1, limit=4
    $region2: #{mynet_forward.5} parent=1 // loop_pre_header
      _
    $region3: #{mynet_forward.5} parent=1 // loop_header
      %s11 = sphi 0, %s15
      %p12 = scmp.ge.s32.totalorder %s11, 4
      %s21 = sphi 0, %s23
      %s24 = sphi 0, %s21
      %s25 = sphi 0, %s24
      %s41 = sphi 0, %s25
      %s45 = sphi 0, %s45
      %s47 = sphi 0, %s45
      %s48 = sphi 0, %s47
      %s62 = sphi 0, %s48
      %s66 = sphi 0, %s66
      %s68 = sphi 0, %s66
      %s69 = sphi 0, %s68
      %s83 = sphi 0, %s69
      %s87 = sphi 0, %s87
      %s89 = sphi 0, %s87
      %s90 = sphi 0, %s89
      %s104 = sphi 0, %s90
      %s108 = sphi 0, %s108
      %s110 = sphi 0, %s108
      %s111 = sphi 0, %s110
      %s125 = sphi 0, %s111
      %s131 = sphi 0, %s133
      %s134 = sphi 0, %s131
      %s135 = sphi 0, %s134
      %s151 = sphi 0, %s135
    $region4: #{mynet_forward.5} parent=1 // loop_header_branch
      %14 = sbr.rel (%p12) target = $region8
    $region5: #{mynet_forward.5} parent=1 // loop_body
      %s16 = ssub.s32 %s11, 1
      %s17 = ssub.s32 %s11, 2
      %s18 = sadd.s32 %s11, 1
      %s19 = ssub.s32 %s11, %s18
      %p20 = scmp.eq.s32.totalorder %s19, 0
      %s22 = sadd.s32 %s21, 1
      %s23 = scalar_select %p20, %s21, %s22
      %p26 = pneg %p20
      %p27 = scmp.eq.s32.totalorder %s11, 1
      %p28 = por %p26, %p27
      %p29 = scmp.ne.s32.totalorder %s21, %s24
      %p30 = scmp.eq.s32.totalorder %s11, 0
      %p31 = por %p29, %p30
      %p32 = scmp.ne.s32.totalorder %s21, %s24
      %p33 = scmp.eq.s32.totalorder %s16, 1
      %p34 = por %p32, %p33
      %p35 = scmp.ne.s32.totalorder %s24, %s25
      %p36 = scmp.eq.s32.totalorder %s16, 0
      %p37 = por %p35, %p36
      %p38 = scmp.ne.s32.totalorder %s24, %s25
      %p39 = scmp.eq.s32.totalorder %s17, 1
      %p40 = por %p38, %p39
      %p42 = scmp.ne.s32.totalorder %s25, %s41
      %p43 = scmp.eq.s32.totalorder %s17, 0
      %p44 = por %p42, %p43
      %s46 = sadd.s32 %s45, 1
      %p49 = scmp.eq.s32.totalorder %s11, 1
      %p50 = scmp.ne.s32.totalorder %s45, %s47
      %p51 = scmp.eq.s32.totalorder %s11, 0
      %p52 = por %p50, %p51
      %p53 = scmp.ne.s32.totalorder %s45, %s47
      %p54 = scmp.eq.s32.totalorder %s16, 1
      %p55 = por %p53, %p54
      %p56 = scmp.ne.s32.totalorder %s47, %s48
      %p57 = scmp.eq.s32.totalorder %s16, 0
      %p58 = por %p56, %p57
      %p59 = scmp.ne.s32.totalorder %s47, %s48
      %p60 = scmp.eq.s32.totalorder %s17, 1
      %p61 = por %p59, %p60
      %p63 = scmp.ne.s32.totalorder %s48, %s62
      %p64 = scmp.eq.s32.totalorder %s17, 0
      %p65 = por %p63, %p64
      %s67 = sadd.s32 %s66, 1
      %p70 = scmp.eq.s32.totalorder %s11, 1
      %p71 = scmp.ne.s32.totalorder %s66, %s68
      %p72 = scmp.eq.s32.totalorder %s11, 0
      %p73 = por %p71, %p72
      %p74 = scmp.ne.s32.totalorder %s66, %s68
      %p75 = scmp.eq.s32.totalorder %s16, 1
      %p76 = por %p74, %p75
      %p77 = scmp.ne.s32.totalorder %s68, %s69
      %p78 = scmp.eq.s32.totalorder %s16, 0
      %p79 = por %p77, %p78
      %p80 = scmp.ne.s32.totalorder %s68, %s69
      %p81 = scmp.eq.s32.totalorder %s17, 1
      %p82 = por %p80, %p81
      %p84 = scmp.ne.s32.totalorder %s69, %s83
      %p85 = scmp.eq.s32.totalorder %s17, 0
      %p86 = por %p84, %p85
      %s88 = sadd.s32 %s87, 1
      %p91 = scmp.eq.s32.totalorder %s11, 1
      %p92 = scmp.ne.s32.totalorder %s87, %s89
      %p93 = scmp.eq.s32.totalorder %s11, 0
      %p94 = por %p92, %p93
      %p95 = scmp.ne.s32.totalorder %s87, %s89
      %p96 = scmp.eq.s32.totalorder %s16, 1
      %p97 = por %p95, %p96
      %p98 = scmp.ne.s32.totalorder %s89, %s90
      %p99 = scmp.eq.s32.totalorder %s16, 0
      %p100 = por %p98, %p99
      %p101 = scmp.ne.s32.totalorder %s89, %s90
      %p102 = scmp.eq.s32.totalorder %s17, 1
      %p103 = por %p101, %p102
      %p105 = scmp.ne.s32.totalorder %s90, %s104
      %p106 = scmp.eq.s32.totalorder %s17, 0
      %p107 = por %p105, %p106
      %s109 = sadd.s32 %s108, 1
      %p112 = scmp.eq.s32.totalorder %s11, 1
      %p113 = scmp.ne.s32.totalorder %s108, %s110
      %p114 = scmp.eq.s32.totalorder %s11, 0
      %p115 = por %p113, %p114
      %p116 = scmp.ne.s32.totalorder %s108, %s110
      %p117 = scmp.eq.s32.totalorder %s16, 1
      %p118 = por %p116, %p117
      %p119 = scmp.ne.s32.totalorder %s110, %s111
      %p120 = scmp.eq.s32.totalorder %s16, 0
      %p121 = por %p119, %p120
      %p122 = scmp.ne.s32.totalorder %s110, %s111
      %p123 = scmp.eq.s32.totalorder %s17, 1
      %p124 = por %p122, %p123
      %p126 = scmp.ne.s32.totalorder %s111, %s125
      %p127 = scmp.eq.s32.totalorder %s17, 0
      %p128 = por %p126, %p127
      %s129 = ssub.s32 %s11, %s18
      %p130 = scmp.eq.s32.totalorder %s129, 0
      %s132 = sadd.s32 %s131, 1
      %s133 = scalar_select %p130, %s131, %s132
      %p136 = pneg %p130
      %p137 = scmp.eq.s32.totalorder %s11, 1
      %p138 = por %p136, %p137
      %p139 = scmp.ne.s32.totalorder %s131, %s134
      %p140 = scmp.eq.s32.totalorder %s11, 0
      %p141 = por %p139, %p140
      %p142 = scmp.ne.s32.totalorder %s131, %s134
      %p143 = scmp.eq.s32.totalorder %s16, 1
      %p144 = por %p142, %p143
      %p145 = scmp.ne.s32.totalorder %s134, %s135
      %p146 = scmp.eq.s32.totalorder %s16, 0
      %p147 = por %p145, %p146
      %p148 = scmp.ne.s32.totalorder %s134, %s135
      %p149 = scmp.eq.s32.totalorder %s17, 1
      %p150 = por %p148, %p149
      %p152 = scmp.ne.s32.totalorder %s135, %s151
      %p153 = scmp.eq.s32.totalorder %s17, 0
      %p154 = por %p152, %p153
      %p155 = scmp.le.s32.totalorder 1, %s11
      %p156 = scmp.lt.s32.totalorder %s11, 3
      %p157 = pnand %p155, %p156
      %p158 = pneg %p157
      // Predicated region
      $region9: #{mynet_forward.5} parent=5 // pred_check
        _
      $region10: #{mynet_forward.5} parent=5 // pred_check_branch
        %160 = sbr.rel (%p157) target = $region12
      $region11: #{mynet_forward.5} parent=5 // pred_region
        %s161 = ssub.s32 %s11, 1
        // Predicated region
        $region13: #{mynet_forward.5} parent=11 // pred_check
          %p162 = pneg %p58
        $region14: #{mynet_forward.5} parent=11 // pred_check_branch
          %164 = sbr.rel (%p162) target = $region16
        $region15: #{mynet_forward.5} parent=11 // pred_region
          _
        $region16: #{mynet_forward.5} parent=11 // pred_fallthru
          _
        // Predicated region
        $region17: #{mynet_forward.5} parent=11 // pred_check
          %p165 = pneg %p79
        $region18: #{mynet_forward.5} parent=11 // pred_check_branch
          %167 = sbr.rel (%p165) target = $region20
        $region19: #{mynet_forward.5} parent=11 // pred_region
          _
        $region20: #{mynet_forward.5} parent=11 // pred_fallthru
          _
        // Predicated region
        $region21: #{mynet_forward.5} parent=11 // pred_check
          %p168 = pneg %p100
        $region22: #{mynet_forward.5} parent=11 // pred_check_branch
          %170 = sbr.rel (%p168) target = $region24
        $region23: #{mynet_forward.5} parent=11 // pred_region
          _
        $region24: #{mynet_forward.5} parent=11 // pred_fallthru
          _
        // Predicated region
        $region25: #{mynet_forward.5} parent=11 // pred_check
          %p171 = pneg %p121
        $region26: #{mynet_forward.5} parent=11 // pred_check_branch
          %173 = sbr.rel (%p171) target = $region28
        $region27: #{mynet_forward.5} parent=11 // pred_region
          _
        $region28: #{mynet_forward.5} parent=11 // pred_fallthru
          _
      $region12: #{mynet_forward.5} parent=5 // pred_fallthru
        _
      %p174 = scmp.lt.s32.totalorder %s11, 2
      // Predicated region
      $region29: #{mynet_forward.5} parent=5 // pred_check
        %p175 = pneg %p174
      $region30: #{mynet_forward.5} parent=5 // pred_check_branch
        %177 = sbr.rel (%p175) target = $region32
      $region31: #{mynet_forward.5} parent=5 // pred_region
        // Predicated region
        $region33: #{mynet_forward.5} parent=31 // pred_check
          %p178 = pneg %p31
        $region34: #{mynet_forward.5} parent=31 // pred_check_branch
          %180 = sbr.rel (%p178) target = $region36
        $region35: #{mynet_forward.5} parent=31 // pred_region
          %s181 = sand.u32 %s21, 1
          %s182 = sand.u32 %s21, 1
          %s183 = smul.addr %s182, 512
          %s184 = scalar_lea.vmem [#allocation2], %s183
          %s185 = smul.u32 32, %s11
          %s186 = smul.addr %s185, 4
          %s187 = scalar_lea.vmem %s0, %s186
          // Predicated region
          $region37: #{mynet_forward.5} parent=35 // pred_check
            _
          $region38: #{mynet_forward.5} parent=35 // pred_check_branch
            %189 = sbr.rel (0) target = $region40
          $region39: #{mynet_forward.5} parent=35 // pred_region
            // Predicated region
            $region41: #{mynet_forward.5} parent=39 // pred_check
              _
            $region42: #{mynet_forward.5} parent=39 // pred_check_branch
              %191 = sbr.rel target = $region44
            $region43: #{mynet_forward.5} parent=39 // pred_region
              // Predicated region
              $region56: #{mynet_forward.5} parent=43 // pred_check
                _
              $region57: #{mynet_forward.5} parent=43 // pred_check_branch
                %461 = sbr.rel (0) target = $region59
              $region58: #{mynet_forward.5} parent=43 // pred_region
                loop: start=0, step=1, limit=1
                $region60: #{mynet_forward.5} parent=58 // loop_pre_header
                  _
                $region61: #{mynet_forward.5} parent=58 // loop_header
                  %s463 = sphi 0, %s467
                  %p464 = scmp.ge.s32.totalorder %s463, 1
                  %s468 = sphi %s187, %s187
                  %s469 = sphi %s184, %s184
                $region62: #{mynet_forward.5} parent=58 // loop_header_branch
                  %466 = sbr.rel (%p464) target = $region66
                $region63: #{mynet_forward.5} parent=58 // loop_body
                  _
                $region64: #{mynet_forward.5} parent=58 // loop_footer
                  %s467 = sadd.s32 1, %s463
                $region65: #{mynet_forward.5} parent=58 // loop_footer_branch
                  %462 = sbr.rel target = $region61
                $region66: #{mynet_forward.5} parent=58 // loop_exit
                  _
                %s471 = ssub.s32 16, 1
                loop: start=0, step=1, limit=1
                $region67: #{mynet_forward.5} parent=58 // loop_pre_header
                  _
                $region68: #{mynet_forward.5} parent=58 // loop_header
                  %s473 = sphi 0, %s477
                  %p474 = scmp.ge.s32.totalorder %s473, 1
                  %s478 = sphi %s187, %s187
                  %s479 = sphi %s184, %s184
                $region69: #{mynet_forward.5} parent=58 // loop_header_branch
                  %476 = sbr.rel (%p474) target = $region73
                $region70: #{mynet_forward.5} parent=58 // loop_body
                  %v480 = vld [vmem:[%s478] sm:%s471]
                  %481 = vst [vmem:[%s479] sm:%s471] %v480
                  %v482 = vld [vmem:[%s478 + $0x4] sm:%s471]
                  %483 = vst [vmem:[%s479 + $0x4] sm:%s471] %v482
                  %v484 = vld [vmem:[%s478 + $0x8] sm:%s471]
                  %485 = vst [vmem:[%s479 + $0x8] sm:%s471] %v484
                  %v486 = vld [vmem:[%s478 + $0xc] sm:%s471]
                  %487 = vst [vmem:[%s479 + $0xc] sm:%s471] %v486
                  %v488 = vld [vmem:[%s478 + $0x10] sm:%s471]
                  %489 = vst [vmem:[%s479 + $0x10] sm:%s471] %v488
                  %v490 = vld [vmem:[%s478 + $0x14] sm:%s471]
                  %491 = vst [vmem:[%s479 + $0x14] sm:%s471] %v490
                  %v492 = vld [vmem:[%s478 + $0x18] sm:%s471]
                  %493 = vst [vmem:[%s479 + $0x18] sm:%s471] %v492
                  %v494 = vld [vmem:[%s478 + $0x1c] sm:%s471]
                  %495 = vst [vmem:[%s479 + $0x1c] sm:%s471] %v494
                  %v496 = vld [vmem:[%s478 + $0x20] sm:%s471]
                  %497 = vst [vmem:[%s479 + $0x20] sm:%s471] %v496
                  %v498 = vld [vmem:[%s478 + $0x24] sm:%s471]
                  %499 = vst [vmem:[%s479 + $0x24] sm:%s471] %v498
                  %v500 = vld [vmem:[%s478 + $0x28] sm:%s471]
                  %501 = vst [vmem:[%s479 + $0x28] sm:%s471] %v500
                  %v502 = vld [vmem:[%s478 + $0x2c] sm:%s471]
                  %503 = vst [vmem:[%s479 + $0x2c] sm:%s471] %v502
                  %v504 = vld [vmem:[%s478 + $0x30] sm:%s471]
                  %505 = vst [vmem:[%s479 + $0x30] sm:%s471] %v504
                  %v506 = vld [vmem:[%s478 + $0x34] sm:%s471]
                  %507 = vst [vmem:[%s479 + $0x34] sm:%s471] %v506
                  %v508 = vld [vmem:[%s478 + $0x38] sm:%s471]
                  %509 = vst [vmem:[%s479 + $0x38] sm:%s471] %v508
                  %v510 = vld [vmem:[%s478 + $0x3c] sm:%s471]
                  %511 = vst [vmem:[%s479 + $0x3c] sm:%s471] %v510
                  %v512 = vld [vmem:[%s478 + $0x40] sm:%s471]
                  %513 = vst [vmem:[%s479 + $0x40] sm:%s471] %v512
                  %v514 = vld [vmem:[%s478 + $0x44] sm:%s471]
                  %515 = vst [vmem:[%s479 + $0x44] sm:%s471] %v514
                  %v516 = vld [vmem:[%s478 + $0x48] sm:%s471]
                  %517 = vst [vmem:[%s479 + $0x48] sm:%s471] %v516
                  %v518 = vld [vmem:[%s478 + $0x4c] sm:%s471]
                  %519 = vst [vmem:[%s479 + $0x4c] sm:%s471] %v518
                  %v520 = vld [vmem:[%s478 + $0x50] sm:%s471]
                  %521 = vst [vmem:[%s479 + $0x50] sm:%s471] %v520
                  %v522 = vld [vmem:[%s478 + $0x54] sm:%s471]
                  %523 = vst [vmem:[%s479 + $0x54] sm:%s471] %v522
                  %v524 = vld [vmem:[%s478 + $0x58] sm:%s471]
                  %525 = vst [vmem:[%s479 + $0x58] sm:%s471] %v524
                  %v526 = vld [vmem:[%s478 + $0x5c] sm:%s471]
                  %527 = vst [vmem:[%s479 + $0x5c] sm:%s471] %v526
                  %v528 = vld [vmem:[%s478 + $0x60] sm:%s471]
                  %529 = vst [vmem:[%s479 + $0x60] sm:%s471] %v528
                  %v530 = vld [vmem:[%s478 + $0x64] sm:%s471]
                  %531 = vst [vmem:[%s479 + $0x64] sm:%s471] %v530
                  %v532 = vld [vmem:[%s478 + $0x68] sm:%s471]
                  %533 = vst [vmem:[%s479 + $0x68] sm:%s471] %v532
                  %v534 = vld [vmem:[%s478 + $0x6c] sm:%s471]
                  %535 = vst [vmem:[%s479 + $0x6c] sm:%s471] %v534
                  %v536 = vld [vmem:[%s478 + $0x70] sm:%s471]
                  %537 = vst [vmem:[%s479 + $0x70] sm:%s471] %v536
                  %v538 = vld [vmem:[%s478 + $0x74] sm:%s471]
                  %539 = vst [vmem:[%s479 + $0x74] sm:%s471] %v538
                  %v540 = vld [vmem:[%s478 + $0x78] sm:%s471]
                  %541 = vst [vmem:[%s479 + $0x78] sm:%s471] %v540
                  %v542 = vld [vmem:[%s478 + $0x7c] sm:%s471]
                  %543 = vst [vmem:[%s479 + $0x7c] sm:%s471] %v542
                  %v544 = vld [vmem:[%s478 + $0x100] sm:%s471]
                  %545 = vst [vmem:[%s479 + $0x80] sm:%s471] %v544
                  %v546 = vld [vmem:[%s478 + $0x104] sm:%s471]
                  %547 = vst [vmem:[%s479 + $0x84] sm:%s471] %v546
                  %v548 = vld [vmem:[%s478 + $0x108] sm:%s471]
                  %549 = vst [vmem:[%s479 + $0x88] sm:%s471] %v548
                  %v550 = vld [vmem:[%s478 + $0x10c] sm:%s471]
                  %551 = vst [vmem:[%s479 + $0x8c] sm:%s471] %v550
                  %v552 = vld [vmem:[%s478 + $0x110] sm:%s471]
                  %553 = vst [vmem:[%s479 + $0x90] sm:%s471] %v552
                  %v554 = vld [vmem:[%s478 + $0x114] sm:%s471]
                  %555 = vst [vmem:[%s479 + $0x94] sm:%s471] %v554
                  %v556 = vld [vmem:[%s478 + $0x118] sm:%s471]
                  %557 = vst [vmem:[%s479 + $0x98] sm:%s471] %v556
                  %v558 = vld [vmem:[%s478 + $0x11c] sm:%s471]
                  %559 = vst [vmem:[%s479 + $0x9c] sm:%s471] %v558
                  %v560 = vld [vmem:[%s478 + $0x120] sm:%s471]
                  %561 = vst [vmem:[%s479 + $0xa0] sm:%s471] %v560
                  %v562 = vld [vmem:[%s478 + $0x124] sm:%s471]
                  %563 = vst [vmem:[%s479 + $0xa4] sm:%s471] %v562
                  %v564 = vld [vmem:[%s478 + $0x128] sm:%s471]
                  %565 = vst [vmem:[%s479 + $0xa8] sm:%s471] %v564
                  %v566 = vld [vmem:[%s478 + $0x12c] sm:%s471]
                  %567 = vst [vmem:[%s479 + $0xac] sm:%s471] %v566
                  %v568 = vld [vmem:[%s478 + $0x130] sm:%s471]
                  %569 = vst [vmem:[%s479 + $0xb0] sm:%s471] %v568
                  %v570 = vld [vmem:[%s478 + $0x134] sm:%s471]
                  %571 = vst [vmem:[%s479 + $0xb4] sm:%s471] %v570
                  %v572 = vld [vmem:[%s478 + $0x138] sm:%s471]
                  %573 = vst [vmem:[%s479 + $0xb8] sm:%s471] %v572
                  %v574 = vld [vmem:[%s478 + $0x13c] sm:%s471]
                  %575 = vst [vmem:[%s479 + $0xbc] sm:%s471] %v574
                  %v576 = vld [vmem:[%s478 + $0x140] sm:%s471]
                  %577 = vst [vmem:[%s479 + $0xc0] sm:%s471] %v576
                  %v578 = vld [vmem:[%s478 + $0x144] sm:%s471]
                  %579 = vst [vmem:[%s479 + $0xc4] sm:%s471] %v578
                  %v580 = vld [vmem:[%s478 + $0x148] sm:%s471]
                  %581 = vst [vmem:[%s479 + $0xc8] sm:%s471] %v580
                  %v582 = vld [vmem:[%s478 + $0x14c] sm:%s471]
                  %583 = vst [vmem:[%s479 + $0xcc] sm:%s471] %v582
                  %v584 = vld [vmem:[%s478 + $0x150] sm:%s471]
                  %585 = vst [vmem:[%s479 + $0xd0] sm:%s471] %v584
                  %v586 = vld [vmem:[%s478 + $0x154] sm:%s471]
                  %587 = vst [vmem:[%s479 + $0xd4] sm:%s471] %v586
                  %v588 = vld [vmem:[%s478 + $0x158] sm:%s471]
                  %589 = vst [vmem:[%s479 + $0xd8] sm:%s471] %v588
                  %v590 = vld [vmem:[%s478 + $0x15c] sm:%s471]
                  %591 = vst [vmem:[%s479 + $0xdc] sm:%s471] %v590
                  %v592 = vld [vmem:[%s478 + $0x160] sm:%s471]
                  %593 = vst [vmem:[%s479 + $0xe0] sm:%s471] %v592
                  %v594 = vld [vmem:[%s478 + $0x164] sm:%s471]
                  %595 = vst [vmem:[%s479 + $0xe4] sm:%s471] %v594
                  %v596 = vld [vmem:[%s478 + $0x168] sm:%s471]
                  %597 = vst [vmem:[%s479 + $0xe8] sm:%s471] %v596
                  %v598 = vld [vmem:[%s478 + $0x16c] sm:%s471]
                  %599 = vst [vmem:[%s479 + $0xec] sm:%s471] %v598
                  %v600 = vld [vmem:[%s478 + $0x170] sm:%s471]
                  %601 = vst [vmem:[%s479 + $0xf0] sm:%s471] %v600
                  %v602 = vld [vmem:[%s478 + $0x174] sm:%s471]
                  %603 = vst [vmem:[%s479 + $0xf4] sm:%s471] %v602
                  %v604 = vld [vmem:[%s478 + $0x178] sm:%s471]
                  %605 = vst [vmem:[%s479 + $0xf8] sm:%s471] %v604
                  %v606 = vld [vmem:[%s478 + $0x17c] sm:%s471]
                  %607 = vst [vmem:[%s479 + $0xfc] sm:%s471] %v606
                  %v608 = vld [vmem:[%s478 + $0x200] sm:%s471]
                  %609 = vst [vmem:[%s479 + $0x100] sm:%s471] %v608
                  %v610 = vld [vmem:[%s478 + $0x204] sm:%s471]
                  %611 = vst [vmem:[%s479 + $0x104] sm:%s471] %v610
                  %v612 = vld [vmem:[%s478 + $0x208] sm:%s471]
                  %613 = vst [vmem:[%s479 + $0x108] sm:%s471] %v612
                  %v614 = vld [vmem:[%s478 + $0x20c] sm:%s471]
                  %615 = vst [vmem:[%s479 + $0x10c] sm:%s471] %v614
                  %v616 = vld [vmem:[%s478 + $0x210] sm:%s471]
                  %617 = vst [vmem:[%s479 + $0x110] sm:%s471] %v616
                  %v618 = vld [vmem:[%s478 + $0x214] sm:%s471]
                  %619 = vst [vmem:[%s479 + $0x114] sm:%s471] %v618
                  %v620 = vld [vmem:[%s478 + $0x218] sm:%s471]
                  %621 = vst [vmem:[%s479 + $0x118] sm:%s471] %v620
                  %v622 = vld [vmem:[%s478 + $0x21c] sm:%s471]
                  %623 = vst [vmem:[%s479 + $0x11c] sm:%s471] %v622
                  %v624 = vld [vmem:[%s478 + $0x220] sm:%s471]
                  %625 = vst [vmem:[%s479 + $0x120] sm:%s471] %v624
                  %v626 = vld [vmem:[%s478 + $0x224] sm:%s471]
                  %627 = vst [vmem:[%s479 + $0x124] sm:%s471] %v626
                  %v628 = vld [vmem:[%s478 + $0x228] sm:%s471]
                  %629 = vst [vmem:[%s479 + $0x128] sm:%s471] %v628
                  %v630 = vld [vmem:[%s478 + $0x22c] sm:%s471]
                  %631 = vst [vmem:[%s479 + $0x12c] sm:%s471] %v630
                  %v632 = vld [vmem:[%s478 + $0x230] sm:%s471]
                  %633 = vst [vmem:[%s479 + $0x130] sm:%s471] %v632
                  %v634 = vld [vmem:[%s478 + $0x234] sm:%s471]
                  %635 = vst [vmem:[%s479 + $0x134] sm:%s471] %v634
                  %v636 = vld [vmem:[%s478 + $0x238] sm:%s471]
                  %637 = vst [vmem:[%s479 + $0x138] sm:%s471] %v636
                  %v638 = vld [vmem:[%s478 + $0x23c] sm:%s471]
                  %639 = vst [vmem:[%s479 + $0x13c] sm:%s471] %v638
                  %v640 = vld [vmem:[%s478 + $0x240] sm:%s471]
                  %641 = vst [vmem:[%s479 + $0x140] sm:%s471] %v640
                  %v642 = vld [vmem:[%s478 + $0x244] sm:%s471]
                  %643 = vst [vmem:[%s479 + $0x144] sm:%s471] %v642
                  %v644 = vld [vmem:[%s478 + $0x248] sm:%s471]
                  %645 = vst [vmem:[%s479 + $0x148] sm:%s471] %v644
                  %v646 = vld [vmem:[%s478 + $0x24c] sm:%s471]
                  %647 = vst [vmem:[%s479 + $0x14c] sm:%s471] %v646
                  %v648 = vld [vmem:[%s478 + $0x250] sm:%s471]
                  %649 = vst [vmem:[%s479 + $0x150] sm:%s471] %v648
                  %v650 = vld [vmem:[%s478 + $0x254] sm:%s471]
                  %651 = vst [vmem:[%s479 + $0x154] sm:%s471] %v650
                  %v652 = vld [vmem:[%s478 + $0x258] sm:%s471]
                  %653 = vst [vmem:[%s479 + $0x158] sm:%s471] %v652
                  %v654 = vld [vmem:[%s478 + $0x25c] sm:%s471]
                  %655 = vst [vmem:[%s479 + $0x15c] sm:%s471] %v654
                  %v656 = vld [vmem:[%s478 + $0x260] sm:%s471]
                  %657 = vst [vmem:[%s479 + $0x160] sm:%s471] %v656
                  %v658 = vld [vmem:[%s478 + $0x264] sm:%s471]
                  %659 = vst [vmem:[%s479 + $0x164] sm:%s471] %v658
                  %v660 = vld [vmem:[%s478 + $0x268] sm:%s471]
                  %661 = vst [vmem:[%s479 + $0x168] sm:%s471] %v660
                  %v662 = vld [vmem:[%s478 + $0x26c] sm:%s471]
                  %663 = vst [vmem:[%s479 + $0x16c] sm:%s471] %v662
                  %v664 = vld [vmem:[%s478 + $0x270] sm:%s471]
                  %665 = vst [vmem:[%s479 + $0x170] sm:%s471] %v664
                  %v666 = vld [vmem:[%s478 + $0x274] sm:%s471]
                  %667 = vst [vmem:[%s479 + $0x174] sm:%s471] %v666
                  %v668 = vld [vmem:[%s478 + $0x278] sm:%s471]
                  %669 = vst [vmem:[%s479 + $0x178] sm:%s471] %v668
                  %v670 = vld [vmem:[%s478 + $0x27c] sm:%s471]
                  %671 = vst [vmem:[%s479 + $0x17c] sm:%s471] %v670
                  %v672 = vld [vmem:[%s478 + $0x300] sm:%s471]
                  %673 = vst [vmem:[%s479 + $0x180] sm:%s471] %v672
                  %v674 = vld [vmem:[%s478 + $0x304] sm:%s471]
                  %675 = vst [vmem:[%s479 + $0x184] sm:%s471] %v674
                  %v676 = vld [vmem:[%s478 + $0x308] sm:%s471]
                  %677 = vst [vmem:[%s479 + $0x188] sm:%s471] %v676
                  %v678 = vld [vmem:[%s478 + $0x30c] sm:%s471]
                  %679 = vst [vmem:[%s479 + $0x18c] sm:%s471] %v678
                  %v680 = vld [vmem:[%s478 + $0x310] sm:%s471]
                  %681 = vst [vmem:[%s479 + $0x190] sm:%s471] %v680
                  %v682 = vld [vmem:[%s478 + $0x314] sm:%s471]
                  %683 = vst [vmem:[%s479 + $0x194] sm:%s471] %v682
                  %v684 = vld [vmem:[%s478 + $0x318] sm:%s471]
                  %685 = vst [vmem:[%s479 + $0x198] sm:%s471] %v684
                  %v686 = vld [vmem:[%s478 + $0x31c] sm:%s471]
                  %687 = vst [vmem:[%s479 + $0x19c] sm:%s471] %v686
                  %v688 = vld [vmem:[%s478 + $0x320] sm:%s471]
                  %689 = vst [vmem:[%s479 + $0x1a0] sm:%s471] %v688
                  %v690 = vld [vmem:[%s478 + $0x324] sm:%s471]
                  %691 = vst [vmem:[%s479 + $0x1a4] sm:%s471] %v690
                  %v692 = vld [vmem:[%s478 + $0x328] sm:%s471]
                  %693 = vst [vmem:[%s479 + $0x1a8] sm:%s471] %v692
                  %v694 = vld [vmem:[%s478 + $0x32c] sm:%s471]
                  %695 = vst [vmem:[%s479 + $0x1ac] sm:%s471] %v694
                  %v696 = vld [vmem:[%s478 + $0x330] sm:%s471]
                  %697 = vst [vmem:[%s479 + $0x1b0] sm:%s471] %v696
                  %v698 = vld [vmem:[%s478 + $0x334] sm:%s471]
                  %699 = vst [vmem:[%s479 + $0x1b4] sm:%s471] %v698
                  %v700 = vld [vmem:[%s478 + $0x338] sm:%s471]
                  %701 = vst [vmem:[%s479 + $0x1b8] sm:%s471] %v700
                  %v702 = vld [vmem:[%s478 + $0x33c] sm:%s471]
                  %703 = vst [vmem:[%s479 + $0x1bc] sm:%s471] %v702
                  %v704 = vld [vmem:[%s478 + $0x340] sm:%s471]
                  %705 = vst [vmem:[%s479 + $0x1c0] sm:%s471] %v704
                  %v706 = vld [vmem:[%s478 + $0x344] sm:%s471]
                  %707 = vst [vmem:[%s479 + $0x1c4] sm:%s471] %v706
                  %v708 = vld [vmem:[%s478 + $0x348] sm:%s471]
                  %709 = vst [vmem:[%s479 + $0x1c8] sm:%s471] %v708
                  %v710 = vld [vmem:[%s478 + $0x34c] sm:%s471]
                  %711 = vst [vmem:[%s479 + $0x1cc] sm:%s471] %v710
                  %v712 = vld [vmem:[%s478 + $0x350] sm:%s471]
                  %713 = vst [vmem:[%s479 + $0x1d0] sm:%s471] %v712
                  %v714 = vld [vmem:[%s478 + $0x354] sm:%s471]
                  %715 = vst [vmem:[%s479 + $0x1d4] sm:%s471] %v714
                  %v716 = vld [vmem:[%s478 + $0x358] sm:%s471]
                  %717 = vst [vmem:[%s479 + $0x1d8] sm:%s471] %v716
                  %v718 = vld [vmem:[%s478 + $0x35c] sm:%s471]
                  %719 = vst [vmem:[%s479 + $0x1dc] sm:%s471] %v718
                  %v720 = vld [vmem:[%s478 + $0x360] sm:%s471]
                  %721 = vst [vmem:[%s479 + $0x1e0] sm:%s471] %v720
                  %v722 = vld [vmem:[%s478 + $0x364] sm:%s471]
                  %723 = vst [vmem:[%s479 + $0x1e4] sm:%s471] %v722
                  %v724 = vld [vmem:[%s478 + $0x368] sm:%s471]
                  %725 = vst [vmem:[%s479 + $0x1e8] sm:%s471] %v724
                  %v726 = vld [vmem:[%s478 + $0x36c] sm:%s471]
                  %727 = vst [vmem:[%s479 + $0x1ec] sm:%s471] %v726
                  %v728 = vld [vmem:[%s478 + $0x370] sm:%s471]
                  %729 = vst [vmem:[%s479 + $0x1f0] sm:%s471] %v728
                  %v730 = vld [vmem:[%s478 + $0x374] sm:%s471]
                  %731 = vst [vmem:[%s479 + $0x1f4] sm:%s471] %v730
                  %v732 = vld [vmem:[%s478 + $0x378] sm:%s471]
                  %733 = vst [vmem:[%s479 + $0x1f8] sm:%s471] %v732
                  %v734 = vld [vmem:[%s478 + $0x37c] sm:%s471]
                  %735 = vst [vmem:[%s479 + $0x1fc] sm:%s471] %v734
                $region71: #{mynet_forward.5} parent=58 // loop_footer
                  %s477 = sadd.s32 1, %s473
                $region72: #{mynet_forward.5} parent=58 // loop_footer_branch
                  %472 = sbr.rel target = $region68
                $region73: #{mynet_forward.5} parent=58 // loop_exit
                  _
              $region59: #{mynet_forward.5} parent=43 // pred_fallthru
                _
            $region44: #{mynet_forward.5} parent=39 // pred_fallthru
              _
            // Predicated region
            $region45: #{mynet_forward.5} parent=39 // pred_check
              _
            $region46: #{mynet_forward.5} parent=39 // pred_check_branch
              %193 = sbr.rel (0) target = $region48
            $region47: #{mynet_forward.5} parent=39 // pred_region
              %s195 = ssub.s32 16, 1
              loop: start=0, step=1, limit=1
              $region49: #{mynet_forward.5} parent=47 // loop_pre_header
                _
              $region50: #{mynet_forward.5} parent=47 // loop_header
                %s197 = sphi 0, %s201
                %p198 = scmp.ge.s32.totalorder %s197, 1
                %s202 = sphi %s187, %s187
                %s203 = sphi %s184, %s184
              $region51: #{mynet_forward.5} parent=47 // loop_header_branch
                %200 = sbr.rel (%p198) target = $region55
              $region52: #{mynet_forward.5} parent=47 // loop_body
                %v204 = vld [vmem:[%s202] sm:%s195]
                %205 = vst [vmem:[%s203] sm:%s195] %v204
                %v206 = vld [vmem:[%s202 + $0x4] sm:%s195]
                %207 = vst [vmem:[%s203 + $0x4] sm:%s195] %v206
                %v208 = vld [vmem:[%s202 + $0x8] sm:%s195]
                %209 = vst [vmem:[%s203 + $0x8] sm:%s195] %v208
                %v210 = vld [vmem:[%s202 + $0xc] sm:%s195]
                %211 = vst [vmem:[%s203 + $0xc] sm:%s195] %v210
                %v212 = vld [vmem:[%s202 + $0x10] sm:%s195]
                %213 = vst [vmem:[%s203 + $0x10] sm:%s195] %v212
                %v214 = vld [vmem:[%s202 + $0x14] sm:%s195]
                %215 = vst [vmem:[%s203 + $0x14] sm:%s195] %v214
                %v216 = vld [vmem:[%s202 + $0x18] sm:%s195]
                %217 = vst [vmem:[%s203 + $0x18] sm:%s195] %v216
                %v218 = vld [vmem:[%s202 + $0x1c] sm:%s195]
                %219 = vst [vmem:[%s203 + $0x1c] sm:%s195] %v218
                %v220 = vld [vmem:[%s202 + $0x20] sm:%s195]
                %221 = vst [vmem:[%s203 + $0x20] sm:%s195] %v220
                %v222 = vld [vmem:[%s202 + $0x24] sm:%s195]
                %223 = vst [vmem:[%s203 + $0x24] sm:%s195] %v222
                %v224 = vld [vmem:[%s202 + $0x28] sm:%s195]
                %225 = vst [vmem:[%s203 + $0x28] sm:%s195] %v224
                %v226 = vld [vmem:[%s202 + $0x2c] sm:%s195]
                %227 = vst [vmem:[%s203 + $0x2c] sm:%s195] %v226
                %v228 = vld [vmem:[%s202 + $0x30] sm:%s195]
                %229 = vst [vmem:[%s203 + $0x30] sm:%s195] %v228
                %v230 = vld [vmem:[%s202 + $0x34] sm:%s195]
                %231 = vst [vmem:[%s203 + $0x34] sm:%s195] %v230
                %v232 = vld [vmem:[%s202 + $0x38] sm:%s195]
                %233 = vst [vmem:[%s203 + $0x38] sm:%s195] %v232
                %v234 = vld [vmem:[%s202 + $0x3c] sm:%s195]
                %235 = vst [vmem:[%s203 + $0x3c] sm:%s195] %v234
                %v236 = vld [vmem:[%s202 + $0x40] sm:%s195]
                %237 = vst [vmem:[%s203 + $0x40] sm:%s195] %v236
                %v238 = vld [vmem:[%s202 + $0x44] sm:%s195]
                %239 = vst [vmem:[%s203 + $0x44] sm:%s195] %v238
                %v240 = vld [vmem:[%s202 + $0x48] sm:%s195]
                %241 = vst [vmem:[%s203 + $0x48] sm:%s195] %v240
                %v242 = vld [vmem:[%s202 + $0x4c] sm:%s195]
                %243 = vst [vmem:[%s203 + $0x4c] sm:%s195] %v242
                %v244 = vld [vmem:[%s202 + $0x50] sm:%s195]
                %245 = vst [vmem:[%s203 + $0x50] sm:%s195] %v244
                %v246 = vld [vmem:[%s202 + $0x54] sm:%s195]
                %247 = vst [vmem:[%s203 + $0x54] sm:%s195] %v246
                %v248 = vld [vmem:[%s202 + $0x58] sm:%s195]
                %249 = vst [vmem:[%s203 + $0x58] sm:%s195] %v248
                %v250 = vld [vmem:[%s202 + $0x5c] sm:%s195]
                %251 = vst [vmem:[%s203 + $0x5c] sm:%s195] %v250
                %v252 = vld [vmem:[%s202 + $0x60] sm:%s195]
                %253 = vst [vmem:[%s203 + $0x60] sm:%s195] %v252
                %v254 = vld [vmem:[%s202 + $0x64] sm:%s195]
                %255 = vst [vmem:[%s203 + $0x64] sm:%s195] %v254
                %v256 = vld [vmem:[%s202 + $0x68] sm:%s195]
                %257 = vst [vmem:[%s203 + $0x68] sm:%s195] %v256
                %v258 = vld [vmem:[%s202 + $0x6c] sm:%s195]
                %259 = vst [vmem:[%s203 + $0x6c] sm:%s195] %v258
                %v260 = vld [vmem:[%s202 + $0x70] sm:%s195]
                %261 = vst [vmem:[%s203 + $0x70] sm:%s195] %v260
                %v262 = vld [vmem:[%s202 + $0x74] sm:%s195]
                %263 = vst [vmem:[%s203 + $0x74] sm:%s195] %v262
                %v264 = vld [vmem:[%s202 + $0x78] sm:%s195]
                %265 = vst [vmem:[%s203 + $0x78] sm:%s195] %v264
                %v266 = vld [vmem:[%s202 + $0x7c] sm:%s195]
                %267 = vst [vmem:[%s203 + $0x7c] sm:%s195] %v266
                %v268 = vld [vmem:[%s202 + $0x100] sm:%s195]
                %269 = vst [vmem:[%s203 + $0x80] sm:%s195] %v268
                %v270 = vld [vmem:[%s202 + $0x104] sm:%s195]
                %271 = vst [vmem:[%s203 + $0x84] sm:%s195] %v270
                %v272 = vld [vmem:[%s202 + $0x108] sm:%s195]
                %273 = vst [vmem:[%s203 + $0x88] sm:%s195] %v272
                %v274 = vld [vmem:[%s202 + $0x10c] sm:%s195]
                %275 = vst [vmem:[%s203 + $0x8c] sm:%s195] %v274
                %v276 = vld [vmem:[%s202 + $0x110] sm:%s195]
                %277 = vst [vmem:[%s203 + $0x90] sm:%s195] %v276
                %v278 = vld [vmem:[%s202 + $0x114] sm:%s195]
                %279 = vst [vmem:[%s203 + $0x94] sm:%s195] %v278
                %v280 = vld [vmem:[%s202 + $0x118] sm:%s195]
                %281 = vst [vmem:[%s203 + $0x98] sm:%s195] %v280
                %v282 = vld [vmem:[%s202 + $0x11c] sm:%s195]
                %283 = vst [vmem:[%s203 + $0x9c] sm:%s195] %v282
                %v284 = vld [vmem:[%s202 + $0x120] sm:%s195]
                %285 = vst [vmem:[%s203 + $0xa0] sm:%s195] %v284
                %v286 = vld [vmem:[%s202 + $0x124] sm:%s195]
                %287 = vst [vmem:[%s203 + $0xa4] sm:%s195] %v286
                %v288 = vld [vmem:[%s202 + $0x128] sm:%s195]
                %289 = vst [vmem:[%s203 + $0xa8] sm:%s195] %v288
                %v290 = vld [vmem:[%s202 + $0x12c] sm:%s195]
                %291 = vst [vmem:[%s203 + $0xac] sm:%s195] %v290
                %v292 = vld [vmem:[%s202 + $0x130] sm:%s195]
                %293 = vst [vmem:[%s203 + $0xb0] sm:%s195] %v292
                %v294 = vld [vmem:[%s202 + $0x134] sm:%s195]
                %295 = vst [vmem:[%s203 + $0xb4] sm:%s195] %v294
                %v296 = vld [vmem:[%s202 + $0x138] sm:%s195]
                %297 = vst [vmem:[%s203 + $0xb8] sm:%s195] %v296
                %v298 = vld [vmem:[%s202 + $0x13c] sm:%s195]
                %299 = vst [vmem:[%s203 + $0xbc] sm:%s195] %v298
                %v300 = vld [vmem:[%s202 + $0x140] sm:%s195]
                %301 = vst [vmem:[%s203 + $0xc0] sm:%s195] %v300
                %v302 = vld [vmem:[%s202 + $0x144] sm:%s195]
                %303 = vst [vmem:[%s203 + $0xc4] sm:%s195] %v302
                %v304 = vld [vmem:[%s202 + $0x148] sm:%s195]
                %305 = vst [vmem:[%s203 + $0xc8] sm:%s195] %v304
                %v306 = vld [vmem:[%s202 + $0x14c] sm:%s195]
                %307 = vst [vmem:[%s203 + $0xcc] sm:%s195] %v306
                %v308 = vld [vmem:[%s202 + $0x150] sm:%s195]
                %309 = vst [vmem:[%s203 + $0xd0] sm:%s195] %v308
                %v310 = vld [vmem:[%s202 + $0x154] sm:%s195]
                %311 = vst [vmem:[%s203 + $0xd4] sm:%s195] %v310
                %v312 = vld [vmem:[%s202 + $0x158] sm:%s195]
                %313 = vst [vmem:[%s203 + $0xd8] sm:%s195] %v312
                %v314 = vld [vmem:[%s202 + $0x15c] sm:%s195]
                %315 = vst [vmem:[%s203 + $0xdc] sm:%s195] %v314
                %v316 = vld [vmem:[%s202 + $0x160] sm:%s195]
                %317 = vst [vmem:[%s203 + $0xe0] sm:%s195] %v316
                %v318 = vld [vmem:[%s202 + $0x164] sm:%s195]
                %319 = vst [vmem:[%s203 + $0xe4] sm:%s195] %v318
                %v320 = vld [vmem:[%s202 + $0x168] sm:%s195]
                %321 = vst [vmem:[%s203 + $0xe8] sm:%s195] %v320
                %v322 = vld [vmem:[%s202 + $0x16c] sm:%s195]
                %323 = vst [vmem:[%s203 + $0xec] sm:%s195] %v322
                %v324 = vld [vmem:[%s202 + $0x170] sm:%s195]
                %325 = vst [vmem:[%s203 + $0xf0] sm:%s195] %v324
                %v326 = vld [vmem:[%s202 + $0x174] sm:%s195]
                %327 = vst [vmem:[%s203 + $0xf4] sm:%s195] %v326
                %v328 = vld [vmem:[%s202 + $0x178] sm:%s195]
                %329 = vst [vmem:[%s203 + $0xf8] sm:%s195] %v328
                %v330 = vld [vmem:[%s202 + $0x17c] sm:%s195]
                %331 = vst [vmem:[%s203 + $0xfc] sm:%s195] %v330
                %v332 = vld [vmem:[%s202 + $0x200] sm:%s195]
                %333 = vst [vmem:[%s203 + $0x100] sm:%s195] %v332
                %v334 = vld [vmem:[%s202 + $0x204] sm:%s195]
                %335 = vst [vmem:[%s203 + $0x104] sm:%s195] %v334
                %v336 = vld [vmem:[%s202 + $0x208] sm:%s195]
                %337 = vst [vmem:[%s203 + $0x108] sm:%s195] %v336
                %v338 = vld [vmem:[%s202 + $0x20c] sm:%s195]
                %339 = vst [vmem:[%s203 + $0x10c] sm:%s195] %v338
                %v340 = vld [vmem:[%s202 + $0x210] sm:%s195]
                %341 = vst [vmem:[%s203 + $0x110] sm:%s195] %v340
                %v342 = vld [vmem:[%s202 + $0x214] sm:%s195]
                %343 = vst [vmem:[%s203 + $0x114] sm:%s195] %v342
                %v344 = vld [vmem:[%s202 + $0x218] sm:%s195]
                %345 = vst [vmem:[%s203 + $0x118] sm:%s195] %v344
                %v346 = vld [vmem:[%s202 + $0x21c] sm:%s195]
                %347 = vst [vmem:[%s203 + $0x11c] sm:%s195] %v346
                %v348 = vld [vmem:[%s202 + $0x220] sm:%s195]
                %349 = vst [vmem:[%s203 + $0x120] sm:%s195] %v348
                %v350 = vld [vmem:[%s202 + $0x224] sm:%s195]
                %351 = vst [vmem:[%s203 + $0x124] sm:%s195] %v350
                %v352 = vld [vmem:[%s202 + $0x228] sm:%s195]
                %353 = vst [vmem:[%s203 + $0x128] sm:%s195] %v352
                %v354 = vld [vmem:[%s202 + $0x22c] sm:%s195]
                %355 = vst [vmem:[%s203 + $0x12c] sm:%s195] %v354
                %v356 = vld [vmem:[%s202 + $0x230] sm:%s195]
                %357 = vst [vmem:[%s203 + $0x130] sm:%s195] %v356
                %v358 = vld [vmem:[%s202 + $0x234] sm:%s195]
                %359 = vst [vmem:[%s203 + $0x134] sm:%s195] %v358
                %v360 = vld [vmem:[%s202 + $0x238] sm:%s195]
                %361 = vst [vmem:[%s203 + $0x138] sm:%s195] %v360
                %v362 = vld [vmem:[%s202 + $0x23c] sm:%s195]
                %363 = vst [vmem:[%s203 + $0x13c] sm:%s195] %v362
                %v364 = vld [vmem:[%s202 + $0x240] sm:%s195]
                %365 = vst [vmem:[%s203 + $0x140] sm:%s195] %v364
                %v366 = vld [vmem:[%s202 + $0x244] sm:%s195]
                %367 = vst [vmem:[%s203 + $0x144] sm:%s195] %v366
                %v368 = vld [vmem:[%s202 + $0x248] sm:%s195]
                %369 = vst [vmem:[%s203 + $0x148] sm:%s195] %v368
                %v370 = vld [vmem:[%s202 + $0x24c] sm:%s195]
                %371 = vst [vmem:[%s203 + $0x14c] sm:%s195] %v370
                %v372 = vld [vmem:[%s202 + $0x250] sm:%s195]
                %373 = vst [vmem:[%s203 + $0x150] sm:%s195] %v372
                %v374 = vld [vmem:[%s202 + $0x254] sm:%s195]
                %375 = vst [vmem:[%s203 + $0x154] sm:%s195] %v374
                %v376 = vld [vmem:[%s202 + $0x258] sm:%s195]
                %377 = vst [vmem:[%s203 + $0x158] sm:%s195] %v376
                %v378 = vld [vmem:[%s202 + $0x25c] sm:%s195]
                %379 = vst [vmem:[%s203 + $0x15c] sm:%s195] %v378
                %v380 = vld [vmem:[%s202 + $0x260] sm:%s195]
                %381 = vst [vmem:[%s203 + $0x160] sm:%s195] %v380
                %v382 = vld [vmem:[%s202 + $0x264] sm:%s195]
                %383 = vst [vmem:[%s203 + $0x164] sm:%s195] %v382
                %v384 = vld [vmem:[%s202 + $0x268] sm:%s195]
                %385 = vst [vmem:[%s203 + $0x168] sm:%s195] %v384
                %v386 = vld [vmem:[%s202 + $0x26c] sm:%s195]
                %387 = vst [vmem:[%s203 + $0x16c] sm:%s195] %v386
                %v388 = vld [vmem:[%s202 + $0x270] sm:%s195]
                %389 = vst [vmem:[%s203 + $0x170] sm:%s195] %v388
                %v390 = vld [vmem:[%s202 + $0x274] sm:%s195]
                %391 = vst [vmem:[%s203 + $0x174] sm:%s195] %v390
                %v392 = vld [vmem:[%s202 + $0x278] sm:%s195]
                %393 = vst [vmem:[%s203 + $0x178] sm:%s195] %v392
                %v394 = vld [vmem:[%s202 + $0x27c] sm:%s195]
                %395 = vst [vmem:[%s203 + $0x17c] sm:%s195] %v394
                %v396 = vld [vmem:[%s202 + $0x300] sm:%s195]
                %397 = vst [vmem:[%s203 + $0x180] sm:%s195] %v396
                %v398 = vld [vmem:[%s202 + $0x304] sm:%s195]
                %399 = vst [vmem:[%s203 + $0x184] sm:%s195] %v398
                %v400 = vld [vmem:[%s202 + $0x308] sm:%s195]
                %401 = vst [vmem:[%s203 + $0x188] sm:%s195] %v400
                %v402 = vld [vmem:[%s202 + $0x30c] sm:%s195]
                %403 = vst [vmem:[%s203 + $0x18c] sm:%s195] %v402
                %v404 = vld [vmem:[%s202 + $0x310] sm:%s195]
                %405 = vst [vmem:[%s203 + $0x190] sm:%s195] %v404
                %v406 = vld [vmem:[%s202 + $0x314] sm:%s195]
                %407 = vst [vmem:[%s203 + $0x194] sm:%s195] %v406
                %v408 = vld [vmem:[%s202 + $0x318] sm:%s195]
                %409 = vst [vmem:[%s203 + $0x198] sm:%s195] %v408
                %v410 = vld [vmem:[%s202 + $0x31c] sm:%s195]
                %411 = vst [vmem:[%s203 + $0x19c] sm:%s195] %v410
                %v412 = vld [vmem:[%s202 + $0x320] sm:%s195]
                %413 = vst [vmem:[%s203 + $0x1a0] sm:%s195] %v412
                %v414 = vld [vmem:[%s202 + $0x324] sm:%s195]
                %415 = vst [vmem:[%s203 + $0x1a4] sm:%s195] %v414
                %v416 = vld [vmem:[%s202 + $0x328] sm:%s195]
                %417 = vst [vmem:[%s203 + $0x1a8] sm:%s195] %v416
                %v418 = vld [vmem:[%s202 + $0x32c] sm:%s195]
                %419 = vst [vmem:[%s203 + $0x1ac] sm:%s195] %v418
                %v420 = vld [vmem:[%s202 + $0x330] sm:%s195]
                %421 = vst [vmem:[%s203 + $0x1b0] sm:%s195] %v420
                %v422 = vld [vmem:[%s202 + $0x334] sm:%s195]
                %423 = vst [vmem:[%s203 + $0x1b4] sm:%s195] %v422
                %v424 = vld [vmem:[%s202 + $0x338] sm:%s195]
                %425 = vst [vmem:[%s203 + $0x1b8] sm:%s195] %v424
                %v426 = vld [vmem:[%s202 + $0x33c] sm:%s195]
                %427 = vst [vmem:[%s203 + $0x1bc] sm:%s195] %v426
                %v428 = vld [vmem:[%s202 + $0x340] sm:%s195]
                %429 = vst [vmem:[%s203 + $0x1c0] sm:%s195] %v428
                %v430 = vld [vmem:[%s202 + $0x344] sm:%s195]
                %431 = vst [vmem:[%s203 + $0x1c4] sm:%s195] %v430
                %v432 = vld [vmem:[%s202 + $0x348] sm:%s195]
                %433 = vst [vmem:[%s203 + $0x1c8] sm:%s195] %v432
                %v434 = vld [vmem:[%s202 + $0x34c] sm:%s195]
                %435 = vst [vmem:[%s203 + $0x1cc] sm:%s195] %v434
                %v436 = vld [vmem:[%s202 + $0x350] sm:%s195]
                %437 = vst [vmem:[%s203 + $0x1d0] sm:%s195] %v436
                %v438 = vld [vmem:[%s202 + $0x354] sm:%s195]
                %439 = vst [vmem:[%s203 + $0x1d4] sm:%s195] %v438
                %v440 = vld [vmem:[%s202 + $0x358] sm:%s195]
                %441 = vst [vmem:[%s203 + $0x1d8] sm:%s195] %v440
                %v442 = vld [vmem:[%s202 + $0x35c] sm:%s195]
                %443 = vst [vmem:[%s203 + $0x1dc] sm:%s195] %v442
                %v444 = vld [vmem:[%s202 + $0x360] sm:%s195]
                %445 = vst [vmem:[%s203 + $0x1e0] sm:%s195] %v444
                %v446 = vld [vmem:[%s202 + $0x364] sm:%s195]
                %447 = vst [vmem:[%s203 + $0x1e4] sm:%s195] %v446
                %v448 = vld [vmem:[%s202 + $0x368] sm:%s195]
                %449 = vst [vmem:[%s203 + $0x1e8] sm:%s195] %v448
                %v450 = vld [vmem:[%s202 + $0x36c] sm:%s195]
                %451 = vst [vmem:[%s203 + $0x1ec] sm:%s195] %v450
                %v452 = vld [vmem:[%s202 + $0x370] sm:%s195]
                %453 = vst [vmem:[%s203 + $0x1f0] sm:%s195] %v452
                %v454 = vld [vmem:[%s202 + $0x374] sm:%s195]
                %455 = vst [vmem:[%s203 + $0x1f4] sm:%s195] %v454
                %v456 = vld [vmem:[%s202 + $0x378] sm:%s195]
                %457 = vst [vmem:[%s203 + $0x1f8] sm:%s195] %v456
                %v458 = vld [vmem:[%s202 + $0x37c] sm:%s195]
                %459 = vst [vmem:[%s203 + $0x1fc] sm:%s195] %v458
              $region53: #{mynet_forward.5} parent=47 // loop_footer
                %s201 = sadd.s32 1, %s197
              $region54: #{mynet_forward.5} parent=47 // loop_footer_branch
                %196 = sbr.rel target = $region50
              $region55: #{mynet_forward.5} parent=47 // loop_exit
                _
            $region48: #{mynet_forward.5} parent=39 // pred_fallthru
              _
          $region40: #{mynet_forward.5} parent=35 // pred_fallthru
            _
          %736 = vnop
        $region36: #{mynet_forward.5} parent=31 // pred_fallthru
          _
      $region32: #{mynet_forward.5} parent=5 // pred_fallthru
        _
      %p737 = scmp.le.s32.totalorder 1, %s11
      %p738 = scmp.lt.s32.totalorder %s11, 3
      %p739 = pnand %p737, %p738
      %p740 = pneg %p739
      // Predicated region
      $region74: #{mynet_forward.5} parent=5 // pred_check
        _
      $region75: #{mynet_forward.5} parent=5 // pred_check_branch
        %742 = sbr.rel (%p739) target = $region77
      $region76: #{mynet_forward.5} parent=5 // pred_region
        %s743 = ssub.s32 %s11, 1
        %s744 = sand.u32 %s24, 1
        %s745 = sand.u32 %s24, 1
        %s746 = smul.addr %s745, 512
        %s747 = scalar_lea.vmem [#allocation2], %s746
        // Predicated region
        $region78: #{mynet_forward.5} parent=76 // pred_check
          %p748 = pneg %p37
        $region79: #{mynet_forward.5} parent=76 // pred_check_branch
          %750 = sbr.rel (%p748) target = $region81
        $region80: #{mynet_forward.5} parent=76 // pred_region
          _
        $region81: #{mynet_forward.5} parent=76 // pred_fallthru
          _
        %s751 = sand.u32 %s24, 1
        %s752 = sand.u32 %s24, 1
        %s753 = smul.addr %s752, 512
        %s754 = scalar_lea.vmem [#allocation2], %s753
        %p755 = pneg %p37
        %p756 = pneg %p34
        %p757 = pneg %p58
        %p758 = pneg %p55
        %p759 = pneg %p79
        %p760 = pneg %p76
        %p761 = pneg %p100
        %p762 = pneg %p97
        %p763 = pneg %p121
        %p764 = pneg %p118
        %p765 = pneg %p147
        %p766 = pneg %p144
        %s767 = smul.u32 32, %s16
        %p768 = scmp.lt.s32.totalorder %s767, 63
        %s769 = scalar_select %p768, %s767, 63
        %s770 = smul.addr %s769, 4
        %s771 = scalar_lea.vmem %s5, %s770
        %s772 = smul.u32 32, %s16
        %s773 = smul.u32 32, %s16
        %p774 = scmp.lt.s32.totalorder %s773, 63
        %s775 = scalar_select %p774, %s773, 63
        %s776 = smul.addr %s775, 4
        %s777 = scalar_lea.vmem %s5, %s776
        %s778 = smul.u32 32, %s16
        %v780 = vld [vmem:[%s747] sm:$0xf]
        %v781 = vld [vmem:[%s747 + $0x4] sm:$0xf]
        %v782 = vld [vmem:[%s747 + $0x8] sm:$0xf]
        %v783 = vld [vmem:[%s747 + $0xc] sm:$0xf]
        %v784 = vld [vmem:[%s747 + $0x10] sm:$0xf]
        %v785 = vld [vmem:[%s747 + $0x14] sm:$0xf]
        %v786 = vld [vmem:[%s747 + $0x18] sm:$0xf]
        %v787 = vld [vmem:[%s747 + $0x1c] sm:$0xf]
        %v788 = vld [vmem:[%s747 + $0x20] sm:$0xf]
        %v789 = vld [vmem:[%s747 + $0x24] sm:$0xf]
        %v790 = vld [vmem:[%s747 + $0x28] sm:$0xf]
        %v791 = vld [vmem:[%s747 + $0x2c] sm:$0xf]
        %v792 = vld [vmem:[%s747 + $0x30] sm:$0xf]
        %v793 = vld [vmem:[%s747 + $0x34] sm:$0xf]
        %v794 = vld [vmem:[%s747 + $0x38] sm:$0xf]
        %v795 = vld [vmem:[%s747 + $0x3c] sm:$0xf]
        %v796 = vld [vmem:[%s747 + $0x40] sm:$0xf]
        %v797 = vld [vmem:[%s747 + $0x44] sm:$0xf]
        %v798 = vld [vmem:[%s747 + $0x48] sm:$0xf]
        %v799 = vld [vmem:[%s747 + $0x4c] sm:$0xf]
        %v800 = vld [vmem:[%s747 + $0x50] sm:$0xf]
        %v801 = vld [vmem:[%s747 + $0x54] sm:$0xf]
        %v802 = vld [vmem:[%s747 + $0x58] sm:$0xf]
        %v803 = vld [vmem:[%s747 + $0x5c] sm:$0xf]
        %v804 = vld [vmem:[%s747 + $0x60] sm:$0xf]
        %v805 = vld [vmem:[%s747 + $0x64] sm:$0xf]
        %v806 = vld [vmem:[%s747 + $0x68] sm:$0xf]
        %v807 = vld [vmem:[%s747 + $0x6c] sm:$0xf]
        %v808 = vld [vmem:[%s747 + $0x70] sm:$0xf]
        %v809 = vld [vmem:[%s747 + $0x74] sm:$0xf]
        %v810 = vld [vmem:[%s747 + $0x78] sm:$0xf]
        %v811 = vld [vmem:[%s747 + $0x7c] sm:$0xf]
        %v812 = vld [vmem:[%s747 + $0x80] sm:$0xf]
        %v813 = vld [vmem:[%s747 + $0x84] sm:$0xf]
        %v814 = vld [vmem:[%s747 + $0x88] sm:$0xf]
        %v815 = vld [vmem:[%s747 + $0x8c] sm:$0xf]
        %v816 = vld [vmem:[%s747 + $0x90] sm:$0xf]
        %v817 = vld [vmem:[%s747 + $0x94] sm:$0xf]
        %v818 = vld [vmem:[%s747 + $0x98] sm:$0xf]
        %v819 = vld [vmem:[%s747 + $0x9c] sm:$0xf]
        %v820 = vld [vmem:[%s747 + $0xa0] sm:$0xf]
        %v821 = vld [vmem:[%s747 + $0xa4] sm:$0xf]
        %v822 = vld [vmem:[%s747 + $0xa8] sm:$0xf]
        %v823 = vld [vmem:[%s747 + $0xac] sm:$0xf]
        %v824 = vld [vmem:[%s747 + $0xb0] sm:$0xf]
        %v825 = vld [vmem:[%s747 + $0xb4] sm:$0xf]
        %v826 = vld [vmem:[%s747 + $0xb8] sm:$0xf]
        %v827 = vld [vmem:[%s747 + $0xbc] sm:$0xf]
        %v828 = vld [vmem:[%s747 + $0xc0] sm:$0xf]
        %v829 = vld [vmem:[%s747 + $0xc4] sm:$0xf]
        %v830 = vld [vmem:[%s747 + $0xc8] sm:$0xf]
        %v831 = vld [vmem:[%s747 + $0xcc] sm:$0xf]
        %v832 = vld [vmem:[%s747 + $0xd0] sm:$0xf]
        %v833 = vld [vmem:[%s747 + $0xd4] sm:$0xf]
        %v834 = vld [vmem:[%s747 + $0xd8] sm:$0xf]
        %v835 = vld [vmem:[%s747 + $0xdc] sm:$0xf]
        %v836 = vld [vmem:[%s747 + $0xe0] sm:$0xf]
        %v837 = vld [vmem:[%s747 + $0xe4] sm:$0xf]
        %v838 = vld [vmem:[%s747 + $0xe8] sm:$0xf]
        %v839 = vld [vmem:[%s747 + $0xec] sm:$0xf]
        %v840 = vld [vmem:[%s747 + $0xf0] sm:$0xf]
        %v841 = vld [vmem:[%s747 + $0xf4] sm:$0xf]
        %v842 = vld [vmem:[%s747 + $0xf8] sm:$0xf]
        %v843 = vld [vmem:[%s747 + $0xfc] sm:$0xf]
        %v844 = vld [vmem:[%s747 + $0x100] sm:$0xf]
        %v845 = vld [vmem:[%s747 + $0x104] sm:$0xf]
        %v846 = vld [vmem:[%s747 + $0x108] sm:$0xf]
        %v847 = vld [vmem:[%s747 + $0x10c] sm:$0xf]
        %v848 = vld [vmem:[%s747 + $0x110] sm:$0xf]
        %v849 = vld [vmem:[%s747 + $0x114] sm:$0xf]
        %v850 = vld [vmem:[%s747 + $0x118] sm:$0xf]
        %v851 = vld [vmem:[%s747 + $0x11c] sm:$0xf]
        %v852 = vld [vmem:[%s747 + $0x120] sm:$0xf]
        %v853 = vld [vmem:[%s747 + $0x124] sm:$0xf]
        %v854 = vld [vmem:[%s747 + $0x128] sm:$0xf]
        %v855 = vld [vmem:[%s747 + $0x12c] sm:$0xf]
        %v856 = vld [vmem:[%s747 + $0x130] sm:$0xf]
        %v857 = vld [vmem:[%s747 + $0x134] sm:$0xf]
        %v858 = vld [vmem:[%s747 + $0x138] sm:$0xf]
        %v859 = vld [vmem:[%s747 + $0x13c] sm:$0xf]
        %v860 = vld [vmem:[%s747 + $0x140] sm:$0xf]
        %v861 = vld [vmem:[%s747 + $0x144] sm:$0xf]
        %v862 = vld [vmem:[%s747 + $0x148] sm:$0xf]
        %v863 = vld [vmem:[%s747 + $0x14c] sm:$0xf]
        %v864 = vld [vmem:[%s747 + $0x150] sm:$0xf]
        %v865 = vld [vmem:[%s747 + $0x154] sm:$0xf]
        %v866 = vld [vmem:[%s747 + $0x158] sm:$0xf]
        %v867 = vld [vmem:[%s747 + $0x15c] sm:$0xf]
        %v868 = vld [vmem:[%s747 + $0x160] sm:$0xf]
        %v869 = vld [vmem:[%s747 + $0x164] sm:$0xf]
        %v870 = vld [vmem:[%s747 + $0x168] sm:$0xf]
        %v871 = vld [vmem:[%s747 + $0x16c] sm:$0xf]
        %v872 = vld [vmem:[%s747 + $0x170] sm:$0xf]
        %v873 = vld [vmem:[%s747 + $0x174] sm:$0xf]
        %v874 = vld [vmem:[%s747 + $0x178] sm:$0xf]
        %v875 = vld [vmem:[%s747 + $0x17c] sm:$0xf]
        %v876 = vld [vmem:[%s747 + $0x180] sm:$0xf]
        %v877 = vld [vmem:[%s747 + $0x184] sm:$0xf]
        %v878 = vld [vmem:[%s747 + $0x188] sm:$0xf]
        %v879 = vld [vmem:[%s747 + $0x18c] sm:$0xf]
        %v880 = vld [vmem:[%s747 + $0x190] sm:$0xf]
        %v881 = vld [vmem:[%s747 + $0x194] sm:$0xf]
        %v882 = vld [vmem:[%s747 + $0x198] sm:$0xf]
        %v883 = vld [vmem:[%s747 + $0x19c] sm:$0xf]
        %v884 = vld [vmem:[%s747 + $0x1a0] sm:$0xf]
        %v885 = vld [vmem:[%s747 + $0x1a4] sm:$0xf]
        %v886 = vld [vmem:[%s747 + $0x1a8] sm:$0xf]
        %v887 = vld [vmem:[%s747 + $0x1ac] sm:$0xf]
        %v888 = vld [vmem:[%s747 + $0x1b0] sm:$0xf]
        %v889 = vld [vmem:[%s747 + $0x1b4] sm:$0xf]
        %v890 = vld [vmem:[%s747 + $0x1b8] sm:$0xf]
        %v891 = vld [vmem:[%s747 + $0x1bc] sm:$0xf]
        %v892 = vld [vmem:[%s747 + $0x1c0] sm:$0xf]
        %v893 = vld [vmem:[%s747 + $0x1c4] sm:$0xf]
        %v894 = vld [vmem:[%s747 + $0x1c8] sm:$0xf]
        %v895 = vld [vmem:[%s747 + $0x1cc] sm:$0xf]
        %v896 = vld [vmem:[%s747 + $0x1d0] sm:$0xf]
        %v897 = vld [vmem:[%s747 + $0x1d4] sm:$0xf]
        %v898 = vld [vmem:[%s747 + $0x1d8] sm:$0xf]
        %v899 = vld [vmem:[%s747 + $0x1dc] sm:$0xf]
        %v900 = vld [vmem:[%s747 + $0x1e0] sm:$0xf]
        %v901 = vld [vmem:[%s747 + $0x1e4] sm:$0xf]
        %v902 = vld [vmem:[%s747 + $0x1e8] sm:$0xf]
        %v903 = vld [vmem:[%s747 + $0x1ec] sm:$0xf]
        %v904 = vld [vmem:[%s747 + $0x1f0] sm:$0xf]
        %v905 = vld [vmem:[%s747 + $0x1f4] sm:$0xf]
        %v906 = vld [vmem:[%s747 + $0x1f8] sm:$0xf]
        %v907 = vld [vmem:[%s747 + $0x1fc] sm:$0xf]
        %v908 = vld [vmem:[%s1] sm:$0xf]
        %v909 = vld [vmem:[%s1 + $0x4] sm:$0xf]
        %v910 = vld [vmem:[%s1 + $0x8] sm:$0xf]
        %v911 = vld [vmem:[%s1 + $0xc] sm:$0xf]
        %v912 = vld [vmem:[%s1 + $0x10] sm:$0xf]
        %v913 = vld [vmem:[%s1 + $0x14] sm:$0xf]
        %v914 = vld [vmem:[%s1 + $0x18] sm:$0xf]
        %v915 = vld [vmem:[%s1 + $0x1c] sm:$0xf]
        %v916 = vld [vmem:[%s1 + $0x20] sm:$0xf]
        %v1045 = vunpack.c.l.b16 %v780
        %v1046 = vunpack.c.l.b16 %v781
        %v1047 = vunpack.c.l.b16 %v782
        %v1048 = vunpack.c.l.b16 %v783
        %v1049 = vunpack.c.l.b16 %v784
        %v1050 = vunpack.c.l.b16 %v785
        %v1051 = vunpack.c.l.b16 %v786
        %v1052 = vunpack.c.l.b16 %v787
        %v1053 = vunpack.c.l.b16 %v788
        %v1054 = vunpack.c.l.b16 %v789
        %v1055 = vunpack.c.l.b16 %v790
        %v1056 = vunpack.c.l.b16 %v791
        %v1057 = vunpack.c.l.b16 %v792
        %v1058 = vunpack.c.l.b16 %v793
        %v1059 = vunpack.c.l.b16 %v794
        %v1060 = vunpack.c.l.b16 %v795
        %v1061 = vunpack.c.l.b16 %v796
        %v1062 = vunpack.c.l.b16 %v797
        %v1063 = vunpack.c.l.b16 %v798
        %v1064 = vunpack.c.l.b16 %v799
        %v1065 = vunpack.c.l.b16 %v800
        %v1066 = vunpack.c.l.b16 %v801
        %v1067 = vunpack.c.l.b16 %v802
        %v1068 = vunpack.c.l.b16 %v803
        %v1069 = vunpack.c.l.b16 %v804
        %v1070 = vunpack.c.l.b16 %v805
        %v1071 = vunpack.c.l.b16 %v806
        %v1072 = vunpack.c.l.b16 %v807
        %v1073 = vunpack.c.l.b16 %v808
        %v1074 = vunpack.c.l.b16 %v809
        %v1075 = vunpack.c.l.b16 %v810
        %v1076 = vunpack.c.l.b16 %v811
        %v1077 = vunpack.c.l.b16 %v812
        %v1078 = vunpack.c.l.b16 %v813
        %v1079 = vunpack.c.l.b16 %v814
        %v1080 = vunpack.c.l.b16 %v815
        %v1081 = vunpack.c.l.b16 %v816
        %v1082 = vunpack.c.l.b16 %v817
        %v1083 = vunpack.c.l.b16 %v818
        %v1084 = vunpack.c.l.b16 %v819
        %v1085 = vunpack.c.l.b16 %v820
        %v1086 = vunpack.c.l.b16 %v821
        %v1087 = vunpack.c.l.b16 %v822
        %v1088 = vunpack.c.l.b16 %v823
        %v1089 = vunpack.c.l.b16 %v824
        %v1090 = vunpack.c.l.b16 %v825
        %v1091 = vunpack.c.l.b16 %v826
        %v1092 = vunpack.c.l.b16 %v827
        %v1093 = vunpack.c.l.b16 %v828
        %v1094 = vunpack.c.l.b16 %v829
        %v1095 = vunpack.c.l.b16 %v830
        %v1096 = vunpack.c.l.b16 %v831
        %v1097 = vunpack.c.l.b16 %v832
        %v1098 = vunpack.c.l.b16 %v833
        %v1099 = vunpack.c.l.b16 %v834
        %v1100 = vunpack.c.l.b16 %v835
        %v1101 = vunpack.c.l.b16 %v836
        %v1102 = vunpack.c.l.b16 %v837
        %v1103 = vunpack.c.l.b16 %v838
        %v1104 = vunpack.c.l.b16 %v839
        %v1105 = vunpack.c.l.b16 %v840
        %v1106 = vunpack.c.l.b16 %v841
        %v1107 = vunpack.c.l.b16 %v842
        %v1108 = vunpack.c.l.b16 %v843
        %v1109 = vunpack.c.l.b16 %v844
        %v1110 = vunpack.c.l.b16 %v845
        %v1111 = vunpack.c.l.b16 %v846
        %v1112 = vunpack.c.l.b16 %v847
        %v1113 = vunpack.c.l.b16 %v848
        %v1114 = vunpack.c.l.b16 %v849
        %v1115 = vunpack.c.l.b16 %v850
        %v1116 = vunpack.c.l.b16 %v851
        %v1117 = vunpack.c.l.b16 %v852
        %v1118 = vunpack.c.l.b16 %v853
        %v1119 = vunpack.c.l.b16 %v854
        %v1120 = vunpack.c.l.b16 %v855
        %v1121 = vunpack.c.l.b16 %v856
        %v1122 = vunpack.c.l.b16 %v857
        %v1123 = vunpack.c.l.b16 %v858
        %v1124 = vunpack.c.l.b16 %v859
        %v1125 = vunpack.c.l.b16 %v860
        %v1126 = vunpack.c.l.b16 %v861
        %v1127 = vunpack.c.l.b16 %v862
        %v1128 = vunpack.c.l.b16 %v863
        %v1129 = vunpack.c.l.b16 %v864
        %v1130 = vunpack.c.l.b16 %v865
        %v1131 = vunpack.c.l.b16 %v866
        %v1132 = vunpack.c.l.b16 %v867
        %v1133 = vunpack.c.l.b16 %v868
        %v1134 = vunpack.c.l.b16 %v869
        %v1135 = vunpack.c.l.b16 %v870
        %v1136 = vunpack.c.l.b16 %v871
        %v1137 = vunpack.c.l.b16 %v872
        %v1138 = vunpack.c.l.b16 %v873
        %v1139 = vunpack.c.l.b16 %v874
        %v1140 = vunpack.c.l.b16 %v875
        %v1141 = vunpack.c.l.b16 %v876
        %v1142 = vunpack.c.l.b16 %v877
        %v1143 = vunpack.c.l.b16 %v878
        %v1144 = vunpack.c.l.b16 %v879
        %v1145 = vunpack.c.l.b16 %v880
        %v1146 = vunpack.c.l.b16 %v881
        %v1147 = vunpack.c.l.b16 %v882
        %v1148 = vunpack.c.l.b16 %v883
        %v1149 = vunpack.c.l.b16 %v884
        %v1150 = vunpack.c.l.b16 %v885
        %v1151 = vunpack.c.l.b16 %v886
        %v1152 = vunpack.c.l.b16 %v887
        %v1153 = vunpack.c.l.b16 %v888
        %v1154 = vunpack.c.l.b16 %v889
        %v1155 = vunpack.c.l.b16 %v890
        %v1156 = vunpack.c.l.b16 %v891
        %v1157 = vunpack.c.l.b16 %v892
        %v1158 = vunpack.c.l.b16 %v893
        %v1159 = vunpack.c.l.b16 %v894
        %v1160 = vunpack.c.l.b16 %v895
        %v1161 = vunpack.c.l.b16 %v896
        %v1162 = vunpack.c.l.b16 %v897
        %v1163 = vunpack.c.l.b16 %v898
        %v1164 = vunpack.c.l.b16 %v899
        %v1165 = vunpack.c.l.b16 %v900
        %v1166 = vunpack.c.l.b16 %v901
        %v1167 = vunpack.c.l.b16 %v902
        %v1168 = vunpack.c.l.b16 %v903
        %v1169 = vunpack.c.l.b16 %v904
        %v1170 = vunpack.c.l.b16 %v905
        %v1171 = vunpack.c.l.b16 %v906
        %v1172 = vunpack.c.l.b16 %v907
        %v1173 = vpack.c.b16 %v1046, %v1045
        %v1174 = vpack.c.b16 %v1048, %v1047
        %v1175 = vpack.c.b16 %v1050, %v1049
        %v1176 = vpack.c.b16 %v1052, %v1051
        %v1177 = vpack.c.b16 %v1054, %v1053
        %v1178 = vpack.c.b16 %v1056, %v1055
        %v1179 = vpack.c.b16 %v1058, %v1057
        %v1180 = vpack.c.b16 %v1060, %v1059
        %v1181 = vpack.c.b16 %v1062, %v1061
        %v1182 = vpack.c.b16 %v1064, %v1063
        %v1183 = vpack.c.b16 %v1066, %v1065
        %v1184 = vpack.c.b16 %v1068, %v1067
        %v1185 = vpack.c.b16 %v1070, %v1069
        %v1186 = vpack.c.b16 %v1072, %v1071
        %v1187 = vpack.c.b16 %v1074, %v1073
        %v1188 = vpack.c.b16 %v1076, %v1075
        %v1189 = vpack.c.b16 %v1078, %v1077
        %v1190 = vpack.c.b16 %v1080, %v1079
        %v1191 = vpack.c.b16 %v1082, %v1081
        %v1192 = vpack.c.b16 %v1084, %v1083
        %v1193 = vpack.c.b16 %v1086, %v1085
        %v1194 = vpack.c.b16 %v1088, %v1087
        %v1195 = vpack.c.b16 %v1090, %v1089
        %v1196 = vpack.c.b16 %v1092, %v1091
        %v1197 = vpack.c.b16 %v1094, %v1093
        %v1198 = vpack.c.b16 %v1096, %v1095
        %v1199 = vpack.c.b16 %v1098, %v1097
        %v1200 = vpack.c.b16 %v1100, %v1099
        %v1201 = vpack.c.b16 %v1102, %v1101
        %v1202 = vpack.c.b16 %v1104, %v1103
        %v1203 = vpack.c.b16 %v1106, %v1105
        %v1204 = vpack.c.b16 %v1108, %v1107
        %v1205 = vpack.c.b16 %v1110, %v1109
        %v1206 = vpack.c.b16 %v1112, %v1111
        %v1207 = vpack.c.b16 %v1114, %v1113
        %v1208 = vpack.c.b16 %v1116, %v1115
        %v1209 = vpack.c.b16 %v1118, %v1117
        %v1210 = vpack.c.b16 %v1120, %v1119
        %v1211 = vpack.c.b16 %v1122, %v1121
        %v1212 = vpack.c.b16 %v1124, %v1123
        %v1213 = vpack.c.b16 %v1126, %v1125
        %v1214 = vpack.c.b16 %v1128, %v1127
        %v1215 = vpack.c.b16 %v1130, %v1129
        %v1216 = vpack.c.b16 %v1132, %v1131
        %v1217 = vpack.c.b16 %v1134, %v1133
        %v1218 = vpack.c.b16 %v1136, %v1135
        %v1219 = vpack.c.b16 %v1138, %v1137
        %v1220 = vpack.c.b16 %v1140, %v1139
        %v1221 = vpack.c.b16 %v1142, %v1141
        %v1222 = vpack.c.b16 %v1144, %v1143
        %v1223 = vpack.c.b16 %v1146, %v1145
        %v1224 = vpack.c.b16 %v1148, %v1147
        %v1225 = vpack.c.b16 %v1150, %v1149
        %v1226 = vpack.c.b16 %v1152, %v1151
        %v1227 = vpack.c.b16 %v1154, %v1153
        %v1228 = vpack.c.b16 %v1156, %v1155
        %v1229 = vpack.c.b16 %v1158, %v1157
        %v1230 = vpack.c.b16 %v1160, %v1159
        %v1231 = vpack.c.b16 %v1162, %v1161
        %v1232 = vpack.c.b16 %v1164, %v1163
        %v1233 = vpack.c.b16 %v1166, %v1165
        %v1234 = vpack.c.b16 %v1168, %v1167
        %v1235 = vpack.c.b16 %v1170, %v1169
        %v1236 = vpack.c.b16 %v1172, %v1171
        %v1246 = vunpack.c.l.b16 %v908
        %v1247 = vunpack.c.l.b16 %v909
        %v1248 = vunpack.c.l.b16 %v910
        %v1249 = vunpack.c.l.b16 %v911
        %v1250 = vunpack.c.l.b16 %v912
        %v1251 = vunpack.c.l.b16 %v913
        %v1252 = vunpack.c.l.b16 %v914
        %v1253 = vunpack.c.l.b16 %v915
        %v1254 = vunpack.c.l.b16 %v916
        %v1255 = vpack.c.b16 %v1247, %v1246
        %v1256 = vpack.c.b16 %v1249, %v1248
        %v1257 = vpack.c.b16 %v1251, %v1250
        %v1258 = vpack.c.b16 %v1253, %v1252
        %v1259 = vpack.c.b16 %v1254, %v1254
        %vm1264 = vcmask 588800
        %v1266 = vsel %vm1264, %v1173, 0
        %v1269 = vsel %vm1264, %v1174, 0
        %v1272 = vsel %vm1264, %v1175, 0
        %v1275 = vsel %vm1264, %v1176, 0
        %v1278 = vsel %vm1264, %v1177, 0
        %v1281 = vsel %vm1264, %v1178, 0
        %v1284 = vsel %vm1264, %v1179, 0
        %v1287 = vsel %vm1264, %v1180, 0
        %v1290 = vsel %vm1264, %v1181, 0
        %v1293 = vsel %vm1264, %v1182, 0
        %v1296 = vsel %vm1264, %v1183, 0
        %v1299 = vsel %vm1264, %v1184, 0
        %v1302 = vsel %vm1264, %v1185, 0
        %v1305 = vsel %vm1264, %v1186, 0
        %v1308 = vsel %vm1264, %v1187, 0
        %v1311 = vsel %vm1264, %v1188, 0
        %v1314 = vsel %vm1264, %v1189, 0
        %v1317 = vsel %vm1264, %v1190, 0
        %v1320 = vsel %vm1264, %v1191, 0
        %v1323 = vsel %vm1264, %v1192, 0
        %v1326 = vsel %vm1264, %v1193, 0
        %v1329 = vsel %vm1264, %v1194, 0
        %v1332 = vsel %vm1264, %v1195, 0
        %v1335 = vsel %vm1264, %v1196, 0
        %v1338 = vsel %vm1264, %v1197, 0
        %v1341 = vsel %vm1264, %v1198, 0
        %v1344 = vsel %vm1264, %v1199, 0
        %v1347 = vsel %vm1264, %v1200, 0
        %v1350 = vsel %vm1264, %v1201, 0
        %v1353 = vsel %vm1264, %v1202, 0
        %v1356 = vsel %vm1264, %v1203, 0
        %v1359 = vsel %vm1264, %v1204, 0
        %v1362 = vsel %vm1264, %v1205, 0
        %v1365 = vsel %vm1264, %v1206, 0
        %v1368 = vsel %vm1264, %v1207, 0
        %v1371 = vsel %vm1264, %v1208, 0
        %v1374 = vsel %vm1264, %v1209, 0
        %v1377 = vsel %vm1264, %v1210, 0
        %v1380 = vsel %vm1264, %v1211, 0
        %v1383 = vsel %vm1264, %v1212, 0
        %v1386 = vsel %vm1264, %v1213, 0
        %v1389 = vsel %vm1264, %v1214, 0
        %v1392 = vsel %vm1264, %v1215, 0
        %v1395 = vsel %vm1264, %v1216, 0
        %v1398 = vsel %vm1264, %v1217, 0
        %v1401 = vsel %vm1264, %v1218, 0
        %v1404 = vsel %vm1264, %v1219, 0
        %v1407 = vsel %vm1264, %v1220, 0
        %v1410 = vsel %vm1264, %v1221, 0
        %v1413 = vsel %vm1264, %v1222, 0
        %v1416 = vsel %vm1264, %v1223, 0
        %v1419 = vsel %vm1264, %v1224, 0
        %v1422 = vsel %vm1264, %v1225, 0
        %v1425 = vsel %vm1264, %v1226, 0
        %v1428 = vsel %vm1264, %v1227, 0
        %v1431 = vsel %vm1264, %v1228, 0
        %v1434 = vsel %vm1264, %v1229, 0
        %v1437 = vsel %vm1264, %v1230, 0
        %v1440 = vsel %vm1264, %v1231, 0
        %v1443 = vsel %vm1264, %v1232, 0
        %v1446 = vsel %vm1264, %v1233, 0
        %v1449 = vsel %vm1264, %v1234, 0
        %v1452 = vsel %vm1264, %v1235, 0
        %v1455 = vsel %vm1264, %v1236, 0
        %vm1457 = vcmask 1043456
        %v1459 = vsel %vm1457, %v1259, 0
        %1461 = vmatpush.bf16.msra.mxu0 0
        %1462 = vmatpush.bf16.msra.mxu0 0
        %1463 = vmatpush.bf16.msra.mxu0 0
        %1464 = vmatpush.bf16.msra.mxu0 %v1459
        %1465 = vmatpush.bf16.msra.mxu0 %v1258
        %1466 = vmatpush.bf16.msra.mxu0 %v1257
        %1467 = vmatpush.bf16.msra.mxu0 %v1256
        %1468 = vmatpush.bf16.msra.mxu0 %v1255
        %1469 = vmatmul.bf16.gmra.mxu0 %v1266
        %v1470 = vpop.f32.mrf.mxu0
        %v1471 = vadd.f32 0.0, %v1470
        %v1472 = vpop.f32.mrf.mxu0
        %v1473 = vadd.f32 0.0, %v1472
        %1474 = vmatmul.bf16.gmra.mxu0 %v1269
        %v1475 = vpop.f32.mrf.mxu0
        %v1476 = vadd.f32 0.0, %v1475
        %v1477 = vpop.f32.mrf.mxu0
        %v1478 = vadd.f32 0.0, %v1477
        %1479 = vmatmul.bf16.gmra.mxu0 %v1272
        %v1480 = vpop.f32.mrf.mxu0
        %v1481 = vadd.f32 0.0, %v1480
        %v1482 = vpop.f32.mrf.mxu0
        %v1483 = vadd.f32 0.0, %v1482
        %1484 = vmatmul.bf16.gmra.mxu0 %v1275
        %v1485 = vpop.f32.mrf.mxu0
        %v1486 = vadd.f32 0.0, %v1485
        %v1487 = vpop.f32.mrf.mxu0
        %v1488 = vadd.f32 0.0, %v1487
        %1489 = vmatmul.bf16.gmra.mxu0 %v1278
        %v1490 = vpop.f32.mrf.mxu0
        %v1491 = vadd.f32 0.0, %v1490
        %v1492 = vpop.f32.mrf.mxu0
        %v1493 = vadd.f32 0.0, %v1492
        %1494 = vmatmul.bf16.gmra.mxu0 %v1281
        %v1495 = vpop.f32.mrf.mxu0
        %v1496 = vadd.f32 0.0, %v1495
        %v1497 = vpop.f32.mrf.mxu0
        %v1498 = vadd.f32 0.0, %v1497
        %1499 = vmatmul.bf16.gmra.mxu0 %v1284
        %v1500 = vpop.f32.mrf.mxu0
        %v1501 = vadd.f32 0.0, %v1500
        %v1502 = vpop.f32.mrf.mxu0
        %v1503 = vadd.f32 0.0, %v1502
        %1504 = vmatmul.bf16.gmra.mxu0 %v1287
        %v1505 = vpop.f32.mrf.mxu0
        %v1506 = vadd.f32 0.0, %v1505
        %v1507 = vpop.f32.mrf.mxu0
        %v1508 = vadd.f32 0.0, %v1507
        %1509 = vmatmul.bf16.gmra.mxu0 %v1290
        %v1510 = vpop.f32.mrf.mxu0
        %v1511 = vadd.f32 0.0, %v1510
        %v1512 = vpop.f32.mrf.mxu0
        %v1513 = vadd.f32 0.0, %v1512
        %1514 = vmatmul.bf16.gmra.mxu0 %v1293
        %v1515 = vpop.f32.mrf.mxu0
        %v1516 = vadd.f32 0.0, %v1515
        %v1517 = vpop.f32.mrf.mxu0
        %v1518 = vadd.f32 0.0, %v1517
        %1519 = vmatmul.bf16.gmra.mxu0 %v1296
        %v1520 = vpop.f32.mrf.mxu0
        %v1521 = vadd.f32 0.0, %v1520
        %v1522 = vpop.f32.mrf.mxu0
        %v1523 = vadd.f32 0.0, %v1522
        %1524 = vmatmul.bf16.gmra.mxu0 %v1299
        %v1525 = vpop.f32.mrf.mxu0
        %v1526 = vadd.f32 0.0, %v1525
        %v1527 = vpop.f32.mrf.mxu0
        %v1528 = vadd.f32 0.0, %v1527
        %1529 = vmatmul.bf16.gmra.mxu0 %v1302
        %v1530 = vpop.f32.mrf.mxu0
        %v1531 = vadd.f32 0.0, %v1530
        %v1532 = vpop.f32.mrf.mxu0
        %v1533 = vadd.f32 0.0, %v1532
        %1534 = vmatmul.bf16.gmra.mxu0 %v1305
        %v1535 = vpop.f32.mrf.mxu0
        %v1536 = vadd.f32 0.0, %v1535
        %v1537 = vpop.f32.mrf.mxu0
        %v1538 = vadd.f32 0.0, %v1537
        %1539 = vmatmul.bf16.gmra.mxu0 %v1308
        %v1540 = vpop.f32.mrf.mxu0
        %v1541 = vadd.f32 0.0, %v1540
        %v1542 = vpop.f32.mrf.mxu0
        %v1543 = vadd.f32 0.0, %v1542
        %1544 = vmatmul.bf16.gmra.mxu0 %v1311
        %v1545 = vpop.f32.mrf.mxu0
        %v1546 = vadd.f32 0.0, %v1545
        %v1547 = vpop.f32.mrf.mxu0
        %v1548 = vadd.f32 0.0, %v1547
        %1549 = vmatmul.bf16.gmra.mxu0 %v1314
        %v1550 = vpop.f32.mrf.mxu0
        %v1551 = vadd.f32 0.0, %v1550
        %v1552 = vpop.f32.mrf.mxu0
        %v1553 = vadd.f32 0.0, %v1552
        %1554 = vmatmul.bf16.gmra.mxu0 %v1317
        %v1555 = vpop.f32.mrf.mxu0
        %v1556 = vadd.f32 0.0, %v1555
        %v1557 = vpop.f32.mrf.mxu0
        %v1558 = vadd.f32 0.0, %v1557
        %1559 = vmatmul.bf16.gmra.mxu0 %v1320
        %v1560 = vpop.f32.mrf.mxu0
        %v1561 = vadd.f32 0.0, %v1560
        %v1562 = vpop.f32.mrf.mxu0
        %v1563 = vadd.f32 0.0, %v1562
        %1564 = vmatmul.bf16.gmra.mxu0 %v1323
        %v1565 = vpop.f32.mrf.mxu0
        %v1566 = vadd.f32 0.0, %v1565
        %v1567 = vpop.f32.mrf.mxu0
        %v1568 = vadd.f32 0.0, %v1567
        %1569 = vmatmul.bf16.gmra.mxu0 %v1326
        %v1570 = vpop.f32.mrf.mxu0
        %v1571 = vadd.f32 0.0, %v1570
        %v1572 = vpop.f32.mrf.mxu0
        %v1573 = vadd.f32 0.0, %v1572
        %1574 = vmatmul.bf16.gmra.mxu0 %v1329
        %v1575 = vpop.f32.mrf.mxu0
        %v1576 = vadd.f32 0.0, %v1575
        %v1577 = vpop.f32.mrf.mxu0
        %v1578 = vadd.f32 0.0, %v1577
        %1579 = vmatmul.bf16.gmra.mxu0 %v1332
        %v1580 = vpop.f32.mrf.mxu0
        %v1581 = vadd.f32 0.0, %v1580
        %v1582 = vpop.f32.mrf.mxu0
        %v1583 = vadd.f32 0.0, %v1582
        %1584 = vmatmul.bf16.gmra.mxu0 %v1335
        %v1585 = vpop.f32.mrf.mxu0
        %v1586 = vadd.f32 0.0, %v1585
        %v1587 = vpop.f32.mrf.mxu0
        %v1588 = vadd.f32 0.0, %v1587
        %1589 = vmatmul.bf16.gmra.mxu0 %v1338
        %v1590 = vpop.f32.mrf.mxu0
        %v1591 = vadd.f32 0.0, %v1590
        %v1592 = vpop.f32.mrf.mxu0
        %v1593 = vadd.f32 0.0, %v1592
        %1594 = vmatmul.bf16.gmra.mxu0 %v1341
        %v1595 = vpop.f32.mrf.mxu0
        %v1596 = vadd.f32 0.0, %v1595
        %v1597 = vpop.f32.mrf.mxu0
        %v1598 = vadd.f32 0.0, %v1597
        %1599 = vmatmul.bf16.gmra.mxu0 %v1344
        %v1600 = vpop.f32.mrf.mxu0
        %v1601 = vadd.f32 0.0, %v1600
        %v1602 = vpop.f32.mrf.mxu0
        %v1603 = vadd.f32 0.0, %v1602
        %1604 = vmatmul.bf16.gmra.mxu0 %v1347
        %v1605 = vpop.f32.mrf.mxu0
        %v1606 = vadd.f32 0.0, %v1605
        %v1607 = vpop.f32.mrf.mxu0
        %v1608 = vadd.f32 0.0, %v1607
        %1609 = vmatmul.bf16.gmra.mxu0 %v1350
        %v1610 = vpop.f32.mrf.mxu0
        %v1611 = vadd.f32 0.0, %v1610
        %v1612 = vpop.f32.mrf.mxu0
        %v1613 = vadd.f32 0.0, %v1612
        %1614 = vmatmul.bf16.gmra.mxu0 %v1353
        %v1615 = vpop.f32.mrf.mxu0
        %v1616 = vadd.f32 0.0, %v1615
        %v1617 = vpop.f32.mrf.mxu0
        %v1618 = vadd.f32 0.0, %v1617
        %1619 = vmatmul.bf16.gmra.mxu0 %v1356
        %v1620 = vpop.f32.mrf.mxu0
        %v1621 = vadd.f32 0.0, %v1620
        %v1622 = vpop.f32.mrf.mxu0
        %v1623 = vadd.f32 0.0, %v1622
        %1624 = vmatmul.bf16.gmra.mxu0 %v1359
        %v1625 = vpop.f32.mrf.mxu0
        %v1626 = vadd.f32 0.0, %v1625
        %v1627 = vpop.f32.mrf.mxu0
        %v1628 = vadd.f32 0.0, %v1627
        %1629 = vmatmul.bf16.gmra.mxu0 %v1362
        %v1630 = vpop.f32.mrf.mxu0
        %v1631 = vadd.f32 0.0, %v1630
        %v1632 = vpop.f32.mrf.mxu0
        %v1633 = vadd.f32 0.0, %v1632
        %1634 = vmatmul.bf16.gmra.mxu0 %v1365
        %v1635 = vpop.f32.mrf.mxu0
        %v1636 = vadd.f32 0.0, %v1635
        %v1637 = vpop.f32.mrf.mxu0
        %v1638 = vadd.f32 0.0, %v1637
        %1639 = vmatmul.bf16.gmra.mxu0 %v1368
        %v1640 = vpop.f32.mrf.mxu0
        %v1641 = vadd.f32 0.0, %v1640
        %v1642 = vpop.f32.mrf.mxu0
        %v1643 = vadd.f32 0.0, %v1642
        %1644 = vmatmul.bf16.gmra.mxu0 %v1371
        %v1645 = vpop.f32.mrf.mxu0
        %v1646 = vadd.f32 0.0, %v1645
        %v1647 = vpop.f32.mrf.mxu0
        %v1648 = vadd.f32 0.0, %v1647
        %1649 = vmatmul.bf16.gmra.mxu0 %v1374
        %v1650 = vpop.f32.mrf.mxu0
        %v1651 = vadd.f32 0.0, %v1650
        %v1652 = vpop.f32.mrf.mxu0
        %v1653 = vadd.f32 0.0, %v1652
        %1654 = vmatmul.bf16.gmra.mxu0 %v1377
        %v1655 = vpop.f32.mrf.mxu0
        %v1656 = vadd.f32 0.0, %v1655
        %v1657 = vpop.f32.mrf.mxu0
        %v1658 = vadd.f32 0.0, %v1657
        %1659 = vmatmul.bf16.gmra.mxu0 %v1380
        %v1660 = vpop.f32.mrf.mxu0
        %v1661 = vadd.f32 0.0, %v1660
        %v1662 = vpop.f32.mrf.mxu0
        %v1663 = vadd.f32 0.0, %v1662
        %1664 = vmatmul.bf16.gmra.mxu0 %v1383
        %v1665 = vpop.f32.mrf.mxu0
        %v1666 = vadd.f32 0.0, %v1665
        %v1667 = vpop.f32.mrf.mxu0
        %v1668 = vadd.f32 0.0, %v1667
        %1669 = vmatmul.bf16.gmra.mxu0 %v1386
        %v1670 = vpop.f32.mrf.mxu0
        %v1671 = vadd.f32 0.0, %v1670
        %v1672 = vpop.f32.mrf.mxu0
        %v1673 = vadd.f32 0.0, %v1672
        %1674 = vmatmul.bf16.gmra.mxu0 %v1389
        %v1675 = vpop.f32.mrf.mxu0
        %v1676 = vadd.f32 0.0, %v1675
        %v1677 = vpop.f32.mrf.mxu0
        %v1678 = vadd.f32 0.0, %v1677
        %1679 = vmatmul.bf16.gmra.mxu0 %v1392
        %v1680 = vpop.f32.mrf.mxu0
        %v1681 = vadd.f32 0.0, %v1680
        %v1682 = vpop.f32.mrf.mxu0
        %v1683 = vadd.f32 0.0, %v1682
        %1684 = vmatmul.bf16.gmra.mxu0 %v1395
        %v1685 = vpop.f32.mrf.mxu0
        %v1686 = vadd.f32 0.0, %v1685
        %v1687 = vpop.f32.mrf.mxu0
        %v1688 = vadd.f32 0.0, %v1687
        %1689 = vmatmul.bf16.gmra.mxu0 %v1398
        %v1690 = vpop.f32.mrf.mxu0
        %v1691 = vadd.f32 0.0, %v1690
        %v1692 = vpop.f32.mrf.mxu0
        %v1693 = vadd.f32 0.0, %v1692
        %1694 = vmatmul.bf16.gmra.mxu0 %v1401
        %v1695 = vpop.f32.mrf.mxu0
        %v1696 = vadd.f32 0.0, %v1695
        %v1697 = vpop.f32.mrf.mxu0
        %v1698 = vadd.f32 0.0, %v1697
        %1699 = vmatmul.bf16.gmra.mxu0 %v1404
        %v1700 = vpop.f32.mrf.mxu0
        %v1701 = vadd.f32 0.0, %v1700
        %v1702 = vpop.f32.mrf.mxu0
        %v1703 = vadd.f32 0.0, %v1702
        %1704 = vmatmul.bf16.gmra.mxu0 %v1407
        %v1705 = vpop.f32.mrf.mxu0
        %v1706 = vadd.f32 0.0, %v1705
        %v1707 = vpop.f32.mrf.mxu0
        %v1708 = vadd.f32 0.0, %v1707
        %1709 = vmatmul.bf16.gmra.mxu0 %v1410
        %v1710 = vpop.f32.mrf.mxu0
        %v1711 = vadd.f32 0.0, %v1710
        %v1712 = vpop.f32.mrf.mxu0
        %v1713 = vadd.f32 0.0, %v1712
        %1714 = vmatmul.bf16.gmra.mxu0 %v1413
        %v1715 = vpop.f32.mrf.mxu0
        %v1716 = vadd.f32 0.0, %v1715
        %v1717 = vpop.f32.mrf.mxu0
        %v1718 = vadd.f32 0.0, %v1717
        %1719 = vmatmul.bf16.gmra.mxu0 %v1416
        %v1720 = vpop.f32.mrf.mxu0
        %v1721 = vadd.f32 0.0, %v1720
        %v1722 = vpop.f32.mrf.mxu0
        %v1723 = vadd.f32 0.0, %v1722
        %1724 = vmatmul.bf16.gmra.mxu0 %v1419
        %v1725 = vpop.f32.mrf.mxu0
        %v1726 = vadd.f32 0.0, %v1725
        %v1727 = vpop.f32.mrf.mxu0
        %v1728 = vadd.f32 0.0, %v1727
        %1729 = vmatmul.bf16.gmra.mxu0 %v1422
        %v1730 = vpop.f32.mrf.mxu0
        %v1731 = vadd.f32 0.0, %v1730
        %v1732 = vpop.f32.mrf.mxu0
        %v1733 = vadd.f32 0.0, %v1732
        %1734 = vmatmul.bf16.gmra.mxu0 %v1425
        %v1735 = vpop.f32.mrf.mxu0
        %v1736 = vadd.f32 0.0, %v1735
        %v1737 = vpop.f32.mrf.mxu0
        %v1738 = vadd.f32 0.0, %v1737
        %1739 = vmatmul.bf16.gmra.mxu0 %v1428
        %v1740 = vpop.f32.mrf.mxu0
        %v1741 = vadd.f32 0.0, %v1740
        %v1742 = vpop.f32.mrf.mxu0
        %v1743 = vadd.f32 0.0, %v1742
        %1744 = vmatmul.bf16.gmra.mxu0 %v1431
        %v1745 = vpop.f32.mrf.mxu0
        %v1746 = vadd.f32 0.0, %v1745
        %v1747 = vpop.f32.mrf.mxu0
        %v1748 = vadd.f32 0.0, %v1747
        %1749 = vmatmul.bf16.gmra.mxu0 %v1434
        %v1750 = vpop.f32.mrf.mxu0
        %v1751 = vadd.f32 0.0, %v1750
        %v1752 = vpop.f32.mrf.mxu0
        %v1753 = vadd.f32 0.0, %v1752
        %1754 = vmatmul.bf16.gmra.mxu0 %v1437
        %v1755 = vpop.f32.mrf.mxu0
        %v1756 = vadd.f32 0.0, %v1755
        %v1757 = vpop.f32.mrf.mxu0
        %v1758 = vadd.f32 0.0, %v1757
        %1759 = vmatmul.bf16.gmra.mxu0 %v1440
        %v1760 = vpop.f32.mrf.mxu0
        %v1761 = vadd.f32 0.0, %v1760
        %v1762 = vpop.f32.mrf.mxu0
        %v1763 = vadd.f32 0.0, %v1762
        %1764 = vmatmul.bf16.gmra.mxu0 %v1443
        %v1765 = vpop.f32.mrf.mxu0
        %v1766 = vadd.f32 0.0, %v1765
        %v1767 = vpop.f32.mrf.mxu0
        %v1768 = vadd.f32 0.0, %v1767
        %1769 = vmatmul.bf16.gmra.mxu0 %v1446
        %v1770 = vpop.f32.mrf.mxu0
        %v1771 = vadd.f32 0.0, %v1770
        %v1772 = vpop.f32.mrf.mxu0
        %v1773 = vadd.f32 0.0, %v1772
        %1774 = vmatmul.bf16.gmra.mxu0 %v1449
        %v1775 = vpop.f32.mrf.mxu0
        %v1776 = vadd.f32 0.0, %v1775
        %v1777 = vpop.f32.mrf.mxu0
        %v1778 = vadd.f32 0.0, %v1777
        %1779 = vmatmul.bf16.gmra.mxu0 %v1452
        %v1780 = vpop.f32.mrf.mxu0
        %v1781 = vadd.f32 0.0, %v1780
        %v1782 = vpop.f32.mrf.mxu0
        %v1783 = vadd.f32 0.0, %v1782
        %1784 = vmatmul.bf16.gmra.mxu0 %v1455
        %v1785 = vpop.f32.mrf.mxu0
        %v1786 = vadd.f32 0.0, %v1785
        %v1787 = vpop.f32.mrf.mxu0
        %v1788 = vadd.f32 0.0, %v1787
        %1789 = vdwg.mxu0
        %vm1790 = vcmask 261120
        %v1791 = vsel %vm1790, %v1471, -inf
        %v1792 = vsel %vm1790, %v1551, -inf
        %v1793 = vmax.f32 %v1791, %v1792
        %v1794 = vsel %vm1790, %v1631, -inf
        %v1795 = vmax.f32 %v1793, %v1794
        %v1796 = vsel %vm1790, %v1711, -inf
        %v1797 = vmax.f32 %v1795, %v1796
        %v1798 = vsel %vm1790, %v1473, -inf
        %v1799 = vsel %vm1790, %v1553, -inf
        %v1800 = vmax.f32 %v1798, %v1799
        %v1801 = vsel %vm1790, %v1633, -inf
        %v1802 = vmax.f32 %v1800, %v1801
        %v1803 = vsel %vm1790, %v1713, -inf
        %v1804 = vmax.f32 %v1802, %v1803
        %v1805 = vsel %vm1790, %v1476, -inf
        %v1806 = vsel %vm1790, %v1556, -inf
        %v1807 = vmax.f32 %v1805, %v1806
        %v1808 = vsel %vm1790, %v1636, -inf
        %v1809 = vmax.f32 %v1807, %v1808
        %v1810 = vsel %vm1790, %v1716, -inf
        %v1811 = vmax.f32 %v1809, %v1810
        %v1812 = vsel %vm1790, %v1478, -inf
        %v1813 = vsel %vm1790, %v1558, -inf
        %v1814 = vmax.f32 %v1812, %v1813
        %v1815 = vsel %vm1790, %v1638, -inf
        %v1816 = vmax.f32 %v1814, %v1815
        %v1817 = vsel %vm1790, %v1718, -inf
        %v1818 = vmax.f32 %v1816, %v1817
        %v1819 = vsel %vm1790, %v1481, -inf
        %v1820 = vsel %vm1790, %v1561, -inf
        %v1821 = vmax.f32 %v1819, %v1820
        %v1822 = vsel %vm1790, %v1641, -inf
        %v1823 = vmax.f32 %v1821, %v1822
        %v1824 = vsel %vm1790, %v1721, -inf
        %v1825 = vmax.f32 %v1823, %v1824
        %v1826 = vsel %vm1790, %v1483, -inf
        %v1827 = vsel %vm1790, %v1563, -inf
        %v1828 = vmax.f32 %v1826, %v1827
        %v1829 = vsel %vm1790, %v1643, -inf
        %v1830 = vmax.f32 %v1828, %v1829
        %v1831 = vsel %vm1790, %v1723, -inf
        %v1832 = vmax.f32 %v1830, %v1831
        %v1833 = vsel %vm1790, %v1486, -inf
        %v1834 = vsel %vm1790, %v1566, -inf
        %v1835 = vmax.f32 %v1833, %v1834
        %v1836 = vsel %vm1790, %v1646, -inf
        %v1837 = vmax.f32 %v1835, %v1836
        %v1838 = vsel %vm1790, %v1726, -inf
        %v1839 = vmax.f32 %v1837, %v1838
        %v1840 = vsel %vm1790, %v1488, -inf
        %v1841 = vsel %vm1790, %v1568, -inf
        %v1842 = vmax.f32 %v1840, %v1841
        %v1843 = vsel %vm1790, %v1648, -inf
        %v1844 = vmax.f32 %v1842, %v1843
        %v1845 = vsel %vm1790, %v1728, -inf
        %v1846 = vmax.f32 %v1844, %v1845
        %v1847 = vsel %vm1790, %v1491, -inf
        %v1848 = vsel %vm1790, %v1571, -inf
        %v1849 = vmax.f32 %v1847, %v1848
        %v1850 = vsel %vm1790, %v1651, -inf
        %v1851 = vmax.f32 %v1849, %v1850
        %v1852 = vsel %vm1790, %v1731, -inf
        %v1853 = vmax.f32 %v1851, %v1852
        %v1854 = vsel %vm1790, %v1493, -inf
        %v1855 = vsel %vm1790, %v1573, -inf
        %v1856 = vmax.f32 %v1854, %v1855
        %v1857 = vsel %vm1790, %v1653, -inf
        %v1858 = vmax.f32 %v1856, %v1857
        %v1859 = vsel %vm1790, %v1733, -inf
        %v1860 = vmax.f32 %v1858, %v1859
        %v1861 = vsel %vm1790, %v1496, -inf
        %v1862 = vsel %vm1790, %v1576, -inf
        %v1863 = vmax.f32 %v1861, %v1862
        %v1864 = vsel %vm1790, %v1656, -inf
        %v1865 = vmax.f32 %v1863, %v1864
        %v1866 = vsel %vm1790, %v1736, -inf
        %v1867 = vmax.f32 %v1865, %v1866
        %v1868 = vsel %vm1790, %v1498, -inf
        %v1869 = vsel %vm1790, %v1578, -inf
        %v1870 = vmax.f32 %v1868, %v1869
        %v1871 = vsel %vm1790, %v1658, -inf
        %v1872 = vmax.f32 %v1870, %v1871
        %v1873 = vsel %vm1790, %v1738, -inf
        %v1874 = vmax.f32 %v1872, %v1873
        %v1875 = vsel %vm1790, %v1501, -inf
        %v1876 = vsel %vm1790, %v1581, -inf
        %v1877 = vmax.f32 %v1875, %v1876
        %v1878 = vsel %vm1790, %v1661, -inf
        %v1879 = vmax.f32 %v1877, %v1878
        %v1880 = vsel %vm1790, %v1741, -inf
        %v1881 = vmax.f32 %v1879, %v1880
        %v1882 = vsel %vm1790, %v1503, -inf
        %v1883 = vsel %vm1790, %v1583, -inf
        %v1884 = vmax.f32 %v1882, %v1883
        %v1885 = vsel %vm1790, %v1663, -inf
        %v1886 = vmax.f32 %v1884, %v1885
        %v1887 = vsel %vm1790, %v1743, -inf
        %v1888 = vmax.f32 %v1886, %v1887
        %v1889 = vsel %vm1790, %v1506, -inf
        %v1890 = vsel %vm1790, %v1586, -inf
        %v1891 = vmax.f32 %v1889, %v1890
        %v1892 = vsel %vm1790, %v1666, -inf
        %v1893 = vmax.f32 %v1891, %v1892
        %v1894 = vsel %vm1790, %v1746, -inf
        %v1895 = vmax.f32 %v1893, %v1894
        %v1896 = vsel %vm1790, %v1508, -inf
        %v1897 = vsel %vm1790, %v1588, -inf
        %v1898 = vmax.f32 %v1896, %v1897
        %v1899 = vsel %vm1790, %v1668, -inf
        %v1900 = vmax.f32 %v1898, %v1899
        %v1901 = vsel %vm1790, %v1748, -inf
        %v1902 = vmax.f32 %v1900, %v1901
        %v1903 = vsel %vm1790, %v1511, -inf
        %v1904 = vsel %vm1790, %v1591, -inf
        %v1905 = vmax.f32 %v1903, %v1904
        %v1906 = vsel %vm1790, %v1671, -inf
        %v1907 = vmax.f32 %v1905, %v1906
        %v1908 = vsel %vm1790, %v1751, -inf
        %v1909 = vmax.f32 %v1907, %v1908
        %v1910 = vsel %vm1790, %v1513, -inf
        %v1911 = vsel %vm1790, %v1593, -inf
        %v1912 = vmax.f32 %v1910, %v1911
        %v1913 = vsel %vm1790, %v1673, -inf
        %v1914 = vmax.f32 %v1912, %v1913
        %v1915 = vsel %vm1790, %v1753, -inf
        %v1916 = vmax.f32 %v1914, %v1915
        %v1917 = vsel %vm1790, %v1516, -inf
        %v1918 = vsel %vm1790, %v1596, -inf
        %v1919 = vmax.f32 %v1917, %v1918
        %v1920 = vsel %vm1790, %v1676, -inf
        %v1921 = vmax.f32 %v1919, %v1920
        %v1922 = vsel %vm1790, %v1756, -inf
        %v1923 = vmax.f32 %v1921, %v1922
        %v1924 = vsel %vm1790, %v1518, -inf
        %v1925 = vsel %vm1790, %v1598, -inf
        %v1926 = vmax.f32 %v1924, %v1925
        %v1927 = vsel %vm1790, %v1678, -inf
        %v1928 = vmax.f32 %v1926, %v1927
        %v1929 = vsel %vm1790, %v1758, -inf
        %v1930 = vmax.f32 %v1928, %v1929
        %v1931 = vsel %vm1790, %v1521, -inf
        %v1932 = vsel %vm1790, %v1601, -inf
        %v1933 = vmax.f32 %v1931, %v1932
        %v1934 = vsel %vm1790, %v1681, -inf
        %v1935 = vmax.f32 %v1933, %v1934
        %v1936 = vsel %vm1790, %v1761, -inf
        %v1937 = vmax.f32 %v1935, %v1936
        %v1938 = vsel %vm1790, %v1523, -inf
        %v1939 = vsel %vm1790, %v1603, -inf
        %v1940 = vmax.f32 %v1938, %v1939
        %v1941 = vsel %vm1790, %v1683, -inf
        %v1942 = vmax.f32 %v1940, %v1941
        %v1943 = vsel %vm1790, %v1763, -inf
        %v1944 = vmax.f32 %v1942, %v1943
        %v1945 = vsel %vm1790, %v1526, -inf
        %v1946 = vsel %vm1790, %v1606, -inf
        %v1947 = vmax.f32 %v1945, %v1946
        %v1948 = vsel %vm1790, %v1686, -inf
        %v1949 = vmax.f32 %v1947, %v1948
        %v1950 = vsel %vm1790, %v1766, -inf
        %v1951 = vmax.f32 %v1949, %v1950
        %v1952 = vsel %vm1790, %v1528, -inf
        %v1953 = vsel %vm1790, %v1608, -inf
        %v1954 = vmax.f32 %v1952, %v1953
        %v1955 = vsel %vm1790, %v1688, -inf
        %v1956 = vmax.f32 %v1954, %v1955
        %v1957 = vsel %vm1790, %v1768, -inf
        %v1958 = vmax.f32 %v1956, %v1957
        %v1959 = vsel %vm1790, %v1531, -inf
        %v1960 = vsel %vm1790, %v1611, -inf
        %v1961 = vmax.f32 %v1959, %v1960
        %v1962 = vsel %vm1790, %v1691, -inf
        %v1963 = vmax.f32 %v1961, %v1962
        %v1964 = vsel %vm1790, %v1771, -inf
        %v1965 = vmax.f32 %v1963, %v1964
        %v1966 = vsel %vm1790, %v1533, -inf
        %v1967 = vsel %vm1790, %v1613, -inf
        %v1968 = vmax.f32 %v1966, %v1967
        %v1969 = vsel %vm1790, %v1693, -inf
        %v1970 = vmax.f32 %v1968, %v1969
        %v1971 = vsel %vm1790, %v1773, -inf
        %v1972 = vmax.f32 %v1970, %v1971
        %v1973 = vsel %vm1790, %v1536, -inf
        %v1974 = vsel %vm1790, %v1616, -inf
        %v1975 = vmax.f32 %v1973, %v1974
        %v1976 = vsel %vm1790, %v1696, -inf
        %v1977 = vmax.f32 %v1975, %v1976
        %v1978 = vsel %vm1790, %v1776, -inf
        %v1979 = vmax.f32 %v1977, %v1978
        %v1980 = vsel %vm1790, %v1538, -inf
        %v1981 = vsel %vm1790, %v1618, -inf
        %v1982 = vmax.f32 %v1980, %v1981
        %v1983 = vsel %vm1790, %v1698, -inf
        %v1984 = vmax.f32 %v1982, %v1983
        %v1985 = vsel %vm1790, %v1778, -inf
        %v1986 = vmax.f32 %v1984, %v1985
        %v1987 = vsel %vm1790, %v1541, -inf
        %v1988 = vsel %vm1790, %v1621, -inf
        %v1989 = vmax.f32 %v1987, %v1988
        %v1990 = vsel %vm1790, %v1701, -inf
        %v1991 = vmax.f32 %v1989, %v1990
        %v1992 = vsel %vm1790, %v1781, -inf
        %v1993 = vmax.f32 %v1991, %v1992
        %v1994 = vsel %vm1790, %v1543, -inf
        %v1995 = vsel %vm1790, %v1623, -inf
        %v1996 = vmax.f32 %v1994, %v1995
        %v1997 = vsel %vm1790, %v1703, -inf
        %v1998 = vmax.f32 %v1996, %v1997
        %v1999 = vsel %vm1790, %v1783, -inf
        %v2000 = vmax.f32 %v1998, %v1999
        %v2001 = vsel %vm1790, %v1546, -inf
        %v2002 = vsel %vm1790, %v1626, -inf
        %v2003 = vmax.f32 %v2001, %v2002
        %v2004 = vsel %vm1790, %v1706, -inf
        %v2005 = vmax.f32 %v2003, %v2004
        %v2006 = vsel %vm1790, %v1786, -inf
        %v2007 = vmax.f32 %v2005, %v2006
        %v2008 = vsel %vm1790, %v1548, -inf
        %v2009 = vsel %vm1790, %v1628, -inf
        %v2010 = vmax.f32 %v2008, %v2009
        %v2011 = vsel %vm1790, %v1708, -inf
        %v2012 = vmax.f32 %v2010, %v2011
        %v2013 = vsel %vm1790, %v1788, -inf
        %v2014 = vmax.f32 %v2012, %v2013
        %v2015 = vld [vmem:[%s2] sm:$0x1]
        %v2017 = vperm.slane %v2015, 0
        %v2019 = vadd.f32 %v1797, %v2017
        %v2020 = vadd.f32 %v1804, %v2017
        %v2021 = vadd.f32 %v1811, %v2017
        %v2022 = vadd.f32 %v1818, %v2017
        %v2023 = vadd.f32 %v1825, %v2017
        %v2024 = vadd.f32 %v1832, %v2017
        %v2025 = vadd.f32 %v1839, %v2017
        %v2026 = vadd.f32 %v1846, %v2017
        %v2027 = vadd.f32 %v1853, %v2017
        %v2028 = vadd.f32 %v1860, %v2017
        %v2029 = vadd.f32 %v1867, %v2017
        %v2030 = vadd.f32 %v1874, %v2017
        %v2031 = vadd.f32 %v1881, %v2017
        %v2032 = vadd.f32 %v1888, %v2017
        %v2033 = vadd.f32 %v1895, %v2017
        %v2034 = vadd.f32 %v1902, %v2017
        %v2035 = vadd.f32 %v1909, %v2017
        %v2036 = vadd.f32 %v1916, %v2017
        %v2037 = vadd.f32 %v1923, %v2017
        %v2038 = vadd.f32 %v1930, %v2017
        %v2039 = vadd.f32 %v1937, %v2017
        %v2040 = vadd.f32 %v1944, %v2017
        %v2041 = vadd.f32 %v1951, %v2017
        %v2042 = vadd.f32 %v1958, %v2017
        %v2043 = vadd.f32 %v1965, %v2017
        %v2044 = vadd.f32 %v1972, %v2017
        %v2045 = vadd.f32 %v1979, %v2017
        %v2046 = vadd.f32 %v1986, %v2017
        %v2047 = vadd.f32 %v1993, %v2017
        %v2048 = vadd.f32 %v2000, %v2017
        %v2049 = vadd.f32 %v2007, %v2017
        %v2050 = vadd.f32 %v2014, %v2017
        %v2051 = vmax.f32 %v2019, 0.0
        %v2052 = vmax.f32 %v2020, 0.0
        %v2053 = vmax.f32 %v2021, 0.0
        %v2054 = vmax.f32 %v2022, 0.0
        %v2055 = vmax.f32 %v2023, 0.0
        %v2056 = vmax.f32 %v2024, 0.0
        %v2057 = vmax.f32 %v2025, 0.0
        %v2058 = vmax.f32 %v2026, 0.0
        %v2059 = vmax.f32 %v2027, 0.0
        %v2060 = vmax.f32 %v2028, 0.0
        %v2061 = vmax.f32 %v2029, 0.0
        %v2062 = vmax.f32 %v2030, 0.0
        %v2063 = vmax.f32 %v2031, 0.0
        %v2064 = vmax.f32 %v2032, 0.0
        %v2065 = vmax.f32 %v2033, 0.0
        %v2066 = vmax.f32 %v2034, 0.0
        %v2067 = vmax.f32 %v2035, 0.0
        %v2068 = vmax.f32 %v2036, 0.0
        %v2069 = vmax.f32 %v2037, 0.0
        %v2070 = vmax.f32 %v2038, 0.0
        %v2071 = vmax.f32 %v2039, 0.0
        %v2072 = vmax.f32 %v2040, 0.0
        %v2073 = vmax.f32 %v2041, 0.0
        %v2074 = vmax.f32 %v2042, 0.0
        %v2075 = vmax.f32 %v2043, 0.0
        %v2076 = vmax.f32 %v2044, 0.0
        %v2077 = vmax.f32 %v2045, 0.0
        %v2078 = vmax.f32 %v2046, 0.0
        %v2079 = vmax.f32 %v2047, 0.0
        %v2080 = vmax.f32 %v2048, 0.0
        %v2081 = vmax.f32 %v2049, 0.0
        %v2082 = vmax.f32 %v2050, 0.0
        %v2083 = vld [vmem:[%s3] sm:$0x1]
        %v2085 = vperm.slane %v2083, 0
        %v2087 = vmul.f32 %v2051, %v2085
        %v2088 = vmul.f32 %v2052, %v2085
        %v2089 = vmul.f32 %v2053, %v2085
        %v2090 = vmul.f32 %v2054, %v2085
        %v2091 = vmul.f32 %v2055, %v2085
        %v2092 = vmul.f32 %v2056, %v2085
        %v2093 = vmul.f32 %v2057, %v2085
        %v2094 = vmul.f32 %v2058, %v2085
        %v2095 = vmul.f32 %v2059, %v2085
        %v2096 = vmul.f32 %v2060, %v2085
        %v2097 = vmul.f32 %v2061, %v2085
        %v2098 = vmul.f32 %v2062, %v2085
        %v2099 = vmul.f32 %v2063, %v2085
        %v2100 = vmul.f32 %v2064, %v2085
        %v2101 = vmul.f32 %v2065, %v2085
        %v2102 = vmul.f32 %v2066, %v2085
        %v2103 = vmul.f32 %v2067, %v2085
        %v2104 = vmul.f32 %v2068, %v2085
        %v2105 = vmul.f32 %v2069, %v2085
        %v2106 = vmul.f32 %v2070, %v2085
        %v2107 = vmul.f32 %v2071, %v2085
        %v2108 = vmul.f32 %v2072, %v2085
        %v2109 = vmul.f32 %v2073, %v2085
        %v2110 = vmul.f32 %v2074, %v2085
        %v2111 = vmul.f32 %v2075, %v2085
        %v2112 = vmul.f32 %v2076, %v2085
        %v2113 = vmul.f32 %v2077, %v2085
        %v2114 = vmul.f32 %v2078, %v2085
        %v2115 = vmul.f32 %v2079, %v2085
        %v2116 = vmul.f32 %v2080, %v2085
        %v2117 = vmul.f32 %v2081, %v2085
        %v2118 = vmul.f32 %v2082, %v2085
        %v2119 = vld [vmem:[%s4] sm:$0x1]
        %v2121 = vperm.slane %v2119, 0
        %v2123 = vadd.f32 %v2087, %v2121
        %v2124 = vadd.f32 %v2088, %v2121
        %v2125 = vadd.f32 %v2089, %v2121
        %v2126 = vadd.f32 %v2090, %v2121
        %v2127 = vadd.f32 %v2091, %v2121
        %v2128 = vadd.f32 %v2092, %v2121
        %v2129 = vadd.f32 %v2093, %v2121
        %v2130 = vadd.f32 %v2094, %v2121
        %v2131 = vadd.f32 %v2095, %v2121
        %v2132 = vadd.f32 %v2096, %v2121
        %v2133 = vadd.f32 %v2097, %v2121
        %v2134 = vadd.f32 %v2098, %v2121
        %v2135 = vadd.f32 %v2099, %v2121
        %v2136 = vadd.f32 %v2100, %v2121
        %v2137 = vadd.f32 %v2101, %v2121
        %v2138 = vadd.f32 %v2102, %v2121
        %v2139 = vadd.f32 %v2103, %v2121
        %v2140 = vadd.f32 %v2104, %v2121
        %v2141 = vadd.f32 %v2105, %v2121
        %v2142 = vadd.f32 %v2106, %v2121
        %v2143 = vadd.f32 %v2107, %v2121
        %v2144 = vadd.f32 %v2108, %v2121
        %v2145 = vadd.f32 %v2109, %v2121
        %v2146 = vadd.f32 %v2110, %v2121
        %v2147 = vadd.f32 %v2111, %v2121
        %v2148 = vadd.f32 %v2112, %v2121
        %v2149 = vadd.f32 %v2113, %v2121
        %v2150 = vadd.f32 %v2114, %v2121
        %v2151 = vadd.f32 %v2115, %v2121
        %v2152 = vadd.f32 %v2116, %v2121
        %v2153 = vadd.f32 %v2117, %v2121
        %v2154 = vadd.f32 %v2118, %v2121
        %v2155 = vpack.c.bf16 %v2123, %v2123
        %v2156 = vpack.c.bf16 %v2124, %v2124
        %v2157 = vpack.c.bf16 %v2125, %v2125
        %v2158 = vpack.c.bf16 %v2126, %v2126
        %v2159 = vpack.c.bf16 %v2127, %v2127
        %v2160 = vpack.c.bf16 %v2128, %v2128
        %v2161 = vpack.c.bf16 %v2129, %v2129
        %v2162 = vpack.c.bf16 %v2130, %v2130
        %v2163 = vpack.c.bf16 %v2131, %v2131
        %v2164 = vpack.c.bf16 %v2132, %v2132
        %v2165 = vpack.c.bf16 %v2133, %v2133
        %v2166 = vpack.c.bf16 %v2134, %v2134
        %v2167 = vpack.c.bf16 %v2135, %v2135
        %v2168 = vpack.c.bf16 %v2136, %v2136
        %v2169 = vpack.c.bf16 %v2137, %v2137
        %v2170 = vpack.c.bf16 %v2138, %v2138
        %v2171 = vpack.c.bf16 %v2139, %v2139
        %v2172 = vpack.c.bf16 %v2140, %v2140
        %v2173 = vpack.c.bf16 %v2141, %v2141
        %v2174 = vpack.c.bf16 %v2142, %v2142
        %v2175 = vpack.c.bf16 %v2143, %v2143
        %v2176 = vpack.c.bf16 %v2144, %v2144
        %v2177 = vpack.c.bf16 %v2145, %v2145
        %v2178 = vpack.c.bf16 %v2146, %v2146
        %v2179 = vpack.c.bf16 %v2147, %v2147
        %v2180 = vpack.c.bf16 %v2148, %v2148
        %v2181 = vpack.c.bf16 %v2149, %v2149
        %v2182 = vpack.c.bf16 %v2150, %v2150
        %v2183 = vpack.c.bf16 %v2151, %v2151
        %v2184 = vpack.c.bf16 %v2152, %v2152
        %v2185 = vpack.c.bf16 %v2153, %v2153
        %v2186 = vpack.c.bf16 %v2154, %v2154
        %vm2187 = vcmask 257024
        %2188 = vst.msk [vmem:[%s777] sm:$0xf] %vm2187, %v2155
        %2189 = vst.msk [vmem:[%s777 + $0x4] sm:$0xf] %vm2187, %v2156
        %2190 = vst.msk [vmem:[%s777 + $0x8] sm:$0xf] %vm2187, %v2157
        %2191 = vst.msk [vmem:[%s777 + $0xc] sm:$0xf] %vm2187, %v2158
        %2192 = vst.msk [vmem:[%s777 + $0x10] sm:$0xf] %vm2187, %v2159
        %2193 = vst.msk [vmem:[%s777 + $0x14] sm:$0xf] %vm2187, %v2160
        %2194 = vst.msk [vmem:[%s777 + $0x18] sm:$0xf] %vm2187, %v2161
        %2195 = vst.msk [vmem:[%s777 + $0x1c] sm:$0xf] %vm2187, %v2162
        %2196 = vst.msk [vmem:[%s777 + $0x20] sm:$0xf] %vm2187, %v2163
        %2197 = vst.msk [vmem:[%s777 + $0x24] sm:$0xf] %vm2187, %v2164
        %2198 = vst.msk [vmem:[%s777 + $0x28] sm:$0xf] %vm2187, %v2165
        %2199 = vst.msk [vmem:[%s777 + $0x2c] sm:$0xf] %vm2187, %v2166
        %2200 = vst.msk [vmem:[%s777 + $0x30] sm:$0xf] %vm2187, %v2167
        %2201 = vst.msk [vmem:[%s777 + $0x34] sm:$0xf] %vm2187, %v2168
        %2202 = vst.msk [vmem:[%s777 + $0x38] sm:$0xf] %vm2187, %v2169
        %2203 = vst.msk [vmem:[%s777 + $0x3c] sm:$0xf] %vm2187, %v2170
        %2204 = vst.msk [vmem:[%s777 + $0x40] sm:$0xf] %vm2187, %v2171
        %2205 = vst.msk [vmem:[%s777 + $0x44] sm:$0xf] %vm2187, %v2172
        %2206 = vst.msk [vmem:[%s777 + $0x48] sm:$0xf] %vm2187, %v2173
        %2207 = vst.msk [vmem:[%s777 + $0x4c] sm:$0xf] %vm2187, %v2174
        %2208 = vst.msk [vmem:[%s777 + $0x50] sm:$0xf] %vm2187, %v2175
        %2209 = vst.msk [vmem:[%s777 + $0x54] sm:$0xf] %vm2187, %v2176
        %2210 = vst.msk [vmem:[%s777 + $0x58] sm:$0xf] %vm2187, %v2177
        %2211 = vst.msk [vmem:[%s777 + $0x5c] sm:$0xf] %vm2187, %v2178
        %2212 = vst.msk [vmem:[%s777 + $0x60] sm:$0xf] %vm2187, %v2179
        %2213 = vst.msk [vmem:[%s777 + $0x64] sm:$0xf] %vm2187, %v2180
        %2214 = vst.msk [vmem:[%s777 + $0x68] sm:$0xf] %vm2187, %v2181
        %2215 = vst.msk [vmem:[%s777 + $0x6c] sm:$0xf] %vm2187, %v2182
        %2216 = vst.msk [vmem:[%s777 + $0x70] sm:$0xf] %vm2187, %v2183
        %2217 = vst.msk [vmem:[%s777 + $0x74] sm:$0xf] %vm2187, %v2184
        %2218 = vst.msk [vmem:[%s777 + $0x78] sm:$0xf] %vm2187, %v2185
        %2219 = vst.msk [vmem:[%s777 + $0x7c] sm:$0xf] %vm2187, %v2186
        %s2220 = smul.u32 32, %s16
        %p2221 = scmp.lt.s32.totalorder %s2220, 63
        %s2222 = scalar_select %p2221, %s2220, 63
        %s2223 = smul.addr %s2222, 4
        %s2224 = scalar_lea.vmem %s5, %s2223
        // Predicated region
        $region82: #{mynet_forward.5} parent=76 // pred_check
          %p2225 = pneg %p144
        $region83: #{mynet_forward.5} parent=76 // pred_check_branch
          %2227 = sbr.rel (%p2225) target = $region85
        $region84: #{mynet_forward.5} parent=76 // pred_region
          %s2228 = smul.u32 32, %s16
        $region85: #{mynet_forward.5} parent=76 // pred_fallthru
          _
      $region77: #{mynet_forward.5} parent=5 // pred_fallthru
        _
      %p2229 = scmp.le.s32.totalorder 2, %s11
      // Predicated region
      $region86: #{mynet_forward.5} parent=5 // pred_check
        %p2230 = pneg %p2229
      $region87: #{mynet_forward.5} parent=5 // pred_check_branch
        %2232 = sbr.rel (%p2230) target = $region89
      $region88: #{mynet_forward.5} parent=5 // pred_region
        %s2233 = ssub.s32 %s11, 2
        // Predicated region
        $region90: #{mynet_forward.5} parent=88 // pred_check
          %p2234 = pneg %p150
        $region91: #{mynet_forward.5} parent=88 // pred_check_branch
          %2236 = sbr.rel (%p2234) target = $region93
        $region92: #{mynet_forward.5} parent=88 // pred_region
          %s2237 = smul.u32 32, %s17
          %p2238 = scmp.lt.s32.totalorder %s2237, 63
          %s2239 = scalar_select %p2238, %s2237, 63
          %s2240 = smul.addr %s2239, 4
          %s2241 = scalar_lea.vmem %s5, %s2240
        $region93: #{mynet_forward.5} parent=88 // pred_fallthru
          _
      $region89: #{mynet_forward.5} parent=5 // pred_fallthru
        _
    $region6: #{mynet_forward.5} parent=1 // loop_footer
      %s15 = sadd.s32 1, %s11
    $region7: #{mynet_forward.5} parent=1 // loop_footer_branch
      %10 = sbr.rel target = $region3
    $region8: #{mynet_forward.5} parent=1 // loop_exit
      _

// kernel: mynet_forward.6
$region0: #{mynet_forward.6}
  #allocation0 [shape = 'u32[]', space=smem, size = 0x4, offset = 0x4, fixed_abs, tag = 'smem constant byte address 0x4 - core index']
  #allocation1 [shape = 'u32[72,128]{1,0:T(1,128)}', space=vmem, size = 0x9000, scoped, tag = 'internal scratch']
  %s0 = inlined_call_operand.vmem [shape: bf16[4,128,288], index: 0, kind: input, shape index: {}]
  %s1 = inlined_call_operand.vmem [shape: bf16[288,64], index: 1, kind: input, shape index: {}]
  %s2 = inlined_call_operand.vmem [shape: f32[1,64], index: 2, kind: input, shape index: {}]
  %s3 = inlined_call_operand.vmem [shape: f32[1,64], index: 3, kind: input, shape index: {}]
  %s4 = inlined_call_operand.vmem [shape: f32[1,64], index: 4, kind: input, shape index: {}]
  %s5 = inlined_call_operand.vmem [shape: bf16[128,64], index: 5, kind: output, shape index: {}]
  %s6 = sld [smem:[#allocation0]]
  $region79: #{mynet_forward.6} parent=0
    _
  %s8 = ssub.s32 1, %s6
  %s9 = scalar_select 0, %s8, %s6
  $region1: #{mynet_forward.6} parent=0
    #allocation2 [shape = 'u8[393216]{0}', space=vmem, size = 0x60000, scoped, tag = 'input window, operand 0']
    loop: start=0, step=1, limit=4
    $region2: #{mynet_forward.6} parent=1 // loop_pre_header
      _
    $region3: #{mynet_forward.6} parent=1 // loop_header
      %s11 = sphi 0, %s15
      %p12 = scmp.ge.s32.totalorder %s11, 4
      %s21 = sphi 0, %s23
      %s24 = sphi 0, %s21
      %s25 = sphi 0, %s24
      %s41 = sphi 0, %s25
      %s45 = sphi 0, %s45
      %s47 = sphi 0, %s45
      %s48 = sphi 0, %s47
      %s62 = sphi 0, %s48
      %s66 = sphi 0, %s66
      %s68 = sphi 0, %s66
      %s69 = sphi 0, %s68
      %s83 = sphi 0, %s69
      %s87 = sphi 0, %s87
      %s89 = sphi 0, %s87
      %s90 = sphi 0, %s89
      %s104 = sphi 0, %s90
      %s108 = sphi 0, %s108
      %s110 = sphi 0, %s108
      %s111 = sphi 0, %s110
      %s125 = sphi 0, %s111
      %s131 = sphi 0, %s133
      %s134 = sphi 0, %s131
      %s135 = sphi 0, %s134
      %s151 = sphi 0, %s135
    $region4: #{mynet_forward.6} parent=1 // loop_header_branch
      %14 = sbr.rel (%p12) target = $region8
    $region5: #{mynet_forward.6} parent=1 // loop_body
      %s16 = ssub.s32 %s11, 1
      %s17 = ssub.s32 %s11, 2
      %s18 = sadd.s32 %s11, 1
      %s19 = ssub.s32 %s11, %s18
      %p20 = scmp.eq.s32.totalorder %s19, 0
      %s22 = sadd.s32 %s21, 1
      %s23 = scalar_select %p20, %s21, %s22
      %p26 = pneg %p20
      %p27 = scmp.eq.s32.totalorder %s11, 1
      %p28 = por %p26, %p27
      %p29 = scmp.ne.s32.totalorder %s21, %s24
      %p30 = scmp.eq.s32.totalorder %s11, 0
      %p31 = por %p29, %p30
      %p32 = scmp.ne.s32.totalorder %s21, %s24
      %p33 = scmp.eq.s32.totalorder %s16, 1
      %p34 = por %p32, %p33
      %p35 = scmp.ne.s32.totalorder %s24, %s25
      %p36 = scmp.eq.s32.totalorder %s16, 0
      %p37 = por %p35, %p36
      %p38 = scmp.ne.s32.totalorder %s24, %s25
      %p39 = scmp.eq.s32.totalorder %s17, 1
      %p40 = por %p38, %p39
      %p42 = scmp.ne.s32.totalorder %s25, %s41
      %p43 = scmp.eq.s32.totalorder %s17, 0
      %p44 = por %p42, %p43
      %s46 = sadd.s32 %s45, 1
      %p49 = scmp.eq.s32.totalorder %s11, 1
      %p50 = scmp.ne.s32.totalorder %s45, %s47
      %p51 = scmp.eq.s32.totalorder %s11, 0
      %p52 = por %p50, %p51
      %p53 = scmp.ne.s32.totalorder %s45, %s47
      %p54 = scmp.eq.s32.totalorder %s16, 1
      %p55 = por %p53, %p54
      %p56 = scmp.ne.s32.totalorder %s47, %s48
      %p57 = scmp.eq.s32.totalorder %s16, 0
      %p58 = por %p56, %p57
      %p59 = scmp.ne.s32.totalorder %s47, %s48
      %p60 = scmp.eq.s32.totalorder %s17, 1
      %p61 = por %p59, %p60
      %p63 = scmp.ne.s32.totalorder %s48, %s62
      %p64 = scmp.eq.s32.totalorder %s17, 0
      %p65 = por %p63, %p64
      %s67 = sadd.s32 %s66, 1
      %p70 = scmp.eq.s32.totalorder %s11, 1
      %p71 = scmp.ne.s32.totalorder %s66, %s68
      %p72 = scmp.eq.s32.totalorder %s11, 0
      %p73 = por %p71, %p72
      %p74 = scmp.ne.s32.totalorder %s66, %s68
      %p75 = scmp.eq.s32.totalorder %s16, 1
      %p76 = por %p74, %p75
      %p77 = scmp.ne.s32.totalorder %s68, %s69
      %p78 = scmp.eq.s32.totalorder %s16, 0
      %p79 = por %p77, %p78
      %p80 = scmp.ne.s32.totalorder %s68, %s69
      %p81 = scmp.eq.s32.totalorder %s17, 1
      %p82 = por %p80, %p81
      %p84 = scmp.ne.s32.totalorder %s69, %s83
      %p85 = scmp.eq.s32.totalorder %s17, 0
      %p86 = por %p84, %p85
      %s88 = sadd.s32 %s87, 1
      %p91 = scmp.eq.s32.totalorder %s11, 1
      %p92 = scmp.ne.s32.totalorder %s87, %s89
      %p93 = scmp.eq.s32.totalorder %s11, 0
      %p94 = por %p92, %p93
      %p95 = scmp.ne.s32.totalorder %s87, %s89
      %p96 = scmp.eq.s32.totalorder %s16, 1
      %p97 = por %p95, %p96
      %p98 = scmp.ne.s32.totalorder %s89, %s90
      %p99 = scmp.eq.s32.totalorder %s16, 0
      %p100 = por %p98, %p99
      %p101 = scmp.ne.s32.totalorder %s89, %s90
      %p102 = scmp.eq.s32.totalorder %s17, 1
      %p103 = por %p101, %p102
      %p105 = scmp.ne.s32.totalorder %s90, %s104
      %p106 = scmp.eq.s32.totalorder %s17, 0
      %p107 = por %p105, %p106
      %s109 = sadd.s32 %s108, 1
      %p112 = scmp.eq.s32.totalorder %s11, 1
      %p113 = scmp.ne.s32.totalorder %s108, %s110
      %p114 = scmp.eq.s32.totalorder %s11, 0
      %p115 = por %p113, %p114
      %p116 = scmp.ne.s32.totalorder %s108, %s110
      %p117 = scmp.eq.s32.totalorder %s16, 1
      %p118 = por %p116, %p117
      %p119 = scmp.ne.s32.totalorder %s110, %s111
      %p120 = scmp.eq.s32.totalorder %s16, 0
      %p121 = por %p119, %p120
      %p122 = scmp.ne.s32.totalorder %s110, %s111
      %p123 = scmp.eq.s32.totalorder %s17, 1
      %p124 = por %p122, %p123
      %p126 = scmp.ne.s32.totalorder %s111, %s125
      %p127 = scmp.eq.s32.totalorder %s17, 0
      %p128 = por %p126, %p127
      %s129 = ssub.s32 %s11, %s18
      %p130 = scmp.eq.s32.totalorder %s129, 0
      %s132 = sadd.s32 %s131, 1
      %s133 = scalar_select %p130, %s131, %s132
      %p136 = pneg %p130
      %p137 = scmp.eq.s32.totalorder %s11, 1
      %p138 = por %p136, %p137
      %p139 = scmp.ne.s32.totalorder %s131, %s134
      %p140 = scmp.eq.s32.totalorder %s11, 0
      %p141 = por %p139, %p140
      %p142 = scmp.ne.s32.totalorder %s131, %s134
      %p143 = scmp.eq.s32.totalorder %s16, 1
      %p144 = por %p142, %p143
      %p145 = scmp.ne.s32.totalorder %s134, %s135
      %p146 = scmp.eq.s32.totalorder %s16, 0
      %p147 = por %p145, %p146
      %p148 = scmp.ne.s32.totalorder %s134, %s135
      %p149 = scmp.eq.s32.totalorder %s17, 1
      %p150 = por %p148, %p149
      %p152 = scmp.ne.s32.totalorder %s135, %s151
      %p153 = scmp.eq.s32.totalorder %s17, 0
      %p154 = por %p152, %p153
      %p155 = scmp.le.s32.totalorder 1, %s11
      %p156 = scmp.lt.s32.totalorder %s11, 3
      %p157 = pnand %p155, %p156
      %p158 = pneg %p157
      // Predicated region
      $region9: #{mynet_forward.6} parent=5 // pred_check
        _
      $region10: #{mynet_forward.6} parent=5 // pred_check_branch
        %160 = sbr.rel (%p157) target = $region12
      $region11: #{mynet_forward.6} parent=5 // pred_region
        %s161 = ssub.s32 %s11, 1
        // Predicated region
        $region13: #{mynet_forward.6} parent=11 // pred_check
          %p162 = pneg %p58
        $region14: #{mynet_forward.6} parent=11 // pred_check_branch
          %164 = sbr.rel (%p162) target = $region16
        $region15: #{mynet_forward.6} parent=11 // pred_region
          _
        $region16: #{mynet_forward.6} parent=11 // pred_fallthru
          _
        // Predicated region
        $region17: #{mynet_forward.6} parent=11 // pred_check
          %p165 = pneg %p79
        $region18: #{mynet_forward.6} parent=11 // pred_check_branch
          %167 = sbr.rel (%p165) target = $region20
        $region19: #{mynet_forward.6} parent=11 // pred_region
          _
        $region20: #{mynet_forward.6} parent=11 // pred_fallthru
          _
        // Predicated region
        $region21: #{mynet_forward.6} parent=11 // pred_check
          %p168 = pneg %p100
        $region22: #{mynet_forward.6} parent=11 // pred_check_branch
          %170 = sbr.rel (%p168) target = $region24
        $region23: #{mynet_forward.6} parent=11 // pred_region
          _
        $region24: #{mynet_forward.6} parent=11 // pred_fallthru
          _
        // Predicated region
        $region25: #{mynet_forward.6} parent=11 // pred_check
          %p171 = pneg %p121
        $region26: #{mynet_forward.6} parent=11 // pred_check_branch
          %173 = sbr.rel (%p171) target = $region28
        $region27: #{mynet_forward.6} parent=11 // pred_region
          _
        $region28: #{mynet_forward.6} parent=11 // pred_fallthru
          _
      $region12: #{mynet_forward.6} parent=5 // pred_fallthru
        _
      %p174 = scmp.lt.s32.totalorder %s11, 2
      // Predicated region
      $region29: #{mynet_forward.6} parent=5 // pred_check
        %p175 = pneg %p174
      $region30: #{mynet_forward.6} parent=5 // pred_check_branch
        %177 = sbr.rel (%p175) target = $region32
      $region31: #{mynet_forward.6} parent=5 // pred_region
        // Predicated region
        $region33: #{mynet_forward.6} parent=31 // pred_check
          %p178 = pneg %p31
        $region34: #{mynet_forward.6} parent=31 // pred_check_branch
          %180 = sbr.rel (%p178) target = $region36
        $region35: #{mynet_forward.6} parent=31 // pred_region
          %s181 = sand.u32 %s21, 1
          %s182 = sand.u32 %s21, 1
          %s183 = smul.addr %s182, 384
          %s184 = scalar_lea.vmem [#allocation2], %s183
          %s185 = smul.u32 8, %s11
          %s186 = smul.addr %s185, 3
          %s187 = smul.addr %s186, 4
          %s188 = scalar_lea.vmem %s0, %s187
          // Predicated region
          $region37: #{mynet_forward.6} parent=35 // pred_check
            _
          $region38: #{mynet_forward.6} parent=35 // pred_check_branch
            %190 = sbr.rel (0) target = $region40
          $region39: #{mynet_forward.6} parent=35 // pred_region
            // Predicated region
            $region41: #{mynet_forward.6} parent=39 // pred_check
              _
            $region42: #{mynet_forward.6} parent=39 // pred_check_branch
              %192 = sbr.rel (0) target = $region44
            $region43: #{mynet_forward.6} parent=39 // pred_region
              %s193 = scalar_lea.vmem %s188, 8
              %s194 = scalar_lea.vmem %s184, 8 [#allocation2]
              loop: start=0, step=1, limit=1
              $region45: #{mynet_forward.6} parent=43 // loop_pre_header
                _
              $region46: #{mynet_forward.6} parent=43 // loop_header
                %s196 = sphi 0, %s200
                %p197 = scmp.ge.s32.totalorder %s196, 1
                %s201 = sphi %s188, %s188
                %s202 = sphi %s184, %s184
              $region47: #{mynet_forward.6} parent=43 // loop_header_branch
                %199 = sbr.rel (%p197) target = $region51
              $region48: #{mynet_forward.6} parent=43 // loop_body
                %v203 = vld [vmem:[%s201] sm:$0xff]
                %204 = vst [vmem:[%s202] sm:$0xff] %v203
                %v205 = vld [vmem:[%s201 + $0xc] sm:$0xff]
                %206 = vst [vmem:[%s202 + $0xc] sm:$0xff] %v205
                %v207 = vld [vmem:[%s201 + $0x18] sm:$0xff]
                %208 = vst [vmem:[%s202 + $0x18] sm:$0xff] %v207
                %v209 = vld [vmem:[%s201 + $0x24] sm:$0xff]
                %210 = vst [vmem:[%s202 + $0x24] sm:$0xff] %v209
                %v211 = vld [vmem:[%s201 + $0x30] sm:$0xff]
                %212 = vst [vmem:[%s202 + $0x30] sm:$0xff] %v211
                %v213 = vld [vmem:[%s201 + $0x3c] sm:$0xff]
                %214 = vst [vmem:[%s202 + $0x3c] sm:$0xff] %v213
                %v215 = vld [vmem:[%s201 + $0x48] sm:$0xff]
                %216 = vst [vmem:[%s202 + $0x48] sm:$0xff] %v215
                %v217 = vld [vmem:[%s201 + $0x54] sm:$0xff]
                %218 = vst [vmem:[%s202 + $0x54] sm:$0xff] %v217
                %v219 = vld [vmem:[%s201 + $0xc0] sm:$0xff]
                %220 = vst [vmem:[%s202 + $0x60] sm:$0xff] %v219
                %v221 = vld [vmem:[%s201 + $0xcc] sm:$0xff]
                %222 = vst [vmem:[%s202 + $0x6c] sm:$0xff] %v221
                %v223 = vld [vmem:[%s201 + $0xd8] sm:$0xff]
                %224 = vst [vmem:[%s202 + $0x78] sm:$0xff] %v223
                %v225 = vld [vmem:[%s201 + $0xe4] sm:$0xff]
                %226 = vst [vmem:[%s202 + $0x84] sm:$0xff] %v225
                %v227 = vld [vmem:[%s201 + $0xf0] sm:$0xff]
                %228 = vst [vmem:[%s202 + $0x90] sm:$0xff] %v227
                %v229 = vld [vmem:[%s201 + $0xfc] sm:$0xff]
                %230 = vst [vmem:[%s202 + $0x9c] sm:$0xff] %v229
                %v231 = vld [vmem:[%s201 + $0x108] sm:$0xff]
                %232 = vst [vmem:[%s202 + $0xa8] sm:$0xff] %v231
                %v233 = vld [vmem:[%s201 + $0x114] sm:$0xff]
                %234 = vst [vmem:[%s202 + $0xb4] sm:$0xff] %v233
                %v235 = vld [vmem:[%s201 + $0x180] sm:$0xff]
                %236 = vst [vmem:[%s202 + $0xc0] sm:$0xff] %v235
                %v237 = vld [vmem:[%s201 + $0x18c] sm:$0xff]
                %238 = vst [vmem:[%s202 + $0xcc] sm:$0xff] %v237
                %v239 = vld [vmem:[%s201 + $0x198] sm:$0xff]
                %240 = vst [vmem:[%s202 + $0xd8] sm:$0xff] %v239
                %v241 = vld [vmem:[%s201 + $0x1a4] sm:$0xff]
                %242 = vst [vmem:[%s202 + $0xe4] sm:$0xff] %v241
                %v243 = vld [vmem:[%s201 + $0x1b0] sm:$0xff]
                %244 = vst [vmem:[%s202 + $0xf0] sm:$0xff] %v243
                %v245 = vld [vmem:[%s201 + $0x1bc] sm:$0xff]
                %246 = vst [vmem:[%s202 + $0xfc] sm:$0xff] %v245
                %v247 = vld [vmem:[%s201 + $0x1c8] sm:$0xff]
                %248 = vst [vmem:[%s202 + $0x108] sm:$0xff] %v247
                %v249 = vld [vmem:[%s201 + $0x1d4] sm:$0xff]
                %250 = vst [vmem:[%s202 + $0x114] sm:$0xff] %v249
                %v251 = vld [vmem:[%s201 + $0x240] sm:$0xff]
                %252 = vst [vmem:[%s202 + $0x120] sm:$0xff] %v251
                %v253 = vld [vmem:[%s201 + $0x24c] sm:$0xff]
                %254 = vst [vmem:[%s202 + $0x12c] sm:$0xff] %v253
                %v255 = vld [vmem:[%s201 + $0x258] sm:$0xff]
                %256 = vst [vmem:[%s202 + $0x138] sm:$0xff] %v255
                %v257 = vld [vmem:[%s201 + $0x264] sm:$0xff]
                %258 = vst [vmem:[%s202 + $0x144] sm:$0xff] %v257
                %v259 = vld [vmem:[%s201 + $0x270] sm:$0xff]
                %260 = vst [vmem:[%s202 + $0x150] sm:$0xff] %v259
                %v261 = vld [vmem:[%s201 + $0x27c] sm:$0xff]
                %262 = vst [vmem:[%s202 + $0x15c] sm:$0xff] %v261
                %v263 = vld [vmem:[%s201 + $0x288] sm:$0xff]
                %264 = vst [vmem:[%s202 + $0x168] sm:$0xff] %v263
                %v265 = vld [vmem:[%s201 + $0x294] sm:$0xff]
                %266 = vst [vmem:[%s202 + $0x174] sm:$0xff] %v265
              $region49: #{mynet_forward.6} parent=43 // loop_footer
                %s200 = sadd.s32 1, %s196
              $region50: #{mynet_forward.6} parent=43 // loop_footer_branch
                %195 = sbr.rel target = $region46
              $region51: #{mynet_forward.6} parent=43 // loop_exit
                _
              %s268 = ssub.s32 16, 1
              loop: start=0, step=1, limit=1
              $region52: #{mynet_forward.6} parent=43 // loop_pre_header
                _
              $region53: #{mynet_forward.6} parent=43 // loop_header
                %s270 = sphi 0, %s274
                %p271 = scmp.ge.s32.totalorder %s270, 1
                %s275 = sphi %s193, %s193
                %s276 = sphi %s194, %s194
              $region54: #{mynet_forward.6} parent=43 // loop_header_branch
                %273 = sbr.rel (%p271) target = $region58
              $region55: #{mynet_forward.6} parent=43 // loop_body
                %v277 = vld [vmem:[%s275] sm:%s268]
                %278 = vst [vmem:[%s276] sm:%s268] %v277
                %v279 = vld [vmem:[%s275 + $0xc] sm:%s268]
                %280 = vst [vmem:[%s276 + $0xc] sm:%s268] %v279
                %v281 = vld [vmem:[%s275 + $0x18] sm:%s268]
                %282 = vst [vmem:[%s276 + $0x18] sm:%s268] %v281
                %v283 = vld [vmem:[%s275 + $0x24] sm:%s268]
                %284 = vst [vmem:[%s276 + $0x24] sm:%s268] %v283
                %v285 = vld [vmem:[%s275 + $0x30] sm:%s268]
                %286 = vst [vmem:[%s276 + $0x30] sm:%s268] %v285
                %v287 = vld [vmem:[%s275 + $0x3c] sm:%s268]
                %288 = vst [vmem:[%s276 + $0x3c] sm:%s268] %v287
                %v289 = vld [vmem:[%s275 + $0x48] sm:%s268]
                %290 = vst [vmem:[%s276 + $0x48] sm:%s268] %v289
                %v291 = vld [vmem:[%s275 + $0x54] sm:%s268]
                %292 = vst [vmem:[%s276 + $0x54] sm:%s268] %v291
                %v293 = vld [vmem:[%s275 + $0xc0] sm:%s268]
                %294 = vst [vmem:[%s276 + $0x60] sm:%s268] %v293
                %v295 = vld [vmem:[%s275 + $0xcc] sm:%s268]
                %296 = vst [vmem:[%s276 + $0x6c] sm:%s268] %v295
                %v297 = vld [vmem:[%s275 + $0xd8] sm:%s268]
                %298 = vst [vmem:[%s276 + $0x78] sm:%s268] %v297
                %v299 = vld [vmem:[%s275 + $0xe4] sm:%s268]
                %300 = vst [vmem:[%s276 + $0x84] sm:%s268] %v299
                %v301 = vld [vmem:[%s275 + $0xf0] sm:%s268]
                %302 = vst [vmem:[%s276 + $0x90] sm:%s268] %v301
                %v303 = vld [vmem:[%s275 + $0xfc] sm:%s268]
                %304 = vst [vmem:[%s276 + $0x9c] sm:%s268] %v303
                %v305 = vld [vmem:[%s275 + $0x108] sm:%s268]
                %306 = vst [vmem:[%s276 + $0xa8] sm:%s268] %v305
                %v307 = vld [vmem:[%s275 + $0x114] sm:%s268]
                %308 = vst [vmem:[%s276 + $0xb4] sm:%s268] %v307
                %v309 = vld [vmem:[%s275 + $0x180] sm:%s268]
                %310 = vst [vmem:[%s276 + $0xc0] sm:%s268] %v309
                %v311 = vld [vmem:[%s275 + $0x18c] sm:%s268]
                %312 = vst [vmem:[%s276 + $0xcc] sm:%s268] %v311
                %v313 = vld [vmem:[%s275 + $0x198] sm:%s268]
                %314 = vst [vmem:[%s276 + $0xd8] sm:%s268] %v313
                %v315 = vld [vmem:[%s275 + $0x1a4] sm:%s268]
                %316 = vst [vmem:[%s276 + $0xe4] sm:%s268] %v315
                %v317 = vld [vmem:[%s275 + $0x1b0] sm:%s268]
                %318 = vst [vmem:[%s276 + $0xf0] sm:%s268] %v317
                %v319 = vld [vmem:[%s275 + $0x1bc] sm:%s268]
                %320 = vst [vmem:[%s276 + $0xfc] sm:%s268] %v319
                %v321 = vld [vmem:[%s275 + $0x1c8] sm:%s268]
                %322 = vst [vmem:[%s276 + $0x108] sm:%s268] %v321
                %v323 = vld [vmem:[%s275 + $0x1d4] sm:%s268]
                %324 = vst [vmem:[%s276 + $0x114] sm:%s268] %v323
                %v325 = vld [vmem:[%s275 + $0x240] sm:%s268]
                %326 = vst [vmem:[%s276 + $0x120] sm:%s268] %v325
                %v327 = vld [vmem:[%s275 + $0x24c] sm:%s268]
                %328 = vst [vmem:[%s276 + $0x12c] sm:%s268] %v327
                %v329 = vld [vmem:[%s275 + $0x258] sm:%s268]
                %330 = vst [vmem:[%s276 + $0x138] sm:%s268] %v329
                %v331 = vld [vmem:[%s275 + $0x264] sm:%s268]
                %332 = vst [vmem:[%s276 + $0x144] sm:%s268] %v331
                %v333 = vld [vmem:[%s275 + $0x270] sm:%s268]
                %334 = vst [vmem:[%s276 + $0x150] sm:%s268] %v333
                %v335 = vld [vmem:[%s275 + $0x27c] sm:%s268]
                %336 = vst [vmem:[%s276 + $0x15c] sm:%s268] %v335
                %v337 = vld [vmem:[%s275 + $0x288] sm:%s268]
                %338 = vst [vmem:[%s276 + $0x168] sm:%s268] %v337
                %v339 = vld [vmem:[%s275 + $0x294] sm:%s268]
                %340 = vst [vmem:[%s276 + $0x174] sm:%s268] %v339
              $region56: #{mynet_forward.6} parent=43 // loop_footer
                %s274 = sadd.s32 1, %s270
              $region57: #{mynet_forward.6} parent=43 // loop_footer_branch
                %269 = sbr.rel target = $region53
              $region58: #{mynet_forward.6} parent=43 // loop_exit
                _
            $region44: #{mynet_forward.6} parent=39 // pred_fallthru
              _
          $region40: #{mynet_forward.6} parent=35 // pred_fallthru
            _
          %341 = vnop
        $region36: #{mynet_forward.6} parent=31 // pred_fallthru
          _
      $region32: #{mynet_forward.6} parent=5 // pred_fallthru
        _
      %p342 = scmp.le.s32.totalorder 1, %s11
      %p343 = scmp.lt.s32.totalorder %s11, 3
      %p344 = pnand %p342, %p343
      %p345 = pneg %p344
      // Predicated region
      $region59: #{mynet_forward.6} parent=5 // pred_check
        _
      $region60: #{mynet_forward.6} parent=5 // pred_check_branch
        %347 = sbr.rel (%p344) target = $region62
      $region61: #{mynet_forward.6} parent=5 // pred_region
        %s348 = ssub.s32 %s11, 1
        %s349 = sand.u32 %s24, 1
        %s350 = sand.u32 %s24, 1
        %s351 = smul.addr %s350, 384
        %s352 = scalar_lea.vmem [#allocation2], %s351
        // Predicated region
        $region63: #{mynet_forward.6} parent=61 // pred_check
          %p353 = pneg %p37
        $region64: #{mynet_forward.6} parent=61 // pred_check_branch
          %355 = sbr.rel (%p353) target = $region66
        $region65: #{mynet_forward.6} parent=61 // pred_region
          _
        $region66: #{mynet_forward.6} parent=61 // pred_fallthru
          _
        %s356 = sand.u32 %s24, 1
        %s357 = sand.u32 %s24, 1
        %s358 = smul.addr %s357, 384
        %s359 = scalar_lea.vmem [#allocation2], %s358
        %p360 = pneg %p37
        %p361 = pneg %p34
        %p362 = pneg %p58
        %p363 = pneg %p55
        %p364 = pneg %p79
        %p365 = pneg %p76
        %p366 = pneg %p100
        %p367 = pneg %p97
        %p368 = pneg %p121
        %p369 = pneg %p118
        %p370 = pneg %p147
        %p371 = pneg %p144
        %s372 = smul.u32 8, %s16
        %p373 = scmp.lt.s32.totalorder %s372, 15
        %s374 = scalar_select %p373, %s372, 15
        %s375 = smul.addr %s374, 4
        %s376 = scalar_lea.vmem %s5, %s375
        %s377 = smul.u32 8, %s16
        %s378 = smul.u32 8, %s16
        %p379 = scmp.lt.s32.totalorder %s378, 15
        %s380 = scalar_select %p379, %s378, 15
        %s381 = smul.addr %s380, 4
        %s382 = scalar_lea.vmem %s5, %s381
        %s383 = smul.u32 8, %s16
        %v385 = vld [vmem:[%s352] sm:$0xff]
        %v386 = vld [vmem:[%s352 + $0x8] sm:$0xf]
        %v387 = vld [vmem:[%s352 + $0xc] sm:$0xff]
        %v388 = vld [vmem:[%s352 + $0x14] sm:$0xf]
        %v389 = vld [vmem:[%s352 + $0x18] sm:$0xff]
        %v390 = vld [vmem:[%s352 + $0x20] sm:$0xf]
        %v391 = vld [vmem:[%s352 + $0x24] sm:$0xff]
        %v392 = vld [vmem:[%s352 + $0x2c] sm:$0xf]
        %v393 = vld [vmem:[%s352 + $0x30] sm:$0xff]
        %v394 = vld [vmem:[%s352 + $0x38] sm:$0xf]
        %v395 = vld [vmem:[%s352 + $0x3c] sm:$0xff]
        %v396 = vld [vmem:[%s352 + $0x44] sm:$0xf]
        %v397 = vld [vmem:[%s352 + $0x48] sm:$0xff]
        %v398 = vld [vmem:[%s352 + $0x50] sm:$0xf]
        %v399 = vld [vmem:[%s352 + $0x54] sm:$0xff]
        %v400 = vld [vmem:[%s352 + $0x5c] sm:$0xf]
        %v401 = vld [vmem:[%s352 + $0x60] sm:$0xff]
        %v402 = vld [vmem:[%s352 + $0x68] sm:$0xf]
        %v403 = vld [vmem:[%s352 + $0x6c] sm:$0xff]
        %v404 = vld [vmem:[%s352 + $0x74] sm:$0xf]
        %v405 = vld [vmem:[%s352 + $0x78] sm:$0xff]
        %v406 = vld [vmem:[%s352 + $0x80] sm:$0xf]
        %v407 = vld [vmem:[%s352 + $0x84] sm:$0xff]
        %v408 = vld [vmem:[%s352 + $0x8c] sm:$0xf]
        %v409 = vld [vmem:[%s352 + $0x90] sm:$0xff]
        %v410 = vld [vmem:[%s352 + $0x98] sm:$0xf]
        %v411 = vld [vmem:[%s352 + $0x9c] sm:$0xff]
        %v412 = vld [vmem:[%s352 + $0xa4] sm:$0xf]
        %v413 = vld [vmem:[%s352 + $0xa8] sm:$0xff]
        %v414 = vld [vmem:[%s352 + $0xb0] sm:$0xf]
        %v415 = vld [vmem:[%s352 + $0xb4] sm:$0xff]
        %v416 = vld [vmem:[%s352 + $0xbc] sm:$0xf]
        %v417 = vld [vmem:[%s352 + $0xc0] sm:$0xff]
        %v418 = vld [vmem:[%s352 + $0xc8] sm:$0xf]
        %v419 = vld [vmem:[%s352 + $0xcc] sm:$0xff]
        %v420 = vld [vmem:[%s352 + $0xd4] sm:$0xf]
        %v421 = vld [vmem:[%s352 + $0xd8] sm:$0xff]
        %v422 = vld [vmem:[%s352 + $0xe0] sm:$0xf]
        %v423 = vld [vmem:[%s352 + $0xe4] sm:$0xff]
        %v424 = vld [vmem:[%s352 + $0xec] sm:$0xf]
        %v425 = vld [vmem:[%s352 + $0xf0] sm:$0xff]
        %v426 = vld [vmem:[%s352 + $0xf8] sm:$0xf]
        %v427 = vld [vmem:[%s352 + $0xfc] sm:$0xff]
        %v428 = vld [vmem:[%s352 + $0x104] sm:$0xf]
        %v429 = vld [vmem:[%s352 + $0x108] sm:$0xff]
        %v430 = vld [vmem:[%s352 + $0x110] sm:$0xf]
        %v431 = vld [vmem:[%s352 + $0x114] sm:$0xff]
        %v432 = vld [vmem:[%s352 + $0x11c] sm:$0xf]
        %v433 = vld [vmem:[%s352 + $0x120] sm:$0xff]
        %v434 = vld [vmem:[%s352 + $0x128] sm:$0xf]
        %v435 = vld [vmem:[%s352 + $0x12c] sm:$0xff]
        %v436 = vld [vmem:[%s352 + $0x134] sm:$0xf]
        %v437 = vld [vmem:[%s352 + $0x138] sm:$0xff]
        %v438 = vld [vmem:[%s352 + $0x140] sm:$0xf]
        %v439 = vld [vmem:[%s352 + $0x144] sm:$0xff]
        %v440 = vld [vmem:[%s352 + $0x14c] sm:$0xf]
        %v441 = vld [vmem:[%s352 + $0x150] sm:$0xff]
        %v442 = vld [vmem:[%s352 + $0x158] sm:$0xf]
        %v443 = vld [vmem:[%s352 + $0x15c] sm:$0xff]
        %v444 = vld [vmem:[%s352 + $0x164] sm:$0xf]
        %v445 = vld [vmem:[%s352 + $0x168] sm:$0xff]
        %v446 = vld [vmem:[%s352 + $0x170] sm:$0xf]
        %v447 = vld [vmem:[%s352 + $0x174] sm:$0xff]
        %v448 = vld [vmem:[%s352 + $0x17c] sm:$0xf]
        %v449 = vld [vmem:[%s1] sm:$0xf]
        %v450 = vld [vmem:[%s1 + $0x4] sm:$0xf]
        %v451 = vld [vmem:[%s1 + $0x8] sm:$0xf]
        %v452 = vld [vmem:[%s1 + $0xc] sm:$0xf]
        %v453 = vld [vmem:[%s1 + $0x10] sm:$0xf]
        %v454 = vld [vmem:[%s1 + $0x14] sm:$0xf]
        %v455 = vld [vmem:[%s1 + $0x18] sm:$0xf]
        %v456 = vld [vmem:[%s1 + $0x1c] sm:$0xf]
        %v457 = vld [vmem:[%s1 + $0x20] sm:$0xf]
        %v458 = vld [vmem:[%s1 + $0x24] sm:$0xf]
        %v459 = vld [vmem:[%s1 + $0x28] sm:$0xf]
        %v460 = vld [vmem:[%s1 + $0x2c] sm:$0xf]
        %v461 = vld [vmem:[%s1 + $0x30] sm:$0xf]
        %v462 = vld [vmem:[%s1 + $0x34] sm:$0xf]
        %v463 = vld [vmem:[%s1 + $0x38] sm:$0xf]
        %v464 = vld [vmem:[%s1 + $0x3c] sm:$0xf]
        %v465 = vld [vmem:[%s1 + $0x40] sm:$0xf]
        %v466 = vld [vmem:[%s1 + $0x44] sm:$0xf]
        %v467 = vld [vmem:[%s1 + $0x48] sm:$0xf]
        %v468 = vld [vmem:[%s1 + $0x4c] sm:$0xf]
        %v469 = vld [vmem:[%s1 + $0x50] sm:$0xf]
        %v470 = vld [vmem:[%s1 + $0x54] sm:$0xf]
        %v471 = vld [vmem:[%s1 + $0x58] sm:$0xf]
        %v472 = vld [vmem:[%s1 + $0x5c] sm:$0xf]
        %v473 = vld [vmem:[%s1 + $0x60] sm:$0xf]
        %v474 = vld [vmem:[%s1 + $0x64] sm:$0xf]
        %v475 = vld [vmem:[%s1 + $0x68] sm:$0xf]
        %v476 = vld [vmem:[%s1 + $0x6c] sm:$0xf]
        %v477 = vld [vmem:[%s1 + $0x70] sm:$0xf]
        %v478 = vld [vmem:[%s1 + $0x74] sm:$0xf]
        %v479 = vld [vmem:[%s1 + $0x78] sm:$0xf]
        %v480 = vld [vmem:[%s1 + $0x7c] sm:$0xf]
        %v481 = vld [vmem:[%s1 + $0x80] sm:$0xf]
        %v482 = vld [vmem:[%s1 + $0x84] sm:$0xf]
        %v483 = vld [vmem:[%s1 + $0x88] sm:$0xf]
        %v484 = vld [vmem:[%s1 + $0x8c] sm:$0xf]
        %v549 = vunpack.c.l.b16 %v385
        %v550 = vunpack.c.h.b16 %v385
        %v551 = vunpack.c.l.b16 %v386
        %v552 = vunpack.c.l.b16 %v387
        %v553 = vunpack.c.h.b16 %v387
        %v554 = vunpack.c.l.b16 %v388
        %v555 = vunpack.c.l.b16 %v389
        %v556 = vunpack.c.h.b16 %v389
        %v557 = vunpack.c.l.b16 %v390
        %v558 = vunpack.c.l.b16 %v391
        %v559 = vunpack.c.h.b16 %v391
        %v560 = vunpack.c.l.b16 %v392
        %v561 = vunpack.c.l.b16 %v393
        %v562 = vunpack.c.h.b16 %v393
        %v563 = vunpack.c.l.b16 %v394
        %v564 = vunpack.c.l.b16 %v395
        %v565 = vunpack.c.h.b16 %v395
        %v566 = vunpack.c.l.b16 %v396
        %v567 = vunpack.c.l.b16 %v397
        %v568 = vunpack.c.h.b16 %v397
        %v569 = vunpack.c.l.b16 %v398
        %v570 = vunpack.c.l.b16 %v399
        %v571 = vunpack.c.h.b16 %v399
        %v572 = vunpack.c.l.b16 %v400
        %v573 = vunpack.c.l.b16 %v401
        %v574 = vunpack.c.h.b16 %v401
        %v575 = vunpack.c.l.b16 %v402
        %v576 = vunpack.c.l.b16 %v403
        %v577 = vunpack.c.h.b16 %v403
        %v578 = vunpack.c.l.b16 %v404
        %v579 = vunpack.c.l.b16 %v405
        %v580 = vunpack.c.h.b16 %v405
        %v581 = vunpack.c.l.b16 %v406
        %v582 = vunpack.c.l.b16 %v407
        %v583 = vunpack.c.h.b16 %v407
        %v584 = vunpack.c.l.b16 %v408
        %v585 = vunpack.c.l.b16 %v409
        %v586 = vunpack.c.h.b16 %v409
        %v587 = vunpack.c.l.b16 %v410
        %v588 = vunpack.c.l.b16 %v411
        %v589 = vunpack.c.h.b16 %v411
        %v590 = vunpack.c.l.b16 %v412
        %v591 = vunpack.c.l.b16 %v413
        %v592 = vunpack.c.h.b16 %v413
        %v593 = vunpack.c.l.b16 %v414
        %v594 = vunpack.c.l.b16 %v415
        %v595 = vunpack.c.h.b16 %v415
        %v596 = vunpack.c.l.b16 %v416
        %v597 = vunpack.c.l.b16 %v417
        %v598 = vunpack.c.h.b16 %v417
        %v599 = vunpack.c.l.b16 %v418
        %v600 = vunpack.c.l.b16 %v419
        %v601 = vunpack.c.h.b16 %v419
        %v602 = vunpack.c.l.b16 %v420
        %v603 = vunpack.c.l.b16 %v421
        %v604 = vunpack.c.h.b16 %v421
        %v605 = vunpack.c.l.b16 %v422
        %v606 = vunpack.c.l.b16 %v423
        %v607 = vunpack.c.h.b16 %v423
        %v608 = vunpack.c.l.b16 %v424
        %v609 = vunpack.c.l.b16 %v425
        %v610 = vunpack.c.h.b16 %v425
        %v611 = vunpack.c.l.b16 %v426
        %v612 = vunpack.c.l.b16 %v427
        %v613 = vunpack.c.h.b16 %v427
        %v614 = vunpack.c.l.b16 %v428
        %v615 = vunpack.c.l.b16 %v429
        %v616 = vunpack.c.h.b16 %v429
        %v617 = vunpack.c.l.b16 %v430
        %v618 = vunpack.c.l.b16 %v431
        %v619 = vunpack.c.h.b16 %v431
        %v620 = vunpack.c.l.b16 %v432
        %v621 = vunpack.c.l.b16 %v433
        %v622 = vunpack.c.h.b16 %v433
        %v623 = vunpack.c.l.b16 %v434
        %v624 = vunpack.c.l.b16 %v435
        %v625 = vunpack.c.h.b16 %v435
        %v626 = vunpack.c.l.b16 %v436
        %v627 = vunpack.c.l.b16 %v437
        %v628 = vunpack.c.h.b16 %v437
        %v629 = vunpack.c.l.b16 %v438
        %v630 = vunpack.c.l.b16 %v439
        %v631 = vunpack.c.h.b16 %v439
        %v632 = vunpack.c.l.b16 %v440
        %v633 = vunpack.c.l.b16 %v441
        %v634 = vunpack.c.h.b16 %v441
        %v635 = vunpack.c.l.b16 %v442
        %v636 = vunpack.c.l.b16 %v443
        %v637 = vunpack.c.h.b16 %v443
        %v638 = vunpack.c.l.b16 %v444
        %v639 = vunpack.c.l.b16 %v445
        %v640 = vunpack.c.h.b16 %v445
        %v641 = vunpack.c.l.b16 %v446
        %v642 = vunpack.c.l.b16 %v447
        %v643 = vunpack.c.h.b16 %v447
        %v644 = vunpack.c.l.b16 %v448
        %v645 = vpack.c.b16 %v552, %v549
        %v646 = vpack.c.b16 %v553, %v550
        %v647 = vpack.c.b16 %v554, %v551
        %v648 = vpack.c.b16 %v558, %v555
        %v649 = vpack.c.b16 %v559, %v556
        %v650 = vpack.c.b16 %v560, %v557
        %v651 = vpack.c.b16 %v564, %v561
        %v652 = vpack.c.b16 %v565, %v562
        %v653 = vpack.c.b16 %v566, %v563
        %v654 = vpack.c.b16 %v570, %v567
        %v655 = vpack.c.b16 %v571, %v568
        %v656 = vpack.c.b16 %v572, %v569
        %v657 = vpack.c.b16 %v576, %v573
        %v658 = vpack.c.b16 %v577, %v574
        %v659 = vpack.c.b16 %v578, %v575
        %v660 = vpack.c.b16 %v582, %v579
        %v661 = vpack.c.b16 %v583, %v580
        %v662 = vpack.c.b16 %v584, %v581
        %v663 = vpack.c.b16 %v588, %v585
        %v664 = vpack.c.b16 %v589, %v586
        %v665 = vpack.c.b16 %v590, %v587
        %v666 = vpack.c.b16 %v594, %v591
        %v667 = vpack.c.b16 %v595, %v592
        %v668 = vpack.c.b16 %v596, %v593
        %v669 = vpack.c.b16 %v600, %v597
        %v670 = vpack.c.b16 %v601, %v598
        %v671 = vpack.c.b16 %v602, %v599
        %v672 = vpack.c.b16 %v606, %v603
        %v673 = vpack.c.b16 %v607, %v604
        %v674 = vpack.c.b16 %v608, %v605
        %v675 = vpack.c.b16 %v612, %v609
        %v676 = vpack.c.b16 %v613, %v610
        %v677 = vpack.c.b16 %v614, %v611
        %v678 = vpack.c.b16 %v618, %v615
        %v679 = vpack.c.b16 %v619, %v616
        %v680 = vpack.c.b16 %v620, %v617
        %v681 = vpack.c.b16 %v624, %v621
        %v682 = vpack.c.b16 %v625, %v622
        %v683 = vpack.c.b16 %v626, %v623
        %v684 = vpack.c.b16 %v630, %v627
        %v685 = vpack.c.b16 %v631, %v628
        %v686 = vpack.c.b16 %v632, %v629
        %v687 = vpack.c.b16 %v636, %v633
        %v688 = vpack.c.b16 %v637, %v634
        %v689 = vpack.c.b16 %v638, %v635
        %v690 = vpack.c.b16 %v642, %v639
        %v691 = vpack.c.b16 %v643, %v640
        %v692 = vpack.c.b16 %v644, %v641
        %v761 = vunpack.c.l.b16 %v449
        %v762 = vunpack.c.l.b16 %v450
        %v763 = vunpack.c.l.b16 %v451
        %v764 = vunpack.c.l.b16 %v452
        %v765 = vunpack.c.l.b16 %v453
        %v766 = vunpack.c.l.b16 %v454
        %v767 = vunpack.c.l.b16 %v455
        %v768 = vunpack.c.l.b16 %v456
        %v769 = vunpack.c.l.b16 %v457
        %v770 = vunpack.c.l.b16 %v458
        %v771 = vunpack.c.l.b16 %v459
        %v772 = vunpack.c.l.b16 %v460
        %v773 = vunpack.c.l.b16 %v461
        %v774 = vunpack.c.l.b16 %v462
        %v775 = vunpack.c.l.b16 %v463
        %v776 = vunpack.c.l.b16 %v464
        %v777 = vunpack.c.l.b16 %v465
        %v778 = vunpack.c.l.b16 %v466
        %v779 = vunpack.c.l.b16 %v467
        %v780 = vunpack.c.l.b16 %v468
        %v781 = vunpack.c.l.b16 %v469
        %v782 = vunpack.c.l.b16 %v470
        %v783 = vunpack.c.l.b16 %v471
        %v784 = vunpack.c.l.b16 %v472
        %v785 = vunpack.c.l.b16 %v473
        %v786 = vunpack.c.l.b16 %v474
        %v787 = vunpack.c.l.b16 %v475
        %v788 = vunpack.c.l.b16 %v476
        %v789 = vunpack.c.l.b16 %v477
        %v790 = vunpack.c.l.b16 %v478
        %v791 = vunpack.c.l.b16 %v479
        %v792 = vunpack.c.l.b16 %v480
        %v793 = vunpack.c.l.b16 %v481
        %v794 = vunpack.c.l.b16 %v482
        %v795 = vunpack.c.l.b16 %v483
        %v796 = vunpack.c.l.b16 %v484
        %v797 = vpack.c.b16 %v762, %v761
        %v798 = vpack.c.b16 %v764, %v763
        %v799 = vpack.c.b16 %v766, %v765
        %v800 = vpack.c.b16 %v768, %v767
        %v801 = vpack.c.b16 %v770, %v769
        %v802 = vpack.c.b16 %v772, %v771
        %v803 = vpack.c.b16 %v774, %v773
        %v804 = vpack.c.b16 %v776, %v775
        %v805 = vpack.c.b16 %v778, %v777
        %v806 = vpack.c.b16 %v780, %v779
        %v807 = vpack.c.b16 %v782, %v781
        %v808 = vpack.c.b16 %v784, %v783
        %v809 = vpack.c.b16 %v786, %v785
        %v810 = vpack.c.b16 %v788, %v787
        %v811 = vpack.c.b16 %v790, %v789
        %v812 = vpack.c.b16 %v792, %v791
        %v813 = vpack.c.b16 %v794, %v793
        %v814 = vpack.c.b16 %v796, %v795
        %vm833 = vcmask 261120
        %v835 = vsel %vm833, %v647, 0
        %v838 = vsel %vm833, %v650, 0
        %v841 = vsel %vm833, %v653, 0
        %v844 = vsel %vm833, %v656, 0
        %v847 = vsel %vm833, %v659, 0
        %v850 = vsel %vm833, %v662, 0
        %v853 = vsel %vm833, %v665, 0
        %v856 = vsel %vm833, %v668, 0
        %v859 = vsel %vm833, %v671, 0
        %v862 = vsel %vm833, %v674, 0
        %v865 = vsel %vm833, %v677, 0
        %v868 = vsel %vm833, %v680, 0
        %v871 = vsel %vm833, %v683, 0
        %v874 = vsel %vm833, %v686, 0
        %v877 = vsel %vm833, %v689, 0
        %v880 = vsel %vm833, %v692, 0
        %882 = vmatpush.bf16.msra.mxu0 %v804
        %883 = vmatpush.bf16.msra.mxu0 %v803
        %884 = vmatpush.bf16.msra.mxu0 %v802
        %885 = vmatpush.bf16.msra.mxu0 %v801
        %886 = vmatpush.bf16.msra.mxu0 %v800
        %887 = vmatpush.bf16.msra.mxu0 %v799
        %888 = vmatpush.bf16.msra.mxu0 %v798
        %889 = vmatpush.bf16.msra.mxu0 %v797
        %890 = vmatmul.bf16.gmra.mxu0 %v645
        %v891 = vpop.f32.mrf.mxu0
        %v892 = vadd.f32 0.0, %v891
        %v893 = vpop.f32.mrf.mxu0
        %v894 = vadd.f32 0.0, %v893
        %895 = vmatmul.bf16.gmra.mxu0 %v648
        %v896 = vpop.f32.mrf.mxu0
        %v897 = vadd.f32 0.0, %v896
        %v898 = vpop.f32.mrf.mxu0
        %v899 = vadd.f32 0.0, %v898
        %900 = vmatmul.bf16.gmra.mxu0 %v651
        %v901 = vpop.f32.mrf.mxu0
        %v902 = vadd.f32 0.0, %v901
        %v903 = vpop.f32.mrf.mxu0
        %v904 = vadd.f32 0.0, %v903
        %905 = vmatmul.bf16.gmra.mxu0 %v654
        %v906 = vpop.f32.mrf.mxu0
        %v907 = vadd.f32 0.0, %v906
        %v908 = vpop.f32.mrf.mxu0
        %v909 = vadd.f32 0.0, %v908
        %910 = vmatmul.bf16.gmra.mxu0 %v657
        %v911 = vpop.f32.mrf.mxu0
        %v912 = vadd.f32 0.0, %v911
        %v913 = vpop.f32.mrf.mxu0
        %v914 = vadd.f32 0.0, %v913
        %915 = vmatmul.bf16.gmra.mxu0 %v660
        %v916 = vpop.f32.mrf.mxu0
        %v917 = vadd.f32 0.0, %v916
        %v918 = vpop.f32.mrf.mxu0
        %v919 = vadd.f32 0.0, %v918
        %920 = vmatmul.bf16.gmra.mxu0 %v663
        %v921 = vpop.f32.mrf.mxu0
        %v922 = vadd.f32 0.0, %v921
        %v923 = vpop.f32.mrf.mxu0
        %v924 = vadd.f32 0.0, %v923
        %925 = vmatmul.bf16.gmra.mxu0 %v666
        %v926 = vpop.f32.mrf.mxu0
        %v927 = vadd.f32 0.0, %v926
        %v928 = vpop.f32.mrf.mxu0
        %v929 = vadd.f32 0.0, %v928
        %930 = vmatmul.bf16.gmra.mxu0 %v669
        %v931 = vpop.f32.mrf.mxu0
        %v932 = vadd.f32 0.0, %v931
        %v933 = vpop.f32.mrf.mxu0
        %v934 = vadd.f32 0.0, %v933
        %935 = vmatmul.bf16.gmra.mxu0 %v672
        %v936 = vpop.f32.mrf.mxu0
        %v937 = vadd.f32 0.0, %v936
        %v938 = vpop.f32.mrf.mxu0
        %v939 = vadd.f32 0.0, %v938
        %940 = vmatmul.bf16.gmra.mxu0 %v675
        %v941 = vpop.f32.mrf.mxu0
        %v942 = vadd.f32 0.0, %v941
        %v943 = vpop.f32.mrf.mxu0
        %v944 = vadd.f32 0.0, %v943
        %945 = vmatmul.bf16.gmra.mxu0 %v678
        %v946 = vpop.f32.mrf.mxu0
        %v947 = vadd.f32 0.0, %v946
        %v948 = vpop.f32.mrf.mxu0
        %v949 = vadd.f32 0.0, %v948
        %950 = vmatmul.bf16.gmra.mxu0 %v681
        %v951 = vpop.f32.mrf.mxu0
        %v952 = vadd.f32 0.0, %v951
        %v953 = vpop.f32.mrf.mxu0
        %v954 = vadd.f32 0.0, %v953
        %955 = vmatmul.bf16.gmra.mxu0 %v684
        %v956 = vpop.f32.mrf.mxu0
        %v957 = vadd.f32 0.0, %v956
        %v958 = vpop.f32.mrf.mxu0
        %v959 = vadd.f32 0.0, %v958
        %960 = vmatmul.bf16.gmra.mxu0 %v687
        %v961 = vpop.f32.mrf.mxu0
        %v962 = vadd.f32 0.0, %v961
        %v963 = vpop.f32.mrf.mxu0
        %v964 = vadd.f32 0.0, %v963
        %965 = vmatmul.bf16.gmra.mxu0 %v690
        %v966 = vpop.f32.mrf.mxu0
        %v967 = vadd.f32 0.0, %v966
        %v968 = vpop.f32.mrf.mxu0
        %v969 = vadd.f32 0.0, %v968
        %970 = vdwg.mxu0
        %971 = vmatpush.bf16.msra.mxu0 %v812
        %972 = vmatpush.bf16.msra.mxu0 %v811
        %973 = vmatpush.bf16.msra.mxu0 %v810
        %974 = vmatpush.bf16.msra.mxu0 %v809
        %975 = vmatpush.bf16.msra.mxu0 %v808
        %976 = vmatpush.bf16.msra.mxu0 %v807
        %977 = vmatpush.bf16.msra.mxu0 %v806
        %978 = vmatpush.bf16.msra.mxu0 %v805
        %979 = vmatmul.bf16.gmra.mxu0 %v646
        %v980 = vpop.f32.mrf.mxu0
        %v981 = vadd.f32 %v892, %v980
        %v982 = vpop.f32.mrf.mxu0
        %v983 = vadd.f32 %v894, %v982
        %984 = vmatmul.bf16.gmra.mxu0 %v649
        %v985 = vpop.f32.mrf.mxu0
        %v986 = vadd.f32 %v897, %v985
        %v987 = vpop.f32.mrf.mxu0
        %v988 = vadd.f32 %v899, %v987
        %989 = vmatmul.bf16.gmra.mxu0 %v652
        %v990 = vpop.f32.mrf.mxu0
        %v991 = vadd.f32 %v902, %v990
        %v992 = vpop.f32.mrf.mxu0
        %v993 = vadd.f32 %v904, %v992
        %994 = vmatmul.bf16.gmra.mxu0 %v655
        %v995 = vpop.f32.mrf.mxu0
        %v996 = vadd.f32 %v907, %v995
        %v997 = vpop.f32.mrf.mxu0
        %v998 = vadd.f32 %v909, %v997
        %999 = vmatmul.bf16.gmra.mxu0 %v658
        %v1000 = vpop.f32.mrf.mxu0
        %v1001 = vadd.f32 %v912, %v1000
        %v1002 = vpop.f32.mrf.mxu0
        %v1003 = vadd.f32 %v914, %v1002
        %1004 = vmatmul.bf16.gmra.mxu0 %v661
        %v1005 = vpop.f32.mrf.mxu0
        %v1006 = vadd.f32 %v917, %v1005
        %v1007 = vpop.f32.mrf.mxu0
        %v1008 = vadd.f32 %v919, %v1007
        %1009 = vmatmul.bf16.gmra.mxu0 %v664
        %v1010 = vpop.f32.mrf.mxu0
        %v1011 = vadd.f32 %v922, %v1010
        %v1012 = vpop.f32.mrf.mxu0
        %v1013 = vadd.f32 %v924, %v1012
        %1014 = vmatmul.bf16.gmra.mxu0 %v667
        %v1015 = vpop.f32.mrf.mxu0
        %v1016 = vadd.f32 %v927, %v1015
        %v1017 = vpop.f32.mrf.mxu0
        %v1018 = vadd.f32 %v929, %v1017
        %1019 = vmatmul.bf16.gmra.mxu0 %v670
        %v1020 = vpop.f32.mrf.mxu0
        %v1021 = vadd.f32 %v932, %v1020
        %v1022 = vpop.f32.mrf.mxu0
        %v1023 = vadd.f32 %v934, %v1022
        %1024 = vmatmul.bf16.gmra.mxu0 %v673
        %v1025 = vpop.f32.mrf.mxu0
        %v1026 = vadd.f32 %v937, %v1025
        %v1027 = vpop.f32.mrf.mxu0
        %v1028 = vadd.f32 %v939, %v1027
        %1029 = vmatmul.bf16.gmra.mxu0 %v676
        %v1030 = vpop.f32.mrf.mxu0
        %v1031 = vadd.f32 %v942, %v1030
        %v1032 = vpop.f32.mrf.mxu0
        %v1033 = vadd.f32 %v944, %v1032
        %1034 = vmatmul.bf16.gmra.mxu0 %v679
        %v1035 = vpop.f32.mrf.mxu0
        %v1036 = vadd.f32 %v947, %v1035
        %v1037 = vpop.f32.mrf.mxu0
        %v1038 = vadd.f32 %v949, %v1037
        %1039 = vmatmul.bf16.gmra.mxu0 %v682
        %v1040 = vpop.f32.mrf.mxu0
        %v1041 = vadd.f32 %v952, %v1040
        %v1042 = vpop.f32.mrf.mxu0
        %v1043 = vadd.f32 %v954, %v1042
        %1044 = vmatmul.bf16.gmra.mxu0 %v685
        %v1045 = vpop.f32.mrf.mxu0
        %v1046 = vadd.f32 %v957, %v1045
        %v1047 = vpop.f32.mrf.mxu0
        %v1048 = vadd.f32 %v959, %v1047
        %1049 = vmatmul.bf16.gmra.mxu0 %v688
        %v1050 = vpop.f32.mrf.mxu0
        %v1051 = vadd.f32 %v962, %v1050
        %v1052 = vpop.f32.mrf.mxu0
        %v1053 = vadd.f32 %v964, %v1052
        %1054 = vmatmul.bf16.gmra.mxu0 %v691
        %v1055 = vpop.f32.mrf.mxu0
        %v1056 = vadd.f32 %v967, %v1055
        %v1057 = vpop.f32.mrf.mxu0
        %v1058 = vadd.f32 %v969, %v1057
        %1059 = vdwg.mxu0
        %1060 = vmatpush.bf16.msra.mxu0 0
        %1061 = vmatpush.bf16.msra.mxu0 0
        %1062 = vmatpush.bf16.msra.mxu0 0
        %1063 = vmatpush.bf16.msra.mxu0 0
        %1064 = vmatpush.bf16.msra.mxu0 0
        %1065 = vmatpush.bf16.msra.mxu0 0
        %1066 = vmatpush.bf16.msra.mxu0 %v814
        %1067 = vmatpush.bf16.msra.mxu0 %v813
        %1068 = vmatmul.bf16.gmra.mxu0 %v835
        %v1069 = vpop.f32.mrf.mxu0
        %v1070 = vadd.f32 %v981, %v1069
        %v1071 = vpop.f32.mrf.mxu0
        %v1072 = vadd.f32 %v983, %v1071
        %1073 = vmatmul.bf16.gmra.mxu0 %v838
        %v1074 = vpop.f32.mrf.mxu0
        %v1075 = vadd.f32 %v986, %v1074
        %v1076 = vpop.f32.mrf.mxu0
        %v1077 = vadd.f32 %v988, %v1076
        %1078 = vmatmul.bf16.gmra.mxu0 %v841
        %v1079 = vpop.f32.mrf.mxu0
        %v1080 = vadd.f32 %v991, %v1079
        %v1081 = vpop.f32.mrf.mxu0
        %v1082 = vadd.f32 %v993, %v1081
        %1083 = vmatmul.bf16.gmra.mxu0 %v844
        %v1084 = vpop.f32.mrf.mxu0
        %v1085 = vadd.f32 %v996, %v1084
        %v1086 = vpop.f32.mrf.mxu0
        %v1087 = vadd.f32 %v998, %v1086
        %1088 = vmatmul.bf16.gmra.mxu0 %v847
        %v1089 = vpop.f32.mrf.mxu0
        %v1090 = vadd.f32 %v1001, %v1089
        %v1091 = vpop.f32.mrf.mxu0
        %v1092 = vadd.f32 %v1003, %v1091
        %1093 = vmatmul.bf16.gmra.mxu0 %v850
        %v1094 = vpop.f32.mrf.mxu0
        %v1095 = vadd.f32 %v1006, %v1094
        %v1096 = vpop.f32.mrf.mxu0
        %v1097 = vadd.f32 %v1008, %v1096
        %1098 = vmatmul.bf16.gmra.mxu0 %v853
        %v1099 = vpop.f32.mrf.mxu0
        %v1100 = vadd.f32 %v1011, %v1099
        %v1101 = vpop.f32.mrf.mxu0
        %v1102 = vadd.f32 %v1013, %v1101
        %1103 = vmatmul.bf16.gmra.mxu0 %v856
        %v1104 = vpop.f32.mrf.mxu0
        %v1105 = vadd.f32 %v1016, %v1104
        %v1106 = vpop.f32.mrf.mxu0
        %v1107 = vadd.f32 %v1018, %v1106
        %1108 = vmatmul.bf16.gmra.mxu0 %v859
        %v1109 = vpop.f32.mrf.mxu0
        %v1110 = vadd.f32 %v1021, %v1109
        %v1111 = vpop.f32.mrf.mxu0
        %v1112 = vadd.f32 %v1023, %v1111
        %1113 = vmatmul.bf16.gmra.mxu0 %v862
        %v1114 = vpop.f32.mrf.mxu0
        %v1115 = vadd.f32 %v1026, %v1114
        %v1116 = vpop.f32.mrf.mxu0
        %v1117 = vadd.f32 %v1028, %v1116
        %1118 = vmatmul.bf16.gmra.mxu0 %v865
        %v1119 = vpop.f32.mrf.mxu0
        %v1120 = vadd.f32 %v1031, %v1119
        %v1121 = vpop.f32.mrf.mxu0
        %v1122 = vadd.f32 %v1033, %v1121
        %1123 = vmatmul.bf16.gmra.mxu0 %v868
        %v1124 = vpop.f32.mrf.mxu0
        %v1125 = vadd.f32 %v1036, %v1124
        %v1126 = vpop.f32.mrf.mxu0
        %v1127 = vadd.f32 %v1038, %v1126
        %1128 = vmatmul.bf16.gmra.mxu0 %v871
        %v1129 = vpop.f32.mrf.mxu0
        %v1130 = vadd.f32 %v1041, %v1129
        %v1131 = vpop.f32.mrf.mxu0
        %v1132 = vadd.f32 %v1043, %v1131
        %1133 = vmatmul.bf16.gmra.mxu0 %v874
        %v1134 = vpop.f32.mrf.mxu0
        %v1135 = vadd.f32 %v1046, %v1134
        %v1136 = vpop.f32.mrf.mxu0
        %v1137 = vadd.f32 %v1048, %v1136
        %1138 = vmatmul.bf16.gmra.mxu0 %v877
        %v1139 = vpop.f32.mrf.mxu0
        %v1140 = vadd.f32 %v1051, %v1139
        %v1141 = vpop.f32.mrf.mxu0
        %v1142 = vadd.f32 %v1053, %v1141
        %1143 = vmatmul.bf16.gmra.mxu0 %v880
        %v1144 = vpop.f32.mrf.mxu0
        %v1145 = vadd.f32 %v1056, %v1144
        %v1146 = vpop.f32.mrf.mxu0
        %v1147 = vadd.f32 %v1058, %v1146
        %1148 = vdwg.mxu0
        %vm1149 = vcmask 523264
        %v1150 = vsel %vm1149, %v1070, -inf
        %v1151 = vsel %vm1149, %v1090, -inf
        %v1152 = vmax.f32 %v1150, %v1151
        %v1153 = vsel %vm1149, %v1110, -inf
        %v1154 = vmax.f32 %v1152, %v1153
        %v1155 = vsel %vm1149, %v1130, -inf
        %v1156 = vmax.f32 %v1154, %v1155
        %v1157 = vsel %vm1149, %v1072, -inf
        %v1158 = vsel %vm1149, %v1092, -inf
        %v1159 = vmax.f32 %v1157, %v1158
        %v1160 = vsel %vm1149, %v1112, -inf
        %v1161 = vmax.f32 %v1159, %v1160
        %v1162 = vsel %vm1149, %v1132, -inf
        %v1163 = vmax.f32 %v1161, %v1162
        %v1164 = vsel %vm1149, %v1075, -inf
        %v1165 = vsel %vm1149, %v1095, -inf
        %v1166 = vmax.f32 %v1164, %v1165
        %v1167 = vsel %vm1149, %v1115, -inf
        %v1168 = vmax.f32 %v1166, %v1167
        %v1169 = vsel %vm1149, %v1135, -inf
        %v1170 = vmax.f32 %v1168, %v1169
        %v1171 = vsel %vm1149, %v1077, -inf
        %v1172 = vsel %vm1149, %v1097, -inf
        %v1173 = vmax.f32 %v1171, %v1172
        %v1174 = vsel %vm1149, %v1117, -inf
        %v1175 = vmax.f32 %v1173, %v1174
        %v1176 = vsel %vm1149, %v1137, -inf
        %v1177 = vmax.f32 %v1175, %v1176
        %v1178 = vsel %vm1149, %v1080, -inf
        %v1179 = vsel %vm1149, %v1100, -inf
        %v1180 = vmax.f32 %v1178, %v1179
        %v1181 = vsel %vm1149, %v1120, -inf
        %v1182 = vmax.f32 %v1180, %v1181
        %v1183 = vsel %vm1149, %v1140, -inf
        %v1184 = vmax.f32 %v1182, %v1183
        %v1185 = vsel %vm1149, %v1082, -inf
        %v1186 = vsel %vm1149, %v1102, -inf
        %v1187 = vmax.f32 %v1185, %v1186
        %v1188 = vsel %vm1149, %v1122, -inf
        %v1189 = vmax.f32 %v1187, %v1188
        %v1190 = vsel %vm1149, %v1142, -inf
        %v1191 = vmax.f32 %v1189, %v1190
        %v1192 = vsel %vm1149, %v1085, -inf
        %v1193 = vsel %vm1149, %v1105, -inf
        %v1194 = vmax.f32 %v1192, %v1193
        %v1195 = vsel %vm1149, %v1125, -inf
        %v1196 = vmax.f32 %v1194, %v1195
        %v1197 = vsel %vm1149, %v1145, -inf
        %v1198 = vmax.f32 %v1196, %v1197
        %v1199 = vsel %vm1149, %v1087, -inf
        %v1200 = vsel %vm1149, %v1107, -inf
        %v1201 = vmax.f32 %v1199, %v1200
        %v1202 = vsel %vm1149, %v1127, -inf
        %v1203 = vmax.f32 %v1201, %v1202
        %v1204 = vsel %vm1149, %v1147, -inf
        %v1205 = vmax.f32 %v1203, %v1204
        %v1206 = vld [vmem:[%s2] sm:$0x1]
        %v1208 = vperm.slane %v1206, 0
        %v1210 = vadd.f32 %v1156, %v1208
        %v1211 = vadd.f32 %v1163, %v1208
        %v1212 = vadd.f32 %v1170, %v1208
        %v1213 = vadd.f32 %v1177, %v1208
        %v1214 = vadd.f32 %v1184, %v1208
        %v1215 = vadd.f32 %v1191, %v1208
        %v1216 = vadd.f32 %v1198, %v1208
        %v1217 = vadd.f32 %v1205, %v1208
        %v1218 = vmax.f32 %v1210, 0.0
        %v1219 = vmax.f32 %v1211, 0.0
        %v1220 = vmax.f32 %v1212, 0.0
        %v1221 = vmax.f32 %v1213, 0.0
        %v1222 = vmax.f32 %v1214, 0.0
        %v1223 = vmax.f32 %v1215, 0.0
        %v1224 = vmax.f32 %v1216, 0.0
        %v1225 = vmax.f32 %v1217, 0.0
        %v1226 = vld [vmem:[%s3] sm:$0x1]
        %v1228 = vperm.slane %v1226, 0
        %v1230 = vmul.f32 %v1218, %v1228
        %v1231 = vmul.f32 %v1219, %v1228
        %v1232 = vmul.f32 %v1220, %v1228
        %v1233 = vmul.f32 %v1221, %v1228
        %v1234 = vmul.f32 %v1222, %v1228
        %v1235 = vmul.f32 %v1223, %v1228
        %v1236 = vmul.f32 %v1224, %v1228
        %v1237 = vmul.f32 %v1225, %v1228
        %v1238 = vld [vmem:[%s4] sm:$0x1]
        %v1240 = vperm.slane %v1238, 0
        %v1242 = vadd.f32 %v1230, %v1240
        %v1243 = vadd.f32 %v1231, %v1240
        %v1244 = vadd.f32 %v1232, %v1240
        %v1245 = vadd.f32 %v1233, %v1240
        %v1246 = vadd.f32 %v1234, %v1240
        %v1247 = vadd.f32 %v1235, %v1240
        %v1248 = vadd.f32 %v1236, %v1240
        %v1249 = vadd.f32 %v1237, %v1240
        %v1250 = vpack.c.bf16 %v1242, %v1242
        %v1251 = vpack.c.bf16 %v1243, %v1243
        %v1252 = vpack.c.bf16 %v1244, %v1244
        %v1253 = vpack.c.bf16 %v1245, %v1245
        %v1254 = vpack.c.bf16 %v1246, %v1246
        %v1255 = vpack.c.bf16 %v1247, %v1247
        %v1256 = vpack.c.bf16 %v1248, %v1248
        %v1257 = vpack.c.bf16 %v1249, %v1249
        %vm1258 = vcmask 519168
        %1259 = vst.msk [vmem:[%s382] sm:$0xf] %vm1258, %v1250
        %1260 = vst.msk [vmem:[%s382 + $0x4] sm:$0xf] %vm1258, %v1251
        %1261 = vst.msk [vmem:[%s382 + $0x8] sm:$0xf] %vm1258, %v1252
        %1262 = vst.msk [vmem:[%s382 + $0xc] sm:$0xf] %vm1258, %v1253
        %1263 = vst.msk [vmem:[%s382 + $0x10] sm:$0xf] %vm1258, %v1254
        %1264 = vst.msk [vmem:[%s382 + $0x14] sm:$0xf] %vm1258, %v1255
        %1265 = vst.msk [vmem:[%s382 + $0x18] sm:$0xf] %vm1258, %v1256
        %1266 = vst.msk [vmem:[%s382 + $0x1c] sm:$0xf] %vm1258, %v1257
        %s1267 = smul.u32 8, %s16
        %p1268 = scmp.lt.s32.totalorder %s1267, 15
        %s1269 = scalar_select %p1268, %s1267, 15
        %s1270 = smul.addr %s1269, 4
        %s1271 = scalar_lea.vmem %s5, %s1270
        // Predicated region
        $region67: #{mynet_forward.6} parent=61 // pred_check
          %p1272 = pneg %p144
        $region68: #{mynet_forward.6} parent=61 // pred_check_branch
          %1274 = sbr.rel (%p1272) target = $region70
        $region69: #{mynet_forward.6} parent=61 // pred_region
          %s1275 = smul.u32 8, %s16
        $region70: #{mynet_forward.6} parent=61 // pred_fallthru
          _
      $region62: #{mynet_forward.6} parent=5 // pred_fallthru
        _
      %p1276 = scmp.le.s32.totalorder 2, %s11
      // Predicated region
      $region71: #{mynet_forward.6} parent=5 // pred_check
        %p1277 = pneg %p1276
      $region72: #{mynet_forward.6} parent=5 // pred_check_branch
        %1279 = sbr.rel (%p1277) target = $region74
      $region73: #{mynet_forward.6} parent=5 // pred_region
        %s1280 = ssub.s32 %s11, 2
        // Predicated region
        $region75: #{mynet_forward.6} parent=73 // pred_check
          %p1281 = pneg %p150
        $region76: #{mynet_forward.6} parent=73 // pred_check_branch
          %1283 = sbr.rel (%p1281) target = $region78
        $region77: #{mynet_forward.6} parent=73 // pred_region
          %s1284 = smul.u32 8, %s17
          %p1285 = scmp.lt.s32.totalorder %s1284, 15
          %s1286 = scalar_select %p1285, %s1284, 15
          %s1287 = smul.addr %s1286, 4
          %s1288 = scalar_lea.vmem %s5, %s1287
        $region78: #{mynet_forward.6} parent=73 // pred_fallthru
          _
      $region74: #{mynet_forward.6} parent=5 // pred_fallthru
        _
    $region6: #{mynet_forward.6} parent=1 // loop_footer
      %s15 = sadd.s32 1, %s11
    $region7: #{mynet_forward.6} parent=1 // loop_footer_branch
      %10 = sbr.rel target = $region3
    $region8: #{mynet_forward.6} parent=1 // loop_exit
      _

// kernel: mynet_forward.7
$region0: #{mynet_forward.7}
  #allocation0 [shape = 'u32[]', space=smem, size = 0x4, offset = 0x4, fixed_abs, tag = 'smem constant byte address 0x4 - core index']
  #allocation1 [shape = 'u32[72,128]{1,0:T(1,128)}', space=vmem, size = 0x9000, scoped, tag = 'internal scratch']
  %s0 = inlined_call_operand.vmem [shape: bf16[4,32,576], index: 0, kind: input, shape index: {}]
  %s1 = inlined_call_operand.vmem [shape: bf16[576,128], index: 1, kind: input, shape index: {}]
  %s2 = inlined_call_operand.vmem [shape: f32[1,128], index: 2, kind: input, shape index: {}]
  %s3 = inlined_call_operand.vmem [shape: f32[1,128], index: 3, kind: input, shape index: {}]
  %s4 = inlined_call_operand.vmem [shape: f32[1,128], index: 4, kind: input, shape index: {}]
  %s5 = inlined_call_operand.vmem [shape: bf16[32,128], index: 5, kind: output, shape index: {}]
  %s6 = sld [smem:[#allocation0]]
  $region79: #{mynet_forward.7} parent=0
    _
  %s8 = ssub.s32 1, %s6
  %s9 = scalar_select 0, %s8, %s6
  $region1: #{mynet_forward.7} parent=0
    #allocation2 [shape = 'u8[163840]{0}', space=vmem, size = 0x28000, scoped, tag = 'input window, operand 0']
    loop: start=0, step=1, limit=4
    $region2: #{mynet_forward.7} parent=1 // loop_pre_header
      _
    $region3: #{mynet_forward.7} parent=1 // loop_header
      %s11 = sphi 0, %s15
      %p12 = scmp.ge.s32.totalorder %s11, 4
      %s21 = sphi 0, %s23
      %s24 = sphi 0, %s21
      %s25 = sphi 0, %s24
      %s41 = sphi 0, %s25
      %s45 = sphi 0, %s45
      %s47 = sphi 0, %s45
      %s48 = sphi 0, %s47
      %s62 = sphi 0, %s48
      %s66 = sphi 0, %s66
      %s68 = sphi 0, %s66
      %s69 = sphi 0, %s68
      %s83 = sphi 0, %s69
      %s87 = sphi 0, %s87
      %s89 = sphi 0, %s87
      %s90 = sphi 0, %s89
      %s104 = sphi 0, %s90
      %s108 = sphi 0, %s108
      %s110 = sphi 0, %s108
      %s111 = sphi 0, %s110
      %s125 = sphi 0, %s111
      %s131 = sphi 0, %s133
      %s134 = sphi 0, %s131
      %s135 = sphi 0, %s134
      %s151 = sphi 0, %s135
    $region4: #{mynet_forward.7} parent=1 // loop_header_branch
      %14 = sbr.rel (%p12) target = $region8
    $region5: #{mynet_forward.7} parent=1 // loop_body
      %s16 = ssub.s32 %s11, 1
      %s17 = ssub.s32 %s11, 2
      %s18 = sadd.s32 %s11, 1
      %s19 = ssub.s32 %s11, %s18
      %p20 = scmp.eq.s32.totalorder %s19, 0
      %s22 = sadd.s32 %s21, 1
      %s23 = scalar_select %p20, %s21, %s22
      %p26 = pneg %p20
      %p27 = scmp.eq.s32.totalorder %s11, 1
      %p28 = por %p26, %p27
      %p29 = scmp.ne.s32.totalorder %s21, %s24
      %p30 = scmp.eq.s32.totalorder %s11, 0
      %p31 = por %p29, %p30
      %p32 = scmp.ne.s32.totalorder %s21, %s24
      %p33 = scmp.eq.s32.totalorder %s16, 1
      %p34 = por %p32, %p33
      %p35 = scmp.ne.s32.totalorder %s24, %s25
      %p36 = scmp.eq.s32.totalorder %s16, 0
      %p37 = por %p35, %p36
      %p38 = scmp.ne.s32.totalorder %s24, %s25
      %p39 = scmp.eq.s32.totalorder %s17, 1
      %p40 = por %p38, %p39
      %p42 = scmp.ne.s32.totalorder %s25, %s41
      %p43 = scmp.eq.s32.totalorder %s17, 0
      %p44 = por %p42, %p43
      %s46 = sadd.s32 %s45, 1
      %p49 = scmp.eq.s32.totalorder %s11, 1
      %p50 = scmp.ne.s32.totalorder %s45, %s47
      %p51 = scmp.eq.s32.totalorder %s11, 0
      %p52 = por %p50, %p51
      %p53 = scmp.ne.s32.totalorder %s45, %s47
      %p54 = scmp.eq.s32.totalorder %s16, 1
      %p55 = por %p53, %p54
      %p56 = scmp.ne.s32.totalorder %s47, %s48
      %p57 = scmp.eq.s32.totalorder %s16, 0
      %p58 = por %p56, %p57
      %p59 = scmp.ne.s32.totalorder %s47, %s48
      %p60 = scmp.eq.s32.totalorder %s17, 1
      %p61 = por %p59, %p60
      %p63 = scmp.ne.s32.totalorder %s48, %s62
      %p64 = scmp.eq.s32.totalorder %s17, 0
      %p65 = por %p63, %p64
      %s67 = sadd.s32 %s66, 1
      %p70 = scmp.eq.s32.totalorder %s11, 1
      %p71 = scmp.ne.s32.totalorder %s66, %s68
      %p72 = scmp.eq.s32.totalorder %s11, 0
      %p73 = por %p71, %p72
      %p74 = scmp.ne.s32.totalorder %s66, %s68
      %p75 = scmp.eq.s32.totalorder %s16, 1
      %p76 = por %p74, %p75
      %p77 = scmp.ne.s32.totalorder %s68, %s69
      %p78 = scmp.eq.s32.totalorder %s16, 0
      %p79 = por %p77, %p78
      %p80 = scmp.ne.s32.totalorder %s68, %s69
      %p81 = scmp.eq.s32.totalorder %s17, 1
      %p82 = por %p80, %p81
      %p84 = scmp.ne.s32.totalorder %s69, %s83
      %p85 = scmp.eq.s32.totalorder %s17, 0
      %p86 = por %p84, %p85
      %s88 = sadd.s32 %s87, 1
      %p91 = scmp.eq.s32.totalorder %s11, 1
      %p92 = scmp.ne.s32.totalorder %s87, %s89
      %p93 = scmp.eq.s32.totalorder %s11, 0
      %p94 = por %p92, %p93
      %p95 = scmp.ne.s32.totalorder %s87, %s89
      %p96 = scmp.eq.s32.totalorder %s16, 1
      %p97 = por %p95, %p96
      %p98 = scmp.ne.s32.totalorder %s89, %s90
      %p99 = scmp.eq.s32.totalorder %s16, 0
      %p100 = por %p98, %p99
      %p101 = scmp.ne.s32.totalorder %s89, %s90
      %p102 = scmp.eq.s32.totalorder %s17, 1
      %p103 = por %p101, %p102
      %p105 = scmp.ne.s32.totalorder %s90, %s104
      %p106 = scmp.eq.s32.totalorder %s17, 0
      %p107 = por %p105, %p106
      %s109 = sadd.s32 %s108, 1
      %p112 = scmp.eq.s32.totalorder %s11, 1
      %p113 = scmp.ne.s32.totalorder %s108, %s110
      %p114 = scmp.eq.s32.totalorder %s11, 0
      %p115 = por %p113, %p114
      %p116 = scmp.ne.s32.totalorder %s108, %s110
      %p117 = scmp.eq.s32.totalorder %s16, 1
      %p118 = por %p116, %p117
      %p119 = scmp.ne.s32.totalorder %s110, %s111
      %p120 = scmp.eq.s32.totalorder %s16, 0
      %p121 = por %p119, %p120
      %p122 = scmp.ne.s32.totalorder %s110, %s111
      %p123 = scmp.eq.s32.totalorder %s17, 1
      %p124 = por %p122, %p123
      %p126 = scmp.ne.s32.totalorder %s111, %s125
      %p127 = scmp.eq.s32.totalorder %s17, 0
      %p128 = por %p126, %p127
      %s129 = ssub.s32 %s11, %s18
      %p130 = scmp.eq.s32.totalorder %s129, 0
      %s132 = sadd.s32 %s131, 1
      %s133 = scalar_select %p130, %s131, %s132
      %p136 = pneg %p130
      %p137 = scmp.eq.s32.totalorder %s11, 1
      %p138 = por %p136, %p137
      %p139 = scmp.ne.s32.totalorder %s131, %s134
      %p140 = scmp.eq.s32.totalorder %s11, 0
      %p141 = por %p139, %p140
      %p142 = scmp.ne.s32.totalorder %s131, %s134
      %p143 = scmp.eq.s32.totalorder %s16, 1
      %p144 = por %p142, %p143
      %p145 = scmp.ne.s32.totalorder %s134, %s135
      %p146 = scmp.eq.s32.totalorder %s16, 0
      %p147 = por %p145, %p146
      %p148 = scmp.ne.s32.totalorder %s134, %s135
      %p149 = scmp.eq.s32.totalorder %s17, 1
      %p150 = por %p148, %p149
      %p152 = scmp.ne.s32.totalorder %s135, %s151
      %p153 = scmp.eq.s32.totalorder %s17, 0
      %p154 = por %p152, %p153
      %p155 = scmp.le.s32.totalorder 1, %s11
      %p156 = scmp.lt.s32.totalorder %s11, 3
      %p157 = pnand %p155, %p156
      %p158 = pneg %p157
      // Predicated region
      $region9: #{mynet_forward.7} parent=5 // pred_check
        _
      $region10: #{mynet_forward.7} parent=5 // pred_check_branch
        %160 = sbr.rel (%p157) target = $region12
      $region11: #{mynet_forward.7} parent=5 // pred_region
        %s161 = ssub.s32 %s11, 1
        // Predicated region
        $region13: #{mynet_forward.7} parent=11 // pred_check
          %p162 = pneg %p58
        $region14: #{mynet_forward.7} parent=11 // pred_check_branch
          %164 = sbr.rel (%p162) target = $region16
        $region15: #{mynet_forward.7} parent=11 // pred_region
          _
        $region16: #{mynet_forward.7} parent=11 // pred_fallthru
          _
        // Predicated region
        $region17: #{mynet_forward.7} parent=11 // pred_check
          %p165 = pneg %p79
        $region18: #{mynet_forward.7} parent=11 // pred_check_branch
          %167 = sbr.rel (%p165) target = $region20
        $region19: #{mynet_forward.7} parent=11 // pred_region
          _
        $region20: #{mynet_forward.7} parent=11 // pred_fallthru
          _
        // Predicated region
        $region21: #{mynet_forward.7} parent=11 // pred_check
          %p168 = pneg %p100
        $region22: #{mynet_forward.7} parent=11 // pred_check_branch
          %170 = sbr.rel (%p168) target = $region24
        $region23: #{mynet_forward.7} parent=11 // pred_region
          _
        $region24: #{mynet_forward.7} parent=11 // pred_fallthru
          _
        // Predicated region
        $region25: #{mynet_forward.7} parent=11 // pred_check
          %p171 = pneg %p121
        $region26: #{mynet_forward.7} parent=11 // pred_check_branch
          %173 = sbr.rel (%p171) target = $region28
        $region27: #{mynet_forward.7} parent=11 // pred_region
          _
        $region28: #{mynet_forward.7} parent=11 // pred_fallthru
          _
      $region12: #{mynet_forward.7} parent=5 // pred_fallthru
        _
      %p174 = scmp.lt.s32.totalorder %s11, 2
      // Predicated region
      $region29: #{mynet_forward.7} parent=5 // pred_check
        %p175 = pneg %p174
      $region30: #{mynet_forward.7} parent=5 // pred_check_branch
        %177 = sbr.rel (%p175) target = $region32
      $region31: #{mynet_forward.7} parent=5 // pred_region
        // Predicated region
        $region33: #{mynet_forward.7} parent=31 // pred_check
          %p178 = pneg %p31
        $region34: #{mynet_forward.7} parent=31 // pred_check_branch
          %180 = sbr.rel (%p178) target = $region36
        $region35: #{mynet_forward.7} parent=31 // pred_region
          %s181 = sand.u32 %s21, 1
          %s182 = sand.u32 %s21, 1
          %s183 = smul.addr %s182, 160
          %s184 = scalar_lea.vmem [#allocation2], %s183
          %s185 = smul.u32 2, %s11
          %s186 = smul.addr %s185, 5
          %s187 = smul.addr %s186, 4
          %s188 = scalar_lea.vmem %s0, %s187
          // Predicated region
          $region37: #{mynet_forward.7} parent=35 // pred_check
            _
          $region38: #{mynet_forward.7} parent=35 // pred_check_branch
            %190 = sbr.rel (0) target = $region40
          $region39: #{mynet_forward.7} parent=35 // pred_region
            // Predicated region
            $region41: #{mynet_forward.7} parent=39 // pred_check
              _
            $region42: #{mynet_forward.7} parent=39 // pred_check_branch
              %192 = sbr.rel (0) target = $region44
            $region43: #{mynet_forward.7} parent=39 // pred_region
              %s193 = scalar_lea.vmem %s188, 16
              %s194 = scalar_lea.vmem %s184, 16 [#allocation2]
              loop: start=0, step=1, limit=1
              $region45: #{mynet_forward.7} parent=43 // loop_pre_header
                _
              $region46: #{mynet_forward.7} parent=43 // loop_header
                %s196 = sphi 0, %s200
                %p197 = scmp.ge.s32.totalorder %s196, 1
                %s201 = sphi %s188, %s188
                %s202 = sphi %s184, %s184
              $region47: #{mynet_forward.7} parent=43 // loop_header_branch
                %199 = sbr.rel (%p197) target = $region51
              $region48: #{mynet_forward.7} parent=43 // loop_body
                %v203 = vld [vmem:[%s201] sm:$0xff]
                %204 = vst [vmem:[%s202] sm:$0xff] %v203
                %v205 = vld [vmem:[%s201 + $0x8] sm:$0xff]
                %206 = vst [vmem:[%s202 + $0x8] sm:$0xff] %v205
                %v207 = vld [vmem:[%s201 + $0x14] sm:$0xff]
                %208 = vst [vmem:[%s202 + $0x14] sm:$0xff] %v207
                %v209 = vld [vmem:[%s201 + $0x1c] sm:$0xff]
                %210 = vst [vmem:[%s202 + $0x1c] sm:$0xff] %v209
                %v211 = vld [vmem:[%s201 + $0x50] sm:$0xff]
                %212 = vst [vmem:[%s202 + $0x28] sm:$0xff] %v211
                %v213 = vld [vmem:[%s201 + $0x58] sm:$0xff]
                %214 = vst [vmem:[%s202 + $0x30] sm:$0xff] %v213
                %v215 = vld [vmem:[%s201 + $0x64] sm:$0xff]
                %216 = vst [vmem:[%s202 + $0x3c] sm:$0xff] %v215
                %v217 = vld [vmem:[%s201 + $0x6c] sm:$0xff]
                %218 = vst [vmem:[%s202 + $0x44] sm:$0xff] %v217
                %v219 = vld [vmem:[%s201 + $0xa0] sm:$0xff]
                %220 = vst [vmem:[%s202 + $0x50] sm:$0xff] %v219
                %v221 = vld [vmem:[%s201 + $0xa8] sm:$0xff]
                %222 = vst [vmem:[%s202 + $0x58] sm:$0xff] %v221
                %v223 = vld [vmem:[%s201 + $0xb4] sm:$0xff]
                %224 = vst [vmem:[%s202 + $0x64] sm:$0xff] %v223
                %v225 = vld [vmem:[%s201 + $0xbc] sm:$0xff]
                %226 = vst [vmem:[%s202 + $0x6c] sm:$0xff] %v225
                %v227 = vld [vmem:[%s201 + $0xf0] sm:$0xff]
                %228 = vst [vmem:[%s202 + $0x78] sm:$0xff] %v227
                %v229 = vld [vmem:[%s201 + $0xf8] sm:$0xff]
                %230 = vst [vmem:[%s202 + $0x80] sm:$0xff] %v229
                %v231 = vld [vmem:[%s201 + $0x104] sm:$0xff]
                %232 = vst [vmem:[%s202 + $0x8c] sm:$0xff] %v231
                %v233 = vld [vmem:[%s201 + $0x10c] sm:$0xff]
                %234 = vst [vmem:[%s202 + $0x94] sm:$0xff] %v233
              $region49: #{mynet_forward.7} parent=43 // loop_footer
                %s200 = sadd.s32 1, %s196
              $region50: #{mynet_forward.7} parent=43 // loop_footer_branch
                %195 = sbr.rel target = $region46
              $region51: #{mynet_forward.7} parent=43 // loop_exit
                _
              %s236 = ssub.s32 16, 1
              loop: start=0, step=1, limit=1
              $region52: #{mynet_forward.7} parent=43 // loop_pre_header
                _
              $region53: #{mynet_forward.7} parent=43 // loop_header
                %s238 = sphi 0, %s242
                %p239 = scmp.ge.s32.totalorder %s238, 1
                %s243 = sphi %s193, %s193
                %s244 = sphi %s194, %s194
              $region54: #{mynet_forward.7} parent=43 // loop_header_branch
                %241 = sbr.rel (%p239) target = $region58
              $region55: #{mynet_forward.7} parent=43 // loop_body
                %v245 = vld [vmem:[%s243] sm:%s236]
                %246 = vst [vmem:[%s244] sm:%s236] %v245
                %v247 = vld [vmem:[%s243 + $0x14] sm:%s236]
                %248 = vst [vmem:[%s244 + $0x14] sm:%s236] %v247
                %v249 = vld [vmem:[%s243 + $0x50] sm:%s236]
                %250 = vst [vmem:[%s244 + $0x28] sm:%s236] %v249
                %v251 = vld [vmem:[%s243 + $0x64] sm:%s236]
                %252 = vst [vmem:[%s244 + $0x3c] sm:%s236] %v251
                %v253 = vld [vmem:[%s243 + $0xa0] sm:%s236]
                %254 = vst [vmem:[%s244 + $0x50] sm:%s236] %v253
                %v255 = vld [vmem:[%s243 + $0xb4] sm:%s236]
                %256 = vst [vmem:[%s244 + $0x64] sm:%s236] %v255
                %v257 = vld [vmem:[%s243 + $0xf0] sm:%s236]
                %258 = vst [vmem:[%s244 + $0x78] sm:%s236] %v257
                %v259 = vld [vmem:[%s243 + $0x104] sm:%s236]
                %260 = vst [vmem:[%s244 + $0x8c] sm:%s236] %v259
              $region56: #{mynet_forward.7} parent=43 // loop_footer
                %s242 = sadd.s32 1, %s238
              $region57: #{mynet_forward.7} parent=43 // loop_footer_branch
                %237 = sbr.rel target = $region53
              $region58: #{mynet_forward.7} parent=43 // loop_exit
                _
            $region44: #{mynet_forward.7} parent=39 // pred_fallthru
              _
          $region40: #{mynet_forward.7} parent=35 // pred_fallthru
            _
          %261 = vnop
        $region36: #{mynet_forward.7} parent=31 // pred_fallthru
          _
      $region32: #{mynet_forward.7} parent=5 // pred_fallthru
        _
      %p262 = scmp.le.s32.totalorder 1, %s11
      %p263 = scmp.lt.s32.totalorder %s11, 3
      %p264 = pnand %p262, %p263
      %p265 = pneg %p264
      // Predicated region
      $region59: #{mynet_forward.7} parent=5 // pred_check
        _
      $region60: #{mynet_forward.7} parent=5 // pred_check_branch
        %267 = sbr.rel (%p264) target = $region62
      $region61: #{mynet_forward.7} parent=5 // pred_region
        %s268 = ssub.s32 %s11, 1
        %s269 = sand.u32 %s24, 1
        %s270 = sand.u32 %s24, 1
        %s271 = smul.addr %s270, 160
        %s272 = scalar_lea.vmem [#allocation2], %s271
        // Predicated region
        $region63: #{mynet_forward.7} parent=61 // pred_check
          %p273 = pneg %p37
        $region64: #{mynet_forward.7} parent=61 // pred_check_branch
          %275 = sbr.rel (%p273) target = $region66
        $region65: #{mynet_forward.7} parent=61 // pred_region
          _
        $region66: #{mynet_forward.7} parent=61 // pred_fallthru
          _
        %s276 = sand.u32 %s24, 1
        %s277 = sand.u32 %s24, 1
        %s278 = smul.addr %s277, 160
        %s279 = scalar_lea.vmem [#allocation2], %s278
        %p280 = pneg %p37
        %p281 = pneg %p34
        %p282 = pneg %p58
        %p283 = pneg %p55
        %p284 = pneg %p79
        %p285 = pneg %p76
        %p286 = pneg %p100
        %p287 = pneg %p97
        %p288 = pneg %p121
        %p289 = pneg %p118
        %p290 = pneg %p147
        %p291 = pneg %p144
        %s292 = smul.u32 2, %s16
        %p293 = scmp.lt.s32.totalorder %s292, 3
        %s294 = scalar_select %p293, %s292, 3
        %s295 = smul.addr %s294, 4
        %s296 = scalar_lea.vmem %s5, %s295
        %s297 = smul.u32 2, %s16
        %s298 = smul.u32 2, %s16
        %p299 = scmp.lt.s32.totalorder %s298, 3
        %s300 = scalar_select %p299, %s298, 3
        %s301 = smul.addr %s300, 4
        %s302 = scalar_lea.vmem %s5, %s301
        %s303 = smul.u32 2, %s16
        %v305 = vld [vmem:[%s272] sm:$0xff]
        %v306 = vld [vmem:[%s272 + $0x8] sm:$0xff]
        %v307 = vld [vmem:[%s272 + $0x10] sm:$0xf]
        %v308 = vld [vmem:[%s272 + $0x14] sm:$0xff]
        %v309 = vld [vmem:[%s272 + $0x1c] sm:$0xff]
        %v310 = vld [vmem:[%s272 + $0x24] sm:$0xf]
        %v311 = vld [vmem:[%s272 + $0x28] sm:$0xff]
        %v312 = vld [vmem:[%s272 + $0x30] sm:$0xff]
        %v313 = vld [vmem:[%s272 + $0x38] sm:$0xf]
        %v314 = vld [vmem:[%s272 + $0x3c] sm:$0xff]
        %v315 = vld [vmem:[%s272 + $0x44] sm:$0xff]
        %v316 = vld [vmem:[%s272 + $0x4c] sm:$0xf]
        %v317 = vld [vmem:[%s272 + $0x50] sm:$0xff]
        %v318 = vld [vmem:[%s272 + $0x58] sm:$0xff]
        %v319 = vld [vmem:[%s272 + $0x60] sm:$0xf]
        %v320 = vld [vmem:[%s272 + $0x64] sm:$0xff]
        %v321 = vld [vmem:[%s272 + $0x6c] sm:$0xff]
        %v322 = vld [vmem:[%s272 + $0x74] sm:$0xf]
        %v323 = vld [vmem:[%s272 + $0x78] sm:$0xff]
        %v324 = vld [vmem:[%s272 + $0x80] sm:$0xff]
        %v325 = vld [vmem:[%s272 + $0x88] sm:$0xf]
        %v326 = vld [vmem:[%s272 + $0x8c] sm:$0xff]
        %v327 = vld [vmem:[%s272 + $0x94] sm:$0xff]
        %v328 = vld [vmem:[%s272 + $0x9c] sm:$0xf]
        %v329 = vld [vmem:[%s1] sm:$0xf]
        %v330 = vld [vmem:[%s1 + $0x4] sm:$0xf]
        %v331 = vld [vmem:[%s1 + $0x8] sm:$0xf]
        %v332 = vld [vmem:[%s1 + $0xc] sm:$0xf]
        %v333 = vld [vmem:[%s1 + $0x10] sm:$0xf]
        %v334 = vld [vmem:[%s1 + $0x14] sm:$0xf]
        %v335 = vld [vmem:[%s1 + $0x18] sm:$0xf]
        %v336 = vld [vmem:[%s1 + $0x1c] sm:$0xf]
        %v337 = vld [vmem:[%s1 + $0x20] sm:$0xf]
        %v338 = vld [vmem:[%s1 + $0x24] sm:$0xf]
        %v339 = vld [vmem:[%s1 + $0x28] sm:$0xf]
        %v340 = vld [vmem:[%s1 + $0x2c] sm:$0xf]
        %v341 = vld [vmem:[%s1 + $0x30] sm:$0xf]
        %v342 = vld [vmem:[%s1 + $0x34] sm:$0xf]
        %v343 = vld [vmem:[%s1 + $0x38] sm:$0xf]
        %v344 = vld [vmem:[%s1 + $0x3c] sm:$0xf]
        %v345 = vld [vmem:[%s1 + $0x40] sm:$0xf]
        %v346 = vld [vmem:[%s1 + $0x44] sm:$0xf]
        %v347 = vld [vmem:[%s1 + $0x48] sm:$0xf]
        %v348 = vld [vmem:[%s1 + $0x4c] sm:$0xf]
        %v349 = vld [vmem:[%s1 + $0x50] sm:$0xf]
        %v350 = vld [vmem:[%s1 + $0x54] sm:$0xf]
        %v351 = vld [vmem:[%s1 + $0x58] sm:$0xf]
        %v352 = vld [vmem:[%s1 + $0x5c] sm:$0xf]
        %v353 = vld [vmem:[%s1 + $0x60] sm:$0xf]
        %v354 = vld [vmem:[%s1 + $0x64] sm:$0xf]
        %v355 = vld [vmem:[%s1 + $0x68] sm:$0xf]
        %v356 = vld [vmem:[%s1 + $0x6c] sm:$0xf]
        %v357 = vld [vmem:[%s1 + $0x70] sm:$0xf]
        %v358 = vld [vmem:[%s1 + $0x74] sm:$0xf]
        %v359 = vld [vmem:[%s1 + $0x78] sm:$0xf]
        %v360 = vld [vmem:[%s1 + $0x7c] sm:$0xf]
        %v361 = vld [vmem:[%s1 + $0x80] sm:$0xf]
        %v362 = vld [vmem:[%s1 + $0x84] sm:$0xf]
        %v363 = vld [vmem:[%s1 + $0x88] sm:$0xf]
        %v364 = vld [vmem:[%s1 + $0x8c] sm:$0xf]
        %v365 = vld [vmem:[%s1 + $0x90] sm:$0xf]
        %v366 = vld [vmem:[%s1 + $0x94] sm:$0xf]
        %v367 = vld [vmem:[%s1 + $0x98] sm:$0xf]
        %v368 = vld [vmem:[%s1 + $0x9c] sm:$0xf]
        %v369 = vld [vmem:[%s1 + $0xa0] sm:$0xf]
        %v370 = vld [vmem:[%s1 + $0xa4] sm:$0xf]
        %v371 = vld [vmem:[%s1 + $0xa8] sm:$0xf]
        %v372 = vld [vmem:[%s1 + $0xac] sm:$0xf]
        %v373 = vld [vmem:[%s1 + $0xb0] sm:$0xf]
        %v374 = vld [vmem:[%s1 + $0xb4] sm:$0xf]
        %v375 = vld [vmem:[%s1 + $0xb8] sm:$0xf]
        %v376 = vld [vmem:[%s1 + $0xbc] sm:$0xf]
        %v377 = vld [vmem:[%s1 + $0xc0] sm:$0xf]
        %v378 = vld [vmem:[%s1 + $0xc4] sm:$0xf]
        %v379 = vld [vmem:[%s1 + $0xc8] sm:$0xf]
        %v380 = vld [vmem:[%s1 + $0xcc] sm:$0xf]
        %v381 = vld [vmem:[%s1 + $0xd0] sm:$0xf]
        %v382 = vld [vmem:[%s1 + $0xd4] sm:$0xf]
        %v383 = vld [vmem:[%s1 + $0xd8] sm:$0xf]
        %v384 = vld [vmem:[%s1 + $0xdc] sm:$0xf]
        %v385 = vld [vmem:[%s1 + $0xe0] sm:$0xf]
        %v386 = vld [vmem:[%s1 + $0xe4] sm:$0xf]
        %v387 = vld [vmem:[%s1 + $0xe8] sm:$0xf]
        %v388 = vld [vmem:[%s1 + $0xec] sm:$0xf]
        %v389 = vld [vmem:[%s1 + $0xf0] sm:$0xf]
        %v390 = vld [vmem:[%s1 + $0xf4] sm:$0xf]
        %v391 = vld [vmem:[%s1 + $0xf8] sm:$0xf]
        %v392 = vld [vmem:[%s1 + $0xfc] sm:$0xf]
        %v393 = vld [vmem:[%s1 + $0x100] sm:$0xf]
        %v394 = vld [vmem:[%s1 + $0x104] sm:$0xf]
        %v395 = vld [vmem:[%s1 + $0x108] sm:$0xf]
        %v396 = vld [vmem:[%s1 + $0x10c] sm:$0xf]
        %v397 = vld [vmem:[%s1 + $0x110] sm:$0xf]
        %v398 = vld [vmem:[%s1 + $0x114] sm:$0xf]
        %v399 = vld [vmem:[%s1 + $0x118] sm:$0xf]
        %v400 = vld [vmem:[%s1 + $0x11c] sm:$0xf]
        %v425 = vunpack.c.l.b16 %v305
        %v426 = vunpack.c.h.b16 %v305
        %v427 = vunpack.c.l.b16 %v306
        %v428 = vunpack.c.h.b16 %v306
        %v429 = vunpack.c.l.b16 %v307
        %v430 = vunpack.c.l.b16 %v308
        %v431 = vunpack.c.h.b16 %v308
        %v432 = vunpack.c.l.b16 %v309
        %v433 = vunpack.c.h.b16 %v309
        %v434 = vunpack.c.l.b16 %v310
        %v435 = vunpack.c.l.b16 %v311
        %v436 = vunpack.c.h.b16 %v311
        %v437 = vunpack.c.l.b16 %v312
        %v438 = vunpack.c.h.b16 %v312
        %v439 = vunpack.c.l.b16 %v313
        %v440 = vunpack.c.l.b16 %v314
        %v441 = vunpack.c.h.b16 %v314
        %v442 = vunpack.c.l.b16 %v315
        %v443 = vunpack.c.h.b16 %v315
        %v444 = vunpack.c.l.b16 %v316
        %v445 = vunpack.c.l.b16 %v317
        %v446 = vunpack.c.h.b16 %v317
        %v447 = vunpack.c.l.b16 %v318
        %v448 = vunpack.c.h.b16 %v318
        %v449 = vunpack.c.l.b16 %v319
        %v450 = vunpack.c.l.b16 %v320
        %v451 = vunpack.c.h.b16 %v320
        %v452 = vunpack.c.l.b16 %v321
        %v453 = vunpack.c.h.b16 %v321
        %v454 = vunpack.c.l.b16 %v322
        %v455 = vunpack.c.l.b16 %v323
        %v456 = vunpack.c.h.b16 %v323
        %v457 = vunpack.c.l.b16 %v324
        %v458 = vunpack.c.h.b16 %v324
        %v459 = vunpack.c.l.b16 %v325
        %v460 = vunpack.c.l.b16 %v326
        %v461 = vunpack.c.h.b16 %v326
        %v462 = vunpack.c.l.b16 %v327
        %v463 = vunpack.c.h.b16 %v327
        %v464 = vunpack.c.l.b16 %v328
        %v465 = vpack.c.b16 %v430, %v425
        %v466 = vpack.c.b16 %v431, %v426
        %v467 = vpack.c.b16 %v432, %v427
        %v468 = vpack.c.b16 %v433, %v428
        %v469 = vpack.c.b16 %v434, %v429
        %v470 = vpack.c.b16 %v440, %v435
        %v471 = vpack.c.b16 %v441, %v436
        %v472 = vpack.c.b16 %v442, %v437
        %v473 = vpack.c.b16 %v443, %v438
        %v474 = vpack.c.b16 %v444, %v439
        %v475 = vpack.c.b16 %v450, %v445
        %v476 = vpack.c.b16 %v451, %v446
        %v477 = vpack.c.b16 %v452, %v447
        %v478 = vpack.c.b16 %v453, %v448
        %v479 = vpack.c.b16 %v454, %v449
        %v480 = vpack.c.b16 %v460, %v455
        %v481 = vpack.c.b16 %v461, %v456
        %v482 = vpack.c.b16 %v462, %v457
        %v483 = vpack.c.b16 %v463, %v458
        %v484 = vpack.c.b16 %v464, %v459
        %v573 = vunpack.c.l.b16 %v329
        %v574 = vunpack.c.l.b16 %v330
        %v575 = vunpack.c.l.b16 %v331
        %v576 = vunpack.c.l.b16 %v332
        %v577 = vunpack.c.l.b16 %v333
        %v578 = vunpack.c.l.b16 %v334
        %v579 = vunpack.c.l.b16 %v335
        %v580 = vunpack.c.l.b16 %v336
        %v581 = vunpack.c.l.b16 %v337
        %v582 = vunpack.c.l.b16 %v338
        %v583 = vunpack.c.l.b16 %v339
        %v584 = vunpack.c.l.b16 %v340
        %v585 = vunpack.c.l.b16 %v341
        %v586 = vunpack.c.l.b16 %v342
        %v587 = vunpack.c.l.b16 %v343
        %v588 = vunpack.c.l.b16 %v344
        %v589 = vunpack.c.l.b16 %v345
        %v590 = vunpack.c.l.b16 %v346
        %v591 = vunpack.c.l.b16 %v347
        %v592 = vunpack.c.l.b16 %v348
        %v593 = vunpack.c.l.b16 %v349
        %v594 = vunpack.c.l.b16 %v350
        %v595 = vunpack.c.l.b16 %v351
        %v596 = vunpack.c.l.b16 %v352
        %v597 = vunpack.c.l.b16 %v353
        %v598 = vunpack.c.l.b16 %v354
        %v599 = vunpack.c.l.b16 %v355
        %v600 = vunpack.c.l.b16 %v356
        %v601 = vunpack.c.l.b16 %v357
        %v602 = vunpack.c.l.b16 %v358
        %v603 = vunpack.c.l.b16 %v359
        %v604 = vunpack.c.l.b16 %v360
        %v605 = vunpack.c.l.b16 %v361
        %v606 = vunpack.c.l.b16 %v362
        %v607 = vunpack.c.l.b16 %v363
        %v608 = vunpack.c.l.b16 %v364
        %v609 = vunpack.c.l.b16 %v365
        %v610 = vunpack.c.l.b16 %v366
        %v611 = vunpack.c.l.b16 %v367
        %v612 = vunpack.c.l.b16 %v368
        %v613 = vunpack.c.l.b16 %v369
        %v614 = vunpack.c.l.b16 %v370
        %v615 = vunpack.c.l.b16 %v371
        %v616 = vunpack.c.l.b16 %v372
        %v617 = vunpack.c.l.b16 %v373
        %v618 = vunpack.c.l.b16 %v374
        %v619 = vunpack.c.l.b16 %v375
        %v620 = vunpack.c.l.b16 %v376
        %v621 = vunpack.c.l.b16 %v377
        %v622 = vunpack.c.l.b16 %v378
        %v623 = vunpack.c.l.b16 %v379
        %v624 = vunpack.c.l.b16 %v380
        %v625 = vunpack.c.l.b16 %v381
        %v626 = vunpack.c.l.b16 %v382
        %v627 = vunpack.c.l.b16 %v383
        %v628 = vunpack.c.l.b16 %v384
        %v629 = vunpack.c.l.b16 %v385
        %v630 = vunpack.c.l.b16 %v386
        %v631 = vunpack.c.l.b16 %v387
        %v632 = vunpack.c.l.b16 %v388
        %v633 = vunpack.c.l.b16 %v389
        %v634 = vunpack.c.l.b16 %v390
        %v635 = vunpack.c.l.b16 %v391
        %v636 = vunpack.c.l.b16 %v392
        %v637 = vunpack.c.l.b16 %v393
        %v638 = vunpack.c.l.b16 %v394
        %v639 = vunpack.c.l.b16 %v395
        %v640 = vunpack.c.l.b16 %v396
        %v641 = vunpack.c.l.b16 %v397
        %v642 = vunpack.c.l.b16 %v398
        %v643 = vunpack.c.l.b16 %v399
        %v644 = vunpack.c.l.b16 %v400
        %v645 = vpack.c.b16 %v574, %v573
        %v646 = vpack.c.b16 %v576, %v575
        %v647 = vpack.c.b16 %v578, %v577
        %v648 = vpack.c.b16 %v580, %v579
        %v649 = vpack.c.b16 %v582, %v581
        %v650 = vpack.c.b16 %v584, %v583
        %v651 = vpack.c.b16 %v586, %v585
        %v652 = vpack.c.b16 %v588, %v587
        %v653 = vpack.c.b16 %v590, %v589
        %v654 = vpack.c.b16 %v592, %v591
        %v655 = vpack.c.b16 %v594, %v593
        %v656 = vpack.c.b16 %v596, %v595
        %v657 = vpack.c.b16 %v598, %v597
        %v658 = vpack.c.b16 %v600, %v599
        %v659 = vpack.c.b16 %v602, %v601
        %v660 = vpack.c.b16 %v604, %v603
        %v661 = vpack.c.b16 %v606, %v605
        %v662 = vpack.c.b16 %v608, %v607
        %v663 = vpack.c.b16 %v610, %v609
        %v664 = vpack.c.b16 %v612, %v611
        %v665 = vpack.c.b16 %v614, %v613
        %v666 = vpack.c.b16 %v616, %v615
        %v667 = vpack.c.b16 %v618, %v617
        %v668 = vpack.c.b16 %v620, %v619
        %v669 = vpack.c.b16 %v622, %v621
        %v670 = vpack.c.b16 %v624, %v623
        %v671 = vpack.c.b16 %v626, %v625
        %v672 = vpack.c.b16 %v628, %v627
        %v673 = vpack.c.b16 %v630, %v629
        %v674 = vpack.c.b16 %v632, %v631
        %v675 = vpack.c.b16 %v634, %v633
        %v676 = vpack.c.b16 %v636, %v635
        %v677 = vpack.c.b16 %v638, %v637
        %v678 = vpack.c.b16 %v640, %v639
        %v679 = vpack.c.b16 %v642, %v641
        %v680 = vpack.c.b16 %v644, %v643
        %vm717 = vcmask 523264
        %v719 = vsel %vm717, %v469, 0
        %v722 = vsel %vm717, %v474, 0
        %v725 = vsel %vm717, %v479, 0
        %v728 = vsel %vm717, %v484, 0
        %730 = vmatpush.bf16.msra.mxu0 %v652
        %731 = vmatpush.bf16.msra.mxu0 %v651
        %732 = vmatpush.bf16.msra.mxu0 %v650
        %733 = vmatpush.bf16.msra.mxu0 %v649
        %734 = vmatpush.bf16.msra.mxu0 %v648
        %735 = vmatpush.bf16.msra.mxu0 %v647
        %736 = vmatpush.bf16.msra.mxu0 %v646
        %737 = vmatpush.bf16.msra.mxu0 %v645
        %738 = vmatmul.bf16.gmra.mxu0 %v465
        %v739 = vpop.f32.mrf.mxu0
        %v740 = vadd.f32 0.0, %v739
        %v741 = vpop.f32.mrf.mxu0
        %v742 = vadd.f32 0.0, %v741
        %743 = vmatmul.bf16.gmra.mxu0 %v470
        %v744 = vpop.f32.mrf.mxu0
        %v745 = vadd.f32 0.0, %v744
        %v746 = vpop.f32.mrf.mxu0
        %v747 = vadd.f32 0.0, %v746
        %748 = vmatmul.bf16.gmra.mxu0 %v475
        %v749 = vpop.f32.mrf.mxu0
        %v750 = vadd.f32 0.0, %v749
        %v751 = vpop.f32.mrf.mxu0
        %v752 = vadd.f32 0.0, %v751
        %753 = vmatmul.bf16.gmra.mxu0 %v480
        %v754 = vpop.f32.mrf.mxu0
        %v755 = vadd.f32 0.0, %v754
        %v756 = vpop.f32.mrf.mxu0
        %v757 = vadd.f32 0.0, %v756
        %758 = vdwg.mxu0
        %759 = vmatpush.bf16.msra.mxu0 %v660
        %760 = vmatpush.bf16.msra.mxu0 %v659
        %761 = vmatpush.bf16.msra.mxu0 %v658
        %762 = vmatpush.bf16.msra.mxu0 %v657
        %763 = vmatpush.bf16.msra.mxu0 %v656
        %764 = vmatpush.bf16.msra.mxu0 %v655
        %765 = vmatpush.bf16.msra.mxu0 %v654
        %766 = vmatpush.bf16.msra.mxu0 %v653
        %767 = vmatmul.bf16.gmra.mxu0 %v466
        %v768 = vpop.f32.mrf.mxu0
        %v769 = vadd.f32 %v740, %v768
        %v770 = vpop.f32.mrf.mxu0
        %v771 = vadd.f32 %v742, %v770
        %772 = vmatmul.bf16.gmra.mxu0 %v471
        %v773 = vpop.f32.mrf.mxu0
        %v774 = vadd.f32 %v745, %v773
        %v775 = vpop.f32.mrf.mxu0
        %v776 = vadd.f32 %v747, %v775
        %777 = vmatmul.bf16.gmra.mxu0 %v476
        %v778 = vpop.f32.mrf.mxu0
        %v779 = vadd.f32 %v750, %v778
        %v780 = vpop.f32.mrf.mxu0
        %v781 = vadd.f32 %v752, %v780
        %782 = vmatmul.bf16.gmra.mxu0 %v481
        %v783 = vpop.f32.mrf.mxu0
        %v784 = vadd.f32 %v755, %v783
        %v785 = vpop.f32.mrf.mxu0
        %v786 = vadd.f32 %v757, %v785
        %787 = vdwg.mxu0
        %788 = vmatpush.bf16.msra.mxu0 %v668
        %789 = vmatpush.bf16.msra.mxu0 %v667
        %790 = vmatpush.bf16.msra.mxu0 %v666
        %791 = vmatpush.bf16.msra.mxu0 %v665
        %792 = vmatpush.bf16.msra.mxu0 %v664
        %793 = vmatpush.bf16.msra.mxu0 %v663
        %794 = vmatpush.bf16.msra.mxu0 %v662
        %795 = vmatpush.bf16.msra.mxu0 %v661
        %796 = vmatmul.bf16.gmra.mxu0 %v467
        %v797 = vpop.f32.mrf.mxu0
        %v798 = vadd.f32 %v769, %v797
        %v799 = vpop.f32.mrf.mxu0
        %v800 = vadd.f32 %v771, %v799
        %801 = vmatmul.bf16.gmra.mxu0 %v472
        %v802 = vpop.f32.mrf.mxu0
        %v803 = vadd.f32 %v774, %v802
        %v804 = vpop.f32.mrf.mxu0
        %v805 = vadd.f32 %v776, %v804
        %806 = vmatmul.bf16.gmra.mxu0 %v477
        %v807 = vpop.f32.mrf.mxu0
        %v808 = vadd.f32 %v779, %v807
        %v809 = vpop.f32.mrf.mxu0
        %v810 = vadd.f32 %v781, %v809
        %811 = vmatmul.bf16.gmra.mxu0 %v482
        %v812 = vpop.f32.mrf.mxu0
        %v813 = vadd.f32 %v784, %v812
        %v814 = vpop.f32.mrf.mxu0
        %v815 = vadd.f32 %v786, %v814
        %816 = vdwg.mxu0
        %817 = vmatpush.bf16.msra.mxu0 %v676
        %818 = vmatpush.bf16.msra.mxu0 %v675
        %819 = vmatpush.bf16.msra.mxu0 %v674
        %820 = vmatpush.bf16.msra.mxu0 %v673
        %821 = vmatpush.bf16.msra.mxu0 %v672
        %822 = vmatpush.bf16.msra.mxu0 %v671
        %823 = vmatpush.bf16.msra.mxu0 %v670
        %824 = vmatpush.bf16.msra.mxu0 %v669
        %825 = vmatmul.bf16.gmra.mxu0 %v468
        %v826 = vpop.f32.mrf.mxu0
        %v827 = vadd.f32 %v798, %v826
        %v828 = vpop.f32.mrf.mxu0
        %v829 = vadd.f32 %v800, %v828
        %830 = vmatmul.bf16.gmra.mxu0 %v473
        %v831 = vpop.f32.mrf.mxu0
        %v832 = vadd.f32 %v803, %v831
        %v833 = vpop.f32.mrf.mxu0
        %v834 = vadd.f32 %v805, %v833
        %835 = vmatmul.bf16.gmra.mxu0 %v478
        %v836 = vpop.f32.mrf.mxu0
        %v837 = vadd.f32 %v808, %v836
        %v838 = vpop.f32.mrf.mxu0
        %v839 = vadd.f32 %v810, %v838
        %840 = vmatmul.bf16.gmra.mxu0 %v483
        %v841 = vpop.f32.mrf.mxu0
        %v842 = vadd.f32 %v813, %v841
        %v843 = vpop.f32.mrf.mxu0
        %v844 = vadd.f32 %v815, %v843
        %845 = vdwg.mxu0
        %846 = vmatpush.bf16.msra.mxu0 0
        %847 = vmatpush.bf16.msra.mxu0 0
        %848 = vmatpush.bf16.msra.mxu0 0
        %849 = vmatpush.bf16.msra.mxu0 0
        %850 = vmatpush.bf16.msra.mxu0 %v680
        %851 = vmatpush.bf16.msra.mxu0 %v679
        %852 = vmatpush.bf16.msra.mxu0 %v678
        %853 = vmatpush.bf16.msra.mxu0 %v677
        %854 = vmatmul.bf16.gmra.mxu0 %v719
        %v855 = vpop.f32.mrf.mxu0
        %v856 = vadd.f32 %v827, %v855
        %v857 = vpop.f32.mrf.mxu0
        %v858 = vadd.f32 %v829, %v857
        %859 = vmatmul.bf16.gmra.mxu0 %v722
        %v860 = vpop.f32.mrf.mxu0
        %v861 = vadd.f32 %v832, %v860
        %v862 = vpop.f32.mrf.mxu0
        %v863 = vadd.f32 %v834, %v862
        %864 = vmatmul.bf16.gmra.mxu0 %v725
        %v865 = vpop.f32.mrf.mxu0
        %v866 = vadd.f32 %v837, %v865
        %v867 = vpop.f32.mrf.mxu0
        %v868 = vadd.f32 %v839, %v867
        %869 = vmatmul.bf16.gmra.mxu0 %v728
        %v870 = vpop.f32.mrf.mxu0
        %v871 = vadd.f32 %v842, %v870
        %v872 = vpop.f32.mrf.mxu0
        %v873 = vadd.f32 %v844, %v872
        %874 = vdwg.mxu0
        %v875 = vmax.f32 %v856, %v866
        %v876 = vmax.f32 %v861, %v871
        %v877 = vmax.f32 %v875, %v876
        %v878 = vmax.f32 %v858, %v868
        %v879 = vmax.f32 %v863, %v873
        %v880 = vmax.f32 %v878, %v879
        %v881 = vld [vmem:[%s2] sm:$0x1]
        %v883 = vperm.slane %v881, 0
        %v885 = vadd.f32 %v877, %v883
        %v886 = vadd.f32 %v880, %v883
        %v887 = vmax.f32 %v885, 0.0
        %v888 = vmax.f32 %v886, 0.0
        %v889 = vld [vmem:[%s3] sm:$0x1]
        %v891 = vperm.slane %v889, 0
        %v893 = vmul.f32 %v887, %v891
        %v894 = vmul.f32 %v888, %v891
        %v895 = vld [vmem:[%s4] sm:$0x1]
        %v897 = vperm.slane %v895, 0
        %v899 = vadd.f32 %v893, %v897
        %v900 = vadd.f32 %v894, %v897
        %v901 = vpack.c.bf16 %v899, %v899
        %v902 = vpack.c.bf16 %v900, %v900
        %903 = vst [vmem:[%s302] sm:$0xf] %v901
        %904 = vst [vmem:[%s302 + $0x4] sm:$0xf] %v902
        %s905 = smul.u32 2, %s16
        %p906 = scmp.lt.s32.totalorder %s905, 3
        %s907 = scalar_select %p906, %s905, 3
        %s908 = smul.addr %s907, 4
        %s909 = scalar_lea.vmem %s5, %s908
        // Predicated region
        $region67: #{mynet_forward.7} parent=61 // pred_check
          %p910 = pneg %p144
        $region68: #{mynet_forward.7} parent=61 // pred_check_branch
          %912 = sbr.rel (%p910) target = $region70
        $region69: #{mynet_forward.7} parent=61 // pred_region
          %s913 = smul.u32 2, %s16
        $region70: #{mynet_forward.7} parent=61 // pred_fallthru
          _
      $region62: #{mynet_forward.7} parent=5 // pred_fallthru
        _
      %p914 = scmp.le.s32.totalorder 2, %s11
      // Predicated region
      $region71: #{mynet_forward.7} parent=5 // pred_check
        %p915 = pneg %p914
      $region72: #{mynet_forward.7} parent=5 // pred_check_branch
        %917 = sbr.rel (%p915) target = $region74
      $region73: #{mynet_forward.7} parent=5 // pred_region
        %s918 = ssub.s32 %s11, 2
        // Predicated region
        $region75: #{mynet_forward.7} parent=73 // pred_check
          %p919 = pneg %p150
        $region76: #{mynet_forward.7} parent=73 // pred_check_branch
          %921 = sbr.rel (%p919) target = $region78
        $region77: #{mynet_forward.7} parent=73 // pred_region
          %s922 = smul.u32 2, %s17
          %p923 = scmp.lt.s32.totalorder %s922, 3
          %s924 = scalar_select %p923, %s922, 3
          %s925 = smul.addr %s924, 4
          %s926 = scalar_lea.vmem %s5, %s925
        $region78: #{mynet_forward.7} parent=73 // pred_fallthru
          _
      $region74: #{mynet_forward.7} parent=5 // pred_fallthru
        _
    $region6: #{mynet_forward.7} parent=1 // loop_footer
      %s15 = sadd.s32 1, %s11
    $region7: #{mynet_forward.7} parent=1 // loop_footer_branch
      %10 = sbr.rel target = $region3
    $region8: #{mynet_forward.7} parent=1 // loop_exit
      _

// kernel: mynet_forward.8
$region0: #{mynet_forward.8}
  #allocation0 [shape = 'u32[]', space=smem, size = 0x4, offset = 0x4, fixed_abs, tag = 'smem constant byte address 0x4 - core index']
  #allocation1 [shape = 'u32[72,128]{1,0:T(1,128)}', space=vmem, size = 0x9000, scoped, tag = 'internal scratch']
  %s0 = inlined_call_operand.vmem [shape: bf16[2,2048], index: 0, kind: input, shape index: {}]
  %s1 = inlined_call_operand.vmem [shape: bf16[2048,1024], index: 1, kind: input, shape index: {}]
  %s2 = inlined_call_operand.vmem [shape: f32[1,1024], index: 2, kind: input, shape index: {}]
  %s3 = inlined_call_operand.vmem [shape: bf16[2,1024], index: 3, kind: output, shape index: {}]
  %s4 = sld [smem:[#allocation0]]
  $region97: #{mynet_forward.8} parent=0
    _
  %s6 = ssub.s32 1, %s4
  %s7 = scalar_select 0, %s6, %s4
  $region1: #{mynet_forward.8} parent=0
    #allocation2 [shape = 'u8[2097152]{0}', space=vmem, size = 0x200000, scoped, tag = 'input window, operand 1']
    loop: start=0, step=1, limit=6
    $region2: #{mynet_forward.8} parent=1 // loop_pre_header
      _
    $region3: #{mynet_forward.8} parent=1 // loop_header
      %s9 = sphi 0, %s13
      %p10 = scmp.ge.s32.totalorder %s9, 6
      %s17 = sphi 0, %s17
      %s19 = sphi 0, %s17
      %s20 = sphi 0, %s19
      %s34 = sphi 0, %s20
      %s40 = sphi 0, %s42
      %s43 = sphi 0, %s40
      %s44 = sphi 0, %s43
      %s60 = sphi 0, %s44
      %s66 = sphi 0, %s68
      %s69 = sphi 0, %s66
      %s70 = sphi 0, %s69
      %s86 = sphi 0, %s70
      %s92 = sphi 0, %s94
      %s95 = sphi 0, %s92
      %s96 = sphi 0, %s95
      %s112 = sphi 0, %s96
    $region4: #{mynet_forward.8} parent=1 // loop_header_branch
      %12 = sbr.rel (%p10) target = $region8
    $region5: #{mynet_forward.8} parent=1 // loop_body
      %s14 = ssub.s32 %s9, 1
      %s15 = ssub.s32 %s9, 2
      %s16 = sadd.s32 %s9, 1
      %s18 = sadd.s32 %s17, 1
      %p21 = scmp.eq.s32.totalorder %s9, 3
      %p22 = scmp.ne.s32.totalorder %s17, %s19
      %p23 = scmp.eq.s32.totalorder %s9, 0
      %p24 = por %p22, %p23
      %p25 = scmp.ne.s32.totalorder %s17, %s19
      %p26 = scmp.eq.s32.totalorder %s14, 3
      %p27 = por %p25, %p26
      %p28 = scmp.ne.s32.totalorder %s19, %s20
      %p29 = scmp.eq.s32.totalorder %s14, 0
      %p30 = por %p28, %p29
      %p31 = scmp.ne.s32.totalorder %s19, %s20
      %p32 = scmp.eq.s32.totalorder %s15, 3
      %p33 = por %p31, %p32
      %p35 = scmp.ne.s32.totalorder %s20, %s34
      %p36 = scmp.eq.s32.totalorder %s15, 0
      %p37 = por %p35, %p36
      %s38 = ssub.s32 %s9, %s16
      %p39 = scmp.eq.s32.totalorder %s38, 0
      %s41 = sadd.s32 %s40, 1
      %s42 = scalar_select %p39, %s40, %s41
      %p45 = pneg %p39
      %p46 = scmp.eq.s32.totalorder %s9, 3
      %p47 = por %p45, %p46
      %p48 = scmp.ne.s32.totalorder %s40, %s43
      %p49 = scmp.eq.s32.totalorder %s9, 0
      %p50 = por %p48, %p49
      %p51 = scmp.ne.s32.totalorder %s40, %s43
      %p52 = scmp.eq.s32.totalorder %s14, 3
      %p53 = por %p51, %p52
      %p54 = scmp.ne.s32.totalorder %s43, %s44
      %p55 = scmp.eq.s32.totalorder %s14, 0
      %p56 = por %p54, %p55
      %p57 = scmp.ne.s32.totalorder %s43, %s44
      %p58 = scmp.eq.s32.totalorder %s15, 3
      %p59 = por %p57, %p58
      %p61 = scmp.ne.s32.totalorder %s44, %s60
      %p62 = scmp.eq.s32.totalorder %s15, 0
      %p63 = por %p61, %p62
      %s64 = ssub.s32 %s9, %s16
      %p65 = scmp.eq.s32.totalorder %s64, 0
      %s67 = sadd.s32 %s66, 1
      %s68 = scalar_select %p65, %s66, %s67
      %p71 = pneg %p65
      %p72 = scmp.eq.s32.totalorder %s9, 3
      %p73 = por %p71, %p72
      %p74 = scmp.ne.s32.totalorder %s66, %s69
      %p75 = scmp.eq.s32.totalorder %s9, 0
      %p76 = por %p74, %p75
      %p77 = scmp.ne.s32.totalorder %s66, %s69
      %p78 = scmp.eq.s32.totalorder %s14, 3
      %p79 = por %p77, %p78
      %p80 = scmp.ne.s32.totalorder %s69, %s70
      %p81 = scmp.eq.s32.totalorder %s14, 0
      %p82 = por %p80, %p81
      %p83 = scmp.ne.s32.totalorder %s69, %s70
      %p84 = scmp.eq.s32.totalorder %s15, 3
      %p85 = por %p83, %p84
      %p87 = scmp.ne.s32.totalorder %s70, %s86
      %p88 = scmp.eq.s32.totalorder %s15, 0
      %p89 = por %p87, %p88
      %s90 = ssub.s32 %s9, %s16
      %p91 = scmp.eq.s32.totalorder %s90, 0
      %s93 = sadd.s32 %s92, 1
      %s94 = scalar_select %p91, %s92, %s93
      %p97 = pneg %p91
      %p98 = scmp.eq.s32.totalorder %s9, 3
      %p99 = por %p97, %p98
      %p100 = scmp.ne.s32.totalorder %s92, %s95
      %p101 = scmp.eq.s32.totalorder %s9, 0
      %p102 = por %p100, %p101
      %p103 = scmp.ne.s32.totalorder %s92, %s95
      %p104 = scmp.eq.s32.totalorder %s14, 3
      %p105 = por %p103, %p104
      %p106 = scmp.ne.s32.totalorder %s95, %s96
      %p107 = scmp.eq.s32.totalorder %s14, 0
      %p108 = por %p106, %p107
      %p109 = scmp.ne.s32.totalorder %s95, %s96
      %p110 = scmp.eq.s32.totalorder %s15, 3
      %p111 = por %p109, %p110
      %p113 = scmp.ne.s32.totalorder %s96, %s112
      %p114 = scmp.eq.s32.totalorder %s15, 0
      %p115 = por %p113, %p114
      %p116 = scmp.le.s32.totalorder 1, %s9
      %p117 = scmp.lt.s32.totalorder %s9, 5
      %p118 = pnand %p116, %p117
      %p119 = pneg %p118
      // Predicated region
      $region9: #{mynet_forward.8} parent=5 // pred_check
        _
      $region10: #{mynet_forward.8} parent=5 // pred_check_branch
        %121 = sbr.rel (%p118) target = $region12
      $region11: #{mynet_forward.8} parent=5 // pred_region
        %s122 = ssub.s32 %s9, 1
        // Predicated region
        $region13: #{mynet_forward.8} parent=11 // pred_check
          %p123 = pneg %p30
        $region14: #{mynet_forward.8} parent=11 // pred_check_branch
          %125 = sbr.rel (%p123) target = $region16
        $region15: #{mynet_forward.8} parent=11 // pred_region
          _
        $region16: #{mynet_forward.8} parent=11 // pred_fallthru
          _
      $region12: #{mynet_forward.8} parent=5 // pred_fallthru
        _
      %p126 = scmp.lt.s32.totalorder %s9, 4
      // Predicated region
      $region17: #{mynet_forward.8} parent=5 // pred_check
        %p127 = pneg %p126
      $region18: #{mynet_forward.8} parent=5 // pred_check_branch
        %129 = sbr.rel (%p127) target = $region20
      $region19: #{mynet_forward.8} parent=5 // pred_region
        // Predicated region
        $region21: #{mynet_forward.8} parent=19 // pred_check
          %p130 = pneg %p50
        $region22: #{mynet_forward.8} parent=19 // pred_check_branch
          %132 = sbr.rel (%p130) target = $region24
        $region23: #{mynet_forward.8} parent=19 // pred_region
          %s133 = sand.u32 %s40, 1
          %s134 = sand.u32 %s40, 1
          %s135 = smul.addr %s134, 2048
          %s136 = scalar_lea.vmem [#allocation2], %s135
          %s137 = smul.u32 2, %s9
          %s138 = smul.addr %s137, 4
          %s139 = scalar_lea.vmem %s1, %s138
          // Predicated region
          $region25: #{mynet_forward.8} parent=23 // pred_check
            _
          $region26: #{mynet_forward.8} parent=23 // pred_check_branch
            %141 = sbr.rel (0) target = $region28
          $region27: #{mynet_forward.8} parent=23 // pred_region
            // Predicated region
            $region29: #{mynet_forward.8} parent=27 // pred_check
              _
            $region30: #{mynet_forward.8} parent=27 // pred_check_branch
              %143 = sbr.rel (0) target = $region32
            $region31: #{mynet_forward.8} parent=27 // pred_region
              // Predicated region
              $region44: #{mynet_forward.8} parent=31 // pred_check
                _
              $region45: #{mynet_forward.8} parent=31 // pred_check_branch
                %669 = sbr.rel (0) target = $region47
              $region46: #{mynet_forward.8} parent=31 // pred_region
                loop: start=0, step=1, limit=1
                $region48: #{mynet_forward.8} parent=46 // loop_pre_header
                  _
                $region49: #{mynet_forward.8} parent=46 // loop_header
                  %s671 = sphi 0, %s675
                  %p672 = scmp.ge.s32.totalorder %s671, 1
                  %s676 = sphi 0, %s1193
                  %s677 = sphi %s139, %s1196
                  %s678 = sphi %s136, %s1197
                $region50: #{mynet_forward.8} parent=46 // loop_header_branch
                  %674 = sbr.rel (%p672) target = $region54
                $region51: #{mynet_forward.8} parent=46 // loop_body
                  %v679 = vld [vmem:[%s677] sm:$0xff]
                  %680 = vst [vmem:[%s678] sm:$0xff] %v679
                  %v681 = vld [vmem:[%s677 + $0x20] sm:$0xff]
                  %682 = vst [vmem:[%s678 + $0x8] sm:$0xff] %v681
                  %v683 = vld [vmem:[%s677 + $0x40] sm:$0xff]
                  %684 = vst [vmem:[%s678 + $0x10] sm:$0xff] %v683
                  %v685 = vld [vmem:[%s677 + $0x60] sm:$0xff]
                  %686 = vst [vmem:[%s678 + $0x18] sm:$0xff] %v685
                  %v687 = vld [vmem:[%s677 + $0x80] sm:$0xff]
                  %688 = vst [vmem:[%s678 + $0x20] sm:$0xff] %v687
                  %v689 = vld [vmem:[%s677 + $0xa0] sm:$0xff]
                  %690 = vst [vmem:[%s678 + $0x28] sm:$0xff] %v689
                  %v691 = vld [vmem:[%s677 + $0xc0] sm:$0xff]
                  %692 = vst [vmem:[%s678 + $0x30] sm:$0xff] %v691
                  %v693 = vld [vmem:[%s677 + $0xe0] sm:$0xff]
                  %694 = vst [vmem:[%s678 + $0x38] sm:$0xff] %v693
                  %v695 = vld [vmem:[%s677 + $0x100] sm:$0xff]
                  %696 = vst [vmem:[%s678 + $0x40] sm:$0xff] %v695
                  %v697 = vld [vmem:[%s677 + $0x120] sm:$0xff]
                  %698 = vst [vmem:[%s678 + $0x48] sm:$0xff] %v697
                  %v699 = vld [vmem:[%s677 + $0x140] sm:$0xff]
                  %700 = vst [vmem:[%s678 + $0x50] sm:$0xff] %v699
                  %v701 = vld [vmem:[%s677 + $0x160] sm:$0xff]
                  %702 = vst [vmem:[%s678 + $0x58] sm:$0xff] %v701
                  %v703 = vld [vmem:[%s677 + $0x180] sm:$0xff]
                  %704 = vst [vmem:[%s678 + $0x60] sm:$0xff] %v703
                  %v705 = vld [vmem:[%s677 + $0x1a0] sm:$0xff]
                  %706 = vst [vmem:[%s678 + $0x68] sm:$0xff] %v705
                  %v707 = vld [vmem:[%s677 + $0x1c0] sm:$0xff]
                  %708 = vst [vmem:[%s678 + $0x70] sm:$0xff] %v707
                  %v709 = vld [vmem:[%s677 + $0x1e0] sm:$0xff]
                  %710 = vst [vmem:[%s678 + $0x78] sm:$0xff] %v709
                  %v711 = vld [vmem:[%s677 + $0x200] sm:$0xff]
                  %712 = vst [vmem:[%s678 + $0x80] sm:$0xff] %v711
                  %v713 = vld [vmem:[%s677 + $0x220] sm:$0xff]
                  %714 = vst [vmem:[%s678 + $0x88] sm:$0xff] %v713
                  %v715 = vld [vmem:[%s677 + $0x240] sm:$0xff]
                  %716 = vst [vmem:[%s678 + $0x90] sm:$0xff] %v715
                  %v717 = vld [vmem:[%s677 + $0x260] sm:$0xff]
                  %718 = vst [vmem:[%s678 + $0x98] sm:$0xff] %v717
                  %v719 = vld [vmem:[%s677 + $0x280] sm:$0xff]
                  %720 = vst [vmem:[%s678 + $0xa0] sm:$0xff] %v719
                  %v721 = vld [vmem:[%s677 + $0x2a0] sm:$0xff]
                  %722 = vst [vmem:[%s678 + $0xa8] sm:$0xff] %v721
                  %v723 = vld [vmem:[%s677 + $0x2c0] sm:$0xff]
                  %724 = vst [vmem:[%s678 + $0xb0] sm:$0xff] %v723
                  %v725 = vld [vmem:[%s677 + $0x2e0] sm:$0xff]
                  %726 = vst [vmem:[%s678 + $0xb8] sm:$0xff] %v725
                  %v727 = vld [vmem:[%s677 + $0x300] sm:$0xff]
                  %728 = vst [vmem:[%s678 + $0xc0] sm:$0xff] %v727
                  %v729 = vld [vmem:[%s677 + $0x320] sm:$0xff]
                  %730 = vst [vmem:[%s678 + $0xc8] sm:$0xff] %v729
                  %v731 = vld [vmem:[%s677 + $0x340] sm:$0xff]
                  %732 = vst [vmem:[%s678 + $0xd0] sm:$0xff] %v731
                  %v733 = vld [vmem:[%s677 + $0x360] sm:$0xff]
                  %734 = vst [vmem:[%s678 + $0xd8] sm:$0xff] %v733
                  %v735 = vld [vmem:[%s677 + $0x380] sm:$0xff]
                  %736 = vst [vmem:[%s678 + $0xe0] sm:$0xff] %v735
                  %v737 = vld [vmem:[%s677 + $0x3a0] sm:$0xff]
                  %738 = vst [vmem:[%s678 + $0xe8] sm:$0xff] %v737
                  %v739 = vld [vmem:[%s677 + $0x3c0] sm:$0xff]
                  %740 = vst [vmem:[%s678 + $0xf0] sm:$0xff] %v739
                  %v741 = vld [vmem:[%s677 + $0x3e0] sm:$0xff]
                  %742 = vst [vmem:[%s678 + $0xf8] sm:$0xff] %v741
                  %v743 = vld [vmem:[%s677 + $0x400] sm:$0xff]
                  %744 = vst [vmem:[%s678 + $0x100] sm:$0xff] %v743
                  %v745 = vld [vmem:[%s677 + $0x420] sm:$0xff]
                  %746 = vst [vmem:[%s678 + $0x108] sm:$0xff] %v745
                  %v747 = vld [vmem:[%s677 + $0x440] sm:$0xff]
                  %748 = vst [vmem:[%s678 + $0x110] sm:$0xff] %v747
                  %v749 = vld [vmem:[%s677 + $0x460] sm:$0xff]
                  %750 = vst [vmem:[%s678 + $0x118] sm:$0xff] %v749
                  %v751 = vld [vmem:[%s677 + $0x480] sm:$0xff]
                  %752 = vst [vmem:[%s678 + $0x120] sm:$0xff] %v751
                  %v753 = vld [vmem:[%s677 + $0x4a0] sm:$0xff]
                  %754 = vst [vmem:[%s678 + $0x128] sm:$0xff] %v753
                  %v755 = vld [vmem:[%s677 + $0x4c0] sm:$0xff]
                  %756 = vst [vmem:[%s678 + $0x130] sm:$0xff] %v755
                  %v757 = vld [vmem:[%s677 + $0x4e0] sm:$0xff]
                  %758 = vst [vmem:[%s678 + $0x138] sm:$0xff] %v757
                  %v759 = vld [vmem:[%s677 + $0x500] sm:$0xff]
                  %760 = vst [vmem:[%s678 + $0x140] sm:$0xff] %v759
                  %v761 = vld [vmem:[%s677 + $0x520] sm:$0xff]
                  %762 = vst [vmem:[%s678 + $0x148] sm:$0xff] %v761
                  %v763 = vld [vmem:[%s677 + $0x540] sm:$0xff]
                  %764 = vst [vmem:[%s678 + $0x150] sm:$0xff] %v763
                  %v765 = vld [vmem:[%s677 + $0x560] sm:$0xff]
                  %766 = vst [vmem:[%s678 + $0x158] sm:$0xff] %v765
                  %v767 = vld [vmem:[%s677 + $0x580] sm:$0xff]
                  %768 = vst [vmem:[%s678 + $0x160] sm:$0xff] %v767
                  %v769 = vld [vmem:[%s677 + $0x5a0] sm:$0xff]
                  %770 = vst [vmem:[%s678 + $0x168] sm:$0xff] %v769
                  %v771 = vld [vmem:[%s677 + $0x5c0] sm:$0xff]
                  %772 = vst [vmem:[%s678 + $0x170] sm:$0xff] %v771
                  %v773 = vld [vmem:[%s677 + $0x5e0] sm:$0xff]
                  %774 = vst [vmem:[%s678 + $0x178] sm:$0xff] %v773
                  %v775 = vld [vmem:[%s677 + $0x600] sm:$0xff]
                  %776 = vst [vmem:[%s678 + $0x180] sm:$0xff] %v775
                  %v777 = vld [vmem:[%s677 + $0x620] sm:$0xff]
                  %778 = vst [vmem:[%s678 + $0x188] sm:$0xff] %v777
                  %v779 = vld [vmem:[%s677 + $0x640] sm:$0xff]
                  %780 = vst [vmem:[%s678 + $0x190] sm:$0xff] %v779
                  %v781 = vld [vmem:[%s677 + $0x660] sm:$0xff]
                  %782 = vst [vmem:[%s678 + $0x198] sm:$0xff] %v781
                  %v783 = vld [vmem:[%s677 + $0x680] sm:$0xff]
                  %784 = vst [vmem:[%s678 + $0x1a0] sm:$0xff] %v783
                  %v785 = vld [vmem:[%s677 + $0x6a0] sm:$0xff]
                  %786 = vst [vmem:[%s678 + $0x1a8] sm:$0xff] %v785
                  %v787 = vld [vmem:[%s677 + $0x6c0] sm:$0xff]
                  %788 = vst [vmem:[%s678 + $0x1b0] sm:$0xff] %v787
                  %v789 = vld [vmem:[%s677 + $0x6e0] sm:$0xff]
                  %790 = vst [vmem:[%s678 + $0x1b8] sm:$0xff] %v789
                  %v791 = vld [vmem:[%s677 + $0x700] sm:$0xff]
                  %792 = vst [vmem:[%s678 + $0x1c0] sm:$0xff] %v791
                  %v793 = vld [vmem:[%s677 + $0x720] sm:$0xff]
                  %794 = vst [vmem:[%s678 + $0x1c8] sm:$0xff] %v793
                  %v795 = vld [vmem:[%s677 + $0x740] sm:$0xff]
                  %796 = vst [vmem:[%s678 + $0x1d0] sm:$0xff] %v795
                  %v797 = vld [vmem:[%s677 + $0x760] sm:$0xff]
                  %798 = vst [vmem:[%s678 + $0x1d8] sm:$0xff] %v797
                  %v799 = vld [vmem:[%s677 + $0x780] sm:$0xff]
                  %800 = vst [vmem:[%s678 + $0x1e0] sm:$0xff] %v799
                  %v801 = vld [vmem:[%s677 + $0x7a0] sm:$0xff]
                  %802 = vst [vmem:[%s678 + $0x1e8] sm:$0xff] %v801
                  %v803 = vld [vmem:[%s677 + $0x7c0] sm:$0xff]
                  %804 = vst [vmem:[%s678 + $0x1f0] sm:$0xff] %v803
                  %v805 = vld [vmem:[%s677 + $0x7e0] sm:$0xff]
                  %806 = vst [vmem:[%s678 + $0x1f8] sm:$0xff] %v805
                  %v807 = vld [vmem:[%s677 + $0x800] sm:$0xff]
                  %808 = vst [vmem:[%s678 + $0x200] sm:$0xff] %v807
                  %v809 = vld [vmem:[%s677 + $0x820] sm:$0xff]
                  %810 = vst [vmem:[%s678 + $0x208] sm:$0xff] %v809
                  %v811 = vld [vmem:[%s677 + $0x840] sm:$0xff]
                  %812 = vst [vmem:[%s678 + $0x210] sm:$0xff] %v811
                  %v813 = vld [vmem:[%s677 + $0x860] sm:$0xff]
                  %814 = vst [vmem:[%s678 + $0x218] sm:$0xff] %v813
                  %v815 = vld [vmem:[%s677 + $0x880] sm:$0xff]
                  %816 = vst [vmem:[%s678 + $0x220] sm:$0xff] %v815
                  %v817 = vld [vmem:[%s677 + $0x8a0] sm:$0xff]
                  %818 = vst [vmem:[%s678 + $0x228] sm:$0xff] %v817
                  %v819 = vld [vmem:[%s677 + $0x8c0] sm:$0xff]
                  %820 = vst [vmem:[%s678 + $0x230] sm:$0xff] %v819
                  %v821 = vld [vmem:[%s677 + $0x8e0] sm:$0xff]
                  %822 = vst [vmem:[%s678 + $0x238] sm:$0xff] %v821
                  %v823 = vld [vmem:[%s677 + $0x900] sm:$0xff]
                  %824 = vst [vmem:[%s678 + $0x240] sm:$0xff] %v823
                  %v825 = vld [vmem:[%s677 + $0x920] sm:$0xff]
                  %826 = vst [vmem:[%s678 + $0x248] sm:$0xff] %v825
                  %v827 = vld [vmem:[%s677 + $0x940] sm:$0xff]
                  %828 = vst [vmem:[%s678 + $0x250] sm:$0xff] %v827
                  %v829 = vld [vmem:[%s677 + $0x960] sm:$0xff]
                  %830 = vst [vmem:[%s678 + $0x258] sm:$0xff] %v829
                  %v831 = vld [vmem:[%s677 + $0x980] sm:$0xff]
                  %832 = vst [vmem:[%s678 + $0x260] sm:$0xff] %v831
                  %v833 = vld [vmem:[%s677 + $0x9a0] sm:$0xff]
                  %834 = vst [vmem:[%s678 + $0x268] sm:$0xff] %v833
                  %v835 = vld [vmem:[%s677 + $0x9c0] sm:$0xff]
                  %836 = vst [vmem:[%s678 + $0x270] sm:$0xff] %v835
                  %v837 = vld [vmem:[%s677 + $0x9e0] sm:$0xff]
                  %838 = vst [vmem:[%s678 + $0x278] sm:$0xff] %v837
                  %v839 = vld [vmem:[%s677 + $0xa00] sm:$0xff]
                  %840 = vst [vmem:[%s678 + $0x280] sm:$0xff] %v839
                  %v841 = vld [vmem:[%s677 + $0xa20] sm:$0xff]
                  %842 = vst [vmem:[%s678 + $0x288] sm:$0xff] %v841
                  %v843 = vld [vmem:[%s677 + $0xa40] sm:$0xff]
                  %844 = vst [vmem:[%s678 + $0x290] sm:$0xff] %v843
                  %v845 = vld [vmem:[%s677 + $0xa60] sm:$0xff]
                  %846 = vst [vmem:[%s678 + $0x298] sm:$0xff] %v845
                  %v847 = vld [vmem:[%s677 + $0xa80] sm:$0xff]
                  %848 = vst [vmem:[%s678 + $0x2a0] sm:$0xff] %v847
                  %v849 = vld [vmem:[%s677 + $0xaa0] sm:$0xff]
                  %850 = vst [vmem:[%s678 + $0x2a8] sm:$0xff] %v849
                  %v851 = vld [vmem:[%s677 + $0xac0] sm:$0xff]
                  %852 = vst [vmem:[%s678 + $0x2b0] sm:$0xff] %v851
                  %v853 = vld [vmem:[%s677 + $0xae0] sm:$0xff]
                  %854 = vst [vmem:[%s678 + $0x2b8] sm:$0xff] %v853
                  %v855 = vld [vmem:[%s677 + $0xb00] sm:$0xff]
                  %856 = vst [vmem:[%s678 + $0x2c0] sm:$0xff] %v855
                  %v857 = vld [vmem:[%s677 + $0xb20] sm:$0xff]
                  %858 = vst [vmem:[%s678 + $0x2c8] sm:$0xff] %v857
                  %v859 = vld [vmem:[%s677 + $0xb40] sm:$0xff]
                  %860 = vst [vmem:[%s678 + $0x2d0] sm:$0xff] %v859
                  %v861 = vld [vmem:[%s677 + $0xb60] sm:$0xff]
                  %862 = vst [vmem:[%s678 + $0x2d8] sm:$0xff] %v861
                  %v863 = vld [vmem:[%s677 + $0xb80] sm:$0xff]
                  %864 = vst [vmem:[%s678 + $0x2e0] sm:$0xff] %v863
                  %v865 = vld [vmem:[%s677 + $0xba0] sm:$0xff]
                  %866 = vst [vmem:[%s678 + $0x2e8] sm:$0xff] %v865
                  %v867 = vld [vmem:[%s677 + $0xbc0] sm:$0xff]
                  %868 = vst [vmem:[%s678 + $0x2f0] sm:$0xff] %v867
                  %v869 = vld [vmem:[%s677 + $0xbe0] sm:$0xff]
                  %870 = vst [vmem:[%s678 + $0x2f8] sm:$0xff] %v869
                  %v871 = vld [vmem:[%s677 + $0xc00] sm:$0xff]
                  %872 = vst [vmem:[%s678 + $0x300] sm:$0xff] %v871
                  %v873 = vld [vmem:[%s677 + $0xc20] sm:$0xff]
                  %874 = vst [vmem:[%s678 + $0x308] sm:$0xff] %v873
                  %v875 = vld [vmem:[%s677 + $0xc40] sm:$0xff]
                  %876 = vst [vmem:[%s678 + $0x310] sm:$0xff] %v875
                  %v877 = vld [vmem:[%s677 + $0xc60] sm:$0xff]
                  %878 = vst [vmem:[%s678 + $0x318] sm:$0xff] %v877
                  %v879 = vld [vmem:[%s677 + $0xc80] sm:$0xff]
                  %880 = vst [vmem:[%s678 + $0x320] sm:$0xff] %v879
                  %v881 = vld [vmem:[%s677 + $0xca0] sm:$0xff]
                  %882 = vst [vmem:[%s678 + $0x328] sm:$0xff] %v881
                  %v883 = vld [vmem:[%s677 + $0xcc0] sm:$0xff]
                  %884 = vst [vmem:[%s678 + $0x330] sm:$0xff] %v883
                  %v885 = vld [vmem:[%s677 + $0xce0] sm:$0xff]
                  %886 = vst [vmem:[%s678 + $0x338] sm:$0xff] %v885
                  %v887 = vld [vmem:[%s677 + $0xd00] sm:$0xff]
                  %888 = vst [vmem:[%s678 + $0x340] sm:$0xff] %v887
                  %v889 = vld [vmem:[%s677 + $0xd20] sm:$0xff]
                  %890 = vst [vmem:[%s678 + $0x348] sm:$0xff] %v889
                  %v891 = vld [vmem:[%s677 + $0xd40] sm:$0xff]
                  %892 = vst [vmem:[%s678 + $0x350] sm:$0xff] %v891
                  %v893 = vld [vmem:[%s677 + $0xd60] sm:$0xff]
                  %894 = vst [vmem:[%s678 + $0x358] sm:$0xff] %v893
                  %v895 = vld [vmem:[%s677 + $0xd80] sm:$0xff]
                  %896 = vst [vmem:[%s678 + $0x360] sm:$0xff] %v895
                  %v897 = vld [vmem:[%s677 + $0xda0] sm:$0xff]
                  %898 = vst [vmem:[%s678 + $0x368] sm:$0xff] %v897
                  %v899 = vld [vmem:[%s677 + $0xdc0] sm:$0xff]
                  %900 = vst [vmem:[%s678 + $0x370] sm:$0xff] %v899
                  %v901 = vld [vmem:[%s677 + $0xde0] sm:$0xff]
                  %902 = vst [vmem:[%s678 + $0x378] sm:$0xff] %v901
                  %v903 = vld [vmem:[%s677 + $0xe00] sm:$0xff]
                  %904 = vst [vmem:[%s678 + $0x380] sm:$0xff] %v903
                  %v905 = vld [vmem:[%s677 + $0xe20] sm:$0xff]
                  %906 = vst [vmem:[%s678 + $0x388] sm:$0xff] %v905
                  %v907 = vld [vmem:[%s677 + $0xe40] sm:$0xff]
                  %908 = vst [vmem:[%s678 + $0x390] sm:$0xff] %v907
                  %v909 = vld [vmem:[%s677 + $0xe60] sm:$0xff]
                  %910 = vst [vmem:[%s678 + $0x398] sm:$0xff] %v909
                  %v911 = vld [vmem:[%s677 + $0xe80] sm:$0xff]
                  %912 = vst [vmem:[%s678 + $0x3a0] sm:$0xff] %v911
                  %v913 = vld [vmem:[%s677 + $0xea0] sm:$0xff]
                  %914 = vst [vmem:[%s678 + $0x3a8] sm:$0xff] %v913
                  %v915 = vld [vmem:[%s677 + $0xec0] sm:$0xff]
                  %916 = vst [vmem:[%s678 + $0x3b0] sm:$0xff] %v915
                  %v917 = vld [vmem:[%s677 + $0xee0] sm:$0xff]
                  %918 = vst [vmem:[%s678 + $0x3b8] sm:$0xff] %v917
                  %v919 = vld [vmem:[%s677 + $0xf00] sm:$0xff]
                  %920 = vst [vmem:[%s678 + $0x3c0] sm:$0xff] %v919
                  %v921 = vld [vmem:[%s677 + $0xf20] sm:$0xff]
                  %922 = vst [vmem:[%s678 + $0x3c8] sm:$0xff] %v921
                  %v923 = vld [vmem:[%s677 + $0xf40] sm:$0xff]
                  %924 = vst [vmem:[%s678 + $0x3d0] sm:$0xff] %v923
                  %v925 = vld [vmem:[%s677 + $0xf60] sm:$0xff]
                  %926 = vst [vmem:[%s678 + $0x3d8] sm:$0xff] %v925
                  %v927 = vld [vmem:[%s677 + $0xf80] sm:$0xff]
                  %928 = vst [vmem:[%s678 + $0x3e0] sm:$0xff] %v927
                  %v929 = vld [vmem:[%s677 + $0xfa0] sm:$0xff]
                  %930 = vst [vmem:[%s678 + $0x3e8] sm:$0xff] %v929
                  %v931 = vld [vmem:[%s677 + $0xfc0] sm:$0xff]
                  %932 = vst [vmem:[%s678 + $0x3f0] sm:$0xff] %v931
                  %v933 = vld [vmem:[%s677 + $0xfe0] sm:$0xff]
                  %934 = vst [vmem:[%s678 + $0x3f8] sm:$0xff] %v933
                  %v935 = vld [vmem:[%s677 + $0x1000] sm:$0xff]
                  %936 = vst [vmem:[%s678 + $0x400] sm:$0xff] %v935
                  %v937 = vld [vmem:[%s677 + $0x1020] sm:$0xff]
                  %938 = vst [vmem:[%s678 + $0x408] sm:$0xff] %v937
                  %v939 = vld [vmem:[%s677 + $0x1040] sm:$0xff]
                  %940 = vst [vmem:[%s678 + $0x410] sm:$0xff] %v939
                  %v941 = vld [vmem:[%s677 + $0x1060] sm:$0xff]
                  %942 = vst [vmem:[%s678 + $0x418] sm:$0xff] %v941
                  %v943 = vld [vmem:[%s677 + $0x1080] sm:$0xff]
                  %944 = vst [vmem:[%s678 + $0x420] sm:$0xff] %v943
                  %v945 = vld [vmem:[%s677 + $0x10a0] sm:$0xff]
                  %946 = vst [vmem:[%s678 + $0x428] sm:$0xff] %v945
                  %v947 = vld [vmem:[%s677 + $0x10c0] sm:$0xff]
                  %948 = vst [vmem:[%s678 + $0x430] sm:$0xff] %v947
                  %v949 = vld [vmem:[%s677 + $0x10e0] sm:$0xff]
                  %950 = vst [vmem:[%s678 + $0x438] sm:$0xff] %v949
                  %v951 = vld [vmem:[%s677 + $0x1100] sm:$0xff]
                  %952 = vst [vmem:[%s678 + $0x440] sm:$0xff] %v951
                  %v953 = vld [vmem:[%s677 + $0x1120] sm:$0xff]
                  %954 = vst [vmem:[%s678 + $0x448] sm:$0xff] %v953
                  %v955 = vld [vmem:[%s677 + $0x1140] sm:$0xff]
                  %956 = vst [vmem:[%s678 + $0x450] sm:$0xff] %v955
                  %v957 = vld [vmem:[%s677 + $0x1160] sm:$0xff]
                  %958 = vst [vmem:[%s678 + $0x458] sm:$0xff] %v957
                  %v959 = vld [vmem:[%s677 + $0x1180] sm:$0xff]
                  %960 = vst [vmem:[%s678 + $0x460] sm:$0xff] %v959
                  %v961 = vld [vmem:[%s677 + $0x11a0] sm:$0xff]
                  %962 = vst [vmem:[%s678 + $0x468] sm:$0xff] %v961
                  %v963 = vld [vmem:[%s677 + $0x11c0] sm:$0xff]
                  %964 = vst [vmem:[%s678 + $0x470] sm:$0xff] %v963
                  %v965 = vld [vmem:[%s677 + $0x11e0] sm:$0xff]
                  %966 = vst [vmem:[%s678 + $0x478] sm:$0xff] %v965
                  %v967 = vld [vmem:[%s677 + $0x1200] sm:$0xff]
                  %968 = vst [vmem:[%s678 + $0x480] sm:$0xff] %v967
                  %v969 = vld [vmem:[%s677 + $0x1220] sm:$0xff]
                  %970 = vst [vmem:[%s678 + $0x488] sm:$0xff] %v969
                  %v971 = vld [vmem:[%s677 + $0x1240] sm:$0xff]
                  %972 = vst [vmem:[%s678 + $0x490] sm:$0xff] %v971
                  %v973 = vld [vmem:[%s677 + $0x1260] sm:$0xff]
                  %974 = vst [vmem:[%s678 + $0x498] sm:$0xff] %v973
                  %v975 = vld [vmem:[%s677 + $0x1280] sm:$0xff]
                  %976 = vst [vmem:[%s678 + $0x4a0] sm:$0xff] %v975
                  %v977 = vld [vmem:[%s677 + $0x12a0] sm:$0xff]
                  %978 = vst [vmem:[%s678 + $0x4a8] sm:$0xff] %v977
                  %v979 = vld [vmem:[%s677 + $0x12c0] sm:$0xff]
                  %980 = vst [vmem:[%s678 + $0x4b0] sm:$0xff] %v979
                  %v981 = vld [vmem:[%s677 + $0x12e0] sm:$0xff]
                  %982 = vst [vmem:[%s678 + $0x4b8] sm:$0xff] %v981
                  %v983 = vld [vmem:[%s677 + $0x1300] sm:$0xff]
                  %984 = vst [vmem:[%s678 + $0x4c0] sm:$0xff] %v983
                  %v985 = vld [vmem:[%s677 + $0x1320] sm:$0xff]
                  %986 = vst [vmem:[%s678 + $0x4c8] sm:$0xff] %v985
                  %v987 = vld [vmem:[%s677 + $0x1340] sm:$0xff]
                  %988 = vst [vmem:[%s678 + $0x4d0] sm:$0xff] %v987
                  %v989 = vld [vmem:[%s677 + $0x1360] sm:$0xff]
                  %990 = vst [vmem:[%s678 + $0x4d8] sm:$0xff] %v989
                  %v991 = vld [vmem:[%s677 + $0x1380] sm:$0xff]
                  %992 = vst [vmem:[%s678 + $0x4e0] sm:$0xff] %v991
                  %v993 = vld [vmem:[%s677 + $0x13a0] sm:$0xff]
                  %994 = vst [vmem:[%s678 + $0x4e8] sm:$0xff] %v993
                  %v995 = vld [vmem:[%s677 + $0x13c0] sm:$0xff]
                  %996 = vst [vmem:[%s678 + $0x4f0] sm:$0xff] %v995
                  %v997 = vld [vmem:[%s677 + $0x13e0] sm:$0xff]
                  %998 = vst [vmem:[%s678 + $0x4f8] sm:$0xff] %v997
                  %v999 = vld [vmem:[%s677 + $0x1400] sm:$0xff]
                  %1000 = vst [vmem:[%s678 + $0x500] sm:$0xff] %v999
                  %v1001 = vld [vmem:[%s677 + $0x1420] sm:$0xff]
                  %1002 = vst [vmem:[%s678 + $0x508] sm:$0xff] %v1001
                  %v1003 = vld [vmem:[%s677 + $0x1440] sm:$0xff]
                  %1004 = vst [vmem:[%s678 + $0x510] sm:$0xff] %v1003
                  %v1005 = vld [vmem:[%s677 + $0x1460] sm:$0xff]
                  %1006 = vst [vmem:[%s678 + $0x518] sm:$0xff] %v1005
                  %v1007 = vld [vmem:[%s677 + $0x1480] sm:$0xff]
                  %1008 = vst [vmem:[%s678 + $0x520] sm:$0xff] %v1007
                  %v1009 = vld [vmem:[%s677 + $0x14a0] sm:$0xff]
                  %1010 = vst [vmem:[%s678 + $0x528] sm:$0xff] %v1009
                  %v1011 = vld [vmem:[%s677 + $0x14c0] sm:$0xff]
                  %1012 = vst [vmem:[%s678 + $0x530] sm:$0xff] %v1011
                  %v1013 = vld [vmem:[%s677 + $0x14e0] sm:$0xff]
                  %1014 = vst [vmem:[%s678 + $0x538] sm:$0xff] %v1013
                  %v1015 = vld [vmem:[%s677 + $0x1500] sm:$0xff]
                  %1016 = vst [vmem:[%s678 + $0x540] sm:$0xff] %v1015
                  %v1017 = vld [vmem:[%s677 + $0x1520] sm:$0xff]
                  %1018 = vst [vmem:[%s678 + $0x548] sm:$0xff] %v1017
                  %v1019 = vld [vmem:[%s677 + $0x1540] sm:$0xff]
                  %1020 = vst [vmem:[%s678 + $0x550] sm:$0xff] %v1019
                  %v1021 = vld [vmem:[%s677 + $0x1560] sm:$0xff]
                  %1022 = vst [vmem:[%s678 + $0x558] sm:$0xff] %v1021
                  %v1023 = vld [vmem:[%s677 + $0x1580] sm:$0xff]
                  %1024 = vst [vmem:[%s678 + $0x560] sm:$0xff] %v1023
                  %v1025 = vld [vmem:[%s677 + $0x15a0] sm:$0xff]
                  %1026 = vst [vmem:[%s678 + $0x568] sm:$0xff] %v1025
                  %v1027 = vld [vmem:[%s677 + $0x15c0] sm:$0xff]
                  %1028 = vst [vmem:[%s678 + $0x570] sm:$0xff] %v1027
                  %v1029 = vld [vmem:[%s677 + $0x15e0] sm:$0xff]
                  %1030 = vst [vmem:[%s678 + $0x578] sm:$0xff] %v1029
                  %v1031 = vld [vmem:[%s677 + $0x1600] sm:$0xff]
                  %1032 = vst [vmem:[%s678 + $0x580] sm:$0xff] %v1031
                  %v1033 = vld [vmem:[%s677 + $0x1620] sm:$0xff]
                  %1034 = vst [vmem:[%s678 + $0x588] sm:$0xff] %v1033
                  %v1035 = vld [vmem:[%s677 + $0x1640] sm:$0xff]
                  %1036 = vst [vmem:[%s678 + $0x590] sm:$0xff] %v1035
                  %v1037 = vld [vmem:[%s677 + $0x1660] sm:$0xff]
                  %1038 = vst [vmem:[%s678 + $0x598] sm:$0xff] %v1037
                  %v1039 = vld [vmem:[%s677 + $0x1680] sm:$0xff]
                  %1040 = vst [vmem:[%s678 + $0x5a0] sm:$0xff] %v1039
                  %v1041 = vld [vmem:[%s677 + $0x16a0] sm:$0xff]
                  %1042 = vst [vmem:[%s678 + $0x5a8] sm:$0xff] %v1041
                  %v1043 = vld [vmem:[%s677 + $0x16c0] sm:$0xff]
                  %1044 = vst [vmem:[%s678 + $0x5b0] sm:$0xff] %v1043
                  %v1045 = vld [vmem:[%s677 + $0x16e0] sm:$0xff]
                  %1046 = vst [vmem:[%s678 + $0x5b8] sm:$0xff] %v1045
                  %v1047 = vld [vmem:[%s677 + $0x1700] sm:$0xff]
                  %1048 = vst [vmem:[%s678 + $0x5c0] sm:$0xff] %v1047
                  %v1049 = vld [vmem:[%s677 + $0x1720] sm:$0xff]
                  %1050 = vst [vmem:[%s678 + $0x5c8] sm:$0xff] %v1049
                  %v1051 = vld [vmem:[%s677 + $0x1740] sm:$0xff]
                  %1052 = vst [vmem:[%s678 + $0x5d0] sm:$0xff] %v1051
                  %v1053 = vld [vmem:[%s677 + $0x1760] sm:$0xff]
                  %1054 = vst [vmem:[%s678 + $0x5d8] sm:$0xff] %v1053
                  %v1055 = vld [vmem:[%s677 + $0x1780] sm:$0xff]
                  %1056 = vst [vmem:[%s678 + $0x5e0] sm:$0xff] %v1055
                  %v1057 = vld [vmem:[%s677 + $0x17a0] sm:$0xff]
                  %1058 = vst [vmem:[%s678 + $0x5e8] sm:$0xff] %v1057
                  %v1059 = vld [vmem:[%s677 + $0x17c0] sm:$0xff]
                  %1060 = vst [vmem:[%s678 + $0x5f0] sm:$0xff] %v1059
                  %v1061 = vld [vmem:[%s677 + $0x17e0] sm:$0xff]
                  %1062 = vst [vmem:[%s678 + $0x5f8] sm:$0xff] %v1061
                  %v1063 = vld [vmem:[%s677 + $0x1800] sm:$0xff]
                  %1064 = vst [vmem:[%s678 + $0x600] sm:$0xff] %v1063
                  %v1065 = vld [vmem:[%s677 + $0x1820] sm:$0xff]
                  %1066 = vst [vmem:[%s678 + $0x608] sm:$0xff] %v1065
                  %v1067 = vld [vmem:[%s677 + $0x1840] sm:$0xff]
                  %1068 = vst [vmem:[%s678 + $0x610] sm:$0xff] %v1067
                  %v1069 = vld [vmem:[%s677 + $0x1860] sm:$0xff]
                  %1070 = vst [vmem:[%s678 + $0x618] sm:$0xff] %v1069
                  %v1071 = vld [vmem:[%s677 + $0x1880] sm:$0xff]
                  %1072 = vst [vmem:[%s678 + $0x620] sm:$0xff] %v1071
                  %v1073 = vld [vmem:[%s677 + $0x18a0] sm:$0xff]
                  %1074 = vst [vmem:[%s678 + $0x628] sm:$0xff] %v1073
                  %v1075 = vld [vmem:[%s677 + $0x18c0] sm:$0xff]
                  %1076 = vst [vmem:[%s678 + $0x630] sm:$0xff] %v1075
                  %v1077 = vld [vmem:[%s677 + $0x18e0] sm:$0xff]
                  %1078 = vst [vmem:[%s678 + $0x638] sm:$0xff] %v1077
                  %v1079 = vld [vmem:[%s677 + $0x1900] sm:$0xff]
                  %1080 = vst [vmem:[%s678 + $0x640] sm:$0xff] %v1079
                  %v1081 = vld [vmem:[%s677 + $0x1920] sm:$0xff]
                  %1082 = vst [vmem:[%s678 + $0x648] sm:$0xff] %v1081
                  %v1083 = vld [vmem:[%s677 + $0x1940] sm:$0xff]
                  %1084 = vst [vmem:[%s678 + $0x650] sm:$0xff] %v1083
                  %v1085 = vld [vmem:[%s677 + $0x1960] sm:$0xff]
                  %1086 = vst [vmem:[%s678 + $0x658] sm:$0xff] %v1085
                  %v1087 = vld [vmem:[%s677 + $0x1980] sm:$0xff]
                  %1088 = vst [vmem:[%s678 + $0x660] sm:$0xff] %v1087
                  %v1089 = vld [vmem:[%s677 + $0x19a0] sm:$0xff]
                  %1090 = vst [vmem:[%s678 + $0x668] sm:$0xff] %v1089
                  %v1091 = vld [vmem:[%s677 + $0x19c0] sm:$0xff]
                  %1092 = vst [vmem:[%s678 + $0x670] sm:$0xff] %v1091
                  %v1093 = vld [vmem:[%s677 + $0x19e0] sm:$0xff]
                  %1094 = vst [vmem:[%s678 + $0x678] sm:$0xff] %v1093
                  %v1095 = vld [vmem:[%s677 + $0x1a00] sm:$0xff]
                  %1096 = vst [vmem:[%s678 + $0x680] sm:$0xff] %v1095
                  %v1097 = vld [vmem:[%s677 + $0x1a20] sm:$0xff]
                  %1098 = vst [vmem:[%s678 + $0x688] sm:$0xff] %v1097
                  %v1099 = vld [vmem:[%s677 + $0x1a40] sm:$0xff]
                  %1100 = vst [vmem:[%s678 + $0x690] sm:$0xff] %v1099
                  %v1101 = vld [vmem:[%s677 + $0x1a60] sm:$0xff]
                  %1102 = vst [vmem:[%s678 + $0x698] sm:$0xff] %v1101
                  %v1103 = vld [vmem:[%s677 + $0x1a80] sm:$0xff]
                  %1104 = vst [vmem:[%s678 + $0x6a0] sm:$0xff] %v1103
                  %v1105 = vld [vmem:[%s677 + $0x1aa0] sm:$0xff]
                  %1106 = vst [vmem:[%s678 + $0x6a8] sm:$0xff] %v1105
                  %v1107 = vld [vmem:[%s677 + $0x1ac0] sm:$0xff]
                  %1108 = vst [vmem:[%s678 + $0x6b0] sm:$0xff] %v1107
                  %v1109 = vld [vmem:[%s677 + $0x1ae0] sm:$0xff]
                  %1110 = vst [vmem:[%s678 + $0x6b8] sm:$0xff] %v1109
                  %v1111 = vld [vmem:[%s677 + $0x1b00] sm:$0xff]
                  %1112 = vst [vmem:[%s678 + $0x6c0] sm:$0xff] %v1111
                  %v1113 = vld [vmem:[%s677 + $0x1b20] sm:$0xff]
                  %1114 = vst [vmem:[%s678 + $0x6c8] sm:$0xff] %v1113
                  %v1115 = vld [vmem:[%s677 + $0x1b40] sm:$0xff]
                  %1116 = vst [vmem:[%s678 + $0x6d0] sm:$0xff] %v1115
                  %v1117 = vld [vmem:[%s677 + $0x1b60] sm:$0xff]
                  %1118 = vst [vmem:[%s678 + $0x6d8] sm:$0xff] %v1117
                  %v1119 = vld [vmem:[%s677 + $0x1b80] sm:$0xff]
                  %1120 = vst [vmem:[%s678 + $0x6e0] sm:$0xff] %v1119
                  %v1121 = vld [vmem:[%s677 + $0x1ba0] sm:$0xff]
                  %1122 = vst [vmem:[%s678 + $0x6e8] sm:$0xff] %v1121
                  %v1123 = vld [vmem:[%s677 + $0x1bc0] sm:$0xff]
                  %1124 = vst [vmem:[%s678 + $0x6f0] sm:$0xff] %v1123
                  %v1125 = vld [vmem:[%s677 + $0x1be0] sm:$0xff]
                  %1126 = vst [vmem:[%s678 + $0x6f8] sm:$0xff] %v1125
                  %v1127 = vld [vmem:[%s677 + $0x1c00] sm:$0xff]
                  %1128 = vst [vmem:[%s678 + $0x700] sm:$0xff] %v1127
                  %v1129 = vld [vmem:[%s677 + $0x1c20] sm:$0xff]
                  %1130 = vst [vmem:[%s678 + $0x708] sm:$0xff] %v1129
                  %v1131 = vld [vmem:[%s677 + $0x1c40] sm:$0xff]
                  %1132 = vst [vmem:[%s678 + $0x710] sm:$0xff] %v1131
                  %v1133 = vld [vmem:[%s677 + $0x1c60] sm:$0xff]
                  %1134 = vst [vmem:[%s678 + $0x718] sm:$0xff] %v1133
                  %v1135 = vld [vmem:[%s677 + $0x1c80] sm:$0xff]
                  %1136 = vst [vmem:[%s678 + $0x720] sm:$0xff] %v1135
                  %v1137 = vld [vmem:[%s677 + $0x1ca0] sm:$0xff]
                  %1138 = vst [vmem:[%s678 + $0x728] sm:$0xff] %v1137
                  %v1139 = vld [vmem:[%s677 + $0x1cc0] sm:$0xff]
                  %1140 = vst [vmem:[%s678 + $0x730] sm:$0xff] %v1139
                  %v1141 = vld [vmem:[%s677 + $0x1ce0] sm:$0xff]
                  %1142 = vst [vmem:[%s678 + $0x738] sm:$0xff] %v1141
                  %v1143 = vld [vmem:[%s677 + $0x1d00] sm:$0xff]
                  %1144 = vst [vmem:[%s678 + $0x740] sm:$0xff] %v1143
                  %v1145 = vld [vmem:[%s677 + $0x1d20] sm:$0xff]
                  %1146 = vst [vmem:[%s678 + $0x748] sm:$0xff] %v1145
                  %v1147 = vld [vmem:[%s677 + $0x1d40] sm:$0xff]
                  %1148 = vst [vmem:[%s678 + $0x750] sm:$0xff] %v1147
                  %v1149 = vld [vmem:[%s677 + $0x1d60] sm:$0xff]
                  %1150 = vst [vmem:[%s678 + $0x758] sm:$0xff] %v1149
                  %v1151 = vld [vmem:[%s677 + $0x1d80] sm:$0xff]
                  %1152 = vst [vmem:[%s678 + $0x760] sm:$0xff] %v1151
                  %v1153 = vld [vmem:[%s677 + $0x1da0] sm:$0xff]
                  %1154 = vst [vmem:[%s678 + $0x768] sm:$0xff] %v1153
                  %v1155 = vld [vmem:[%s677 + $0x1dc0] sm:$0xff]
                  %1156 = vst [vmem:[%s678 + $0x770] sm:$0xff] %v1155
                  %v1157 = vld [vmem:[%s677 + $0x1de0] sm:$0xff]
                  %1158 = vst [vmem:[%s678 + $0x778] sm:$0xff] %v1157
                  %v1159 = vld [vmem:[%s677 + $0x1e00] sm:$0xff]
                  %1160 = vst [vmem:[%s678 + $0x780] sm:$0xff] %v1159
                  %v1161 = vld [vmem:[%s677 + $0x1e20] sm:$0xff]
                  %1162 = vst [vmem:[%s678 + $0x788] sm:$0xff] %v1161
                  %v1163 = vld [vmem:[%s677 + $0x1e40] sm:$0xff]
                  %1164 = vst [vmem:[%s678 + $0x790] sm:$0xff] %v1163
                  %v1165 = vld [vmem:[%s677 + $0x1e60] sm:$0xff]
                  %1166 = vst [vmem:[%s678 + $0x798] sm:$0xff] %v1165
                  %v1167 = vld [vmem:[%s677 + $0x1e80] sm:$0xff]
                  %1168 = vst [vmem:[%s678 + $0x7a0] sm:$0xff] %v1167
                  %v1169 = vld [vmem:[%s677 + $0x1ea0] sm:$0xff]
                  %1170 = vst [vmem:[%s678 + $0x7a8] sm:$0xff] %v1169
                  %v1171 = vld [vmem:[%s677 + $0x1ec0] sm:$0xff]
                  %1172 = vst [vmem:[%s678 + $0x7b0] sm:$0xff] %v1171
                  %v1173 = vld [vmem:[%s677 + $0x1ee0] sm:$0xff]
                  %1174 = vst [vmem:[%s678 + $0x7b8] sm:$0xff] %v1173
                  %v1175 = vld [vmem:[%s677 + $0x1f00] sm:$0xff]
                  %1176 = vst [vmem:[%s678 + $0x7c0] sm:$0xff] %v1175
                  %v1177 = vld [vmem:[%s677 + $0x1f20] sm:$0xff]
                  %1178 = vst [vmem:[%s678 + $0x7c8] sm:$0xff] %v1177
                  %v1179 = vld [vmem:[%s677 + $0x1f40] sm:$0xff]
                  %1180 = vst [vmem:[%s678 + $0x7d0] sm:$0xff] %v1179
                  %v1181 = vld [vmem:[%s677 + $0x1f60] sm:$0xff]
                  %1182 = vst [vmem:[%s678 + $0x7d8] sm:$0xff] %v1181
                  %v1183 = vld [vmem:[%s677 + $0x1f80] sm:$0xff]
                  %1184 = vst [vmem:[%s678 + $0x7e0] sm:$0xff] %v1183
                  %v1185 = vld [vmem:[%s677 + $0x1fa0] sm:$0xff]
                  %1186 = vst [vmem:[%s678 + $0x7e8] sm:$0xff] %v1185
                  %v1187 = vld [vmem:[%s677 + $0x1fc0] sm:$0xff]
                  %1188 = vst [vmem:[%s678 + $0x7f0] sm:$0xff] %v1187
                  %v1189 = vld [vmem:[%s677 + $0x1fe0] sm:$0xff]
                  %1190 = vst [vmem:[%s678 + $0x7f8] sm:$0xff] %v1189
                  %s1191 = sadd.s32 1, %s676
                  %p1192 = scmp.ge.s32.totalorder %s1191, 1
                  %s1193 = scalar_select %p1192, 0, %s1191
                  %s1194 = smul.u32 %s1193, 8
                  %s1195 = smul.u32 %s1193, 8
                  %s1196 = scalar_lea.vmem %s139, %s1194
                  %s1197 = scalar_lea.vmem %s136, %s1195 [#allocation2]
                $region52: #{mynet_forward.8} parent=46 // loop_footer
                  %s675 = sadd.s32 1, %s671
                $region53: #{mynet_forward.8} parent=46 // loop_footer_branch
                  %670 = sbr.rel target = $region49
                $region54: #{mynet_forward.8} parent=46 // loop_exit
                  _
              $region47: #{mynet_forward.8} parent=31 // pred_fallthru
                _
              // Predicated region
              $region55: #{mynet_forward.8} parent=31 // pred_check
                _
              $region56: #{mynet_forward.8} parent=31 // pred_check_branch
                %1199 = sbr.rel target = $region58
              $region57: #{mynet_forward.8} parent=31 // pred_region
                %s1200 = scalar_lea.vmem %s139, 8
                %s1201 = scalar_lea.vmem %s136, 8 [#allocation2]
                loop: start=0, step=1, limit=1
                $region59: #{mynet_forward.8} parent=57 // loop_pre_header
                  _
                $region60: #{mynet_forward.8} parent=57 // loop_header
                  %s1203 = sphi 0, %s1207
                  %p1204 = scmp.ge.s32.totalorder %s1203, 1
                  %s1208 = sphi 0, %s1725
                  %s1209 = sphi %s139, %s1728
                  %s1210 = sphi %s136, %s1729
                $region61: #{mynet_forward.8} parent=57 // loop_header_branch
                  %1206 = sbr.rel (%p1204) target = $region65
                $region62: #{mynet_forward.8} parent=57 // loop_body
                  %v1211 = vld [vmem:[%s1209] sm:$0xff]
                  %1212 = vst [vmem:[%s1210] sm:$0xff] %v1211
                  %v1213 = vld [vmem:[%s1209 + $0x20] sm:$0xff]
                  %1214 = vst [vmem:[%s1210 + $0x8] sm:$0xff] %v1213
                  %v1215 = vld [vmem:[%s1209 + $0x40] sm:$0xff]
                  %1216 = vst [vmem:[%s1210 + $0x10] sm:$0xff] %v1215
                  %v1217 = vld [vmem:[%s1209 + $0x60] sm:$0xff]
                  %1218 = vst [vmem:[%s1210 + $0x18] sm:$0xff] %v1217
                  %v1219 = vld [vmem:[%s1209 + $0x80] sm:$0xff]
                  %1220 = vst [vmem:[%s1210 + $0x20] sm:$0xff] %v1219
                  %v1221 = vld [vmem:[%s1209 + $0xa0] sm:$0xff]
                  %1222 = vst [vmem:[%s1210 + $0x28] sm:$0xff] %v1221
                  %v1223 = vld [vmem:[%s1209 + $0xc0] sm:$0xff]
                  %1224 = vst [vmem:[%s1210 + $0x30] sm:$0xff] %v1223
                  %v1225 = vld [vmem:[%s1209 + $0xe0] sm:$0xff]
                  %1226 = vst [vmem:[%s1210 + $0x38] sm:$0xff] %v1225
                  %v1227 = vld [vmem:[%s1209 + $0x100] sm:$0xff]
                  %1228 = vst [vmem:[%s1210 + $0x40] sm:$0xff] %v1227
                  %v1229 = vld [vmem:[%s1209 + $0x120] sm:$0xff]
                  %1230 = vst [vmem:[%s1210 + $0x48] sm:$0xff] %v1229
                  %v1231 = vld [vmem:[%s1209 + $0x140] sm:$0xff]
                  %1232 = vst [vmem:[%s1210 + $0x50] sm:$0xff] %v1231
                  %v1233 = vld [vmem:[%s1209 + $0x160] sm:$0xff]
                  %1234 = vst [vmem:[%s1210 + $0x58] sm:$0xff] %v1233
                  %v1235 = vld [vmem:[%s1209 + $0x180] sm:$0xff]
                  %1236 = vst [vmem:[%s1210 + $0x60] sm:$0xff] %v1235
                  %v1237 = vld [vmem:[%s1209 + $0x1a0] sm:$0xff]
                  %1238 = vst [vmem:[%s1210 + $0x68] sm:$0xff] %v1237
                  %v1239 = vld [vmem:[%s1209 + $0x1c0] sm:$0xff]
                  %1240 = vst [vmem:[%s1210 + $0x70] sm:$0xff] %v1239
                  %v1241 = vld [vmem:[%s1209 + $0x1e0] sm:$0xff]
                  %1242 = vst [vmem:[%s1210 + $0x78] sm:$0xff] %v1241
                  %v1243 = vld [vmem:[%s1209 + $0x200] sm:$0xff]
                  %1244 = vst [vmem:[%s1210 + $0x80] sm:$0xff] %v1243
                  %v1245 = vld [vmem:[%s1209 + $0x220] sm:$0xff]
                  %1246 = vst [vmem:[%s1210 + $0x88] sm:$0xff] %v1245
                  %v1247 = vld [vmem:[%s1209 + $0x240] sm:$0xff]
                  %1248 = vst [vmem:[%s1210 + $0x90] sm:$0xff] %v1247
                  %v1249 = vld [vmem:[%s1209 + $0x260] sm:$0xff]
                  %1250 = vst [vmem:[%s1210 + $0x98] sm:$0xff] %v1249
                  %v1251 = vld [vmem:[%s1209 + $0x280] sm:$0xff]
                  %1252 = vst [vmem:[%s1210 + $0xa0] sm:$0xff] %v1251
                  %v1253 = vld [vmem:[%s1209 + $0x2a0] sm:$0xff]
                  %1254 = vst [vmem:[%s1210 + $0xa8] sm:$0xff] %v1253
                  %v1255 = vld [vmem:[%s1209 + $0x2c0] sm:$0xff]
                  %1256 = vst [vmem:[%s1210 + $0xb0] sm:$0xff] %v1255
                  %v1257 = vld [vmem:[%s1209 + $0x2e0] sm:$0xff]
                  %1258 = vst [vmem:[%s1210 + $0xb8] sm:$0xff] %v1257
                  %v1259 = vld [vmem:[%s1209 + $0x300] sm:$0xff]
                  %1260 = vst [vmem:[%s1210 + $0xc0] sm:$0xff] %v1259
                  %v1261 = vld [vmem:[%s1209 + $0x320] sm:$0xff]
                  %1262 = vst [vmem:[%s1210 + $0xc8] sm:$0xff] %v1261
                  %v1263 = vld [vmem:[%s1209 + $0x340] sm:$0xff]
                  %1264 = vst [vmem:[%s1210 + $0xd0] sm:$0xff] %v1263
                  %v1265 = vld [vmem:[%s1209 + $0x360] sm:$0xff]
                  %1266 = vst [vmem:[%s1210 + $0xd8] sm:$0xff] %v1265
                  %v1267 = vld [vmem:[%s1209 + $0x380] sm:$0xff]
                  %1268 = vst [vmem:[%s1210 + $0xe0] sm:$0xff] %v1267
                  %v1269 = vld [vmem:[%s1209 + $0x3a0] sm:$0xff]
                  %1270 = vst [vmem:[%s1210 + $0xe8] sm:$0xff] %v1269
                  %v1271 = vld [vmem:[%s1209 + $0x3c0] sm:$0xff]
                  %1272 = vst [vmem:[%s1210 + $0xf0] sm:$0xff] %v1271
                  %v1273 = vld [vmem:[%s1209 + $0x3e0] sm:$0xff]
                  %1274 = vst [vmem:[%s1210 + $0xf8] sm:$0xff] %v1273
                  %v1275 = vld [vmem:[%s1209 + $0x400] sm:$0xff]
                  %1276 = vst [vmem:[%s1210 + $0x100] sm:$0xff] %v1275
                  %v1277 = vld [vmem:[%s1209 + $0x420] sm:$0xff]
                  %1278 = vst [vmem:[%s1210 + $0x108] sm:$0xff] %v1277
                  %v1279 = vld [vmem:[%s1209 + $0x440] sm:$0xff]
                  %1280 = vst [vmem:[%s1210 + $0x110] sm:$0xff] %v1279
                  %v1281 = vld [vmem:[%s1209 + $0x460] sm:$0xff]
                  %1282 = vst [vmem:[%s1210 + $0x118] sm:$0xff] %v1281
                  %v1283 = vld [vmem:[%s1209 + $0x480] sm:$0xff]
                  %1284 = vst [vmem:[%s1210 + $0x120] sm:$0xff] %v1283
                  %v1285 = vld [vmem:[%s1209 + $0x4a0] sm:$0xff]
                  %1286 = vst [vmem:[%s1210 + $0x128] sm:$0xff] %v1285
                  %v1287 = vld [vmem:[%s1209 + $0x4c0] sm:$0xff]
                  %1288 = vst [vmem:[%s1210 + $0x130] sm:$0xff] %v1287
                  %v1289 = vld [vmem:[%s1209 + $0x4e0] sm:$0xff]
                  %1290 = vst [vmem:[%s1210 + $0x138] sm:$0xff] %v1289
                  %v1291 = vld [vmem:[%s1209 + $0x500] sm:$0xff]
                  %1292 = vst [vmem:[%s1210 + $0x140] sm:$0xff] %v1291
                  %v1293 = vld [vmem:[%s1209 + $0x520] sm:$0xff]
                  %1294 = vst [vmem:[%s1210 + $0x148] sm:$0xff] %v1293
                  %v1295 = vld [vmem:[%s1209 + $0x540] sm:$0xff]
                  %1296 = vst [vmem:[%s1210 + $0x150] sm:$0xff] %v1295
                  %v1297 = vld [vmem:[%s1209 + $0x560] sm:$0xff]
                  %1298 = vst [vmem:[%s1210 + $0x158] sm:$0xff] %v1297
                  %v1299 = vld [vmem:[%s1209 + $0x580] sm:$0xff]
                  %1300 = vst [vmem:[%s1210 + $0x160] sm:$0xff] %v1299
                  %v1301 = vld [vmem:[%s1209 + $0x5a0] sm:$0xff]
                  %1302 = vst [vmem:[%s1210 + $0x168] sm:$0xff] %v1301
                  %v1303 = vld [vmem:[%s1209 + $0x5c0] sm:$0xff]
                  %1304 = vst [vmem:[%s1210 + $0x170] sm:$0xff] %v1303
                  %v1305 = vld [vmem:[%s1209 + $0x5e0] sm:$0xff]
                  %1306 = vst [vmem:[%s1210 + $0x178] sm:$0xff] %v1305
                  %v1307 = vld [vmem:[%s1209 + $0x600] sm:$0xff]
                  %1308 = vst [vmem:[%s1210 + $0x180] sm:$0xff] %v1307
                  %v1309 = vld [vmem:[%s1209 + $0x620] sm:$0xff]
                  %1310 = vst [vmem:[%s1210 + $0x188] sm:$0xff] %v1309
                  %v1311 = vld [vmem:[%s1209 + $0x640] sm:$0xff]
                  %1312 = vst [vmem:[%s1210 + $0x190] sm:$0xff] %v1311
                  %v1313 = vld [vmem:[%s1209 + $0x660] sm:$0xff]
                  %1314 = vst [vmem:[%s1210 + $0x198] sm:$0xff] %v1313
                  %v1315 = vld [vmem:[%s1209 + $0x680] sm:$0xff]
                  %1316 = vst [vmem:[%s1210 + $0x1a0] sm:$0xff] %v1315
                  %v1317 = vld [vmem:[%s1209 + $0x6a0] sm:$0xff]
                  %1318 = vst [vmem:[%s1210 + $0x1a8] sm:$0xff] %v1317
                  %v1319 = vld [vmem:[%s1209 + $0x6c0] sm:$0xff]
                  %1320 = vst [vmem:[%s1210 + $0x1b0] sm:$0xff] %v1319
                  %v1321 = vld [vmem:[%s1209 + $0x6e0] sm:$0xff]
                  %1322 = vst [vmem:[%s1210 + $0x1b8] sm:$0xff] %v1321
                  %v1323 = vld [vmem:[%s1209 + $0x700] sm:$0xff]
                  %1324 = vst [vmem:[%s1210 + $0x1c0] sm:$0xff] %v1323
                  %v1325 = vld [vmem:[%s1209 + $0x720] sm:$0xff]
                  %1326 = vst [vmem:[%s1210 + $0x1c8] sm:$0xff] %v1325
                  %v1327 = vld [vmem:[%s1209 + $0x740] sm:$0xff]
                  %1328 = vst [vmem:[%s1210 + $0x1d0] sm:$0xff] %v1327
                  %v1329 = vld [vmem:[%s1209 + $0x760] sm:$0xff]
                  %1330 = vst [vmem:[%s1210 + $0x1d8] sm:$0xff] %v1329
                  %v1331 = vld [vmem:[%s1209 + $0x780] sm:$0xff]
                  %1332 = vst [vmem:[%s1210 + $0x1e0] sm:$0xff] %v1331
                  %v1333 = vld [vmem:[%s1209 + $0x7a0] sm:$0xff]
                  %1334 = vst [vmem:[%s1210 + $0x1e8] sm:$0xff] %v1333
                  %v1335 = vld [vmem:[%s1209 + $0x7c0] sm:$0xff]
                  %1336 = vst [vmem:[%s1210 + $0x1f0] sm:$0xff] %v1335
                  %v1337 = vld [vmem:[%s1209 + $0x7e0] sm:$0xff]
                  %1338 = vst [vmem:[%s1210 + $0x1f8] sm:$0xff] %v1337
                  %v1339 = vld [vmem:[%s1209 + $0x800] sm:$0xff]
                  %1340 = vst [vmem:[%s1210 + $0x200] sm:$0xff] %v1339
                  %v1341 = vld [vmem:[%s1209 + $0x820] sm:$0xff]
                  %1342 = vst [vmem:[%s1210 + $0x208] sm:$0xff] %v1341
                  %v1343 = vld [vmem:[%s1209 + $0x840] sm:$0xff]
                  %1344 = vst [vmem:[%s1210 + $0x210] sm:$0xff] %v1343
                  %v1345 = vld [vmem:[%s1209 + $0x860] sm:$0xff]
                  %1346 = vst [vmem:[%s1210 + $0x218] sm:$0xff] %v1345
                  %v1347 = vld [vmem:[%s1209 + $0x880] sm:$0xff]
                  %1348 = vst [vmem:[%s1210 + $0x220] sm:$0xff] %v1347
                  %v1349 = vld [vmem:[%s1209 + $0x8a0] sm:$0xff]
                  %1350 = vst [vmem:[%s1210 + $0x228] sm:$0xff] %v1349
                  %v1351 = vld [vmem:[%s1209 + $0x8c0] sm:$0xff]
                  %1352 = vst [vmem:[%s1210 + $0x230] sm:$0xff] %v1351
                  %v1353 = vld [vmem:[%s1209 + $0x8e0] sm:$0xff]
                  %1354 = vst [vmem:[%s1210 + $0x238] sm:$0xff] %v1353
                  %v1355 = vld [vmem:[%s1209 + $0x900] sm:$0xff]
                  %1356 = vst [vmem:[%s1210 + $0x240] sm:$0xff] %v1355
                  %v1357 = vld [vmem:[%s1209 + $0x920] sm:$0xff]
                  %1358 = vst [vmem:[%s1210 + $0x248] sm:$0xff] %v1357
                  %v1359 = vld [vmem:[%s1209 + $0x940] sm:$0xff]
                  %1360 = vst [vmem:[%s1210 + $0x250] sm:$0xff] %v1359
                  %v1361 = vld [vmem:[%s1209 + $0x960] sm:$0xff]
                  %1362 = vst [vmem:[%s1210 + $0x258] sm:$0xff] %v1361
                  %v1363 = vld [vmem:[%s1209 + $0x980] sm:$0xff]
                  %1364 = vst [vmem:[%s1210 + $0x260] sm:$0xff] %v1363
                  %v1365 = vld [vmem:[%s1209 + $0x9a0] sm:$0xff]
                  %1366 = vst [vmem:[%s1210 + $0x268] sm:$0xff] %v1365
                  %v1367 = vld [vmem:[%s1209 + $0x9c0] sm:$0xff]
                  %1368 = vst [vmem:[%s1210 + $0x270] sm:$0xff] %v1367
                  %v1369 = vld [vmem:[%s1209 + $0x9e0] sm:$0xff]
                  %1370 = vst [vmem:[%s1210 + $0x278] sm:$0xff] %v1369
                  %v1371 = vld [vmem:[%s1209 + $0xa00] sm:$0xff]
                  %1372 = vst [vmem:[%s1210 + $0x280] sm:$0xff] %v1371
                  %v1373 = vld [vmem:[%s1209 + $0xa20] sm:$0xff]
                  %1374 = vst [vmem:[%s1210 + $0x288] sm:$0xff] %v1373
                  %v1375 = vld [vmem:[%s1209 + $0xa40] sm:$0xff]
                  %1376 = vst [vmem:[%s1210 + $0x290] sm:$0xff] %v1375
                  %v1377 = vld [vmem:[%s1209 + $0xa60] sm:$0xff]
                  %1378 = vst [vmem:[%s1210 + $0x298] sm:$0xff] %v1377
                  %v1379 = vld [vmem:[%s1209 + $0xa80] sm:$0xff]
                  %1380 = vst [vmem:[%s1210 + $0x2a0] sm:$0xff] %v1379
                  %v1381 = vld [vmem:[%s1209 + $0xaa0] sm:$0xff]
                  %1382 = vst [vmem:[%s1210 + $0x2a8] sm:$0xff] %v1381
                  %v1383 = vld [vmem:[%s1209 + $0xac0] sm:$0xff]
                  %1384 = vst [vmem:[%s1210 + $0x2b0] sm:$0xff] %v1383
                  %v1385 = vld [vmem:[%s1209 + $0xae0] sm:$0xff]
                  %1386 = vst [vmem:[%s1210 + $0x2b8] sm:$0xff] %v1385
                  %v1387 = vld [vmem:[%s1209 + $0xb00] sm:$0xff]
                  %1388 = vst [vmem:[%s1210 + $0x2c0] sm:$0xff] %v1387
                  %v1389 = vld [vmem:[%s1209 + $0xb20] sm:$0xff]
                  %1390 = vst [vmem:[%s1210 + $0x2c8] sm:$0xff] %v1389
                  %v1391 = vld [vmem:[%s1209 + $0xb40] sm:$0xff]
                  %1392 = vst [vmem:[%s1210 + $0x2d0] sm:$0xff] %v1391
                  %v1393 = vld [vmem:[%s1209 + $0xb60] sm:$0xff]
                  %1394 = vst [vmem:[%s1210 + $0x2d8] sm:$0xff] %v1393
                  %v1395 = vld [vmem:[%s1209 + $0xb80] sm:$0xff]
                  %1396 = vst [vmem:[%s1210 + $0x2e0] sm:$0xff] %v1395
                  %v1397 = vld [vmem:[%s1209 + $0xba0] sm:$0xff]
                  %1398 = vst [vmem:[%s1210 + $0x2e8] sm:$0xff] %v1397
                  %v1399 = vld [vmem:[%s1209 + $0xbc0] sm:$0xff]
                  %1400 = vst [vmem:[%s1210 + $0x2f0] sm:$0xff] %v1399
                  %v1401 = vld [vmem:[%s1209 + $0xbe0] sm:$0xff]
                  %1402 = vst [vmem:[%s1210 + $0x2f8] sm:$0xff] %v1401
                  %v1403 = vld [vmem:[%s1209 + $0xc00] sm:$0xff]
                  %1404 = vst [vmem:[%s1210 + $0x300] sm:$0xff] %v1403
                  %v1405 = vld [vmem:[%s1209 + $0xc20] sm:$0xff]
                  %1406 = vst [vmem:[%s1210 + $0x308] sm:$0xff] %v1405
                  %v1407 = vld [vmem:[%s1209 + $0xc40] sm:$0xff]
                  %1408 = vst [vmem:[%s1210 + $0x310] sm:$0xff] %v1407
                  %v1409 = vld [vmem:[%s1209 + $0xc60] sm:$0xff]
                  %1410 = vst [vmem:[%s1210 + $0x318] sm:$0xff] %v1409
                  %v1411 = vld [vmem:[%s1209 + $0xc80] sm:$0xff]
                  %1412 = vst [vmem:[%s1210 + $0x320] sm:$0xff] %v1411
                  %v1413 = vld [vmem:[%s1209 + $0xca0] sm:$0xff]
                  %1414 = vst [vmem:[%s1210 + $0x328] sm:$0xff] %v1413
                  %v1415 = vld [vmem:[%s1209 + $0xcc0] sm:$0xff]
                  %1416 = vst [vmem:[%s1210 + $0x330] sm:$0xff] %v1415
                  %v1417 = vld [vmem:[%s1209 + $0xce0] sm:$0xff]
                  %1418 = vst [vmem:[%s1210 + $0x338] sm:$0xff] %v1417
                  %v1419 = vld [vmem:[%s1209 + $0xd00] sm:$0xff]
                  %1420 = vst [vmem:[%s1210 + $0x340] sm:$0xff] %v1419
                  %v1421 = vld [vmem:[%s1209 + $0xd20] sm:$0xff]
                  %1422 = vst [vmem:[%s1210 + $0x348] sm:$0xff] %v1421
                  %v1423 = vld [vmem:[%s1209 + $0xd40] sm:$0xff]
                  %1424 = vst [vmem:[%s1210 + $0x350] sm:$0xff] %v1423
                  %v1425 = vld [vmem:[%s1209 + $0xd60] sm:$0xff]
                  %1426 = vst [vmem:[%s1210 + $0x358] sm:$0xff] %v1425
                  %v1427 = vld [vmem:[%s1209 + $0xd80] sm:$0xff]
                  %1428 = vst [vmem:[%s1210 + $0x360] sm:$0xff] %v1427
                  %v1429 = vld [vmem:[%s1209 + $0xda0] sm:$0xff]
                  %1430 = vst [vmem:[%s1210 + $0x368] sm:$0xff] %v1429
                  %v1431 = vld [vmem:[%s1209 + $0xdc0] sm:$0xff]
                  %1432 = vst [vmem:[%s1210 + $0x370] sm:$0xff] %v1431
                  %v1433 = vld [vmem:[%s1209 + $0xde0] sm:$0xff]
                  %1434 = vst [vmem:[%s1210 + $0x378] sm:$0xff] %v1433
                  %v1435 = vld [vmem:[%s1209 + $0xe00] sm:$0xff]
                  %1436 = vst [vmem:[%s1210 + $0x380] sm:$0xff] %v1435
                  %v1437 = vld [vmem:[%s1209 + $0xe20] sm:$0xff]
                  %1438 = vst [vmem:[%s1210 + $0x388] sm:$0xff] %v1437
                  %v1439 = vld [vmem:[%s1209 + $0xe40] sm:$0xff]
                  %1440 = vst [vmem:[%s1210 + $0x390] sm:$0xff] %v1439
                  %v1441 = vld [vmem:[%s1209 + $0xe60] sm:$0xff]
                  %1442 = vst [vmem:[%s1210 + $0x398] sm:$0xff] %v1441
                  %v1443 = vld [vmem:[%s1209 + $0xe80] sm:$0xff]
                  %1444 = vst [vmem:[%s1210 + $0x3a0] sm:$0xff] %v1443
                  %v1445 = vld [vmem:[%s1209 + $0xea0] sm:$0xff]
                  %1446 = vst [vmem:[%s1210 + $0x3a8] sm:$0xff] %v1445
                  %v1447 = vld [vmem:[%s1209 + $0xec0] sm:$0xff]
                  %1448 = vst [vmem:[%s1210 + $0x3b0] sm:$0xff] %v1447
                  %v1449 = vld [vmem:[%s1209 + $0xee0] sm:$0xff]
                  %1450 = vst [vmem:[%s1210 + $0x3b8] sm:$0xff] %v1449
                  %v1451 = vld [vmem:[%s1209 + $0xf00] sm:$0xff]
                  %1452 = vst [vmem:[%s1210 + $0x3c0] sm:$0xff] %v1451
                  %v1453 = vld [vmem:[%s1209 + $0xf20] sm:$0xff]
                  %1454 = vst [vmem:[%s1210 + $0x3c8] sm:$0xff] %v1453
                  %v1455 = vld [vmem:[%s1209 + $0xf40] sm:$0xff]
                  %1456 = vst [vmem:[%s1210 + $0x3d0] sm:$0xff] %v1455
                  %v1457 = vld [vmem:[%s1209 + $0xf60] sm:$0xff]
                  %1458 = vst [vmem:[%s1210 + $0x3d8] sm:$0xff] %v1457
                  %v1459 = vld [vmem:[%s1209 + $0xf80] sm:$0xff]
                  %1460 = vst [vmem:[%s1210 + $0x3e0] sm:$0xff] %v1459
                  %v1461 = vld [vmem:[%s1209 + $0xfa0] sm:$0xff]
                  %1462 = vst [vmem:[%s1210 + $0x3e8] sm:$0xff] %v1461
                  %v1463 = vld [vmem:[%s1209 + $0xfc0] sm:$0xff]
                  %1464 = vst [vmem:[%s1210 + $0x3f0] sm:$0xff] %v1463
                  %v1465 = vld [vmem:[%s1209 + $0xfe0] sm:$0xff]
                  %1466 = vst [vmem:[%s1210 + $0x3f8] sm:$0xff] %v1465
                  %v1467 = vld [vmem:[%s1209 + $0x1000] sm:$0xff]
                  %1468 = vst [vmem:[%s1210 + $0x400] sm:$0xff] %v1467
                  %v1469 = vld [vmem:[%s1209 + $0x1020] sm:$0xff]
                  %1470 = vst [vmem:[%s1210 + $0x408] sm:$0xff] %v1469
                  %v1471 = vld [vmem:[%s1209 + $0x1040] sm:$0xff]
                  %1472 = vst [vmem:[%s1210 + $0x410] sm:$0xff] %v1471
                  %v1473 = vld [vmem:[%s1209 + $0x1060] sm:$0xff]
                  %1474 = vst [vmem:[%s1210 + $0x418] sm:$0xff] %v1473
                  %v1475 = vld [vmem:[%s1209 + $0x1080] sm:$0xff]
                  %1476 = vst [vmem:[%s1210 + $0x420] sm:$0xff] %v1475
                  %v1477 = vld [vmem:[%s1209 + $0x10a0] sm:$0xff]
                  %1478 = vst [vmem:[%s1210 + $0x428] sm:$0xff] %v1477
                  %v1479 = vld [vmem:[%s1209 + $0x10c0] sm:$0xff]
                  %1480 = vst [vmem:[%s1210 + $0x430] sm:$0xff] %v1479
                  %v1481 = vld [vmem:[%s1209 + $0x10e0] sm:$0xff]
                  %1482 = vst [vmem:[%s1210 + $0x438] sm:$0xff] %v1481
                  %v1483 = vld [vmem:[%s1209 + $0x1100] sm:$0xff]
                  %1484 = vst [vmem:[%s1210 + $0x440] sm:$0xff] %v1483
                  %v1485 = vld [vmem:[%s1209 + $0x1120] sm:$0xff]
                  %1486 = vst [vmem:[%s1210 + $0x448] sm:$0xff] %v1485
                  %v1487 = vld [vmem:[%s1209 + $0x1140] sm:$0xff]
                  %1488 = vst [vmem:[%s1210 + $0x450] sm:$0xff] %v1487
                  %v1489 = vld [vmem:[%s1209 + $0x1160] sm:$0xff]
                  %1490 = vst [vmem:[%s1210 + $0x458] sm:$0xff] %v1489
                  %v1491 = vld [vmem:[%s1209 + $0x1180] sm:$0xff]
                  %1492 = vst [vmem:[%s1210 + $0x460] sm:$0xff] %v1491
                  %v1493 = vld [vmem:[%s1209 + $0x11a0] sm:$0xff]
                  %1494 = vst [vmem:[%s1210 + $0x468] sm:$0xff] %v1493
                  %v1495 = vld [vmem:[%s1209 + $0x11c0] sm:$0xff]
                  %1496 = vst [vmem:[%s1210 + $0x470] sm:$0xff] %v1495
                  %v1497 = vld [vmem:[%s1209 + $0x11e0] sm:$0xff]
                  %1498 = vst [vmem:[%s1210 + $0x478] sm:$0xff] %v1497
                  %v1499 = vld [vmem:[%s1209 + $0x1200] sm:$0xff]
                  %1500 = vst [vmem:[%s1210 + $0x480] sm:$0xff] %v1499
                  %v1501 = vld [vmem:[%s1209 + $0x1220] sm:$0xff]
                  %1502 = vst [vmem:[%s1210 + $0x488] sm:$0xff] %v1501
                  %v1503 = vld [vmem:[%s1209 + $0x1240] sm:$0xff]
                  %1504 = vst [vmem:[%s1210 + $0x490] sm:$0xff] %v1503
                  %v1505 = vld [vmem:[%s1209 + $0x1260] sm:$0xff]
                  %1506 = vst [vmem:[%s1210 + $0x498] sm:$0xff] %v1505
                  %v1507 = vld [vmem:[%s1209 + $0x1280] sm:$0xff]
                  %1508 = vst [vmem:[%s1210 + $0x4a0] sm:$0xff] %v1507
                  %v1509 = vld [vmem:[%s1209 + $0x12a0] sm:$0xff]
                  %1510 = vst [vmem:[%s1210 + $0x4a8] sm:$0xff] %v1509
                  %v1511 = vld [vmem:[%s1209 + $0x12c0] sm:$0xff]
                  %1512 = vst [vmem:[%s1210 + $0x4b0] sm:$0xff] %v1511
                  %v1513 = vld [vmem:[%s1209 + $0x12e0] sm:$0xff]
                  %1514 = vst [vmem:[%s1210 + $0x4b8] sm:$0xff] %v1513
                  %v1515 = vld [vmem:[%s1209 + $0x1300] sm:$0xff]
                  %1516 = vst [vmem:[%s1210 + $0x4c0] sm:$0xff] %v1515
                  %v1517 = vld [vmem:[%s1209 + $0x1320] sm:$0xff]
                  %1518 = vst [vmem:[%s1210 + $0x4c8] sm:$0xff] %v1517
                  %v1519 = vld [vmem:[%s1209 + $0x1340] sm:$0xff]
                  %1520 = vst [vmem:[%s1210 + $0x4d0] sm:$0xff] %v1519
                  %v1521 = vld [vmem:[%s1209 + $0x1360] sm:$0xff]
                  %1522 = vst [vmem:[%s1210 + $0x4d8] sm:$0xff] %v1521
                  %v1523 = vld [vmem:[%s1209 + $0x1380] sm:$0xff]
                  %1524 = vst [vmem:[%s1210 + $0x4e0] sm:$0xff] %v1523
                  %v1525 = vld [vmem:[%s1209 + $0x13a0] sm:$0xff]
                  %1526 = vst [vmem:[%s1210 + $0x4e8] sm:$0xff] %v1525
                  %v1527 = vld [vmem:[%s1209 + $0x13c0] sm:$0xff]
                  %1528 = vst [vmem:[%s1210 + $0x4f0] sm:$0xff] %v1527
                  %v1529 = vld [vmem:[%s1209 + $0x13e0] sm:$0xff]
                  %1530 = vst [vmem:[%s1210 + $0x4f8] sm:$0xff] %v1529
                  %v1531 = vld [vmem:[%s1209 + $0x1400] sm:$0xff]
                  %1532 = vst [vmem:[%s1210 + $0x500] sm:$0xff] %v1531
                  %v1533 = vld [vmem:[%s1209 + $0x1420] sm:$0xff]
                  %1534 = vst [vmem:[%s1210 + $0x508] sm:$0xff] %v1533
                  %v1535 = vld [vmem:[%s1209 + $0x1440] sm:$0xff]
                  %1536 = vst [vmem:[%s1210 + $0x510] sm:$0xff] %v1535
                  %v1537 = vld [vmem:[%s1209 + $0x1460] sm:$0xff]
                  %1538 = vst [vmem:[%s1210 + $0x518] sm:$0xff] %v1537
                  %v1539 = vld [vmem:[%s1209 + $0x1480] sm:$0xff]
                  %1540 = vst [vmem:[%s1210 + $0x520] sm:$0xff] %v1539
                  %v1541 = vld [vmem:[%s1209 + $0x14a0] sm:$0xff]
                  %1542 = vst [vmem:[%s1210 + $0x528] sm:$0xff] %v1541
                  %v1543 = vld [vmem:[%s1209 + $0x14c0] sm:$0xff]
                  %1544 = vst [vmem:[%s1210 + $0x530] sm:$0xff] %v1543
                  %v1545 = vld [vmem:[%s1209 + $0x14e0] sm:$0xff]
                  %1546 = vst [vmem:[%s1210 + $0x538] sm:$0xff] %v1545
                  %v1547 = vld [vmem:[%s1209 + $0x1500] sm:$0xff]
                  %1548 = vst [vmem:[%s1210 + $0x540] sm:$0xff] %v1547
                  %v1549 = vld [vmem:[%s1209 + $0x1520] sm:$0xff]
                  %1550 = vst [vmem:[%s1210 + $0x548] sm:$0xff] %v1549
                  %v1551 = vld [vmem:[%s1209 + $0x1540] sm:$0xff]
                  %1552 = vst [vmem:[%s1210 + $0x550] sm:$0xff] %v1551
                  %v1553 = vld [vmem:[%s1209 + $0x1560] sm:$0xff]
                  %1554 = vst [vmem:[%s1210 + $0x558] sm:$0xff] %v1553
                  %v1555 = vld [vmem:[%s1209 + $0x1580] sm:$0xff]
                  %1556 = vst [vmem:[%s1210 + $0x560] sm:$0xff] %v1555
                  %v1557 = vld [vmem:[%s1209 + $0x15a0] sm:$0xff]
                  %1558 = vst [vmem:[%s1210 + $0x568] sm:$0xff] %v1557
                  %v1559 = vld [vmem:[%s1209 + $0x15c0] sm:$0xff]
                  %1560 = vst [vmem:[%s1210 + $0x570] sm:$0xff] %v1559
                  %v1561 = vld [vmem:[%s1209 + $0x15e0] sm:$0xff]
                  %1562 = vst [vmem:[%s1210 + $0x578] sm:$0xff] %v1561
                  %v1563 = vld [vmem:[%s1209 + $0x1600] sm:$0xff]
                  %1564 = vst [vmem:[%s1210 + $0x580] sm:$0xff] %v1563
                  %v1565 = vld [vmem:[%s1209 + $0x1620] sm:$0xff]
                  %1566 = vst [vmem:[%s1210 + $0x588] sm:$0xff] %v1565
                  %v1567 = vld [vmem:[%s1209 + $0x1640] sm:$0xff]
                  %1568 = vst [vmem:[%s1210 + $0x590] sm:$0xff] %v1567
                  %v1569 = vld [vmem:[%s1209 + $0x1660] sm:$0xff]
                  %1570 = vst [vmem:[%s1210 + $0x598] sm:$0xff] %v1569
                  %v1571 = vld [vmem:[%s1209 + $0x1680] sm:$0xff]
                  %1572 = vst [vmem:[%s1210 + $0x5a0] sm:$0xff] %v1571
                  %v1573 = vld [vmem:[%s1209 + $0x16a0] sm:$0xff]
                  %1574 = vst [vmem:[%s1210 + $0x5a8] sm:$0xff] %v1573
                  %v1575 = vld [vmem:[%s1209 + $0x16c0] sm:$0xff]
                  %1576 = vst [vmem:[%s1210 + $0x5b0] sm:$0xff] %v1575
                  %v1577 = vld [vmem:[%s1209 + $0x16e0] sm:$0xff]
                  %1578 = vst [vmem:[%s1210 + $0x5b8] sm:$0xff] %v1577
                  %v1579 = vld [vmem:[%s1209 + $0x1700] sm:$0xff]
                  %1580 = vst [vmem:[%s1210 + $0x5c0] sm:$0xff] %v1579
                  %v1581 = vld [vmem:[%s1209 + $0x1720] sm:$0xff]
                  %1582 = vst [vmem:[%s1210 + $0x5c8] sm:$0xff] %v1581
                  %v1583 = vld [vmem:[%s1209 + $0x1740] sm:$0xff]
                  %1584 = vst [vmem:[%s1210 + $0x5d0] sm:$0xff] %v1583
                  %v1585 = vld [vmem:[%s1209 + $0x1760] sm:$0xff]
                  %1586 = vst [vmem:[%s1210 + $0x5d8] sm:$0xff] %v1585
                  %v1587 = vld [vmem:[%s1209 + $0x1780] sm:$0xff]
                  %1588 = vst [vmem:[%s1210 + $0x5e0] sm:$0xff] %v1587
                  %v1589 = vld [vmem:[%s1209 + $0x17a0] sm:$0xff]
                  %1590 = vst [vmem:[%s1210 + $0x5e8] sm:$0xff] %v1589
                  %v1591 = vld [vmem:[%s1209 + $0x17c0] sm:$0xff]
                  %1592 = vst [vmem:[%s1210 + $0x5f0] sm:$0xff] %v1591
                  %v1593 = vld [vmem:[%s1209 + $0x17e0] sm:$0xff]
                  %1594 = vst [vmem:[%s1210 + $0x5f8] sm:$0xff] %v1593
                  %v1595 = vld [vmem:[%s1209 + $0x1800] sm:$0xff]
                  %1596 = vst [vmem:[%s1210 + $0x600] sm:$0xff] %v1595
                  %v1597 = vld [vmem:[%s1209 + $0x1820] sm:$0xff]
                  %1598 = vst [vmem:[%s1210 + $0x608] sm:$0xff] %v1597
                  %v1599 = vld [vmem:[%s1209 + $0x1840] sm:$0xff]
                  %1600 = vst [vmem:[%s1210 + $0x610] sm:$0xff] %v1599
                  %v1601 = vld [vmem:[%s1209 + $0x1860] sm:$0xff]
                  %1602 = vst [vmem:[%s1210 + $0x618] sm:$0xff] %v1601
                  %v1603 = vld [vmem:[%s1209 + $0x1880] sm:$0xff]
                  %1604 = vst [vmem:[%s1210 + $0x620] sm:$0xff] %v1603
                  %v1605 = vld [vmem:[%s1209 + $0x18a0] sm:$0xff]
                  %1606 = vst [vmem:[%s1210 + $0x628] sm:$0xff] %v1605
                  %v1607 = vld [vmem:[%s1209 + $0x18c0] sm:$0xff]
                  %1608 = vst [vmem:[%s1210 + $0x630] sm:$0xff] %v1607
                  %v1609 = vld [vmem:[%s1209 + $0x18e0] sm:$0xff]
                  %1610 = vst [vmem:[%s1210 + $0x638] sm:$0xff] %v1609
                  %v1611 = vld [vmem:[%s1209 + $0x1900] sm:$0xff]
                  %1612 = vst [vmem:[%s1210 + $0x640] sm:$0xff] %v1611
                  %v1613 = vld [vmem:[%s1209 + $0x1920] sm:$0xff]
                  %1614 = vst [vmem:[%s1210 + $0x648] sm:$0xff] %v1613
                  %v1615 = vld [vmem:[%s1209 + $0x1940] sm:$0xff]
                  %1616 = vst [vmem:[%s1210 + $0x650] sm:$0xff] %v1615
                  %v1617 = vld [vmem:[%s1209 + $0x1960] sm:$0xff]
                  %1618 = vst [vmem:[%s1210 + $0x658] sm:$0xff] %v1617
                  %v1619 = vld [vmem:[%s1209 + $0x1980] sm:$0xff]
                  %1620 = vst [vmem:[%s1210 + $0x660] sm:$0xff] %v1619
                  %v1621 = vld [vmem:[%s1209 + $0x19a0] sm:$0xff]
                  %1622 = vst [vmem:[%s1210 + $0x668] sm:$0xff] %v1621
                  %v1623 = vld [vmem:[%s1209 + $0x19c0] sm:$0xff]
                  %1624 = vst [vmem:[%s1210 + $0x670] sm:$0xff] %v1623
                  %v1625 = vld [vmem:[%s1209 + $0x19e0] sm:$0xff]
                  %1626 = vst [vmem:[%s1210 + $0x678] sm:$0xff] %v1625
                  %v1627 = vld [vmem:[%s1209 + $0x1a00] sm:$0xff]
                  %1628 = vst [vmem:[%s1210 + $0x680] sm:$0xff] %v1627
                  %v1629 = vld [vmem:[%s1209 + $0x1a20] sm:$0xff]
                  %1630 = vst [vmem:[%s1210 + $0x688] sm:$0xff] %v1629
                  %v1631 = vld [vmem:[%s1209 + $0x1a40] sm:$0xff]
                  %1632 = vst [vmem:[%s1210 + $0x690] sm:$0xff] %v1631
                  %v1633 = vld [vmem:[%s1209 + $0x1a60] sm:$0xff]
                  %1634 = vst [vmem:[%s1210 + $0x698] sm:$0xff] %v1633
                  %v1635 = vld [vmem:[%s1209 + $0x1a80] sm:$0xff]
                  %1636 = vst [vmem:[%s1210 + $0x6a0] sm:$0xff] %v1635
                  %v1637 = vld [vmem:[%s1209 + $0x1aa0] sm:$0xff]
                  %1638 = vst [vmem:[%s1210 + $0x6a8] sm:$0xff] %v1637
                  %v1639 = vld [vmem:[%s1209 + $0x1ac0] sm:$0xff]
                  %1640 = vst [vmem:[%s1210 + $0x6b0] sm:$0xff] %v1639
                  %v1641 = vld [vmem:[%s1209 + $0x1ae0] sm:$0xff]
                  %1642 = vst [vmem:[%s1210 + $0x6b8] sm:$0xff] %v1641
                  %v1643 = vld [vmem:[%s1209 + $0x1b00] sm:$0xff]
                  %1644 = vst [vmem:[%s1210 + $0x6c0] sm:$0xff] %v1643
                  %v1645 = vld [vmem:[%s1209 + $0x1b20] sm:$0xff]
                  %1646 = vst [vmem:[%s1210 + $0x6c8] sm:$0xff] %v1645
                  %v1647 = vld [vmem:[%s1209 + $0x1b40] sm:$0xff]
                  %1648 = vst [vmem:[%s1210 + $0x6d0] sm:$0xff] %v1647
                  %v1649 = vld [vmem:[%s1209 + $0x1b60] sm:$0xff]
                  %1650 = vst [vmem:[%s1210 + $0x6d8] sm:$0xff] %v1649
                  %v1651 = vld [vmem:[%s1209 + $0x1b80] sm:$0xff]
                  %1652 = vst [vmem:[%s1210 + $0x6e0] sm:$0xff] %v1651
                  %v1653 = vld [vmem:[%s1209 + $0x1ba0] sm:$0xff]
                  %1654 = vst [vmem:[%s1210 + $0x6e8] sm:$0xff] %v1653
                  %v1655 = vld [vmem:[%s1209 + $0x1bc0] sm:$0xff]
                  %1656 = vst [vmem:[%s1210 + $0x6f0] sm:$0xff] %v1655
                  %v1657 = vld [vmem:[%s1209 + $0x1be0] sm:$0xff]
                  %1658 = vst [vmem:[%s1210 + $0x6f8] sm:$0xff] %v1657
                  %v1659 = vld [vmem:[%s1209 + $0x1c00] sm:$0xff]
                  %1660 = vst [vmem:[%s1210 + $0x700] sm:$0xff] %v1659
                  %v1661 = vld [vmem:[%s1209 + $0x1c20] sm:$0xff]
                  %1662 = vst [vmem:[%s1210 + $0x708] sm:$0xff] %v1661
                  %v1663 = vld [vmem:[%s1209 + $0x1c40] sm:$0xff]
                  %1664 = vst [vmem:[%s1210 + $0x710] sm:$0xff] %v1663
                  %v1665 = vld [vmem:[%s1209 + $0x1c60] sm:$0xff]
                  %1666 = vst [vmem:[%s1210 + $0x718] sm:$0xff] %v1665
                  %v1667 = vld [vmem:[%s1209 + $0x1c80] sm:$0xff]
                  %1668 = vst [vmem:[%s1210 + $0x720] sm:$0xff] %v1667
                  %v1669 = vld [vmem:[%s1209 + $0x1ca0] sm:$0xff]
                  %1670 = vst [vmem:[%s1210 + $0x728] sm:$0xff] %v1669
                  %v1671 = vld [vmem:[%s1209 + $0x1cc0] sm:$0xff]
                  %1672 = vst [vmem:[%s1210 + $0x730] sm:$0xff] %v1671
                  %v1673 = vld [vmem:[%s1209 + $0x1ce0] sm:$0xff]
                  %1674 = vst [vmem:[%s1210 + $0x738] sm:$0xff] %v1673
                  %v1675 = vld [vmem:[%s1209 + $0x1d00] sm:$0xff]
                  %1676 = vst [vmem:[%s1210 + $0x740] sm:$0xff] %v1675
                  %v1677 = vld [vmem:[%s1209 + $0x1d20] sm:$0xff]
                  %1678 = vst [vmem:[%s1210 + $0x748] sm:$0xff] %v1677
                  %v1679 = vld [vmem:[%s1209 + $0x1d40] sm:$0xff]
                  %1680 = vst [vmem:[%s1210 + $0x750] sm:$0xff] %v1679
                  %v1681 = vld [vmem:[%s1209 + $0x1d60] sm:$0xff]
                  %1682 = vst [vmem:[%s1210 + $0x758] sm:$0xff] %v1681
                  %v1683 = vld [vmem:[%s1209 + $0x1d80] sm:$0xff]
                  %1684 = vst [vmem:[%s1210 + $0x760] sm:$0xff] %v1683
                  %v1685 = vld [vmem:[%s1209 + $0x1da0] sm:$0xff]
                  %1686 = vst [vmem:[%s1210 + $0x768] sm:$0xff] %v1685
                  %v1687 = vld [vmem:[%s1209 + $0x1dc0] sm:$0xff]
                  %1688 = vst [vmem:[%s1210 + $0x770] sm:$0xff] %v1687
                  %v1689 = vld [vmem:[%s1209 + $0x1de0] sm:$0xff]
                  %1690 = vst [vmem:[%s1210 + $0x778] sm:$0xff] %v1689
                  %v1691 = vld [vmem:[%s1209 + $0x1e00] sm:$0xff]
                  %1692 = vst [vmem:[%s1210 + $0x780] sm:$0xff] %v1691
                  %v1693 = vld [vmem:[%s1209 + $0x1e20] sm:$0xff]
                  %1694 = vst [vmem:[%s1210 + $0x788] sm:$0xff] %v1693
                  %v1695 = vld [vmem:[%s1209 + $0x1e40] sm:$0xff]
                  %1696 = vst [vmem:[%s1210 + $0x790] sm:$0xff] %v1695
                  %v1697 = vld [vmem:[%s1209 + $0x1e60] sm:$0xff]
                  %1698 = vst [vmem:[%s1210 + $0x798] sm:$0xff] %v1697
                  %v1699 = vld [vmem:[%s1209 + $0x1e80] sm:$0xff]
                  %1700 = vst [vmem:[%s1210 + $0x7a0] sm:$0xff] %v1699
                  %v1701 = vld [vmem:[%s1209 + $0x1ea0] sm:$0xff]
                  %1702 = vst [vmem:[%s1210 + $0x7a8] sm:$0xff] %v1701
                  %v1703 = vld [vmem:[%s1209 + $0x1ec0] sm:$0xff]
                  %1704 = vst [vmem:[%s1210 + $0x7b0] sm:$0xff] %v1703
                  %v1705 = vld [vmem:[%s1209 + $0x1ee0] sm:$0xff]
                  %1706 = vst [vmem:[%s1210 + $0x7b8] sm:$0xff] %v1705
                  %v1707 = vld [vmem:[%s1209 + $0x1f00] sm:$0xff]
                  %1708 = vst [vmem:[%s1210 + $0x7c0] sm:$0xff] %v1707
                  %v1709 = vld [vmem:[%s1209 + $0x1f20] sm:$0xff]
                  %1710 = vst [vmem:[%s1210 + $0x7c8] sm:$0xff] %v1709
                  %v1711 = vld [vmem:[%s1209 + $0x1f40] sm:$0xff]
                  %1712 = vst [vmem:[%s1210 + $0x7d0] sm:$0xff] %v1711
                  %v1713 = vld [vmem:[%s1209 + $0x1f60] sm:$0xff]
                  %1714 = vst [vmem:[%s1210 + $0x7d8] sm:$0xff] %v1713
                  %v1715 = vld [vmem:[%s1209 + $0x1f80] sm:$0xff]
                  %1716 = vst [vmem:[%s1210 + $0x7e0] sm:$0xff] %v1715
                  %v1717 = vld [vmem:[%s1209 + $0x1fa0] sm:$0xff]
                  %1718 = vst [vmem:[%s1210 + $0x7e8] sm:$0xff] %v1717
                  %v1719 = vld [vmem:[%s1209 + $0x1fc0] sm:$0xff]
                  %1720 = vst [vmem:[%s1210 + $0x7f0] sm:$0xff] %v1719
                  %v1721 = vld [vmem:[%s1209 + $0x1fe0] sm:$0xff]
                  %1722 = vst [vmem:[%s1210 + $0x7f8] sm:$0xff] %v1721
                  %s1723 = sadd.s32 1, %s1208
                  %p1724 = scmp.ge.s32.totalorder %s1723, 1
                  %s1725 = scalar_select %p1724, 0, %s1723
                  %s1726 = smul.u32 %s1725, 8
                  %s1727 = smul.u32 %s1725, 8
                  %s1728 = scalar_lea.vmem %s139, %s1726
                  %s1729 = scalar_lea.vmem %s136, %s1727 [#allocation2]
                $region63: #{mynet_forward.8} parent=57 // loop_footer
                  %s1207 = sadd.s32 1, %s1203
                $region64: #{mynet_forward.8} parent=57 // loop_footer_branch
                  %1202 = sbr.rel target = $region60
                $region65: #{mynet_forward.8} parent=57 // loop_exit
                  _
                %s1731 = ssub.s32 1, 1
                loop: start=0, step=1, limit=1
                $region66: #{mynet_forward.8} parent=57 // loop_pre_header
                  _
                $region67: #{mynet_forward.8} parent=57 // loop_header
                  %s1733 = sphi 0, %s1737
                  %p1734 = scmp.ge.s32.totalorder %s1733, 1
                  %s1738 = sphi %s1200, %s1200
                  %s1739 = sphi %s1201, %s1201
                $region68: #{mynet_forward.8} parent=57 // loop_header_branch
                  %1736 = sbr.rel (%p1734) target = $region72
                $region69: #{mynet_forward.8} parent=57 // loop_body
                  %v1740 = vld [vmem:[%s1738] sm:%s1731]
                  %1741 = vst [vmem:[%s1739] sm:%s1731] %v1740
                  %v1742 = vld [vmem:[%s1738 + $0x20] sm:%s1731]
                  %1743 = vst [vmem:[%s1739 + $0x8] sm:%s1731] %v1742
                  %v1744 = vld [vmem:[%s1738 + $0x40] sm:%s1731]
                  %1745 = vst [vmem:[%s1739 + $0x10] sm:%s1731] %v1744
                  %v1746 = vld [vmem:[%s1738 + $0x60] sm:%s1731]
                  %1747 = vst [vmem:[%s1739 + $0x18] sm:%s1731] %v1746
                  %v1748 = vld [vmem:[%s1738 + $0x80] sm:%s1731]
                  %1749 = vst [vmem:[%s1739 + $0x20] sm:%s1731] %v1748
                  %v1750 = vld [vmem:[%s1738 + $0xa0] sm:%s1731]
                  %1751 = vst [vmem:[%s1739 + $0x28] sm:%s1731] %v1750
                  %v1752 = vld [vmem:[%s1738 + $0xc0] sm:%s1731]
                  %1753 = vst [vmem:[%s1739 + $0x30] sm:%s1731] %v1752
                  %v1754 = vld [vmem:[%s1738 + $0xe0] sm:%s1731]
                  %1755 = vst [vmem:[%s1739 + $0x38] sm:%s1731] %v1754
                  %v1756 = vld [vmem:[%s1738 + $0x100] sm:%s1731]
                  %1757 = vst [vmem:[%s1739 + $0x40] sm:%s1731] %v1756
                  %v1758 = vld [vmem:[%s1738 + $0x120] sm:%s1731]
                  %1759 = vst [vmem:[%s1739 + $0x48] sm:%s1731] %v1758
                  %v1760 = vld [vmem:[%s1738 + $0x140] sm:%s1731]
                  %1761 = vst [vmem:[%s1739 + $0x50] sm:%s1731] %v1760
                  %v1762 = vld [vmem:[%s1738 + $0x160] sm:%s1731]
                  %1763 = vst [vmem:[%s1739 + $0x58] sm:%s1731] %v1762
                  %v1764 = vld [vmem:[%s1738 + $0x180] sm:%s1731]
                  %1765 = vst [vmem:[%s1739 + $0x60] sm:%s1731] %v1764
                  %v1766 = vld [vmem:[%s1738 + $0x1a0] sm:%s1731]
                  %1767 = vst [vmem:[%s1739 + $0x68] sm:%s1731] %v1766
                  %v1768 = vld [vmem:[%s1738 + $0x1c0] sm:%s1731]
                  %1769 = vst [vmem:[%s1739 + $0x70] sm:%s1731] %v1768
                  %v1770 = vld [vmem:[%s1738 + $0x1e0] sm:%s1731]
                  %1771 = vst [vmem:[%s1739 + $0x78] sm:%s1731] %v1770
                  %v1772 = vld [vmem:[%s1738 + $0x200] sm:%s1731]
                  %1773 = vst [vmem:[%s1739 + $0x80] sm:%s1731] %v1772
                  %v1774 = vld [vmem:[%s1738 + $0x220] sm:%s1731]
                  %1775 = vst [vmem:[%s1739 + $0x88] sm:%s1731] %v1774
                  %v1776 = vld [vmem:[%s1738 + $0x240] sm:%s1731]
                  %1777 = vst [vmem:[%s1739 + $0x90] sm:%s1731] %v1776
                  %v1778 = vld [vmem:[%s1738 + $0x260] sm:%s1731]
                  %1779 = vst [vmem:[%s1739 + $0x98] sm:%s1731] %v1778
                  %v1780 = vld [vmem:[%s1738 + $0x280] sm:%s1731]
                  %1781 = vst [vmem:[%s1739 + $0xa0] sm:%s1731] %v1780
                  %v1782 = vld [vmem:[%s1738 + $0x2a0] sm:%s1731]
                  %1783 = vst [vmem:[%s1739 + $0xa8] sm:%s1731] %v1782
                  %v1784 = vld [vmem:[%s1738 + $0x2c0] sm:%s1731]
                  %1785 = vst [vmem:[%s1739 + $0xb0] sm:%s1731] %v1784
                  %v1786 = vld [vmem:[%s1738 + $0x2e0] sm:%s1731]
                  %1787 = vst [vmem:[%s1739 + $0xb8] sm:%s1731] %v1786
                  %v1788 = vld [vmem:[%s1738 + $0x300] sm:%s1731]
                  %1789 = vst [vmem:[%s1739 + $0xc0] sm:%s1731] %v1788
                  %v1790 = vld [vmem:[%s1738 + $0x320] sm:%s1731]
                  %1791 = vst [vmem:[%s1739 + $0xc8] sm:%s1731] %v1790
                  %v1792 = vld [vmem:[%s1738 + $0x340] sm:%s1731]
                  %1793 = vst [vmem:[%s1739 + $0xd0] sm:%s1731] %v1792
                  %v1794 = vld [vmem:[%s1738 + $0x360] sm:%s1731]
                  %1795 = vst [vmem:[%s1739 + $0xd8] sm:%s1731] %v1794
                  %v1796 = vld [vmem:[%s1738 + $0x380] sm:%s1731]
                  %1797 = vst [vmem:[%s1739 + $0xe0] sm:%s1731] %v1796
                  %v1798 = vld [vmem:[%s1738 + $0x3a0] sm:%s1731]
                  %1799 = vst [vmem:[%s1739 + $0xe8] sm:%s1731] %v1798
                  %v1800 = vld [vmem:[%s1738 + $0x3c0] sm:%s1731]
                  %1801 = vst [vmem:[%s1739 + $0xf0] sm:%s1731] %v1800
                  %v1802 = vld [vmem:[%s1738 + $0x3e0] sm:%s1731]
                  %1803 = vst [vmem:[%s1739 + $0xf8] sm:%s1731] %v1802
                  %v1804 = vld [vmem:[%s1738 + $0x400] sm:%s1731]
                  %1805 = vst [vmem:[%s1739 + $0x100] sm:%s1731] %v1804
                  %v1806 = vld [vmem:[%s1738 + $0x420] sm:%s1731]
                  %1807 = vst [vmem:[%s1739 + $0x108] sm:%s1731] %v1806
                  %v1808 = vld [vmem:[%s1738 + $0x440] sm:%s1731]
                  %1809 = vst [vmem:[%s1739 + $0x110] sm:%s1731] %v1808
                  %v1810 = vld [vmem:[%s1738 + $0x460] sm:%s1731]
                  %1811 = vst [vmem:[%s1739 + $0x118] sm:%s1731] %v1810
                  %v1812 = vld [vmem:[%s1738 + $0x480] sm:%s1731]
                  %1813 = vst [vmem:[%s1739 + $0x120] sm:%s1731] %v1812
                  %v1814 = vld [vmem:[%s1738 + $0x4a0] sm:%s1731]
                  %1815 = vst [vmem:[%s1739 + $0x128] sm:%s1731] %v1814
                  %v1816 = vld [vmem:[%s1738 + $0x4c0] sm:%s1731]
                  %1817 = vst [vmem:[%s1739 + $0x130] sm:%s1731] %v1816
                  %v1818 = vld [vmem:[%s1738 + $0x4e0] sm:%s1731]
                  %1819 = vst [vmem:[%s1739 + $0x138] sm:%s1731] %v1818
                  %v1820 = vld [vmem:[%s1738 + $0x500] sm:%s1731]
                  %1821 = vst [vmem:[%s1739 + $0x140] sm:%s1731] %v1820
                  %v1822 = vld [vmem:[%s1738 + $0x520] sm:%s1731]
                  %1823 = vst [vmem:[%s1739 + $0x148] sm:%s1731] %v1822
                  %v1824 = vld [vmem:[%s1738 + $0x540] sm:%s1731]
                  %1825 = vst [vmem:[%s1739 + $0x150] sm:%s1731] %v1824
                  %v1826 = vld [vmem:[%s1738 + $0x560] sm:%s1731]
                  %1827 = vst [vmem:[%s1739 + $0x158] sm:%s1731] %v1826
                  %v1828 = vld [vmem:[%s1738 + $0x580] sm:%s1731]
                  %1829 = vst [vmem:[%s1739 + $0x160] sm:%s1731] %v1828
                  %v1830 = vld [vmem:[%s1738 + $0x5a0] sm:%s1731]
                  %1831 = vst [vmem:[%s1739 + $0x168] sm:%s1731] %v1830
                  %v1832 = vld [vmem:[%s1738 + $0x5c0] sm:%s1731]
                  %1833 = vst [vmem:[%s1739 + $0x170] sm:%s1731] %v1832
                  %v1834 = vld [vmem:[%s1738 + $0x5e0] sm:%s1731]
                  %1835 = vst [vmem:[%s1739 + $0x178] sm:%s1731] %v1834
                  %v1836 = vld [vmem:[%s1738 + $0x600] sm:%s1731]
                  %1837 = vst [vmem:[%s1739 + $0x180] sm:%s1731] %v1836
                  %v1838 = vld [vmem:[%s1738 + $0x620] sm:%s1731]
                  %1839 = vst [vmem:[%s1739 + $0x188] sm:%s1731] %v1838
                  %v1840 = vld [vmem:[%s1738 + $0x640] sm:%s1731]
                  %1841 = vst [vmem:[%s1739 + $0x190] sm:%s1731] %v1840
                  %v1842 = vld [vmem:[%s1738 + $0x660] sm:%s1731]
                  %1843 = vst [vmem:[%s1739 + $0x198] sm:%s1731] %v1842
                  %v1844 = vld [vmem:[%s1738 + $0x680] sm:%s1731]
                  %1845 = vst [vmem:[%s1739 + $0x1a0] sm:%s1731] %v1844
                  %v1846 = vld [vmem:[%s1738 + $0x6a0] sm:%s1731]
                  %1847 = vst [vmem:[%s1739 + $0x1a8] sm:%s1731] %v1846
                  %v1848 = vld [vmem:[%s1738 + $0x6c0] sm:%s1731]
                  %1849 = vst [vmem:[%s1739 + $0x1b0] sm:%s1731] %v1848
                  %v1850 = vld [vmem:[%s1738 + $0x6e0] sm:%s1731]
                  %1851 = vst [vmem:[%s1739 + $0x1b8] sm:%s1731] %v1850
                  %v1852 = vld [vmem:[%s1738 + $0x700] sm:%s1731]
                  %1853 = vst [vmem:[%s1739 + $0x1c0] sm:%s1731] %v1852
                  %v1854 = vld [vmem:[%s1738 + $0x720] sm:%s1731]
                  %1855 = vst [vmem:[%s1739 + $0x1c8] sm:%s1731] %v1854
                  %v1856 = vld [vmem:[%s1738 + $0x740] sm:%s1731]
                  %1857 = vst [vmem:[%s1739 + $0x1d0] sm:%s1731] %v1856
                  %v1858 = vld [vmem:[%s1738 + $0x760] sm:%s1731]
                  %1859 = vst [vmem:[%s1739 + $0x1d8] sm:%s1731] %v1858
                  %v1860 = vld [vmem:[%s1738 + $0x780] sm:%s1731]
                  %1861 = vst [vmem:[%s1739 + $0x1e0] sm:%s1731] %v1860
                  %v1862 = vld [vmem:[%s1738 + $0x7a0] sm:%s1731]
                  %1863 = vst [vmem:[%s1739 + $0x1e8] sm:%s1731] %v1862
                  %v1864 = vld [vmem:[%s1738 + $0x7c0] sm:%s1731]
                  %1865 = vst [vmem:[%s1739 + $0x1f0] sm:%s1731] %v1864
                  %v1866 = vld [vmem:[%s1738 + $0x7e0] sm:%s1731]
                  %1867 = vst [vmem:[%s1739 + $0x1f8] sm:%s1731] %v1866
                  %v1868 = vld [vmem:[%s1738 + $0x800] sm:%s1731]
                  %1869 = vst [vmem:[%s1739 + $0x200] sm:%s1731] %v1868
                  %v1870 = vld [vmem:[%s1738 + $0x820] sm:%s1731]
                  %1871 = vst [vmem:[%s1739 + $0x208] sm:%s1731] %v1870
                  %v1872 = vld [vmem:[%s1738 + $0x840] sm:%s1731]
                  %1873 = vst [vmem:[%s1739 + $0x210] sm:%s1731] %v1872
                  %v1874 = vld [vmem:[%s1738 + $0x860] sm:%s1731]
                  %1875 = vst [vmem:[%s1739 + $0x218] sm:%s1731] %v1874
                  %v1876 = vld [vmem:[%s1738 + $0x880] sm:%s1731]
                  %1877 = vst [vmem:[%s1739 + $0x220] sm:%s1731] %v1876
                  %v1878 = vld [vmem:[%s1738 + $0x8a0] sm:%s1731]
                  %1879 = vst [vmem:[%s1739 + $0x228] sm:%s1731] %v1878
                  %v1880 = vld [vmem:[%s1738 + $0x8c0] sm:%s1731]
                  %1881 = vst [vmem:[%s1739 + $0x230] sm:%s1731] %v1880
                  %v1882 = vld [vmem:[%s1738 + $0x8e0] sm:%s1731]
                  %1883 = vst [vmem:[%s1739 + $0x238] sm:%s1731] %v1882
                  %v1884 = vld [vmem:[%s1738 + $0x900] sm:%s1731]
                  %1885 = vst [vmem:[%s1739 + $0x240] sm:%s1731] %v1884
                  %v1886 = vld [vmem:[%s1738 + $0x920] sm:%s1731]
                  %1887 = vst [vmem:[%s1739 + $0x248] sm:%s1731] %v1886
                  %v1888 = vld [vmem:[%s1738 + $0x940] sm:%s1731]
                  %1889 = vst [vmem:[%s1739 + $0x250] sm:%s1731] %v1888
                  %v1890 = vld [vmem:[%s1738 + $0x960] sm:%s1731]
                  %1891 = vst [vmem:[%s1739 + $0x258] sm:%s1731] %v1890
                  %v1892 = vld [vmem:[%s1738 + $0x980] sm:%s1731]
                  %1893 = vst [vmem:[%s1739 + $0x260] sm:%s1731] %v1892
                  %v1894 = vld [vmem:[%s1738 + $0x9a0] sm:%s1731]
                  %1895 = vst [vmem:[%s1739 + $0x268] sm:%s1731] %v1894
                  %v1896 = vld [vmem:[%s1738 + $0x9c0] sm:%s1731]
                  %1897 = vst [vmem:[%s1739 + $0x270] sm:%s1731] %v1896
                  %v1898 = vld [vmem:[%s1738 + $0x9e0] sm:%s1731]
                  %1899 = vst [vmem:[%s1739 + $0x278] sm:%s1731] %v1898
                  %v1900 = vld [vmem:[%s1738 + $0xa00] sm:%s1731]
                  %1901 = vst [vmem:[%s1739 + $0x280] sm:%s1731] %v1900
                  %v1902 = vld [vmem:[%s1738 + $0xa20] sm:%s1731]
                  %1903 = vst [vmem:[%s1739 + $0x288] sm:%s1731] %v1902
                  %v1904 = vld [vmem:[%s1738 + $0xa40] sm:%s1731]
                  %1905 = vst [vmem:[%s1739 + $0x290] sm:%s1731] %v1904
                  %v1906 = vld [vmem:[%s1738 + $0xa60] sm:%s1731]
                  %1907 = vst [vmem:[%s1739 + $0x298] sm:%s1731] %v1906
                  %v1908 = vld [vmem:[%s1738 + $0xa80] sm:%s1731]
                  %1909 = vst [vmem:[%s1739 + $0x2a0] sm:%s1731] %v1908
                  %v1910 = vld [vmem:[%s1738 + $0xaa0] sm:%s1731]
                  %1911 = vst [vmem:[%s1739 + $0x2a8] sm:%s1731] %v1910
                  %v1912 = vld [vmem:[%s1738 + $0xac0] sm:%s1731]
                  %1913 = vst [vmem:[%s1739 + $0x2b0] sm:%s1731] %v1912
                  %v1914 = vld [vmem:[%s1738 + $0xae0] sm:%s1731]
                  %1915 = vst [vmem:[%s1739 + $0x2b8] sm:%s1731] %v1914
                  %v1916 = vld [vmem:[%s1738 + $0xb00] sm:%s1731]
                  %1917 = vst [vmem:[%s1739 + $0x2c0] sm:%s1731] %v1916
                  %v1918 = vld [vmem:[%s1738 + $0xb20] sm:%s1731]
                  %1919 = vst [vmem:[%s1739 + $0x2c8] sm:%s1731] %v1918
                  %v1920 = vld [vmem:[%s1738 + $0xb40] sm:%s1731]
                  %1921 = vst [vmem:[%s1739 + $0x2d0] sm:%s1731] %v1920
                  %v1922 = vld [vmem:[%s1738 + $0xb60] sm:%s1731]
                  %1923 = vst [vmem:[%s1739 + $0x2d8] sm:%s1731] %v1922
                  %v1924 = vld [vmem:[%s1738 + $0xb80] sm:%s1731]
                  %1925 = vst [vmem:[%s1739 + $0x2e0] sm:%s1731] %v1924
                  %v1926 = vld [vmem:[%s1738 + $0xba0] sm:%s1731]
                  %1927 = vst [vmem:[%s1739 + $0x2e8] sm:%s1731] %v1926
                  %v1928 = vld [vmem:[%s1738 + $0xbc0] sm:%s1731]
                  %1929 = vst [vmem:[%s1739 + $0x2f0] sm:%s1731] %v1928
                  %v1930 = vld [vmem:[%s1738 + $0xbe0] sm:%s1731]
                  %1931 = vst [vmem:[%s1739 + $0x2f8] sm:%s1731] %v1930
                  %v1932 = vld [vmem:[%s1738 + $0xc00] sm:%s1731]
                  %1933 = vst [vmem:[%s1739 + $0x300] sm:%s1731] %v1932
                  %v1934 = vld [vmem:[%s1738 + $0xc20] sm:%s1731]
                  %1935 = vst [vmem:[%s1739 + $0x308] sm:%s1731] %v1934
                  %v1936 = vld [vmem:[%s1738 + $0xc40] sm:%s1731]
                  %1937 = vst [vmem:[%s1739 + $0x310] sm:%s1731] %v1936
                  %v1938 = vld [vmem:[%s1738 + $0xc60] sm:%s1731]
                  %1939 = vst [vmem:[%s1739 + $0x318] sm:%s1731] %v1938
                  %v1940 = vld [vmem:[%s1738 + $0xc80] sm:%s1731]
                  %1941 = vst [vmem:[%s1739 + $0x320] sm:%s1731] %v1940
                  %v1942 = vld [vmem:[%s1738 + $0xca0] sm:%s1731]
                  %1943 = vst [vmem:[%s1739 + $0x328] sm:%s1731] %v1942
                  %v1944 = vld [vmem:[%s1738 + $0xcc0] sm:%s1731]
                  %1945 = vst [vmem:[%s1739 + $0x330] sm:%s1731] %v1944
                  %v1946 = vld [vmem:[%s1738 + $0xce0] sm:%s1731]
                  %1947 = vst [vmem:[%s1739 + $0x338] sm:%s1731] %v1946
                  %v1948 = vld [vmem:[%s1738 + $0xd00] sm:%s1731]
                  %1949 = vst [vmem:[%s1739 + $0x340] sm:%s1731] %v1948
                  %v1950 = vld [vmem:[%s1738 + $0xd20] sm:%s1731]
                  %1951 = vst [vmem:[%s1739 + $0x348] sm:%s1731] %v1950
                  %v1952 = vld [vmem:[%s1738 + $0xd40] sm:%s1731]
                  %1953 = vst [vmem:[%s1739 + $0x350] sm:%s1731] %v1952
                  %v1954 = vld [vmem:[%s1738 + $0xd60] sm:%s1731]
                  %1955 = vst [vmem:[%s1739 + $0x358] sm:%s1731] %v1954
                  %v1956 = vld [vmem:[%s1738 + $0xd80] sm:%s1731]
                  %1957 = vst [vmem:[%s1739 + $0x360] sm:%s1731] %v1956
                  %v1958 = vld [vmem:[%s1738 + $0xda0] sm:%s1731]
                  %1959 = vst [vmem:[%s1739 + $0x368] sm:%s1731] %v1958
                  %v1960 = vld [vmem:[%s1738 + $0xdc0] sm:%s1731]
                  %1961 = vst [vmem:[%s1739 + $0x370] sm:%s1731] %v1960
                  %v1962 = vld [vmem:[%s1738 + $0xde0] sm:%s1731]
                  %1963 = vst [vmem:[%s1739 + $0x378] sm:%s1731] %v1962
                  %v1964 = vld [vmem:[%s1738 + $0xe00] sm:%s1731]
                  %1965 = vst [vmem:[%s1739 + $0x380] sm:%s1731] %v1964
                  %v1966 = vld [vmem:[%s1738 + $0xe20] sm:%s1731]
                  %1967 = vst [vmem:[%s1739 + $0x388] sm:%s1731] %v1966
                  %v1968 = vld [vmem:[%s1738 + $0xe40] sm:%s1731]
                  %1969 = vst [vmem:[%s1739 + $0x390] sm:%s1731] %v1968
                  %v1970 = vld [vmem:[%s1738 + $0xe60] sm:%s1731]
                  %1971 = vst [vmem:[%s1739 + $0x398] sm:%s1731] %v1970
                  %v1972 = vld [vmem:[%s1738 + $0xe80] sm:%s1731]
                  %1973 = vst [vmem:[%s1739 + $0x3a0] sm:%s1731] %v1972
                  %v1974 = vld [vmem:[%s1738 + $0xea0] sm:%s1731]
                  %1975 = vst [vmem:[%s1739 + $0x3a8] sm:%s1731] %v1974
                  %v1976 = vld [vmem:[%s1738 + $0xec0] sm:%s1731]
                  %1977 = vst [vmem:[%s1739 + $0x3b0] sm:%s1731] %v1976
                  %v1978 = vld [vmem:[%s1738 + $0xee0] sm:%s1731]
                  %1979 = vst [vmem:[%s1739 + $0x3b8] sm:%s1731] %v1978
                  %v1980 = vld [vmem:[%s1738 + $0xf00] sm:%s1731]
                  %1981 = vst [vmem:[%s1739 + $0x3c0] sm:%s1731] %v1980
                  %v1982 = vld [vmem:[%s1738 + $0xf20] sm:%s1731]
                  %1983 = vst [vmem:[%s1739 + $0x3c8] sm:%s1731] %v1982
                  %v1984 = vld [vmem:[%s1738 + $0xf40] sm:%s1731]
                  %1985 = vst [vmem:[%s1739 + $0x3d0] sm:%s1731] %v1984
                  %v1986 = vld [vmem:[%s1738 + $0xf60] sm:%s1731]
                  %1987 = vst [vmem:[%s1739 + $0x3d8] sm:%s1731] %v1986
                  %v1988 = vld [vmem:[%s1738 + $0xf80] sm:%s1731]
                  %1989 = vst [vmem:[%s1739 + $0x3e0] sm:%s1731] %v1988
                  %v1990 = vld [vmem:[%s1738 + $0xfa0] sm:%s1731]
                  %1991 = vst [vmem:[%s1739 + $0x3e8] sm:%s1731] %v1990
                  %v1992 = vld [vmem:[%s1738 + $0xfc0] sm:%s1731]
                  %1993 = vst [vmem:[%s1739 + $0x3f0] sm:%s1731] %v1992
                  %v1994 = vld [vmem:[%s1738 + $0xfe0] sm:%s1731]
                  %1995 = vst [vmem:[%s1739 + $0x3f8] sm:%s1731] %v1994
                  %v1996 = vld [vmem:[%s1738 + $0x1000] sm:%s1731]
                  %1997 = vst [vmem:[%s1739 + $0x400] sm:%s1731] %v1996
                  %v1998 = vld [vmem:[%s1738 + $0x1020] sm:%s1731]
                  %1999 = vst [vmem:[%s1739 + $0x408] sm:%s1731] %v1998
                  %v2000 = vld [vmem:[%s1738 + $0x1040] sm:%s1731]
                  %2001 = vst [vmem:[%s1739 + $0x410] sm:%s1731] %v2000
                  %v2002 = vld [vmem:[%s1738 + $0x1060] sm:%s1731]
                  %2003 = vst [vmem:[%s1739 + $0x418] sm:%s1731] %v2002
                  %v2004 = vld [vmem:[%s1738 + $0x1080] sm:%s1731]
                  %2005 = vst [vmem:[%s1739 + $0x420] sm:%s1731] %v2004
                  %v2006 = vld [vmem:[%s1738 + $0x10a0] sm:%s1731]
                  %2007 = vst [vmem:[%s1739 + $0x428] sm:%s1731] %v2006
                  %v2008 = vld [vmem:[%s1738 + $0x10c0] sm:%s1731]
                  %2009 = vst [vmem:[%s1739 + $0x430] sm:%s1731] %v2008
                  %v2010 = vld [vmem:[%s1738 + $0x10e0] sm:%s1731]
                  %2011 = vst [vmem:[%s1739 + $0x438] sm:%s1731] %v2010
                  %v2012 = vld [vmem:[%s1738 + $0x1100] sm:%s1731]
                  %2013 = vst [vmem:[%s1739 + $0x440] sm:%s1731] %v2012
                  %v2014 = vld [vmem:[%s1738 + $0x1120] sm:%s1731]
                  %2015 = vst [vmem:[%s1739 + $0x448] sm:%s1731] %v2014
                  %v2016 = vld [vmem:[%s1738 + $0x1140] sm:%s1731]
                  %2017 = vst [vmem:[%s1739 + $0x450] sm:%s1731] %v2016
                  %v2018 = vld [vmem:[%s1738 + $0x1160] sm:%s1731]
                  %2019 = vst [vmem:[%s1739 + $0x458] sm:%s1731] %v2018
                  %v2020 = vld [vmem:[%s1738 + $0x1180] sm:%s1731]
                  %2021 = vst [vmem:[%s1739 + $0x460] sm:%s1731] %v2020
                  %v2022 = vld [vmem:[%s1738 + $0x11a0] sm:%s1731]
                  %2023 = vst [vmem:[%s1739 + $0x468] sm:%s1731] %v2022
                  %v2024 = vld [vmem:[%s1738 + $0x11c0] sm:%s1731]
                  %2025 = vst [vmem:[%s1739 + $0x470] sm:%s1731] %v2024
                  %v2026 = vld [vmem:[%s1738 + $0x11e0] sm:%s1731]
                  %2027 = vst [vmem:[%s1739 + $0x478] sm:%s1731] %v2026
                  %v2028 = vld [vmem:[%s1738 + $0x1200] sm:%s1731]
                  %2029 = vst [vmem:[%s1739 + $0x480] sm:%s1731] %v2028
                  %v2030 = vld [vmem:[%s1738 + $0x1220] sm:%s1731]
                  %2031 = vst [vmem:[%s1739 + $0x488] sm:%s1731] %v2030
                  %v2032 = vld [vmem:[%s1738 + $0x1240] sm:%s1731]
                  %2033 = vst [vmem:[%s1739 + $0x490] sm:%s1731] %v2032
                  %v2034 = vld [vmem:[%s1738 + $0x1260] sm:%s1731]
                  %2035 = vst [vmem:[%s1739 + $0x498] sm:%s1731] %v2034
                  %v2036 = vld [vmem:[%s1738 + $0x1280] sm:%s1731]
                  %2037 = vst [vmem:[%s1739 + $0x4a0] sm:%s1731] %v2036
                  %v2038 = vld [vmem:[%s1738 + $0x12a0] sm:%s1731]
                  %2039 = vst [vmem:[%s1739 + $0x4a8] sm:%s1731] %v2038
                  %v2040 = vld [vmem:[%s1738 + $0x12c0] sm:%s1731]
                  %2041 = vst [vmem:[%s1739 + $0x4b0] sm:%s1731] %v2040
                  %v2042 = vld [vmem:[%s1738 + $0x12e0] sm:%s1731]
                  %2043 = vst [vmem:[%s1739 + $0x4b8] sm:%s1731] %v2042
                  %v2044 = vld [vmem:[%s1738 + $0x1300] sm:%s1731]
                  %2045 = vst [vmem:[%s1739 + $0x4c0] sm:%s1731] %v2044
                  %v2046 = vld [vmem:[%s1738 + $0x1320] sm:%s1731]
                  %2047 = vst [vmem:[%s1739 + $0x4c8] sm:%s1731] %v2046
                  %v2048 = vld [vmem:[%s1738 + $0x1340] sm:%s1731]
                  %2049 = vst [vmem:[%s1739 + $0x4d0] sm:%s1731] %v2048
                  %v2050 = vld [vmem:[%s1738 + $0x1360] sm:%s1731]
                  %2051 = vst [vmem:[%s1739 + $0x4d8] sm:%s1731] %v2050
                  %v2052 = vld [vmem:[%s1738 + $0x1380] sm:%s1731]
                  %2053 = vst [vmem:[%s1739 + $0x4e0] sm:%s1731] %v2052
                  %v2054 = vld [vmem:[%s1738 + $0x13a0] sm:%s1731]
                  %2055 = vst [vmem:[%s1739 + $0x4e8] sm:%s1731] %v2054
                  %v2056 = vld [vmem:[%s1738 + $0x13c0] sm:%s1731]
                  %2057 = vst [vmem:[%s1739 + $0x4f0] sm:%s1731] %v2056
                  %v2058 = vld [vmem:[%s1738 + $0x13e0] sm:%s1731]
                  %2059 = vst [vmem:[%s1739 + $0x4f8] sm:%s1731] %v2058
                  %v2060 = vld [vmem:[%s1738 + $0x1400] sm:%s1731]
                  %2061 = vst [vmem:[%s1739 + $0x500] sm:%s1731] %v2060
                  %v2062 = vld [vmem:[%s1738 + $0x1420] sm:%s1731]
                  %2063 = vst [vmem:[%s1739 + $0x508] sm:%s1731] %v2062
                  %v2064 = vld [vmem:[%s1738 + $0x1440] sm:%s1731]
                  %2065 = vst [vmem:[%s1739 + $0x510] sm:%s1731] %v2064
                  %v2066 = vld [vmem:[%s1738 + $0x1460] sm:%s1731]
                  %2067 = vst [vmem:[%s1739 + $0x518] sm:%s1731] %v2066
                  %v2068 = vld [vmem:[%s1738 + $0x1480] sm:%s1731]
                  %2069 = vst [vmem:[%s1739 + $0x520] sm:%s1731] %v2068
                  %v2070 = vld [vmem:[%s1738 + $0x14a0] sm:%s1731]
                  %2071 = vst [vmem:[%s1739 + $0x528] sm:%s1731] %v2070
                  %v2072 = vld [vmem:[%s1738 + $0x14c0] sm:%s1731]
                  %2073 = vst [vmem:[%s1739 + $0x530] sm:%s1731] %v2072
                  %v2074 = vld [vmem:[%s1738 + $0x14e0] sm:%s1731]
                  %2075 = vst [vmem:[%s1739 + $0x538] sm:%s1731] %v2074
                  %v2076 = vld [vmem:[%s1738 + $0x1500] sm:%s1731]
                  %2077 = vst [vmem:[%s1739 + $0x540] sm:%s1731] %v2076
                  %v2078 = vld [vmem:[%s1738 + $0x1520] sm:%s1731]
                  %2079 = vst [vmem:[%s1739 + $0x548] sm:%s1731] %v2078
                  %v2080 = vld [vmem:[%s1738 + $0x1540] sm:%s1731]
                  %2081 = vst [vmem:[%s1739 + $0x550] sm:%s1731] %v2080
                  %v2082 = vld [vmem:[%s1738 + $0x1560] sm:%s1731]
                  %2083 = vst [vmem:[%s1739 + $0x558] sm:%s1731] %v2082
                  %v2084 = vld [vmem:[%s1738 + $0x1580] sm:%s1731]
                  %2085 = vst [vmem:[%s1739 + $0x560] sm:%s1731] %v2084
                  %v2086 = vld [vmem:[%s1738 + $0x15a0] sm:%s1731]
                  %2087 = vst [vmem:[%s1739 + $0x568] sm:%s1731] %v2086
                  %v2088 = vld [vmem:[%s1738 + $0x15c0] sm:%s1731]
                  %2089 = vst [vmem:[%s1739 + $0x570] sm:%s1731] %v2088
                  %v2090 = vld [vmem:[%s1738 + $0x15e0] sm:%s1731]
                  %2091 = vst [vmem:[%s1739 + $0x578] sm:%s1731] %v2090
                  %v2092 = vld [vmem:[%s1738 + $0x1600] sm:%s1731]
                  %2093 = vst [vmem:[%s1739 + $0x580] sm:%s1731] %v2092
                  %v2094 = vld [vmem:[%s1738 + $0x1620] sm:%s1731]
                  %2095 = vst [vmem:[%s1739 + $0x588] sm:%s1731] %v2094
                  %v2096 = vld [vmem:[%s1738 + $0x1640] sm:%s1731]
                  %2097 = vst [vmem:[%s1739 + $0x590] sm:%s1731] %v2096
                  %v2098 = vld [vmem:[%s1738 + $0x1660] sm:%s1731]
                  %2099 = vst [vmem:[%s1739 + $0x598] sm:%s1731] %v2098
                  %v2100 = vld [vmem:[%s1738 + $0x1680] sm:%s1731]
                  %2101 = vst [vmem:[%s1739 + $0x5a0] sm:%s1731] %v2100
                  %v2102 = vld [vmem:[%s1738 + $0x16a0] sm:%s1731]
                  %2103 = vst [vmem:[%s1739 + $0x5a8] sm:%s1731] %v2102
                  %v2104 = vld [vmem:[%s1738 + $0x16c0] sm:%s1731]
                  %2105 = vst [vmem:[%s1739 + $0x5b0] sm:%s1731] %v2104
                  %v2106 = vld [vmem:[%s1738 + $0x16e0] sm:%s1731]
                  %2107 = vst [vmem:[%s1739 + $0x5b8] sm:%s1731] %v2106
                  %v2108 = vld [vmem:[%s1738 + $0x1700] sm:%s1731]
                  %2109 = vst [vmem:[%s1739 + $0x5c0] sm:%s1731] %v2108
                  %v2110 = vld [vmem:[%s1738 + $0x1720] sm:%s1731]
                  %2111 = vst [vmem:[%s1739 + $0x5c8] sm:%s1731] %v2110
                  %v2112 = vld [vmem:[%s1738 + $0x1740] sm:%s1731]
                  %2113 = vst [vmem:[%s1739 + $0x5d0] sm:%s1731] %v2112
                  %v2114 = vld [vmem:[%s1738 + $0x1760] sm:%s1731]
                  %2115 = vst [vmem:[%s1739 + $0x5d8] sm:%s1731] %v2114
                  %v2116 = vld [vmem:[%s1738 + $0x1780] sm:%s1731]
                  %2117 = vst [vmem:[%s1739 + $0x5e0] sm:%s1731] %v2116
                  %v2118 = vld [vmem:[%s1738 + $0x17a0] sm:%s1731]
                  %2119 = vst [vmem:[%s1739 + $0x5e8] sm:%s1731] %v2118
                  %v2120 = vld [vmem:[%s1738 + $0x17c0] sm:%s1731]
                  %2121 = vst [vmem:[%s1739 + $0x5f0] sm:%s1731] %v2120
                  %v2122 = vld [vmem:[%s1738 + $0x17e0] sm:%s1731]
                  %2123 = vst [vmem:[%s1739 + $0x5f8] sm:%s1731] %v2122
                  %v2124 = vld [vmem:[%s1738 + $0x1800] sm:%s1731]
                  %2125 = vst [vmem:[%s1739 + $0x600] sm:%s1731] %v2124
                  %v2126 = vld [vmem:[%s1738 + $0x1820] sm:%s1731]
                  %2127 = vst [vmem:[%s1739 + $0x608] sm:%s1731] %v2126
                  %v2128 = vld [vmem:[%s1738 + $0x1840] sm:%s1731]
                  %2129 = vst [vmem:[%s1739 + $0x610] sm:%s1731] %v2128
                  %v2130 = vld [vmem:[%s1738 + $0x1860] sm:%s1731]
                  %2131 = vst [vmem:[%s1739 + $0x618] sm:%s1731] %v2130
                  %v2132 = vld [vmem:[%s1738 + $0x1880] sm:%s1731]
                  %2133 = vst [vmem:[%s1739 + $0x620] sm:%s1731] %v2132
                  %v2134 = vld [vmem:[%s1738 + $0x18a0] sm:%s1731]
                  %2135 = vst [vmem:[%s1739 + $0x628] sm:%s1731] %v2134
                  %v2136 = vld [vmem:[%s1738 + $0x18c0] sm:%s1731]
                  %2137 = vst [vmem:[%s1739 + $0x630] sm:%s1731] %v2136
                  %v2138 = vld [vmem:[%s1738 + $0x18e0] sm:%s1731]
                  %2139 = vst [vmem:[%s1739 + $0x638] sm:%s1731] %v2138
                  %v2140 = vld [vmem:[%s1738 + $0x1900] sm:%s1731]
                  %2141 = vst [vmem:[%s1739 + $0x640] sm:%s1731] %v2140
                  %v2142 = vld [vmem:[%s1738 + $0x1920] sm:%s1731]
                  %2143 = vst [vmem:[%s1739 + $0x648] sm:%s1731] %v2142
                  %v2144 = vld [vmem:[%s1738 + $0x1940] sm:%s1731]
                  %2145 = vst [vmem:[%s1739 + $0x650] sm:%s1731] %v2144
                  %v2146 = vld [vmem:[%s1738 + $0x1960] sm:%s1731]
                  %2147 = vst [vmem:[%s1739 + $0x658] sm:%s1731] %v2146
                  %v2148 = vld [vmem:[%s1738 + $0x1980] sm:%s1731]
                  %2149 = vst [vmem:[%s1739 + $0x660] sm:%s1731] %v2148
                  %v2150 = vld [vmem:[%s1738 + $0x19a0] sm:%s1731]
                  %2151 = vst [vmem:[%s1739 + $0x668] sm:%s1731] %v2150
                  %v2152 = vld [vmem:[%s1738 + $0x19c0] sm:%s1731]
                  %2153 = vst [vmem:[%s1739 + $0x670] sm:%s1731] %v2152
                  %v2154 = vld [vmem:[%s1738 + $0x19e0] sm:%s1731]
                  %2155 = vst [vmem:[%s1739 + $0x678] sm:%s1731] %v2154
                  %v2156 = vld [vmem:[%s1738 + $0x1a00] sm:%s1731]
                  %2157 = vst [vmem:[%s1739 + $0x680] sm:%s1731] %v2156
                  %v2158 = vld [vmem:[%s1738 + $0x1a20] sm:%s1731]
                  %2159 = vst [vmem:[%s1739 + $0x688] sm:%s1731] %v2158
                  %v2160 = vld [vmem:[%s1738 + $0x1a40] sm:%s1731]
                  %2161 = vst [vmem:[%s1739 + $0x690] sm:%s1731] %v2160
                  %v2162 = vld [vmem:[%s1738 + $0x1a60] sm:%s1731]
                  %2163 = vst [vmem:[%s1739 + $0x698] sm:%s1731] %v2162
                  %v2164 = vld [vmem:[%s1738 + $0x1a80] sm:%s1731]
                  %2165 = vst [vmem:[%s1739 + $0x6a0] sm:%s1731] %v2164
                  %v2166 = vld [vmem:[%s1738 + $0x1aa0] sm:%s1731]
                  %2167 = vst [vmem:[%s1739 + $0x6a8] sm:%s1731] %v2166
                  %v2168 = vld [vmem:[%s1738 + $0x1ac0] sm:%s1731]
                  %2169 = vst [vmem:[%s1739 + $0x6b0] sm:%s1731] %v2168
                  %v2170 = vld [vmem:[%s1738 + $0x1ae0] sm:%s1731]
                  %2171 = vst [vmem:[%s1739 + $0x6b8] sm:%s1731] %v2170
                  %v2172 = vld [vmem:[%s1738 + $0x1b00] sm:%s1731]
                  %2173 = vst [vmem:[%s1739 + $0x6c0] sm:%s1731] %v2172
                  %v2174 = vld [vmem:[%s1738 + $0x1b20] sm:%s1731]
                  %2175 = vst [vmem:[%s1739 + $0x6c8] sm:%s1731] %v2174
                  %v2176 = vld [vmem:[%s1738 + $0x1b40] sm:%s1731]
                  %2177 = vst [vmem:[%s1739 + $0x6d0] sm:%s1731] %v2176
                  %v2178 = vld [vmem:[%s1738 + $0x1b60] sm:%s1731]
                  %2179 = vst [vmem:[%s1739 + $0x6d8] sm:%s1731] %v2178
                  %v2180 = vld [vmem:[%s1738 + $0x1b80] sm:%s1731]
                  %2181 = vst [vmem:[%s1739 + $0x6e0] sm:%s1731] %v2180
                  %v2182 = vld [vmem:[%s1738 + $0x1ba0] sm:%s1731]
                  %2183 = vst [vmem:[%s1739 + $0x6e8] sm:%s1731] %v2182
                  %v2184 = vld [vmem:[%s1738 + $0x1bc0] sm:%s1731]
                  %2185 = vst [vmem:[%s1739 + $0x6f0] sm:%s1731] %v2184
                  %v2186 = vld [vmem:[%s1738 + $0x1be0] sm:%s1731]
                  %2187 = vst [vmem:[%s1739 + $0x6f8] sm:%s1731] %v2186
                  %v2188 = vld [vmem:[%s1738 + $0x1c00] sm:%s1731]
                  %2189 = vst [vmem:[%s1739 + $0x700] sm:%s1731] %v2188
                  %v2190 = vld [vmem:[%s1738 + $0x1c20] sm:%s1731]
                  %2191 = vst [vmem:[%s1739 + $0x708] sm:%s1731] %v2190
                  %v2192 = vld [vmem:[%s1738 + $0x1c40] sm:%s1731]
                  %2193 = vst [vmem:[%s1739 + $0x710] sm:%s1731] %v2192
                  %v2194 = vld [vmem:[%s1738 + $0x1c60] sm:%s1731]
                  %2195 = vst [vmem:[%s1739 + $0x718] sm:%s1731] %v2194
                  %v2196 = vld [vmem:[%s1738 + $0x1c80] sm:%s1731]
                  %2197 = vst [vmem:[%s1739 + $0x720] sm:%s1731] %v2196
                  %v2198 = vld [vmem:[%s1738 + $0x1ca0] sm:%s1731]
                  %2199 = vst [vmem:[%s1739 + $0x728] sm:%s1731] %v2198
                  %v2200 = vld [vmem:[%s1738 + $0x1cc0] sm:%s1731]
                  %2201 = vst [vmem:[%s1739 + $0x730] sm:%s1731] %v2200
                  %v2202 = vld [vmem:[%s1738 + $0x1ce0] sm:%s1731]
                  %2203 = vst [vmem:[%s1739 + $0x738] sm:%s1731] %v2202
                  %v2204 = vld [vmem:[%s1738 + $0x1d00] sm:%s1731]
                  %2205 = vst [vmem:[%s1739 + $0x740] sm:%s1731] %v2204
                  %v2206 = vld [vmem:[%s1738 + $0x1d20] sm:%s1731]
                  %2207 = vst [vmem:[%s1739 + $0x748] sm:%s1731] %v2206
                  %v2208 = vld [vmem:[%s1738 + $0x1d40] sm:%s1731]
                  %2209 = vst [vmem:[%s1739 + $0x750] sm:%s1731] %v2208
                  %v2210 = vld [vmem:[%s1738 + $0x1d60] sm:%s1731]
                  %2211 = vst [vmem:[%s1739 + $0x758] sm:%s1731] %v2210
                  %v2212 = vld [vmem:[%s1738 + $0x1d80] sm:%s1731]
                  %2213 = vst [vmem:[%s1739 + $0x760] sm:%s1731] %v2212
                  %v2214 = vld [vmem:[%s1738 + $0x1da0] sm:%s1731]
                  %2215 = vst [vmem:[%s1739 + $0x768] sm:%s1731] %v2214
                  %v2216 = vld [vmem:[%s1738 + $0x1dc0] sm:%s1731]
                  %2217 = vst [vmem:[%s1739 + $0x770] sm:%s1731] %v2216
                  %v2218 = vld [vmem:[%s1738 + $0x1de0] sm:%s1731]
                  %2219 = vst [vmem:[%s1739 + $0x778] sm:%s1731] %v2218
                  %v2220 = vld [vmem:[%s1738 + $0x1e00] sm:%s1731]
                  %2221 = vst [vmem:[%s1739 + $0x780] sm:%s1731] %v2220
                  %v2222 = vld [vmem:[%s1738 + $0x1e20] sm:%s1731]
                  %2223 = vst [vmem:[%s1739 + $0x788] sm:%s1731] %v2222
                  %v2224 = vld [vmem:[%s1738 + $0x1e40] sm:%s1731]
                  %2225 = vst [vmem:[%s1739 + $0x790] sm:%s1731] %v2224
                  %v2226 = vld [vmem:[%s1738 + $0x1e60] sm:%s1731]
                  %2227 = vst [vmem:[%s1739 + $0x798] sm:%s1731] %v2226
                  %v2228 = vld [vmem:[%s1738 + $0x1e80] sm:%s1731]
                  %2229 = vst [vmem:[%s1739 + $0x7a0] sm:%s1731] %v2228
                  %v2230 = vld [vmem:[%s1738 + $0x1ea0] sm:%s1731]
                  %2231 = vst [vmem:[%s1739 + $0x7a8] sm:%s1731] %v2230
                  %v2232 = vld [vmem:[%s1738 + $0x1ec0] sm:%s1731]
                  %2233 = vst [vmem:[%s1739 + $0x7b0] sm:%s1731] %v2232
                  %v2234 = vld [vmem:[%s1738 + $0x1ee0] sm:%s1731]
                  %2235 = vst [vmem:[%s1739 + $0x7b8] sm:%s1731] %v2234
                  %v2236 = vld [vmem:[%s1738 + $0x1f00] sm:%s1731]
                  %2237 = vst [vmem:[%s1739 + $0x7c0] sm:%s1731] %v2236
                  %v2238 = vld [vmem:[%s1738 + $0x1f20] sm:%s1731]
                  %2239 = vst [vmem:[%s1739 + $0x7c8] sm:%s1731] %v2238
                  %v2240 = vld [vmem:[%s1738 + $0x1f40] sm:%s1731]
                  %2241 = vst [vmem:[%s1739 + $0x7d0] sm:%s1731] %v2240
                  %v2242 = vld [vmem:[%s1738 + $0x1f60] sm:%s1731]
                  %2243 = vst [vmem:[%s1739 + $0x7d8] sm:%s1731] %v2242
                  %v2244 = vld [vmem:[%s1738 + $0x1f80] sm:%s1731]
                  %2245 = vst [vmem:[%s1739 + $0x7e0] sm:%s1731] %v2244
                  %v2246 = vld [vmem:[%s1738 + $0x1fa0] sm:%s1731]
                  %2247 = vst [vmem:[%s1739 + $0x7e8] sm:%s1731] %v2246
                  %v2248 = vld [vmem:[%s1738 + $0x1fc0] sm:%s1731]
                  %2249 = vst [vmem:[%s1739 + $0x7f0] sm:%s1731] %v2248
                  %v2250 = vld [vmem:[%s1738 + $0x1fe0] sm:%s1731]
                  %2251 = vst [vmem:[%s1739 + $0x7f8] sm:%s1731] %v2250
                $region70: #{mynet_forward.8} parent=57 // loop_footer
                  %s1737 = sadd.s32 1, %s1733
                $region71: #{mynet_forward.8} parent=57 // loop_footer_branch
                  %1732 = sbr.rel target = $region67
                $region72: #{mynet_forward.8} parent=57 // loop_exit
                  _
              $region58: #{mynet_forward.8} parent=31 // pred_fallthru
                _
            $region32: #{mynet_forward.8} parent=27 // pred_fallthru
              _
            // Predicated region
            $region33: #{mynet_forward.8} parent=27 // pred_check
              _
            $region34: #{mynet_forward.8} parent=27 // pred_check_branch
              %145 = sbr.rel target = $region36
            $region35: #{mynet_forward.8} parent=27 // pred_region
              %s147 = ssub.s32 256, 1
              loop: start=0, step=1, limit=1
              $region37: #{mynet_forward.8} parent=35 // loop_pre_header
                _
              $region38: #{mynet_forward.8} parent=35 // loop_header
                %s149 = sphi 0, %s153
                %p150 = scmp.ge.s32.totalorder %s149, 1
                %s154 = sphi %s139, %s139
                %s155 = sphi %s136, %s136
              $region39: #{mynet_forward.8} parent=35 // loop_header_branch
                %152 = sbr.rel (%p150) target = $region43
              $region40: #{mynet_forward.8} parent=35 // loop_body
                %v156 = vld [vmem:[%s154] sm:%s147]
                %157 = vst [vmem:[%s155] sm:%s147] %v156
                %v158 = vld [vmem:[%s154 + $0x20] sm:%s147]
                %159 = vst [vmem:[%s155 + $0x8] sm:%s147] %v158
                %v160 = vld [vmem:[%s154 + $0x40] sm:%s147]
                %161 = vst [vmem:[%s155 + $0x10] sm:%s147] %v160
                %v162 = vld [vmem:[%s154 + $0x60] sm:%s147]
                %163 = vst [vmem:[%s155 + $0x18] sm:%s147] %v162
                %v164 = vld [vmem:[%s154 + $0x80] sm:%s147]
                %165 = vst [vmem:[%s155 + $0x20] sm:%s147] %v164
                %v166 = vld [vmem:[%s154 + $0xa0] sm:%s147]
                %167 = vst [vmem:[%s155 + $0x28] sm:%s147] %v166
                %v168 = vld [vmem:[%s154 + $0xc0] sm:%s147]
                %169 = vst [vmem:[%s155 + $0x30] sm:%s147] %v168
                %v170 = vld [vmem:[%s154 + $0xe0] sm:%s147]
                %171 = vst [vmem:[%s155 + $0x38] sm:%s147] %v170
                %v172 = vld [vmem:[%s154 + $0x100] sm:%s147]
                %173 = vst [vmem:[%s155 + $0x40] sm:%s147] %v172
                %v174 = vld [vmem:[%s154 + $0x120] sm:%s147]
                %175 = vst [vmem:[%s155 + $0x48] sm:%s147] %v174
                %v176 = vld [vmem:[%s154 + $0x140] sm:%s147]
                %177 = vst [vmem:[%s155 + $0x50] sm:%s147] %v176
                %v178 = vld [vmem:[%s154 + $0x160] sm:%s147]
                %179 = vst [vmem:[%s155 + $0x58] sm:%s147] %v178
                %v180 = vld [vmem:[%s154 + $0x180] sm:%s147]
                %181 = vst [vmem:[%s155 + $0x60] sm:%s147] %v180
                %v182 = vld [vmem:[%s154 + $0x1a0] sm:%s147]
                %183 = vst [vmem:[%s155 + $0x68] sm:%s147] %v182
                %v184 = vld [vmem:[%s154 + $0x1c0] sm:%s147]
                %185 = vst [vmem:[%s155 + $0x70] sm:%s147] %v184
                %v186 = vld [vmem:[%s154 + $0x1e0] sm:%s147]
                %187 = vst [vmem:[%s155 + $0x78] sm:%s147] %v186
                %v188 = vld [vmem:[%s154 + $0x200] sm:%s147]
                %189 = vst [vmem:[%s155 + $0x80] sm:%s147] %v188
                %v190 = vld [vmem:[%s154 + $0x220] sm:%s147]
                %191 = vst [vmem:[%s155 + $0x88] sm:%s147] %v190
                %v192 = vld [vmem:[%s154 + $0x240] sm:%s147]
                %193 = vst [vmem:[%s155 + $0x90] sm:%s147] %v192
                %v194 = vld [vmem:[%s154 + $0x260] sm:%s147]
                %195 = vst [vmem:[%s155 + $0x98] sm:%s147] %v194
                %v196 = vld [vmem:[%s154 + $0x280] sm:%s147]
                %197 = vst [vmem:[%s155 + $0xa0] sm:%s147] %v196
                %v198 = vld [vmem:[%s154 + $0x2a0] sm:%s147]
                %199 = vst [vmem:[%s155 + $0xa8] sm:%s147] %v198
                %v200 = vld [vmem:[%s154 + $0x2c0] sm:%s147]
                %201 = vst [vmem:[%s155 + $0xb0] sm:%s147] %v200
                %v202 = vld [vmem:[%s154 + $0x2e0] sm:%s147]
                %203 = vst [vmem:[%s155 + $0xb8] sm:%s147] %v202
                %v204 = vld [vmem:[%s154 + $0x300] sm:%s147]
                %205 = vst [vmem:[%s155 + $0xc0] sm:%s147] %v204
                %v206 = vld [vmem:[%s154 + $0x320] sm:%s147]
                %207 = vst [vmem:[%s155 + $0xc8] sm:%s147] %v206
                %v208 = vld [vmem:[%s154 + $0x340] sm:%s147]
                %209 = vst [vmem:[%s155 + $0xd0] sm:%s147] %v208
                %v210 = vld [vmem:[%s154 + $0x360] sm:%s147]
                %211 = vst [vmem:[%s155 + $0xd8] sm:%s147] %v210
                %v212 = vld [vmem:[%s154 + $0x380] sm:%s147]
                %213 = vst [vmem:[%s155 + $0xe0] sm:%s147] %v212
                %v214 = vld [vmem:[%s154 + $0x3a0] sm:%s147]
                %215 = vst [vmem:[%s155 + $0xe8] sm:%s147] %v214
                %v216 = vld [vmem:[%s154 + $0x3c0] sm:%s147]
                %217 = vst [vmem:[%s155 + $0xf0] sm:%s147] %v216
                %v218 = vld [vmem:[%s154 + $0x3e0] sm:%s147]
                %219 = vst [vmem:[%s155 + $0xf8] sm:%s147] %v218
                %v220 = vld [vmem:[%s154 + $0x400] sm:%s147]
                %221 = vst [vmem:[%s155 + $0x100] sm:%s147] %v220
                %v222 = vld [vmem:[%s154 + $0x420] sm:%s147]
                %223 = vst [vmem:[%s155 + $0x108] sm:%s147] %v222
                %v224 = vld [vmem:[%s154 + $0x440] sm:%s147]
                %225 = vst [vmem:[%s155 + $0x110] sm:%s147] %v224
                %v226 = vld [vmem:[%s154 + $0x460] sm:%s147]
                %227 = vst [vmem:[%s155 + $0x118] sm:%s147] %v226
                %v228 = vld [vmem:[%s154 + $0x480] sm:%s147]
                %229 = vst [vmem:[%s155 + $0x120] sm:%s147] %v228
                %v230 = vld [vmem:[%s154 + $0x4a0] sm:%s147]
                %231 = vst [vmem:[%s155 + $0x128] sm:%s147] %v230
                %v232 = vld [vmem:[%s154 + $0x4c0] sm:%s147]
                %233 = vst [vmem:[%s155 + $0x130] sm:%s147] %v232
                %v234 = vld [vmem:[%s154 + $0x4e0] sm:%s147]
                %235 = vst [vmem:[%s155 + $0x138] sm:%s147] %v234
                %v236 = vld [vmem:[%s154 + $0x500] sm:%s147]
                %237 = vst [vmem:[%s155 + $0x140] sm:%s147] %v236
                %v238 = vld [vmem:[%s154 + $0x520] sm:%s147]
                %239 = vst [vmem:[%s155 + $0x148] sm:%s147] %v238
                %v240 = vld [vmem:[%s154 + $0x540] sm:%s147]
                %241 = vst [vmem:[%s155 + $0x150] sm:%s147] %v240
                %v242 = vld [vmem:[%s154 + $0x560] sm:%s147]
                %243 = vst [vmem:[%s155 + $0x158] sm:%s147] %v242
                %v244 = vld [vmem:[%s154 + $0x580] sm:%s147]
                %245 = vst [vmem:[%s155 + $0x160] sm:%s147] %v244
                %v246 = vld [vmem:[%s154 + $0x5a0] sm:%s147]
                %247 = vst [vmem:[%s155 + $0x168] sm:%s147] %v246
                %v248 = vld [vmem:[%s154 + $0x5c0] sm:%s147]
                %249 = vst [vmem:[%s155 + $0x170] sm:%s147] %v248
                %v250 = vld [vmem:[%s154 + $0x5e0] sm:%s147]
                %251 = vst [vmem:[%s155 + $0x178] sm:%s147] %v250
                %v252 = vld [vmem:[%s154 + $0x600] sm:%s147]
                %253 = vst [vmem:[%s155 + $0x180] sm:%s147] %v252
                %v254 = vld [vmem:[%s154 + $0x620] sm:%s147]
                %255 = vst [vmem:[%s155 + $0x188] sm:%s147] %v254
                %v256 = vld [vmem:[%s154 + $0x640] sm:%s147]
                %257 = vst [vmem:[%s155 + $0x190] sm:%s147] %v256
                %v258 = vld [vmem:[%s154 + $0x660] sm:%s147]
                %259 = vst [vmem:[%s155 + $0x198] sm:%s147] %v258
                %v260 = vld [vmem:[%s154 + $0x680] sm:%s147]
                %261 = vst [vmem:[%s155 + $0x1a0] sm:%s147] %v260
                %v262 = vld [vmem:[%s154 + $0x6a0] sm:%s147]
                %263 = vst [vmem:[%s155 + $0x1a8] sm:%s147] %v262
                %v264 = vld [vmem:[%s154 + $0x6c0] sm:%s147]
                %265 = vst [vmem:[%s155 + $0x1b0] sm:%s147] %v264
                %v266 = vld [vmem:[%s154 + $0x6e0] sm:%s147]
                %267 = vst [vmem:[%s155 + $0x1b8] sm:%s147] %v266
                %v268 = vld [vmem:[%s154 + $0x700] sm:%s147]
                %269 = vst [vmem:[%s155 + $0x1c0] sm:%s147] %v268
                %v270 = vld [vmem:[%s154 + $0x720] sm:%s147]
                %271 = vst [vmem:[%s155 + $0x1c8] sm:%s147] %v270
                %v272 = vld [vmem:[%s154 + $0x740] sm:%s147]
                %273 = vst [vmem:[%s155 + $0x1d0] sm:%s147] %v272
                %v274 = vld [vmem:[%s154 + $0x760] sm:%s147]
                %275 = vst [vmem:[%s155 + $0x1d8] sm:%s147] %v274
                %v276 = vld [vmem:[%s154 + $0x780] sm:%s147]
                %277 = vst [vmem:[%s155 + $0x1e0] sm:%s147] %v276
                %v278 = vld [vmem:[%s154 + $0x7a0] sm:%s147]
                %279 = vst [vmem:[%s155 + $0x1e8] sm:%s147] %v278
                %v280 = vld [vmem:[%s154 + $0x7c0] sm:%s147]
                %281 = vst [vmem:[%s155 + $0x1f0] sm:%s147] %v280
                %v282 = vld [vmem:[%s154 + $0x7e0] sm:%s147]
                %283 = vst [vmem:[%s155 + $0x1f8] sm:%s147] %v282
                %v284 = vld [vmem:[%s154 + $0x800] sm:%s147]
                %285 = vst [vmem:[%s155 + $0x200] sm:%s147] %v284
                %v286 = vld [vmem:[%s154 + $0x820] sm:%s147]
                %287 = vst [vmem:[%s155 + $0x208] sm:%s147] %v286
                %v288 = vld [vmem:[%s154 + $0x840] sm:%s147]
                %289 = vst [vmem:[%s155 + $0x210] sm:%s147] %v288
                %v290 = vld [vmem:[%s154 + $0x860] sm:%s147]
                %291 = vst [vmem:[%s155 + $0x218] sm:%s147] %v290
                %v292 = vld [vmem:[%s154 + $0x880] sm:%s147]
                %293 = vst [vmem:[%s155 + $0x220] sm:%s147] %v292
                %v294 = vld [vmem:[%s154 + $0x8a0] sm:%s147]
                %295 = vst [vmem:[%s155 + $0x228] sm:%s147] %v294
                %v296 = vld [vmem:[%s154 + $0x8c0] sm:%s147]
                %297 = vst [vmem:[%s155 + $0x230] sm:%s147] %v296
                %v298 = vld [vmem:[%s154 + $0x8e0] sm:%s147]
                %299 = vst [vmem:[%s155 + $0x238] sm:%s147] %v298
                %v300 = vld [vmem:[%s154 + $0x900] sm:%s147]
                %301 = vst [vmem:[%s155 + $0x240] sm:%s147] %v300
                %v302 = vld [vmem:[%s154 + $0x920] sm:%s147]
                %303 = vst [vmem:[%s155 + $0x248] sm:%s147] %v302
                %v304 = vld [vmem:[%s154 + $0x940] sm:%s147]
                %305 = vst [vmem:[%s155 + $0x250] sm:%s147] %v304
                %v306 = vld [vmem:[%s154 + $0x960] sm:%s147]
                %307 = vst [vmem:[%s155 + $0x258] sm:%s147] %v306
                %v308 = vld [vmem:[%s154 + $0x980] sm:%s147]
                %309 = vst [vmem:[%s155 + $0x260] sm:%s147] %v308
                %v310 = vld [vmem:[%s154 + $0x9a0] sm:%s147]
                %311 = vst [vmem:[%s155 + $0x268] sm:%s147] %v310
                %v312 = vld [vmem:[%s154 + $0x9c0] sm:%s147]
                %313 = vst [vmem:[%s155 + $0x270] sm:%s147] %v312
                %v314 = vld [vmem:[%s154 + $0x9e0] sm:%s147]
                %315 = vst [vmem:[%s155 + $0x278] sm:%s147] %v314
                %v316 = vld [vmem:[%s154 + $0xa00] sm:%s147]
                %317 = vst [vmem:[%s155 + $0x280] sm:%s147] %v316
                %v318 = vld [vmem:[%s154 + $0xa20] sm:%s147]
                %319 = vst [vmem:[%s155 + $0x288] sm:%s147] %v318
                %v320 = vld [vmem:[%s154 + $0xa40] sm:%s147]
                %321 = vst [vmem:[%s155 + $0x290] sm:%s147] %v320
                %v322 = vld [vmem:[%s154 + $0xa60] sm:%s147]
                %323 = vst [vmem:[%s155 + $0x298] sm:%s147] %v322
                %v324 = vld [vmem:[%s154 + $0xa80] sm:%s147]
                %325 = vst [vmem:[%s155 + $0x2a0] sm:%s147] %v324
                %v326 = vld [vmem:[%s154 + $0xaa0] sm:%s147]
                %327 = vst [vmem:[%s155 + $0x2a8] sm:%s147] %v326
                %v328 = vld [vmem:[%s154 + $0xac0] sm:%s147]
                %329 = vst [vmem:[%s155 + $0x2b0] sm:%s147] %v328
                %v330 = vld [vmem:[%s154 + $0xae0] sm:%s147]
                %331 = vst [vmem:[%s155 + $0x2b8] sm:%s147] %v330
                %v332 = vld [vmem:[%s154 + $0xb00] sm:%s147]
                %333 = vst [vmem:[%s155 + $0x2c0] sm:%s147] %v332
                %v334 = vld [vmem:[%s154 + $0xb20] sm:%s147]
                %335 = vst [vmem:[%s155 + $0x2c8] sm:%s147] %v334
                %v336 = vld [vmem:[%s154 + $0xb40] sm:%s147]
                %337 = vst [vmem:[%s155 + $0x2d0] sm:%s147] %v336
                %v338 = vld [vmem:[%s154 + $0xb60] sm:%s147]
                %339 = vst [vmem:[%s155 + $0x2d8] sm:%s147] %v338
                %v340 = vld [vmem:[%s154 + $0xb80] sm:%s147]
                %341 = vst [vmem:[%s155 + $0x2e0] sm:%s147] %v340
                %v342 = vld [vmem:[%s154 + $0xba0] sm:%s147]
                %343 = vst [vmem:[%s155 + $0x2e8] sm:%s147] %v342
                %v344 = vld [vmem:[%s154 + $0xbc0] sm:%s147]
                %345 = vst [vmem:[%s155 + $0x2f0] sm:%s147] %v344
                %v346 = vld [vmem:[%s154 + $0xbe0] sm:%s147]
                %347 = vst [vmem:[%s155 + $0x2f8] sm:%s147] %v346
                %v348 = vld [vmem:[%s154 + $0xc00] sm:%s147]
                %349 = vst [vmem:[%s155 + $0x300] sm:%s147] %v348
                %v350 = vld [vmem:[%s154 + $0xc20] sm:%s147]
                %351 = vst [vmem:[%s155 + $0x308] sm:%s147] %v350
                %v352 = vld [vmem:[%s154 + $0xc40] sm:%s147]
                %353 = vst [vmem:[%s155 + $0x310] sm:%s147] %v352
                %v354 = vld [vmem:[%s154 + $0xc60] sm:%s147]
                %355 = vst [vmem:[%s155 + $0x318] sm:%s147] %v354
                %v356 = vld [vmem:[%s154 + $0xc80] sm:%s147]
                %357 = vst [vmem:[%s155 + $0x320] sm:%s147] %v356
                %v358 = vld [vmem:[%s154 + $0xca0] sm:%s147]
                %359 = vst [vmem:[%s155 + $0x328] sm:%s147] %v358
                %v360 = vld [vmem:[%s154 + $0xcc0] sm:%s147]
                %361 = vst [vmem:[%s155 + $0x330] sm:%s147] %v360
                %v362 = vld [vmem:[%s154 + $0xce0] sm:%s147]
                %363 = vst [vmem:[%s155 + $0x338] sm:%s147] %v362
                %v364 = vld [vmem:[%s154 + $0xd00] sm:%s147]
                %365 = vst [vmem:[%s155 + $0x340] sm:%s147] %v364
                %v366 = vld [vmem:[%s154 + $0xd20] sm:%s147]
                %367 = vst [vmem:[%s155 + $0x348] sm:%s147] %v366
                %v368 = vld [vmem:[%s154 + $0xd40] sm:%s147]
                %369 = vst [vmem:[%s155 + $0x350] sm:%s147] %v368
                %v370 = vld [vmem:[%s154 + $0xd60] sm:%s147]
                %371 = vst [vmem:[%s155 + $0x358] sm:%s147] %v370
                %v372 = vld [vmem:[%s154 + $0xd80] sm:%s147]
                %373 = vst [vmem:[%s155 + $0x360] sm:%s147] %v372
                %v374 = vld [vmem:[%s154 + $0xda0] sm:%s147]
                %375 = vst [vmem:[%s155 + $0x368] sm:%s147] %v374
                %v376 = vld [vmem:[%s154 + $0xdc0] sm:%s147]
                %377 = vst [vmem:[%s155 + $0x370] sm:%s147] %v376
                %v378 = vld [vmem:[%s154 + $0xde0] sm:%s147]
                %379 = vst [vmem:[%s155 + $0x378] sm:%s147] %v378
                %v380 = vld [vmem:[%s154 + $0xe00] sm:%s147]
                %381 = vst [vmem:[%s155 + $0x380] sm:%s147] %v380
                %v382 = vld [vmem:[%s154 + $0xe20] sm:%s147]
                %383 = vst [vmem:[%s155 + $0x388] sm:%s147] %v382
                %v384 = vld [vmem:[%s154 + $0xe40] sm:%s147]
                %385 = vst [vmem:[%s155 + $0x390] sm:%s147] %v384
                %v386 = vld [vmem:[%s154 + $0xe60] sm:%s147]
                %387 = vst [vmem:[%s155 + $0x398] sm:%s147] %v386
                %v388 = vld [vmem:[%s154 + $0xe80] sm:%s147]
                %389 = vst [vmem:[%s155 + $0x3a0] sm:%s147] %v388
                %v390 = vld [vmem:[%s154 + $0xea0] sm:%s147]
                %391 = vst [vmem:[%s155 + $0x3a8] sm:%s147] %v390
                %v392 = vld [vmem:[%s154 + $0xec0] sm:%s147]
                %393 = vst [vmem:[%s155 + $0x3b0] sm:%s147] %v392
                %v394 = vld [vmem:[%s154 + $0xee0] sm:%s147]
                %395 = vst [vmem:[%s155 + $0x3b8] sm:%s147] %v394
                %v396 = vld [vmem:[%s154 + $0xf00] sm:%s147]
                %397 = vst [vmem:[%s155 + $0x3c0] sm:%s147] %v396
                %v398 = vld [vmem:[%s154 + $0xf20] sm:%s147]
                %399 = vst [vmem:[%s155 + $0x3c8] sm:%s147] %v398
                %v400 = vld [vmem:[%s154 + $0xf40] sm:%s147]
                %401 = vst [vmem:[%s155 + $0x3d0] sm:%s147] %v400
                %v402 = vld [vmem:[%s154 + $0xf60] sm:%s147]
                %403 = vst [vmem:[%s155 + $0x3d8] sm:%s147] %v402
                %v404 = vld [vmem:[%s154 + $0xf80] sm:%s147]
                %405 = vst [vmem:[%s155 + $0x3e0] sm:%s147] %v404
                %v406 = vld [vmem:[%s154 + $0xfa0] sm:%s147]
                %407 = vst [vmem:[%s155 + $0x3e8] sm:%s147] %v406
                %v408 = vld [vmem:[%s154 + $0xfc0] sm:%s147]
                %409 = vst [vmem:[%s155 + $0x3f0] sm:%s147] %v408
                %v410 = vld [vmem:[%s154 + $0xfe0] sm:%s147]
                %411 = vst [vmem:[%s155 + $0x3f8] sm:%s147] %v410
                %v412 = vld [vmem:[%s154 + $0x1000] sm:%s147]
                %413 = vst [vmem:[%s155 + $0x400] sm:%s147] %v412
                %v414 = vld [vmem:[%s154 + $0x1020] sm:%s147]
                %415 = vst [vmem:[%s155 + $0x408] sm:%s147] %v414
                %v416 = vld [vmem:[%s154 + $0x1040] sm:%s147]
                %417 = vst [vmem:[%s155 + $0x410] sm:%s147] %v416
                %v418 = vld [vmem:[%s154 + $0x1060] sm:%s147]
                %419 = vst [vmem:[%s155 + $0x418] sm:%s147] %v418
                %v420 = vld [vmem:[%s154 + $0x1080] sm:%s147]
                %421 = vst [vmem:[%s155 + $0x420] sm:%s147] %v420
                %v422 = vld [vmem:[%s154 + $0x10a0] sm:%s147]
                %423 = vst [vmem:[%s155 + $0x428] sm:%s147] %v422
                %v424 = vld [vmem:[%s154 + $0x10c0] sm:%s147]
                %425 = vst [vmem:[%s155 + $0x430] sm:%s147] %v424
                %v426 = vld [vmem:[%s154 + $0x10e0] sm:%s147]
                %427 = vst [vmem:[%s155 + $0x438] sm:%s147] %v426
                %v428 = vld [vmem:[%s154 + $0x1100] sm:%s147]
                %429 = vst [vmem:[%s155 + $0x440] sm:%s147] %v428
                %v430 = vld [vmem:[%s154 + $0x1120] sm:%s147]
                %431 = vst [vmem:[%s155 + $0x448] sm:%s147] %v430
                %v432 = vld [vmem:[%s154 + $0x1140] sm:%s147]
                %433 = vst [vmem:[%s155 + $0x450] sm:%s147] %v432
                %v434 = vld [vmem:[%s154 + $0x1160] sm:%s147]
                %435 = vst [vmem:[%s155 + $0x458] sm:%s147] %v434
                %v436 = vld [vmem:[%s154 + $0x1180] sm:%s147]
                %437 = vst [vmem:[%s155 + $0x460] sm:%s147] %v436
                %v438 = vld [vmem:[%s154 + $0x11a0] sm:%s147]
                %439 = vst [vmem:[%s155 + $0x468] sm:%s147] %v438
                %v440 = vld [vmem:[%s154 + $0x11c0] sm:%s147]
                %441 = vst [vmem:[%s155 + $0x470] sm:%s147] %v440
                %v442 = vld [vmem:[%s154 + $0x11e0] sm:%s147]
                %443 = vst [vmem:[%s155 + $0x478] sm:%s147] %v442
                %v444 = vld [vmem:[%s154 + $0x1200] sm:%s147]
                %445 = vst [vmem:[%s155 + $0x480] sm:%s147] %v444
                %v446 = vld [vmem:[%s154 + $0x1220] sm:%s147]
                %447 = vst [vmem:[%s155 + $0x488] sm:%s147] %v446
                %v448 = vld [vmem:[%s154 + $0x1240] sm:%s147]
                %449 = vst [vmem:[%s155 + $0x490] sm:%s147] %v448
                %v450 = vld [vmem:[%s154 + $0x1260] sm:%s147]
                %451 = vst [vmem:[%s155 + $0x498] sm:%s147] %v450
                %v452 = vld [vmem:[%s154 + $0x1280] sm:%s147]
                %453 = vst [vmem:[%s155 + $0x4a0] sm:%s147] %v452
                %v454 = vld [vmem:[%s154 + $0x12a0] sm:%s147]
                %455 = vst [vmem:[%s155 + $0x4a8] sm:%s147] %v454
                %v456 = vld [vmem:[%s154 + $0x12c0] sm:%s147]
                %457 = vst [vmem:[%s155 + $0x4b0] sm:%s147] %v456
                %v458 = vld [vmem:[%s154 + $0x12e0] sm:%s147]
                %459 = vst [vmem:[%s155 + $0x4b8] sm:%s147] %v458
                %v460 = vld [vmem:[%s154 + $0x1300] sm:%s147]
                %461 = vst [vmem:[%s155 + $0x4c0] sm:%s147] %v460
                %v462 = vld [vmem:[%s154 + $0x1320] sm:%s147]
                %463 = vst [vmem:[%s155 + $0x4c8] sm:%s147] %v462
                %v464 = vld [vmem:[%s154 + $0x1340] sm:%s147]
                %465 = vst [vmem:[%s155 + $0x4d0] sm:%s147] %v464
                %v466 = vld [vmem:[%s154 + $0x1360] sm:%s147]
                %467 = vst [vmem:[%s155 + $0x4d8] sm:%s147] %v466
                %v468 = vld [vmem:[%s154 + $0x1380] sm:%s147]
                %469 = vst [vmem:[%s155 + $0x4e0] sm:%s147] %v468
                %v470 = vld [vmem:[%s154 + $0x13a0] sm:%s147]
                %471 = vst [vmem:[%s155 + $0x4e8] sm:%s147] %v470
                %v472 = vld [vmem:[%s154 + $0x13c0] sm:%s147]
                %473 = vst [vmem:[%s155 + $0x4f0] sm:%s147] %v472
                %v474 = vld [vmem:[%s154 + $0x13e0] sm:%s147]
                %475 = vst [vmem:[%s155 + $0x4f8] sm:%s147] %v474
                %v476 = vld [vmem:[%s154 + $0x1400] sm:%s147]
                %477 = vst [vmem:[%s155 + $0x500] sm:%s147] %v476
                %v478 = vld [vmem:[%s154 + $0x1420] sm:%s147]
                %479 = vst [vmem:[%s155 + $0x508] sm:%s147] %v478
                %v480 = vld [vmem:[%s154 + $0x1440] sm:%s147]
                %481 = vst [vmem:[%s155 + $0x510] sm:%s147] %v480
                %v482 = vld [vmem:[%s154 + $0x1460] sm:%s147]
                %483 = vst [vmem:[%s155 + $0x518] sm:%s147] %v482
                %v484 = vld [vmem:[%s154 + $0x1480] sm:%s147]
                %485 = vst [vmem:[%s155 + $0x520] sm:%s147] %v484
                %v486 = vld [vmem:[%s154 + $0x14a0] sm:%s147]
                %487 = vst [vmem:[%s155 + $0x528] sm:%s147] %v486
                %v488 = vld [vmem:[%s154 + $0x14c0] sm:%s147]
                %489 = vst [vmem:[%s155 + $0x530] sm:%s147] %v488
                %v490 = vld [vmem:[%s154 + $0x14e0] sm:%s147]
                %491 = vst [vmem:[%s155 + $0x538] sm:%s147] %v490
                %v492 = vld [vmem:[%s154 + $0x1500] sm:%s147]
                %493 = vst [vmem:[%s155 + $0x540] sm:%s147] %v492
                %v494 = vld [vmem:[%s154 + $0x1520] sm:%s147]
                %495 = vst [vmem:[%s155 + $0x548] sm:%s147] %v494
                %v496 = vld [vmem:[%s154 + $0x1540] sm:%s147]
                %497 = vst [vmem:[%s155 + $0x550] sm:%s147] %v496
                %v498 = vld [vmem:[%s154 + $0x1560] sm:%s147]
                %499 = vst [vmem:[%s155 + $0x558] sm:%s147] %v498
                %v500 = vld [vmem:[%s154 + $0x1580] sm:%s147]
                %501 = vst [vmem:[%s155 + $0x560] sm:%s147] %v500
                %v502 = vld [vmem:[%s154 + $0x15a0] sm:%s147]
                %503 = vst [vmem:[%s155 + $0x568] sm:%s147] %v502
                %v504 = vld [vmem:[%s154 + $0x15c0] sm:%s147]
                %505 = vst [vmem:[%s155 + $0x570] sm:%s147] %v504
                %v506 = vld [vmem:[%s154 + $0x15e0] sm:%s147]
                %507 = vst [vmem:[%s155 + $0x578] sm:%s147] %v506
                %v508 = vld [vmem:[%s154 + $0x1600] sm:%s147]
                %509 = vst [vmem:[%s155 + $0x580] sm:%s147] %v508
                %v510 = vld [vmem:[%s154 + $0x1620] sm:%s147]
                %511 = vst [vmem:[%s155 + $0x588] sm:%s147] %v510
                %v512 = vld [vmem:[%s154 + $0x1640] sm:%s147]
                %513 = vst [vmem:[%s155 + $0x590] sm:%s147] %v512
                %v514 = vld [vmem:[%s154 + $0x1660] sm:%s147]
                %515 = vst [vmem:[%s155 + $0x598] sm:%s147] %v514
                %v516 = vld [vmem:[%s154 + $0x1680] sm:%s147]
                %517 = vst [vmem:[%s155 + $0x5a0] sm:%s147] %v516
                %v518 = vld [vmem:[%s154 + $0x16a0] sm:%s147]
                %519 = vst [vmem:[%s155 + $0x5a8] sm:%s147] %v518
                %v520 = vld [vmem:[%s154 + $0x16c0] sm:%s147]
                %521 = vst [vmem:[%s155 + $0x5b0] sm:%s147] %v520
                %v522 = vld [vmem:[%s154 + $0x16e0] sm:%s147]
                %523 = vst [vmem:[%s155 + $0x5b8] sm:%s147] %v522
                %v524 = vld [vmem:[%s154 + $0x1700] sm:%s147]
                %525 = vst [vmem:[%s155 + $0x5c0] sm:%s147] %v524
                %v526 = vld [vmem:[%s154 + $0x1720] sm:%s147]
                %527 = vst [vmem:[%s155 + $0x5c8] sm:%s147] %v526
                %v528 = vld [vmem:[%s154 + $0x1740] sm:%s147]
                %529 = vst [vmem:[%s155 + $0x5d0] sm:%s147] %v528
                %v530 = vld [vmem:[%s154 + $0x1760] sm:%s147]
                %531 = vst [vmem:[%s155 + $0x5d8] sm:%s147] %v530
                %v532 = vld [vmem:[%s154 + $0x1780] sm:%s147]
                %533 = vst [vmem:[%s155 + $0x5e0] sm:%s147] %v532
                %v534 = vld [vmem:[%s154 + $0x17a0] sm:%s147]
                %535 = vst [vmem:[%s155 + $0x5e8] sm:%s147] %v534
                %v536 = vld [vmem:[%s154 + $0x17c0] sm:%s147]
                %537 = vst [vmem:[%s155 + $0x5f0] sm:%s147] %v536
                %v538 = vld [vmem:[%s154 + $0x17e0] sm:%s147]
                %539 = vst [vmem:[%s155 + $0x5f8] sm:%s147] %v538
                %v540 = vld [vmem:[%s154 + $0x1800] sm:%s147]
                %541 = vst [vmem:[%s155 + $0x600] sm:%s147] %v540
                %v542 = vld [vmem:[%s154 + $0x1820] sm:%s147]
                %543 = vst [vmem:[%s155 + $0x608] sm:%s147] %v542
                %v544 = vld [vmem:[%s154 + $0x1840] sm:%s147]
                %545 = vst [vmem:[%s155 + $0x610] sm:%s147] %v544
                %v546 = vld [vmem:[%s154 + $0x1860] sm:%s147]
                %547 = vst [vmem:[%s155 + $0x618] sm:%s147] %v546
                %v548 = vld [vmem:[%s154 + $0x1880] sm:%s147]
                %549 = vst [vmem:[%s155 + $0x620] sm:%s147] %v548
                %v550 = vld [vmem:[%s154 + $0x18a0] sm:%s147]
                %551 = vst [vmem:[%s155 + $0x628] sm:%s147] %v550
                %v552 = vld [vmem:[%s154 + $0x18c0] sm:%s147]
                %553 = vst [vmem:[%s155 + $0x630] sm:%s147] %v552
                %v554 = vld [vmem:[%s154 + $0x18e0] sm:%s147]
                %555 = vst [vmem:[%s155 + $0x638] sm:%s147] %v554
                %v556 = vld [vmem:[%s154 + $0x1900] sm:%s147]
                %557 = vst [vmem:[%s155 + $0x640] sm:%s147] %v556
                %v558 = vld [vmem:[%s154 + $0x1920] sm:%s147]
                %559 = vst [vmem:[%s155 + $0x648] sm:%s147] %v558
                %v560 = vld [vmem:[%s154 + $0x1940] sm:%s147]
                %561 = vst [vmem:[%s155 + $0x650] sm:%s147] %v560
                %v562 = vld [vmem:[%s154 + $0x1960] sm:%s147]
                %563 = vst [vmem:[%s155 + $0x658] sm:%s147] %v562
                %v564 = vld [vmem:[%s154 + $0x1980] sm:%s147]
                %565 = vst [vmem:[%s155 + $0x660] sm:%s147] %v564
                %v566 = vld [vmem:[%s154 + $0x19a0] sm:%s147]
                %567 = vst [vmem:[%s155 + $0x668] sm:%s147] %v566
                %v568 = vld [vmem:[%s154 + $0x19c0] sm:%s147]
                %569 = vst [vmem:[%s155 + $0x670] sm:%s147] %v568
                %v570 = vld [vmem:[%s154 + $0x19e0] sm:%s147]
                %571 = vst [vmem:[%s155 + $0x678] sm:%s147] %v570
                %v572 = vld [vmem:[%s154 + $0x1a00] sm:%s147]
                %573 = vst [vmem:[%s155 + $0x680] sm:%s147] %v572
                %v574 = vld [vmem:[%s154 + $0x1a20] sm:%s147]
                %575 = vst [vmem:[%s155 + $0x688] sm:%s147] %v574
                %v576 = vld [vmem:[%s154 + $0x1a40] sm:%s147]
                %577 = vst [vmem:[%s155 + $0x690] sm:%s147] %v576
                %v578 = vld [vmem:[%s154 + $0x1a60] sm:%s147]
                %579 = vst [vmem:[%s155 + $0x698] sm:%s147] %v578
                %v580 = vld [vmem:[%s154 + $0x1a80] sm:%s147]
                %581 = vst [vmem:[%s155 + $0x6a0] sm:%s147] %v580
                %v582 = vld [vmem:[%s154 + $0x1aa0] sm:%s147]
                %583 = vst [vmem:[%s155 + $0x6a8] sm:%s147] %v582
                %v584 = vld [vmem:[%s154 + $0x1ac0] sm:%s147]
                %585 = vst [vmem:[%s155 + $0x6b0] sm:%s147] %v584
                %v586 = vld [vmem:[%s154 + $0x1ae0] sm:%s147]
                %587 = vst [vmem:[%s155 + $0x6b8] sm:%s147] %v586
                %v588 = vld [vmem:[%s154 + $0x1b00] sm:%s147]
                %589 = vst [vmem:[%s155 + $0x6c0] sm:%s147] %v588
                %v590 = vld [vmem:[%s154 + $0x1b20] sm:%s147]
                %591 = vst [vmem:[%s155 + $0x6c8] sm:%s147] %v590
                %v592 = vld [vmem:[%s154 + $0x1b40] sm:%s147]
                %593 = vst [vmem:[%s155 + $0x6d0] sm:%s147] %v592
                %v594 = vld [vmem:[%s154 + $0x1b60] sm:%s147]
                %595 = vst [vmem:[%s155 + $0x6d8] sm:%s147] %v594
                %v596 = vld [vmem:[%s154 + $0x1b80] sm:%s147]
                %597 = vst [vmem:[%s155 + $0x6e0] sm:%s147] %v596
                %v598 = vld [vmem:[%s154 + $0x1ba0] sm:%s147]
                %599 = vst [vmem:[%s155 + $0x6e8] sm:%s147] %v598
                %v600 = vld [vmem:[%s154 + $0x1bc0] sm:%s147]
                %601 = vst [vmem:[%s155 + $0x6f0] sm:%s147] %v600
                %v602 = vld [vmem:[%s154 + $0x1be0] sm:%s147]
                %603 = vst [vmem:[%s155 + $0x6f8] sm:%s147] %v602
                %v604 = vld [vmem:[%s154 + $0x1c00] sm:%s147]
                %605 = vst [vmem:[%s155 + $0x700] sm:%s147] %v604
                %v606 = vld [vmem:[%s154 + $0x1c20] sm:%s147]
                %607 = vst [vmem:[%s155 + $0x708] sm:%s147] %v606
                %v608 = vld [vmem:[%s154 + $0x1c40] sm:%s147]
                %609 = vst [vmem:[%s155 + $0x710] sm:%s147] %v608
                %v610 = vld [vmem:[%s154 + $0x1c60] sm:%s147]
                %611 = vst [vmem:[%s155 + $0x718] sm:%s147] %v610
                %v612 = vld [vmem:[%s154 + $0x1c80] sm:%s147]
                %613 = vst [vmem:[%s155 + $0x720] sm:%s147] %v612
                %v614 = vld [vmem:[%s154 + $0x1ca0] sm:%s147]
                %615 = vst [vmem:[%s155 + $0x728] sm:%s147] %v614
                %v616 = vld [vmem:[%s154 + $0x1cc0] sm:%s147]
                %617 = vst [vmem:[%s155 + $0x730] sm:%s147] %v616
                %v618 = vld [vmem:[%s154 + $0x1ce0] sm:%s147]
                %619 = vst [vmem:[%s155 + $0x738] sm:%s147] %v618
                %v620 = vld [vmem:[%s154 + $0x1d00] sm:%s147]
                %621 = vst [vmem:[%s155 + $0x740] sm:%s147] %v620
                %v622 = vld [vmem:[%s154 + $0x1d20] sm:%s147]
                %623 = vst [vmem:[%s155 + $0x748] sm:%s147] %v622
                %v624 = vld [vmem:[%s154 + $0x1d40] sm:%s147]
                %625 = vst [vmem:[%s155 + $0x750] sm:%s147] %v624
                %v626 = vld [vmem:[%s154 + $0x1d60] sm:%s147]
                %627 = vst [vmem:[%s155 + $0x758] sm:%s147] %v626
                %v628 = vld [vmem:[%s154 + $0x1d80] sm:%s147]
                %629 = vst [vmem:[%s155 + $0x760] sm:%s147] %v628
                %v630 = vld [vmem:[%s154 + $0x1da0] sm:%s147]
                %631 = vst [vmem:[%s155 + $0x768] sm:%s147] %v630
                %v632 = vld [vmem:[%s154 + $0x1dc0] sm:%s147]
                %633 = vst [vmem:[%s155 + $0x770] sm:%s147] %v632
                %v634 = vld [vmem:[%s154 + $0x1de0] sm:%s147]
                %635 = vst [vmem:[%s155 + $0x778] sm:%s147] %v634
                %v636 = vld [vmem:[%s154 + $0x1e00] sm:%s147]
                %637 = vst [vmem:[%s155 + $0x780] sm:%s147] %v636
                %v638 = vld [vmem:[%s154 + $0x1e20] sm:%s147]
                %639 = vst [vmem:[%s155 + $0x788] sm:%s147] %v638
                %v640 = vld [vmem:[%s154 + $0x1e40] sm:%s147]
                %641 = vst [vmem:[%s155 + $0x790] sm:%s147] %v640
                %v642 = vld [vmem:[%s154 + $0x1e60] sm:%s147]
                %643 = vst [vmem:[%s155 + $0x798] sm:%s147] %v642
                %v644 = vld [vmem:[%s154 + $0x1e80] sm:%s147]
                %645 = vst [vmem:[%s155 + $0x7a0] sm:%s147] %v644
                %v646 = vld [vmem:[%s154 + $0x1ea0] sm:%s147]
                %647 = vst [vmem:[%s155 + $0x7a8] sm:%s147] %v646
                %v648 = vld [vmem:[%s154 + $0x1ec0] sm:%s147]
                %649 = vst [vmem:[%s155 + $0x7b0] sm:%s147] %v648
                %v650 = vld [vmem:[%s154 + $0x1ee0] sm:%s147]
                %651 = vst [vmem:[%s155 + $0x7b8] sm:%s147] %v650
                %v652 = vld [vmem:[%s154 + $0x1f00] sm:%s147]
                %653 = vst [vmem:[%s155 + $0x7c0] sm:%s147] %v652
                %v654 = vld [vmem:[%s154 + $0x1f20] sm:%s147]
                %655 = vst [vmem:[%s155 + $0x7c8] sm:%s147] %v654
                %v656 = vld [vmem:[%s154 + $0x1f40] sm:%s147]
                %657 = vst [vmem:[%s155 + $0x7d0] sm:%s147] %v656
                %v658 = vld [vmem:[%s154 + $0x1f60] sm:%s147]
                %659 = vst [vmem:[%s155 + $0x7d8] sm:%s147] %v658
                %v660 = vld [vmem:[%s154 + $0x1f80] sm:%s147]
                %661 = vst [vmem:[%s155 + $0x7e0] sm:%s147] %v660
                %v662 = vld [vmem:[%s154 + $0x1fa0] sm:%s147]
                %663 = vst [vmem:[%s155 + $0x7e8] sm:%s147] %v662
                %v664 = vld [vmem:[%s154 + $0x1fc0] sm:%s147]
                %665 = vst [vmem:[%s155 + $0x7f0] sm:%s147] %v664
                %v666 = vld [vmem:[%s154 + $0x1fe0] sm:%s147]
                %667 = vst [vmem:[%s155 + $0x7f8] sm:%s147] %v666
              $region41: #{mynet_forward.8} parent=35 // loop_footer
                %s153 = sadd.s32 1, %s149
              $region42: #{mynet_forward.8} parent=35 // loop_footer_branch
                %148 = sbr.rel target = $region38
              $region43: #{mynet_forward.8} parent=35 // loop_exit
                _
            $region36: #{mynet_forward.8} parent=27 // pred_fallthru
              _
          $region28: #{mynet_forward.8} parent=23 // pred_fallthru
            _
          %2252 = vnop
        $region24: #{mynet_forward.8} parent=19 // pred_fallthru
          _
        // Predicated region
        $region73: #{mynet_forward.8} parent=19 // pred_check
          %p2253 = pneg %p76
        $region74: #{mynet_forward.8} parent=19 // pred_check_branch
          %2255 = sbr.rel (%p2253) target = $region76
        $region75: #{mynet_forward.8} parent=19 // pred_region
          %s2256 = smul.u32 2, %s9
          %p2257 = scmp.lt.s32.totalorder %s2256, 7
          %s2258 = scalar_select %p2257, %s2256, 7
          %s2259 = scalar_lea.vmem %s2, %s2258
          %s2260 = smul.u32 2, %s9
        $region76: #{mynet_forward.8} parent=19 // pred_fallthru
          _
      $region20: #{mynet_forward.8} parent=5 // pred_fallthru
        _
      %p2261 = scmp.le.s32.totalorder 1, %s9
      %p2262 = scmp.lt.s32.totalorder %s9, 5
      %p2263 = pnand %p2261, %p2262
      %p2264 = pneg %p2263
      // Predicated region
      $region77: #{mynet_forward.8} parent=5 // pred_check
        _
      $region78: #{mynet_forward.8} parent=5 // pred_check_branch
        %2266 = sbr.rel (%p2263) target = $region80
      $region79: #{mynet_forward.8} parent=5 // pred_region
        %s2267 = ssub.s32 %s9, 1
        %s2268 = sand.u32 %s43, 1
        %s2269 = sand.u32 %s43, 1
        %s2270 = smul.addr %s2269, 2048
        %s2271 = scalar_lea.vmem [#allocation2], %s2270
        // Predicated region
        $region81: #{mynet_forward.8} parent=79 // pred_check
          %p2272 = pneg %p56
        $region82: #{mynet_forward.8} parent=79 // pred_check_branch
          %2274 = sbr.rel (%p2272) target = $region84
        $region83: #{mynet_forward.8} parent=79 // pred_region
          _
        $region84: #{mynet_forward.8} parent=79 // pred_fallthru
          _
        %p2275 = pneg %p30
        %p2276 = pneg %p27
        %s2277 = sand.u32 %s43, 1
        %s2278 = sand.u32 %s43, 1
        %s2279 = smul.addr %s2278, 2048
        %s2280 = scalar_lea.vmem [#allocation2], %s2279
        %p2281 = pneg %p56
        %p2282 = pneg %p53
        %s2283 = smul.u32 2, %s14
        %p2284 = scmp.lt.s32.totalorder %s2283, 7
        %s2285 = scalar_select %p2284, %s2283, 7
        %s2286 = scalar_lea.vmem %s2, %s2285
        %p2287 = pneg %p82
        %p2288 = pneg %p79
        %p2289 = pneg %p108
        %p2290 = pneg %p105
        %s2291 = smul.u32 2, %s14
        %p2292 = scmp.lt.s32.totalorder %s2291, 7
        %s2293 = scalar_select %p2292, %s2291, 7
        %s2294 = scalar_lea.vmem %s3, %s2293
        %s2295 = smul.u32 2, %s14
        %s2296 = smul.u32 2, %s14
        %p2297 = scmp.lt.s32.totalorder %s2296, 7
        %s2298 = scalar_select %p2297, %s2296, 7
        %s2299 = scalar_lea.vmem %s2, %s2298
        %s2300 = smul.u32 2, %s14
        %s2301 = smul.u32 2, %s14
        %p2302 = scmp.lt.s32.totalorder %s2301, 7
        %s2303 = scalar_select %p2302, %s2301, 7
        %s2304 = scalar_lea.vmem %s3, %s2303
        %s2305 = smul.u32 2, %s14
        %v2306 = vld [vmem:[%s0] sm:$0xff]
        %v2307 = vld [vmem:[%s0 + $0x8] sm:$0xff]
        %v2308 = vld [vmem:[%s2271] sm:$0xff]
        %v2309 = vld [vmem:[%s2271 + $0x8] sm:$0xff]
        %v2310 = vld [vmem:[%s2271 + $0x10] sm:$0xff]
        %v2311 = vld [vmem:[%s2271 + $0x18] sm:$0xff]
        %v2312 = vld [vmem:[%s2271 + $0x20] sm:$0xff]
        %v2313 = vld [vmem:[%s2271 + $0x28] sm:$0xff]
        %v2314 = vld [vmem:[%s2271 + $0x30] sm:$0xff]
        %v2315 = vld [vmem:[%s2271 + $0x38] sm:$0xff]
        %v2316 = vld [vmem:[%s2271 + $0x40] sm:$0xff]
        %v2317 = vld [vmem:[%s2271 + $0x48] sm:$0xff]
        %v2318 = vld [vmem:[%s2271 + $0x50] sm:$0xff]
        %v2319 = vld [vmem:[%s2271 + $0x58] sm:$0xff]
        %v2320 = vld [vmem:[%s2271 + $0x60] sm:$0xff]
        %v2321 = vld [vmem:[%s2271 + $0x68] sm:$0xff]
        %v2322 = vld [vmem:[%s2271 + $0x70] sm:$0xff]
        %v2323 = vld [vmem:[%s2271 + $0x78] sm:$0xff]
        %v2324 = vld [vmem:[%s2271 + $0x80] sm:$0xff]
        %v2325 = vld [vmem:[%s2271 + $0x88] sm:$0xff]
        %v2326 = vld [vmem:[%s2271 + $0x90] sm:$0xff]
        %v2327 = vld [vmem:[%s2271 + $0x98] sm:$0xff]
        %v2328 = vld [vmem:[%s2271 + $0xa0] sm:$0xff]
        %v2329 = vld [vmem:[%s2271 + $0xa8] sm:$0xff]
        %v2330 = vld [vmem:[%s2271 + $0xb0] sm:$0xff]
        %v2331 = vld [vmem:[%s2271 + $0xb8] sm:$0xff]
        %v2332 = vld [vmem:[%s2271 + $0xc0] sm:$0xff]
        %v2333 = vld [vmem:[%s2271 + $0xc8] sm:$0xff]
        %v2334 = vld [vmem:[%s2271 + $0xd0] sm:$0xff]
        %v2335 = vld [vmem:[%s2271 + $0xd8] sm:$0xff]
        %v2336 = vld [vmem:[%s2271 + $0xe0] sm:$0xff]
        %v2337 = vld [vmem:[%s2271 + $0xe8] sm:$0xff]
        %v2338 = vld [vmem:[%s2271 + $0xf0] sm:$0xff]
        %v2339 = vld [vmem:[%s2271 + $0xf8] sm:$0xff]
        %v2340 = vld [vmem:[%s2271 + $0x100] sm:$0xff]
        %v2341 = vld [vmem:[%s2271 + $0x108] sm:$0xff]
        %v2342 = vld [vmem:[%s2271 + $0x110] sm:$0xff]
        %v2343 = vld [vmem:[%s2271 + $0x118] sm:$0xff]
        %v2344 = vld [vmem:[%s2271 + $0x120] sm:$0xff]
        %v2345 = vld [vmem:[%s2271 + $0x128] sm:$0xff]
        %v2346 = vld [vmem:[%s2271 + $0x130] sm:$0xff]
        %v2347 = vld [vmem:[%s2271 + $0x138] sm:$0xff]
        %v2348 = vld [vmem:[%s2271 + $0x140] sm:$0xff]
        %v2349 = vld [vmem:[%s2271 + $0x148] sm:$0xff]
        %v2350 = vld [vmem:[%s2271 + $0x150] sm:$0xff]
        %v2351 = vld [vmem:[%s2271 + $0x158] sm:$0xff]
        %v2352 = vld [vmem:[%s2271 + $0x160] sm:$0xff]
        %v2353 = vld [vmem:[%s2271 + $0x168] sm:$0xff]
        %v2354 = vld [vmem:[%s2271 + $0x170] sm:$0xff]
        %v2355 = vld [vmem:[%s2271 + $0x178] sm:$0xff]
        %v2356 = vld [vmem:[%s2271 + $0x180] sm:$0xff]
        %v2357 = vld [vmem:[%s2271 + $0x188] sm:$0xff]
        %v2358 = vld [vmem:[%s2271 + $0x190] sm:$0xff]
        %v2359 = vld [vmem:[%s2271 + $0x198] sm:$0xff]
        %v2360 = vld [vmem:[%s2271 + $0x1a0] sm:$0xff]
        %v2361 = vld [vmem:[%s2271 + $0x1a8] sm:$0xff]
        %v2362 = vld [vmem:[%s2271 + $0x1b0] sm:$0xff]
        %v2363 = vld [vmem:[%s2271 + $0x1b8] sm:$0xff]
        %v2364 = vld [vmem:[%s2271 + $0x1c0] sm:$0xff]
        %v2365 = vld [vmem:[%s2271 + $0x1c8] sm:$0xff]
        %v2366 = vld [vmem:[%s2271 + $0x1d0] sm:$0xff]
        %v2367 = vld [vmem:[%s2271 + $0x1d8] sm:$0xff]
        %v2368 = vld [vmem:[%s2271 + $0x1e0] sm:$0xff]
        %v2369 = vld [vmem:[%s2271 + $0x1e8] sm:$0xff]
        %v2370 = vld [vmem:[%s2271 + $0x1f0] sm:$0xff]
        %v2371 = vld [vmem:[%s2271 + $0x1f8] sm:$0xff]
        %v2372 = vld [vmem:[%s2271 + $0x200] sm:$0xff]
        %v2373 = vld [vmem:[%s2271 + $0x208] sm:$0xff]
        %v2374 = vld [vmem:[%s2271 + $0x210] sm:$0xff]
        %v2375 = vld [vmem:[%s2271 + $0x218] sm:$0xff]
        %v2376 = vld [vmem:[%s2271 + $0x220] sm:$0xff]
        %v2377 = vld [vmem:[%s2271 + $0x228] sm:$0xff]
        %v2378 = vld [vmem:[%s2271 + $0x230] sm:$0xff]
        %v2379 = vld [vmem:[%s2271 + $0x238] sm:$0xff]
        %v2380 = vld [vmem:[%s2271 + $0x240] sm:$0xff]
        %v2381 = vld [vmem:[%s2271 + $0x248] sm:$0xff]
        %v2382 = vld [vmem:[%s2271 + $0x250] sm:$0xff]
        %v2383 = vld [vmem:[%s2271 + $0x258] sm:$0xff]
        %v2384 = vld [vmem:[%s2271 + $0x260] sm:$0xff]
        %v2385 = vld [vmem:[%s2271 + $0x268] sm:$0xff]
        %v2386 = vld [vmem:[%s2271 + $0x270] sm:$0xff]
        %v2387 = vld [vmem:[%s2271 + $0x278] sm:$0xff]
        %v2388 = vld [vmem:[%s2271 + $0x280] sm:$0xff]
        %v2389 = vld [vmem:[%s2271 + $0x288] sm:$0xff]
        %v2390 = vld [vmem:[%s2271 + $0x290] sm:$0xff]
        %v2391 = vld [vmem:[%s2271 + $0x298] sm:$0xff]
        %v2392 = vld [vmem:[%s2271 + $0x2a0] sm:$0xff]
        %v2393 = vld [vmem:[%s2271 + $0x2a8] sm:$0xff]
        %v2394 = vld [vmem:[%s2271 + $0x2b0] sm:$0xff]
        %v2395 = vld [vmem:[%s2271 + $0x2b8] sm:$0xff]
        %v2396 = vld [vmem:[%s2271 + $0x2c0] sm:$0xff]
        %v2397 = vld [vmem:[%s2271 + $0x2c8] sm:$0xff]
        %v2398 = vld [vmem:[%s2271 + $0x2d0] sm:$0xff]
        %v2399 = vld [vmem:[%s2271 + $0x2d8] sm:$0xff]
        %v2400 = vld [vmem:[%s2271 + $0x2e0] sm:$0xff]
        %v2401 = vld [vmem:[%s2271 + $0x2e8] sm:$0xff]
        %v2402 = vld [vmem:[%s2271 + $0x2f0] sm:$0xff]
        %v2403 = vld [vmem:[%s2271 + $0x2f8] sm:$0xff]
        %v2404 = vld [vmem:[%s2271 + $0x300] sm:$0xff]
        %v2405 = vld [vmem:[%s2271 + $0x308] sm:$0xff]
        %v2406 = vld [vmem:[%s2271 + $0x310] sm:$0xff]
        %v2407 = vld [vmem:[%s2271 + $0x318] sm:$0xff]
        %v2408 = vld [vmem:[%s2271 + $0x320] sm:$0xff]
        %v2409 = vld [vmem:[%s2271 + $0x328] sm:$0xff]
        %v2410 = vld [vmem:[%s2271 + $0x330] sm:$0xff]
        %v2411 = vld [vmem:[%s2271 + $0x338] sm:$0xff]
        %v2412 = vld [vmem:[%s2271 + $0x340] sm:$0xff]
        %v2413 = vld [vmem:[%s2271 + $0x348] sm:$0xff]
        %v2414 = vld [vmem:[%s2271 + $0x350] sm:$0xff]
        %v2415 = vld [vmem:[%s2271 + $0x358] sm:$0xff]
        %v2416 = vld [vmem:[%s2271 + $0x360] sm:$0xff]
        %v2417 = vld [vmem:[%s2271 + $0x368] sm:$0xff]
        %v2418 = vld [vmem:[%s2271 + $0x370] sm:$0xff]
        %v2419 = vld [vmem:[%s2271 + $0x378] sm:$0xff]
        %v2420 = vld [vmem:[%s2271 + $0x380] sm:$0xff]
        %v2421 = vld [vmem:[%s2271 + $0x388] sm:$0xff]
        %v2422 = vld [vmem:[%s2271 + $0x390] sm:$0xff]
        %v2423 = vld [vmem:[%s2271 + $0x398] sm:$0xff]
        %v2424 = vld [vmem:[%s2271 + $0x3a0] sm:$0xff]
        %v2425 = vld [vmem:[%s2271 + $0x3a8] sm:$0xff]
        %v2426 = vld [vmem:[%s2271 + $0x3b0] sm:$0xff]
        %v2427 = vld [vmem:[%s2271 + $0x3b8] sm:$0xff]
        %v2428 = vld [vmem:[%s2271 + $0x3c0] sm:$0xff]
        %v2429 = vld [vmem:[%s2271 + $0x3c8] sm:$0xff]
        %v2430 = vld [vmem:[%s2271 + $0x3d0] sm:$0xff]
        %v2431 = vld [vmem:[%s2271 + $0x3d8] sm:$0xff]
        %v2432 = vld [vmem:[%s2271 + $0x3e0] sm:$0xff]
        %v2433 = vld [vmem:[%s2271 + $0x3e8] sm:$0xff]
        %v2434 = vld [vmem:[%s2271 + $0x3f0] sm:$0xff]
        %v2435 = vld [vmem:[%s2271 + $0x3f8] sm:$0xff]
        %v2436 = vld [vmem:[%s2271 + $0x400] sm:$0xff]
        %v2437 = vld [vmem:[%s2271 + $0x408] sm:$0xff]
        %v2438 = vld [vmem:[%s2271 + $0x410] sm:$0xff]
        %v2439 = vld [vmem:[%s2271 + $0x418] sm:$0xff]
        %v2440 = vld [vmem:[%s2271 + $0x420] sm:$0xff]
        %v2441 = vld [vmem:[%s2271 + $0x428] sm:$0xff]
        %v2442 = vld [vmem:[%s2271 + $0x430] sm:$0xff]
        %v2443 = vld [vmem:[%s2271 + $0x438] sm:$0xff]
        %v2444 = vld [vmem:[%s2271 + $0x440] sm:$0xff]
        %v2445 = vld [vmem:[%s2271 + $0x448] sm:$0xff]
        %v2446 = vld [vmem:[%s2271 + $0x450] sm:$0xff]
        %v2447 = vld [vmem:[%s2271 + $0x458] sm:$0xff]
        %v2448 = vld [vmem:[%s2271 + $0x460] sm:$0xff]
        %v2449 = vld [vmem:[%s2271 + $0x468] sm:$0xff]
        %v2450 = vld [vmem:[%s2271 + $0x470] sm:$0xff]
        %v2451 = vld [vmem:[%s2271 + $0x478] sm:$0xff]
        %v2452 = vld [vmem:[%s2271 + $0x480] sm:$0xff]
        %v2453 = vld [vmem:[%s2271 + $0x488] sm:$0xff]
        %v2454 = vld [vmem:[%s2271 + $0x490] sm:$0xff]
        %v2455 = vld [vmem:[%s2271 + $0x498] sm:$0xff]
        %v2456 = vld [vmem:[%s2271 + $0x4a0] sm:$0xff]
        %v2457 = vld [vmem:[%s2271 + $0x4a8] sm:$0xff]
        %v2458 = vld [vmem:[%s2271 + $0x4b0] sm:$0xff]
        %v2459 = vld [vmem:[%s2271 + $0x4b8] sm:$0xff]
        %v2460 = vld [vmem:[%s2271 + $0x4c0] sm:$0xff]
        %v2461 = vld [vmem:[%s2271 + $0x4c8] sm:$0xff]
        %v2462 = vld [vmem:[%s2271 + $0x4d0] sm:$0xff]
        %v2463 = vld [vmem:[%s2271 + $0x4d8] sm:$0xff]
        %v2464 = vld [vmem:[%s2271 + $0x4e0] sm:$0xff]
        %v2465 = vld [vmem:[%s2271 + $0x4e8] sm:$0xff]
        %v2466 = vld [vmem:[%s2271 + $0x4f0] sm:$0xff]
        %v2467 = vld [vmem:[%s2271 + $0x4f8] sm:$0xff]
        %v2468 = vld [vmem:[%s2271 + $0x500] sm:$0xff]
        %v2469 = vld [vmem:[%s2271 + $0x508] sm:$0xff]
        %v2470 = vld [vmem:[%s2271 + $0x510] sm:$0xff]
        %v2471 = vld [vmem:[%s2271 + $0x518] sm:$0xff]
        %v2472 = vld [vmem:[%s2271 + $0x520] sm:$0xff]
        %v2473 = vld [vmem:[%s2271 + $0x528] sm:$0xff]
        %v2474 = vld [vmem:[%s2271 + $0x530] sm:$0xff]
        %v2475 = vld [vmem:[%s2271 + $0x538] sm:$0xff]
        %v2476 = vld [vmem:[%s2271 + $0x540] sm:$0xff]
        %v2477 = vld [vmem:[%s2271 + $0x548] sm:$0xff]
        %v2478 = vld [vmem:[%s2271 + $0x550] sm:$0xff]
        %v2479 = vld [vmem:[%s2271 + $0x558] sm:$0xff]
        %v2480 = vld [vmem:[%s2271 + $0x560] sm:$0xff]
        %v2481 = vld [vmem:[%s2271 + $0x568] sm:$0xff]
        %v2482 = vld [vmem:[%s2271 + $0x570] sm:$0xff]
        %v2483 = vld [vmem:[%s2271 + $0x578] sm:$0xff]
        %v2484 = vld [vmem:[%s2271 + $0x580] sm:$0xff]
        %v2485 = vld [vmem:[%s2271 + $0x588] sm:$0xff]
        %v2486 = vld [vmem:[%s2271 + $0x590] sm:$0xff]
        %v2487 = vld [vmem:[%s2271 + $0x598] sm:$0xff]
        %v2488 = vld [vmem:[%s2271 + $0x5a0] sm:$0xff]
        %v2489 = vld [vmem:[%s2271 + $0x5a8] sm:$0xff]
        %v2490 = vld [vmem:[%s2271 + $0x5b0] sm:$0xff]
        %v2491 = vld [vmem:[%s2271 + $0x5b8] sm:$0xff]
        %v2492 = vld [vmem:[%s2271 + $0x5c0] sm:$0xff]
        %v2493 = vld [vmem:[%s2271 + $0x5c8] sm:$0xff]
        %v2494 = vld [vmem:[%s2271 + $0x5d0] sm:$0xff]
        %v2495 = vld [vmem:[%s2271 + $0x5d8] sm:$0xff]
        %v2496 = vld [vmem:[%s2271 + $0x5e0] sm:$0xff]
        %v2497 = vld [vmem:[%s2271 + $0x5e8] sm:$0xff]
        %v2498 = vld [vmem:[%s2271 + $0x5f0] sm:$0xff]
        %v2499 = vld [vmem:[%s2271 + $0x5f8] sm:$0xff]
        %v2500 = vld [vmem:[%s2271 + $0x600] sm:$0xff]
        %v2501 = vld [vmem:[%s2271 + $0x608] sm:$0xff]
        %v2502 = vld [vmem:[%s2271 + $0x610] sm:$0xff]
        %v2503 = vld [vmem:[%s2271 + $0x618] sm:$0xff]
        %v2504 = vld [vmem:[%s2271 + $0x620] sm:$0xff]
        %v2505 = vld [vmem:[%s2271 + $0x628] sm:$0xff]
        %v2506 = vld [vmem:[%s2271 + $0x630] sm:$0xff]
        %v2507 = vld [vmem:[%s2271 + $0x638] sm:$0xff]
        %v2508 = vld [vmem:[%s2271 + $0x640] sm:$0xff]
        %v2509 = vld [vmem:[%s2271 + $0x648] sm:$0xff]
        %v2510 = vld [vmem:[%s2271 + $0x650] sm:$0xff]
        %v2511 = vld [vmem:[%s2271 + $0x658] sm:$0xff]
        %v2512 = vld [vmem:[%s2271 + $0x660] sm:$0xff]
        %v2513 = vld [vmem:[%s2271 + $0x668] sm:$0xff]
        %v2514 = vld [vmem:[%s2271 + $0x670] sm:$0xff]
        %v2515 = vld [vmem:[%s2271 + $0x678] sm:$0xff]
        %v2516 = vld [vmem:[%s2271 + $0x680] sm:$0xff]
        %v2517 = vld [vmem:[%s2271 + $0x688] sm:$0xff]
        %v2518 = vld [vmem:[%s2271 + $0x690] sm:$0xff]
        %v2519 = vld [vmem:[%s2271 + $0x698] sm:$0xff]
        %v2520 = vld [vmem:[%s2271 + $0x6a0] sm:$0xff]
        %v2521 = vld [vmem:[%s2271 + $0x6a8] sm:$0xff]
        %v2522 = vld [vmem:[%s2271 + $0x6b0] sm:$0xff]
        %v2523 = vld [vmem:[%s2271 + $0x6b8] sm:$0xff]
        %v2524 = vld [vmem:[%s2271 + $0x6c0] sm:$0xff]
        %v2525 = vld [vmem:[%s2271 + $0x6c8] sm:$0xff]
        %v2526 = vld [vmem:[%s2271 + $0x6d0] sm:$0xff]
        %v2527 = vld [vmem:[%s2271 + $0x6d8] sm:$0xff]
        %v2528 = vld [vmem:[%s2271 + $0x6e0] sm:$0xff]
        %v2529 = vld [vmem:[%s2271 + $0x6e8] sm:$0xff]
        %v2530 = vld [vmem:[%s2271 + $0x6f0] sm:$0xff]
        %v2531 = vld [vmem:[%s2271 + $0x6f8] sm:$0xff]
        %v2532 = vld [vmem:[%s2271 + $0x700] sm:$0xff]
        %v2533 = vld [vmem:[%s2271 + $0x708] sm:$0xff]
        %v2534 = vld [vmem:[%s2271 + $0x710] sm:$0xff]
        %v2535 = vld [vmem:[%s2271 + $0x718] sm:$0xff]
        %v2536 = vld [vmem:[%s2271 + $0x720] sm:$0xff]
        %v2537 = vld [vmem:[%s2271 + $0x728] sm:$0xff]
        %v2538 = vld [vmem:[%s2271 + $0x730] sm:$0xff]
        %v2539 = vld [vmem:[%s2271 + $0x738] sm:$0xff]
        %v2540 = vld [vmem:[%s2271 + $0x740] sm:$0xff]
        %v2541 = vld [vmem:[%s2271 + $0x748] sm:$0xff]
        %v2542 = vld [vmem:[%s2271 + $0x750] sm:$0xff]
        %v2543 = vld [vmem:[%s2271 + $0x758] sm:$0xff]
        %v2544 = vld [vmem:[%s2271 + $0x760] sm:$0xff]
        %v2545 = vld [vmem:[%s2271 + $0x768] sm:$0xff]
        %v2546 = vld [vmem:[%s2271 + $0x770] sm:$0xff]
        %v2547 = vld [vmem:[%s2271 + $0x778] sm:$0xff]
        %v2548 = vld [vmem:[%s2271 + $0x780] sm:$0xff]
        %v2549 = vld [vmem:[%s2271 + $0x788] sm:$0xff]
        %v2550 = vld [vmem:[%s2271 + $0x790] sm:$0xff]
        %v2551 = vld [vmem:[%s2271 + $0x798] sm:$0xff]
        %v2552 = vld [vmem:[%s2271 + $0x7a0] sm:$0xff]
        %v2553 = vld [vmem:[%s2271 + $0x7a8] sm:$0xff]
        %v2554 = vld [vmem:[%s2271 + $0x7b0] sm:$0xff]
        %v2555 = vld [vmem:[%s2271 + $0x7b8] sm:$0xff]
        %v2556 = vld [vmem:[%s2271 + $0x7c0] sm:$0xff]
        %v2557 = vld [vmem:[%s2271 + $0x7c8] sm:$0xff]
        %v2558 = vld [vmem:[%s2271 + $0x7d0] sm:$0xff]
        %v2559 = vld [vmem:[%s2271 + $0x7d8] sm:$0xff]
        %v2560 = vld [vmem:[%s2271 + $0x7e0] sm:$0xff]
        %v2561 = vld [vmem:[%s2271 + $0x7e8] sm:$0xff]
        %v2562 = vld [vmem:[%s2271 + $0x7f0] sm:$0xff]
        %v2563 = vld [vmem:[%s2271 + $0x7f8] sm:$0xff]
        %v2564 = vld [vmem:[%s2299] sm:$0x3]
        %v2566 = vperm.slane %v2564, 0
        %v2567 = vperm.slane %v2564, 1
        %2571 = vst [vmem:[#allocation1] ss:$9 sm:$0xff] %v2306
        %v2572 = vld [vmem:[#allocation1] sm:$0xff]
        %v2573 = vld [vmem:[#allocation1 + $0x9] sm:$0xff]
        %v2574 = vld [vmem:[#allocation1 + $0x12] sm:$0xff]
        %v2575 = vld [vmem:[#allocation1 + $0x1b] sm:$0xff]
        %v2576 = vld [vmem:[#allocation1 + $0x24] sm:$0xff]
        %v2577 = vld [vmem:[#allocation1 + $0x2d] sm:$0xff]
        %v2578 = vld [vmem:[#allocation1 + $0x36] sm:$0xff]
        %v2579 = vld [vmem:[#allocation1 + $0x3f] sm:$0xff]
        %2581 = vst [vmem:[#allocation1] ss:$9 sm:$0xff] %v2307
        %v2582 = vld [vmem:[#allocation1] sm:$0xff]
        %v2583 = vld [vmem:[#allocation1 + $0x9] sm:$0xff]
        %v2584 = vld [vmem:[#allocation1 + $0x12] sm:$0xff]
        %v2585 = vld [vmem:[#allocation1 + $0x1b] sm:$0xff]
        %v2586 = vld [vmem:[#allocation1 + $0x24] sm:$0xff]
        %v2587 = vld [vmem:[#allocation1 + $0x2d] sm:$0xff]
        %v2588 = vld [vmem:[#allocation1 + $0x36] sm:$0xff]
        %v2589 = vld [vmem:[#allocation1 + $0x3f] sm:$0xff]
        %v2862 = vunpack.c.l.b16 %v2308
        %v2863 = vunpack.c.h.b16 %v2308
        %v2864 = vunpack.c.l.b16 %v2309
        %v2865 = vunpack.c.h.b16 %v2309
        %v2866 = vunpack.c.l.b16 %v2310
        %v2867 = vunpack.c.h.b16 %v2310
        %v2868 = vunpack.c.l.b16 %v2311
        %v2869 = vunpack.c.h.b16 %v2311
        %v2870 = vunpack.c.l.b16 %v2312
        %v2871 = vunpack.c.h.b16 %v2312
        %v2872 = vunpack.c.l.b16 %v2313
        %v2873 = vunpack.c.h.b16 %v2313
        %v2874 = vunpack.c.l.b16 %v2314
        %v2875 = vunpack.c.h.b16 %v2314
        %v2876 = vunpack.c.l.b16 %v2315
        %v2877 = vunpack.c.h.b16 %v2315
        %v2878 = vunpack.c.l.b16 %v2316
        %v2879 = vunpack.c.h.b16 %v2316
        %v2880 = vunpack.c.l.b16 %v2317
        %v2881 = vunpack.c.h.b16 %v2317
        %v2882 = vunpack.c.l.b16 %v2318
        %v2883 = vunpack.c.h.b16 %v2318
        %v2884 = vunpack.c.l.b16 %v2319
        %v2885 = vunpack.c.h.b16 %v2319
        %v2886 = vunpack.c.l.b16 %v2320
        %v2887 = vunpack.c.h.b16 %v2320
        %v2888 = vunpack.c.l.b16 %v2321
        %v2889 = vunpack.c.h.b16 %v2321
        %v2890 = vunpack.c.l.b16 %v2322
        %v2891 = vunpack.c.h.b16 %v2322
        %v2892 = vunpack.c.l.b16 %v2323
        %v2893 = vunpack.c.h.b16 %v2323
        %v2894 = vunpack.c.l.b16 %v2324
        %v2895 = vunpack.c.h.b16 %v2324
        %v2896 = vunpack.c.l.b16 %v2325
        %v2897 = vunpack.c.h.b16 %v2325
        %v2898 = vunpack.c.l.b16 %v2326
        %v2899 = vunpack.c.h.b16 %v2326
        %v2900 = vunpack.c.l.b16 %v2327
        %v2901 = vunpack.c.h.b16 %v2327
        %v2902 = vunpack.c.l.b16 %v2328
        %v2903 = vunpack.c.h.b16 %v2328
        %v2904 = vunpack.c.l.b16 %v2329
        %v2905 = vunpack.c.h.b16 %v2329
        %v2906 = vunpack.c.l.b16 %v2330
        %v2907 = vunpack.c.h.b16 %v2330
        %v2908 = vunpack.c.l.b16 %v2331
        %v2909 = vunpack.c.h.b16 %v2331
        %v2910 = vunpack.c.l.b16 %v2332
        %v2911 = vunpack.c.h.b16 %v2332
        %v2912 = vunpack.c.l.b16 %v2333
        %v2913 = vunpack.c.h.b16 %v2333
        %v2914 = vunpack.c.l.b16 %v2334
        %v2915 = vunpack.c.h.b16 %v2334
        %v2916 = vunpack.c.l.b16 %v2335
        %v2917 = vunpack.c.h.b16 %v2335
        %v2918 = vunpack.c.l.b16 %v2336
        %v2919 = vunpack.c.h.b16 %v2336
        %v2920 = vunpack.c.l.b16 %v2337
        %v2921 = vunpack.c.h.b16 %v2337
        %v2922 = vunpack.c.l.b16 %v2338
        %v2923 = vunpack.c.h.b16 %v2338
        %v2924 = vunpack.c.l.b16 %v2339
        %v2925 = vunpack.c.h.b16 %v2339
        %v2926 = vunpack.c.l.b16 %v2340
        %v2927 = vunpack.c.h.b16 %v2340
        %v2928 = vunpack.c.l.b16 %v2341
        %v2929 = vunpack.c.h.b16 %v2341
        %v2930 = vunpack.c.l.b16 %v2342
        %v2931 = vunpack.c.h.b16 %v2342
        %v2932 = vunpack.c.l.b16 %v2343
        %v2933 = vunpack.c.h.b16 %v2343
        %v2934 = vunpack.c.l.b16 %v2344
        %v2935 = vunpack.c.h.b16 %v2344
        %v2936 = vunpack.c.l.b16 %v2345
        %v2937 = vunpack.c.h.b16 %v2345
        %v2938 = vunpack.c.l.b16 %v2346
        %v2939 = vunpack.c.h.b16 %v2346
        %v2940 = vunpack.c.l.b16 %v2347
        %v2941 = vunpack.c.h.b16 %v2347
        %v2942 = vunpack.c.l.b16 %v2348
        %v2943 = vunpack.c.h.b16 %v2348
        %v2944 = vunpack.c.l.b16 %v2349
        %v2945 = vunpack.c.h.b16 %v2349
        %v2946 = vunpack.c.l.b16 %v2350
        %v2947 = vunpack.c.h.b16 %v2350
        %v2948 = vunpack.c.l.b16 %v2351
        %v2949 = vunpack.c.h.b16 %v2351
        %v2950 = vunpack.c.l.b16 %v2352
        %v2951 = vunpack.c.h.b16 %v2352
        %v2952 = vunpack.c.l.b16 %v2353
        %v2953 = vunpack.c.h.b16 %v2353
        %v2954 = vunpack.c.l.b16 %v2354
        %v2955 = vunpack.c.h.b16 %v2354
        %v2956 = vunpack.c.l.b16 %v2355
        %v2957 = vunpack.c.h.b16 %v2355
        %v2958 = vunpack.c.l.b16 %v2356
        %v2959 = vunpack.c.h.b16 %v2356
        %v2960 = vunpack.c.l.b16 %v2357
        %v2961 = vunpack.c.h.b16 %v2357
        %v2962 = vunpack.c.l.b16 %v2358
        %v2963 = vunpack.c.h.b16 %v2358
        %v2964 = vunpack.c.l.b16 %v2359
        %v2965 = vunpack.c.h.b16 %v2359
        %v2966 = vunpack.c.l.b16 %v2360
        %v2967 = vunpack.c.h.b16 %v2360
        %v2968 = vunpack.c.l.b16 %v2361
        %v2969 = vunpack.c.h.b16 %v2361
        %v2970 = vunpack.c.l.b16 %v2362
        %v2971 = vunpack.c.h.b16 %v2362
        %v2972 = vunpack.c.l.b16 %v2363
        %v2973 = vunpack.c.h.b16 %v2363
        %v2974 = vunpack.c.l.b16 %v2364
        %v2975 = vunpack.c.h.b16 %v2364
        %v2976 = vunpack.c.l.b16 %v2365
        %v2977 = vunpack.c.h.b16 %v2365
        %v2978 = vunpack.c.l.b16 %v2366
        %v2979 = vunpack.c.h.b16 %v2366
        %v2980 = vunpack.c.l.b16 %v2367
        %v2981 = vunpack.c.h.b16 %v2367
        %v2982 = vunpack.c.l.b16 %v2368
        %v2983 = vunpack.c.h.b16 %v2368
        %v2984 = vunpack.c.l.b16 %v2369
        %v2985 = vunpack.c.h.b16 %v2369
        %v2986 = vunpack.c.l.b16 %v2370
        %v2987 = vunpack.c.h.b16 %v2370
        %v2988 = vunpack.c.l.b16 %v2371
        %v2989 = vunpack.c.h.b16 %v2371
        %v2990 = vunpack.c.l.b16 %v2372
        %v2991 = vunpack.c.h.b16 %v2372
        %v2992 = vunpack.c.l.b16 %v2373
        %v2993 = vunpack.c.h.b16 %v2373
        %v2994 = vunpack.c.l.b16 %v2374
        %v2995 = vunpack.c.h.b16 %v2374
        %v2996 = vunpack.c.l.b16 %v2375
        %v2997 = vunpack.c.h.b16 %v2375
        %v2998 = vunpack.c.l.b16 %v2376
        %v2999 = vunpack.c.h.b16 %v2376
        %v3000 = vunpack.c.l.b16 %v2377
        %v3001 = vunpack.c.h.b16 %v2377
        %v3002 = vunpack.c.l.b16 %v2378
        %v3003 = vunpack.c.h.b16 %v2378
        %v3004 = vunpack.c.l.b16 %v2379
        %v3005 = vunpack.c.h.b16 %v2379
        %v3006 = vunpack.c.l.b16 %v2380
        %v3007 = vunpack.c.h.b16 %v2380
        %v3008 = vunpack.c.l.b16 %v2381
        %v3009 = vunpack.c.h.b16 %v2381
        %v3010 = vunpack.c.l.b16 %v2382
        %v3011 = vunpack.c.h.b16 %v2382
        %v3012 = vunpack.c.l.b16 %v2383
        %v3013 = vunpack.c.h.b16 %v2383
        %v3014 = vunpack.c.l.b16 %v2384
        %v3015 = vunpack.c.h.b16 %v2384
        %v3016 = vunpack.c.l.b16 %v2385
        %v3017 = vunpack.c.h.b16 %v2385
        %v3018 = vunpack.c.l.b16 %v2386
        %v3019 = vunpack.c.h.b16 %v2386
        %v3020 = vunpack.c.l.b16 %v2387
        %v3021 = vunpack.c.h.b16 %v2387
        %v3022 = vunpack.c.l.b16 %v2388
        %v3023 = vunpack.c.h.b16 %v2388
        %v3024 = vunpack.c.l.b16 %v2389
        %v3025 = vunpack.c.h.b16 %v2389
        %v3026 = vunpack.c.l.b16 %v2390
        %v3027 = vunpack.c.h.b16 %v2390
        %v3028 = vunpack.c.l.b16 %v2391
        %v3029 = vunpack.c.h.b16 %v2391
        %v3030 = vunpack.c.l.b16 %v2392
        %v3031 = vunpack.c.h.b16 %v2392
        %v3032 = vunpack.c.l.b16 %v2393
        %v3033 = vunpack.c.h.b16 %v2393
        %v3034 = vunpack.c.l.b16 %v2394
        %v3035 = vunpack.c.h.b16 %v2394
        %v3036 = vunpack.c.l.b16 %v2395
        %v3037 = vunpack.c.h.b16 %v2395
        %v3038 = vunpack.c.l.b16 %v2396
        %v3039 = vunpack.c.h.b16 %v2396
        %v3040 = vunpack.c.l.b16 %v2397
        %v3041 = vunpack.c.h.b16 %v2397
        %v3042 = vunpack.c.l.b16 %v2398
        %v3043 = vunpack.c.h.b16 %v2398
        %v3044 = vunpack.c.l.b16 %v2399
        %v3045 = vunpack.c.h.b16 %v2399
        %v3046 = vunpack.c.l.b16 %v2400
        %v3047 = vunpack.c.h.b16 %v2400
        %v3048 = vunpack.c.l.b16 %v2401
        %v3049 = vunpack.c.h.b16 %v2401
        %v3050 = vunpack.c.l.b16 %v2402
        %v3051 = vunpack.c.h.b16 %v2402
        %v3052 = vunpack.c.l.b16 %v2403
        %v3053 = vunpack.c.h.b16 %v2403
        %v3054 = vunpack.c.l.b16 %v2404
        %v3055 = vunpack.c.h.b16 %v2404
        %v3056 = vunpack.c.l.b16 %v2405
        %v3057 = vunpack.c.h.b16 %v2405
        %v3058 = vunpack.c.l.b16 %v2406
        %v3059 = vunpack.c.h.b16 %v2406
        %v3060 = vunpack.c.l.b16 %v2407
        %v3061 = vunpack.c.h.b16 %v2407
        %v3062 = vunpack.c.l.b16 %v2408
        %v3063 = vunpack.c.h.b16 %v2408
        %v3064 = vunpack.c.l.b16 %v2409
        %v3065 = vunpack.c.h.b16 %v2409
        %v3066 = vunpack.c.l.b16 %v2410
        %v3067 = vunpack.c.h.b16 %v2410
        %v3068 = vunpack.c.l.b16 %v2411
        %v3069 = vunpack.c.h.b16 %v2411
        %v3070 = vunpack.c.l.b16 %v2412
        %v3071 = vunpack.c.h.b16 %v2412
        %v3072 = vunpack.c.l.b16 %v2413
        %v3073 = vunpack.c.h.b16 %v2413
        %v3074 = vunpack.c.l.b16 %v2414
        %v3075 = vunpack.c.h.b16 %v2414
        %v3076 = vunpack.c.l.b16 %v2415
        %v3077 = vunpack.c.h.b16 %v2415
        %v3078 = vunpack.c.l.b16 %v2416
        %v3079 = vunpack.c.h.b16 %v2416
        %v3080 = vunpack.c.l.b16 %v2417
        %v3081 = vunpack.c.h.b16 %v2417
        %v3082 = vunpack.c.l.b16 %v2418
        %v3083 = vunpack.c.h.b16 %v2418
        %v3084 = vunpack.c.l.b16 %v2419
        %v3085 = vunpack.c.h.b16 %v2419
        %v3086 = vunpack.c.l.b16 %v2420
        %v3087 = vunpack.c.h.b16 %v2420
        %v3088 = vunpack.c.l.b16 %v2421
        %v3089 = vunpack.c.h.b16 %v2421
        %v3090 = vunpack.c.l.b16 %v2422
        %v3091 = vunpack.c.h.b16 %v2422
        %v3092 = vunpack.c.l.b16 %v2423
        %v3093 = vunpack.c.h.b16 %v2423
        %v3094 = vunpack.c.l.b16 %v2424
        %v3095 = vunpack.c.h.b16 %v2424
        %v3096 = vunpack.c.l.b16 %v2425
        %v3097 = vunpack.c.h.b16 %v2425
        %v3098 = vunpack.c.l.b16 %v2426
        %v3099 = vunpack.c.h.b16 %v2426
        %v3100 = vunpack.c.l.b16 %v2427
        %v3101 = vunpack.c.h.b16 %v2427
        %v3102 = vunpack.c.l.b16 %v2428
        %v3103 = vunpack.c.h.b16 %v2428
        %v3104 = vunpack.c.l.b16 %v2429
        %v3105 = vunpack.c.h.b16 %v2429
        %v3106 = vunpack.c.l.b16 %v2430
        %v3107 = vunpack.c.h.b16 %v2430
        %v3108 = vunpack.c.l.b16 %v2431
        %v3109 = vunpack.c.h.b16 %v2431
        %v3110 = vunpack.c.l.b16 %v2432
        %v3111 = vunpack.c.h.b16 %v2432
        %v3112 = vunpack.c.l.b16 %v2433
        %v3113 = vunpack.c.h.b16 %v2433
        %v3114 = vunpack.c.l.b16 %v2434
        %v3115 = vunpack.c.h.b16 %v2434
        %v3116 = vunpack.c.l.b16 %v2435
        %v3117 = vunpack.c.h.b16 %v2435
        %v3118 = vunpack.c.l.b16 %v2436
        %v3119 = vunpack.c.h.b16 %v2436
        %v3120 = vunpack.c.l.b16 %v2437
        %v3121 = vunpack.c.h.b16 %v2437
        %v3122 = vunpack.c.l.b16 %v2438
        %v3123 = vunpack.c.h.b16 %v2438
        %v3124 = vunpack.c.l.b16 %v2439
        %v3125 = vunpack.c.h.b16 %v2439
        %v3126 = vunpack.c.l.b16 %v2440
        %v3127 = vunpack.c.h.b16 %v2440
        %v3128 = vunpack.c.l.b16 %v2441
        %v3129 = vunpack.c.h.b16 %v2441
        %v3130 = vunpack.c.l.b16 %v2442
        %v3131 = vunpack.c.h.b16 %v2442
        %v3132 = vunpack.c.l.b16 %v2443
        %v3133 = vunpack.c.h.b16 %v2443
        %v3134 = vunpack.c.l.b16 %v2444
        %v3135 = vunpack.c.h.b16 %v2444
        %v3136 = vunpack.c.l.b16 %v2445
        %v3137 = vunpack.c.h.b16 %v2445
        %v3138 = vunpack.c.l.b16 %v2446
        %v3139 = vunpack.c.h.b16 %v2446
        %v3140 = vunpack.c.l.b16 %v2447
        %v3141 = vunpack.c.h.b16 %v2447
        %v3142 = vunpack.c.l.b16 %v2448
        %v3143 = vunpack.c.h.b16 %v2448
        %v3144 = vunpack.c.l.b16 %v2449
        %v3145 = vunpack.c.h.b16 %v2449
        %v3146 = vunpack.c.l.b16 %v2450
        %v3147 = vunpack.c.h.b16 %v2450
        %v3148 = vunpack.c.l.b16 %v2451
        %v3149 = vunpack.c.h.b16 %v2451
        %v3150 = vunpack.c.l.b16 %v2452
        %v3151 = vunpack.c.h.b16 %v2452
        %v3152 = vunpack.c.l.b16 %v2453
        %v3153 = vunpack.c.h.b16 %v2453
        %v3154 = vunpack.c.l.b16 %v2454
        %v3155 = vunpack.c.h.b16 %v2454
        %v3156 = vunpack.c.l.b16 %v2455
        %v3157 = vunpack.c.h.b16 %v2455
        %v3158 = vunpack.c.l.b16 %v2456
        %v3159 = vunpack.c.h.b16 %v2456
        %v3160 = vunpack.c.l.b16 %v2457
        %v3161 = vunpack.c.h.b16 %v2457
        %v3162 = vunpack.c.l.b16 %v2458
        %v3163 = vunpack.c.h.b16 %v2458
        %v3164 = vunpack.c.l.b16 %v2459
        %v3165 = vunpack.c.h.b16 %v2459
        %v3166 = vunpack.c.l.b16 %v2460
        %v3167 = vunpack.c.h.b16 %v2460
        %v3168 = vunpack.c.l.b16 %v2461
        %v3169 = vunpack.c.h.b16 %v2461
        %v3170 = vunpack.c.l.b16 %v2462
        %v3171 = vunpack.c.h.b16 %v2462
        %v3172 = vunpack.c.l.b16 %v2463
        %v3173 = vunpack.c.h.b16 %v2463
        %v3174 = vunpack.c.l.b16 %v2464
        %v3175 = vunpack.c.h.b16 %v2464
        %v3176 = vunpack.c.l.b16 %v2465
        %v3177 = vunpack.c.h.b16 %v2465
        %v3178 = vunpack.c.l.b16 %v2466
        %v3179 = vunpack.c.h.b16 %v2466
        %v3180 = vunpack.c.l.b16 %v2467
        %v3181 = vunpack.c.h.b16 %v2467
        %v3182 = vunpack.c.l.b16 %v2468
        %v3183 = vunpack.c.h.b16 %v2468
        %v3184 = vunpack.c.l.b16 %v2469
        %v3185 = vunpack.c.h.b16 %v2469
        %v3186 = vunpack.c.l.b16 %v2470
        %v3187 = vunpack.c.h.b16 %v2470
        %v3188 = vunpack.c.l.b16 %v2471
        %v3189 = vunpack.c.h.b16 %v2471
        %v3190 = vunpack.c.l.b16 %v2472
        %v3191 = vunpack.c.h.b16 %v2472
        %v3192 = vunpack.c.l.b16 %v2473
        %v3193 = vunpack.c.h.b16 %v2473
        %v3194 = vunpack.c.l.b16 %v2474
        %v3195 = vunpack.c.h.b16 %v2474
        %v3196 = vunpack.c.l.b16 %v2475
        %v3197 = vunpack.c.h.b16 %v2475
        %v3198 = vunpack.c.l.b16 %v2476
        %v3199 = vunpack.c.h.b16 %v2476
        %v3200 = vunpack.c.l.b16 %v2477
        %v3201 = vunpack.c.h.b16 %v2477
        %v3202 = vunpack.c.l.b16 %v2478
        %v3203 = vunpack.c.h.b16 %v2478
        %v3204 = vunpack.c.l.b16 %v2479
        %v3205 = vunpack.c.h.b16 %v2479
        %v3206 = vunpack.c.l.b16 %v2480
        %v3207 = vunpack.c.h.b16 %v2480
        %v3208 = vunpack.c.l.b16 %v2481
        %v3209 = vunpack.c.h.b16 %v2481
        %v3210 = vunpack.c.l.b16 %v2482
        %v3211 = vunpack.c.h.b16 %v2482
        %v3212 = vunpack.c.l.b16 %v2483
        %v3213 = vunpack.c.h.b16 %v2483
        %v3214 = vunpack.c.l.b16 %v2484
        %v3215 = vunpack.c.h.b16 %v2484
        %v3216 = vunpack.c.l.b16 %v2485
        %v3217 = vunpack.c.h.b16 %v2485
        %v3218 = vunpack.c.l.b16 %v2486
        %v3219 = vunpack.c.h.b16 %v2486
        %v3220 = vunpack.c.l.b16 %v2487
        %v3221 = vunpack.c.h.b16 %v2487
        %v3222 = vunpack.c.l.b16 %v2488
        %v3223 = vunpack.c.h.b16 %v2488
        %v3224 = vunpack.c.l.b16 %v2489
        %v3225 = vunpack.c.h.b16 %v2489
        %v3226 = vunpack.c.l.b16 %v2490
        %v3227 = vunpack.c.h.b16 %v2490
        %v3228 = vunpack.c.l.b16 %v2491
        %v3229 = vunpack.c.h.b16 %v2491
        %v3230 = vunpack.c.l.b16 %v2492
        %v3231 = vunpack.c.h.b16 %v2492
        %v3232 = vunpack.c.l.b16 %v2493
        %v3233 = vunpack.c.h.b16 %v2493
        %v3234 = vunpack.c.l.b16 %v2494
        %v3235 = vunpack.c.h.b16 %v2494
        %v3236 = vunpack.c.l.b16 %v2495
        %v3237 = vunpack.c.h.b16 %v2495
        %v3238 = vunpack.c.l.b16 %v2496
        %v3239 = vunpack.c.h.b16 %v2496
        %v3240 = vunpack.c.l.b16 %v2497
        %v3241 = vunpack.c.h.b16 %v2497
        %v3242 = vunpack.c.l.b16 %v2498
        %v3243 = vunpack.c.h.b16 %v2498
        %v3244 = vunpack.c.l.b16 %v2499
        %v3245 = vunpack.c.h.b16 %v2499
        %v3246 = vunpack.c.l.b16 %v2500
        %v3247 = vunpack.c.h.b16 %v2500
        %v3248 = vunpack.c.l.b16 %v2501
        %v3249 = vunpack.c.h.b16 %v2501
        %v3250 = vunpack.c.l.b16 %v2502
        %v3251 = vunpack.c.h.b16 %v2502
        %v3252 = vunpack.c.l.b16 %v2503
        %v3253 = vunpack.c.h.b16 %v2503
        %v3254 = vunpack.c.l.b16 %v2504
        %v3255 = vunpack.c.h.b16 %v2504
        %v3256 = vunpack.c.l.b16 %v2505
        %v3257 = vunpack.c.h.b16 %v2505
        %v3258 = vunpack.c.l.b16 %v2506
        %v3259 = vunpack.c.h.b16 %v2506
        %v3260 = vunpack.c.l.b16 %v2507
        %v3261 = vunpack.c.h.b16 %v2507
        %v3262 = vunpack.c.l.b16 %v2508
        %v3263 = vunpack.c.h.b16 %v2508
        %v3264 = vunpack.c.l.b16 %v2509
        %v3265 = vunpack.c.h.b16 %v2509
        %v3266 = vunpack.c.l.b16 %v2510
        %v3267 = vunpack.c.h.b16 %v2510
        %v3268 = vunpack.c.l.b16 %v2511
        %v3269 = vunpack.c.h.b16 %v2511
        %v3270 = vunpack.c.l.b16 %v2512
        %v3271 = vunpack.c.h.b16 %v2512
        %v3272 = vunpack.c.l.b16 %v2513
        %v3273 = vunpack.c.h.b16 %v2513
        %v3274 = vunpack.c.l.b16 %v2514
        %v3275 = vunpack.c.h.b16 %v2514
        %v3276 = vunpack.c.l.b16 %v2515
        %v3277 = vunpack.c.h.b16 %v2515
        %v3278 = vunpack.c.l.b16 %v2516
        %v3279 = vunpack.c.h.b16 %v2516
        %v3280 = vunpack.c.l.b16 %v2517
        %v3281 = vunpack.c.h.b16 %v2517
        %v3282 = vunpack.c.l.b16 %v2518
        %v3283 = vunpack.c.h.b16 %v2518
        %v3284 = vunpack.c.l.b16 %v2519
        %v3285 = vunpack.c.h.b16 %v2519
        %v3286 = vunpack.c.l.b16 %v2520
        %v3287 = vunpack.c.h.b16 %v2520
        %v3288 = vunpack.c.l.b16 %v2521
        %v3289 = vunpack.c.h.b16 %v2521
        %v3290 = vunpack.c.l.b16 %v2522
        %v3291 = vunpack.c.h.b16 %v2522
        %v3292 = vunpack.c.l.b16 %v2523
        %v3293 = vunpack.c.h.b16 %v2523
        %v3294 = vunpack.c.l.b16 %v2524
        %v3295 = vunpack.c.h.b16 %v2524
        %v3296 = vunpack.c.l.b16 %v2525
        %v3297 = vunpack.c.h.b16 %v2525
        %v3298 = vunpack.c.l.b16 %v2526
        %v3299 = vunpack.c.h.b16 %v2526
        %v3300 = vunpack.c.l.b16 %v2527
        %v3301 = vunpack.c.h.b16 %v2527
        %v3302 = vunpack.c.l.b16 %v2528
        %v3303 = vunpack.c.h.b16 %v2528
        %v3304 = vunpack.c.l.b16 %v2529
        %v3305 = vunpack.c.h.b16 %v2529
        %v3306 = vunpack.c.l.b16 %v2530
        %v3307 = vunpack.c.h.b16 %v2530
        %v3308 = vunpack.c.l.b16 %v2531
        %v3309 = vunpack.c.h.b16 %v2531
        %v3310 = vunpack.c.l.b16 %v2532
        %v3311 = vunpack.c.h.b16 %v2532
        %v3312 = vunpack.c.l.b16 %v2533
        %v3313 = vunpack.c.h.b16 %v2533
        %v3314 = vunpack.c.l.b16 %v2534
        %v3315 = vunpack.c.h.b16 %v2534
        %v3316 = vunpack.c.l.b16 %v2535
        %v3317 = vunpack.c.h.b16 %v2535
        %v3318 = vunpack.c.l.b16 %v2536
        %v3319 = vunpack.c.h.b16 %v2536
        %v3320 = vunpack.c.l.b16 %v2537
        %v3321 = vunpack.c.h.b16 %v2537
        %v3322 = vunpack.c.l.b16 %v2538
        %v3323 = vunpack.c.h.b16 %v2538
        %v3324 = vunpack.c.l.b16 %v2539
        %v3325 = vunpack.c.h.b16 %v2539
        %v3326 = vunpack.c.l.b16 %v2540
        %v3327 = vunpack.c.h.b16 %v2540
        %v3328 = vunpack.c.l.b16 %v2541
        %v3329 = vunpack.c.h.b16 %v2541
        %v3330 = vunpack.c.l.b16 %v2542
        %v3331 = vunpack.c.h.b16 %v2542
        %v3332 = vunpack.c.l.b16 %v2543
        %v3333 = vunpack.c.h.b16 %v2543
        %v3334 = vunpack.c.l.b16 %v2544
        %v3335 = vunpack.c.h.b16 %v2544
        %v3336 = vunpack.c.l.b16 %v2545
        %v3337 = vunpack.c.h.b16 %v2545
        %v3338 = vunpack.c.l.b16 %v2546
        %v3339 = vunpack.c.h.b16 %v2546
        %v3340 = vunpack.c.l.b16 %v2547
        %v3341 = vunpack.c.h.b16 %v2547
        %v3342 = vunpack.c.l.b16 %v2548
        %v3343 = vunpack.c.h.b16 %v2548
        %v3344 = vunpack.c.l.b16 %v2549
        %v3345 = vunpack.c.h.b16 %v2549
        %v3346 = vunpack.c.l.b16 %v2550
        %v3347 = vunpack.c.h.b16 %v2550
        %v3348 = vunpack.c.l.b16 %v2551
        %v3349 = vunpack.c.h.b16 %v2551
        %v3350 = vunpack.c.l.b16 %v2552
        %v3351 = vunpack.c.h.b16 %v2552
        %v3352 = vunpack.c.l.b16 %v2553
        %v3353 = vunpack.c.h.b16 %v2553
        %v3354 = vunpack.c.l.b16 %v2554
        %v3355 = vunpack.c.h.b16 %v2554
        %v3356 = vunpack.c.l.b16 %v2555
        %v3357 = vunpack.c.h.b16 %v2555
        %v3358 = vunpack.c.l.b16 %v2556
        %v3359 = vunpack.c.h.b16 %v2556
        %v3360 = vunpack.c.l.b16 %v2557
        %v3361 = vunpack.c.h.b16 %v2557
        %v3362 = vunpack.c.l.b16 %v2558
        %v3363 = vunpack.c.h.b16 %v2558
        %v3364 = vunpack.c.l.b16 %v2559
        %v3365 = vunpack.c.h.b16 %v2559
        %v3366 = vunpack.c.l.b16 %v2560
        %v3367 = vunpack.c.h.b16 %v2560
        %v3368 = vunpack.c.l.b16 %v2561
        %v3369 = vunpack.c.h.b16 %v2561
        %v3370 = vunpack.c.l.b16 %v2562
        %v3371 = vunpack.c.h.b16 %v2562
        %v3372 = vunpack.c.l.b16 %v2563
        %v3373 = vunpack.c.h.b16 %v2563
        %v3374 = vpack.c.b16 %v2864, %v2862
        %v3375 = vpack.c.b16 %v2865, %v2863
        %v3376 = vpack.c.b16 %v2868, %v2866
        %v3377 = vpack.c.b16 %v2869, %v2867
        %v3378 = vpack.c.b16 %v2872, %v2870
        %v3379 = vpack.c.b16 %v2873, %v2871
        %v3380 = vpack.c.b16 %v2876, %v2874
        %v3381 = vpack.c.b16 %v2877, %v2875
        %v3382 = vpack.c.b16 %v2880, %v2878
        %v3383 = vpack.c.b16 %v2881, %v2879
        %v3384 = vpack.c.b16 %v2884, %v2882
        %v3385 = vpack.c.b16 %v2885, %v2883
        %v3386 = vpack.c.b16 %v2888, %v2886
        %v3387 = vpack.c.b16 %v2889, %v2887
        %v3388 = vpack.c.b16 %v2892, %v2890
        %v3389 = vpack.c.b16 %v2893, %v2891
        %v3390 = vpack.c.b16 %v2896, %v2894
        %v3391 = vpack.c.b16 %v2897, %v2895
        %v3392 = vpack.c.b16 %v2900, %v2898
        %v3393 = vpack.c.b16 %v2901, %v2899
        %v3394 = vpack.c.b16 %v2904, %v2902
        %v3395 = vpack.c.b16 %v2905, %v2903
        %v3396 = vpack.c.b16 %v2908, %v2906
        %v3397 = vpack.c.b16 %v2909, %v2907
        %v3398 = vpack.c.b16 %v2912, %v2910
        %v3399 = vpack.c.b16 %v2913, %v2911
        %v3400 = vpack.c.b16 %v2916, %v2914
        %v3401 = vpack.c.b16 %v2917, %v2915
        %v3402 = vpack.c.b16 %v2920, %v2918
        %v3403 = vpack.c.b16 %v2921, %v2919
        %v3404 = vpack.c.b16 %v2924, %v2922
        %v3405 = vpack.c.b16 %v2925, %v2923
        %v3406 = vpack.c.b16 %v2928, %v2926
        %v3407 = vpack.c.b16 %v2929, %v2927
        %v3408 = vpack.c.b16 %v2932, %v2930
        %v3409 = vpack.c.b16 %v2933, %v2931
        %v3410 = vpack.c.b16 %v2936, %v2934
        %v3411 = vpack.c.b16 %v2937, %v2935
        %v3412 = vpack.c.b16 %v2940, %v2938
        %v3413 = vpack.c.b16 %v2941, %v2939
        %v3414 = vpack.c.b16 %v2944, %v2942
        %v3415 = vpack.c.b16 %v2945, %v2943
        %v3416 = vpack.c.b16 %v2948, %v2946
        %v3417 = vpack.c.b16 %v2949, %v2947
        %v3418 = vpack.c.b16 %v2952, %v2950
        %v3419 = vpack.c.b16 %v2953, %v2951
        %v3420 = vpack.c.b16 %v2956, %v2954
        %v3421 = vpack.c.b16 %v2957, %v2955
        %v3422 = vpack.c.b16 %v2960, %v2958
        %v3423 = vpack.c.b16 %v2961, %v2959
        %v3424 = vpack.c.b16 %v2964, %v2962
        %v3425 = vpack.c.b16 %v2965, %v2963
        %v3426 = vpack.c.b16 %v2968, %v2966
        %v3427 = vpack.c.b16 %v2969, %v2967
        %v3428 = vpack.c.b16 %v2972, %v2970
        %v3429 = vpack.c.b16 %v2973, %v2971
        %v3430 = vpack.c.b16 %v2976, %v2974
        %v3431 = vpack.c.b16 %v2977, %v2975
        %v3432 = vpack.c.b16 %v2980, %v2978
        %v3433 = vpack.c.b16 %v2981, %v2979
        %v3434 = vpack.c.b16 %v2984, %v2982
        %v3435 = vpack.c.b16 %v2985, %v2983
        %v3436 = vpack.c.b16 %v2988, %v2986
        %v3437 = vpack.c.b16 %v2989, %v2987
        %v3438 = vpack.c.b16 %v2992, %v2990
        %v3439 = vpack.c.b16 %v2993, %v2991
        %v3440 = vpack.c.b16 %v2996, %v2994
        %v3441 = vpack.c.b16 %v2997, %v2995
        %v3442 = vpack.c.b16 %v3000, %v2998
        %v3443 = vpack.c.b16 %v3001, %v2999
        %v3444 = vpack.c.b16 %v3004, %v3002
        %v3445 = vpack.c.b16 %v3005, %v3003
        %v3446 = vpack.c.b16 %v3008, %v3006
        %v3447 = vpack.c.b16 %v3009, %v3007
        %v3448 = vpack.c.b16 %v3012, %v3010
        %v3449 = vpack.c.b16 %v3013, %v3011
        %v3450 = vpack.c.b16 %v3016, %v3014
        %v3451 = vpack.c.b16 %v3017, %v3015
        %v3452 = vpack.c.b16 %v3020, %v3018
        %v3453 = vpack.c.b16 %v3021, %v3019
        %v3454 = vpack.c.b16 %v3024, %v3022
        %v3455 = vpack.c.b16 %v3025, %v3023
        %v3456 = vpack.c.b16 %v3028, %v3026
        %v3457 = vpack.c.b16 %v3029, %v3027
        %v3458 = vpack.c.b16 %v3032, %v3030
        %v3459 = vpack.c.b16 %v3033, %v3031
        %v3460 = vpack.c.b16 %v3036, %v3034
        %v3461 = vpack.c.b16 %v3037, %v3035
        %v3462 = vpack.c.b16 %v3040, %v3038
        %v3463 = vpack.c.b16 %v3041, %v3039
        %v3464 = vpack.c.b16 %v3044, %v3042
        %v3465 = vpack.c.b16 %v3045, %v3043
        %v3466 = vpack.c.b16 %v3048, %v3046
        %v3467 = vpack.c.b16 %v3049, %v3047
        %v3468 = vpack.c.b16 %v3052, %v3050
        %v3469 = vpack.c.b16 %v3053, %v3051
        %v3470 = vpack.c.b16 %v3056, %v3054
        %v3471 = vpack.c.b16 %v3057, %v3055
        %v3472 = vpack.c.b16 %v3060, %v3058
        %v3473 = vpack.c.b16 %v3061, %v3059
        %v3474 = vpack.c.b16 %v3064, %v3062
        %v3475 = vpack.c.b16 %v3065, %v3063
        %v3476 = vpack.c.b16 %v3068, %v3066
        %v3477 = vpack.c.b16 %v3069, %v3067
        %v3478 = vpack.c.b16 %v3072, %v3070
        %v3479 = vpack.c.b16 %v3073, %v3071
        %v3480 = vpack.c.b16 %v3076, %v3074
        %v3481 = vpack.c.b16 %v3077, %v3075
        %v3482 = vpack.c.b16 %v3080, %v3078
        %v3483 = vpack.c.b16 %v3081, %v3079
        %v3484 = vpack.c.b16 %v3084, %v3082
        %v3485 = vpack.c.b16 %v3085, %v3083
        %v3486 = vpack.c.b16 %v3088, %v3086
        %v3487 = vpack.c.b16 %v3089, %v3087
        %v3488 = vpack.c.b16 %v3092, %v3090
        %v3489 = vpack.c.b16 %v3093, %v3091
        %v3490 = vpack.c.b16 %v3096, %v3094
        %v3491 = vpack.c.b16 %v3097, %v3095
        %v3492 = vpack.c.b16 %v3100, %v3098
        %v3493 = vpack.c.b16 %v3101, %v3099
        %v3494 = vpack.c.b16 %v3104, %v3102
        %v3495 = vpack.c.b16 %v3105, %v3103
        %v3496 = vpack.c.b16 %v3108, %v3106
        %v3497 = vpack.c.b16 %v3109, %v3107
        %v3498 = vpack.c.b16 %v3112, %v3110
        %v3499 = vpack.c.b16 %v3113, %v3111
        %v3500 = vpack.c.b16 %v3116, %v3114
        %v3501 = vpack.c.b16 %v3117, %v3115
        %v3502 = vpack.c.b16 %v3120, %v3118
        %v3503 = vpack.c.b16 %v3121, %v3119
        %v3504 = vpack.c.b16 %v3124, %v3122
        %v3505 = vpack.c.b16 %v3125, %v3123
        %v3506 = vpack.c.b16 %v3128, %v3126
        %v3507 = vpack.c.b16 %v3129, %v3127
        %v3508 = vpack.c.b16 %v3132, %v3130
        %v3509 = vpack.c.b16 %v3133, %v3131
        %v3510 = vpack.c.b16 %v3136, %v3134
        %v3511 = vpack.c.b16 %v3137, %v3135
        %v3512 = vpack.c.b16 %v3140, %v3138
        %v3513 = vpack.c.b16 %v3141, %v3139
        %v3514 = vpack.c.b16 %v3144, %v3142
        %v3515 = vpack.c.b16 %v3145, %v3143
        %v3516 = vpack.c.b16 %v3148, %v3146
        %v3517 = vpack.c.b16 %v3149, %v3147
        %v3518 = vpack.c.b16 %v3152, %v3150
        %v3519 = vpack.c.b16 %v3153, %v3151
        %v3520 = vpack.c.b16 %v3156, %v3154
        %v3521 = vpack.c.b16 %v3157, %v3155
        %v3522 = vpack.c.b16 %v3160, %v3158
        %v3523 = vpack.c.b16 %v3161, %v3159
        %v3524 = vpack.c.b16 %v3164, %v3162
        %v3525 = vpack.c.b16 %v3165, %v3163
        %v3526 = vpack.c.b16 %v3168, %v3166
        %v3527 = vpack.c.b16 %v3169, %v3167
        %v3528 = vpack.c.b16 %v3172, %v3170
        %v3529 = vpack.c.b16 %v3173, %v3171
        %v3530 = vpack.c.b16 %v3176, %v3174
        %v3531 = vpack.c.b16 %v3177, %v3175
        %v3532 = vpack.c.b16 %v3180, %v3178
        %v3533 = vpack.c.b16 %v3181, %v3179
        %v3534 = vpack.c.b16 %v3184, %v3182
        %v3535 = vpack.c.b16 %v3185, %v3183
        %v3536 = vpack.c.b16 %v3188, %v3186
        %v3537 = vpack.c.b16 %v3189, %v3187
        %v3538 = vpack.c.b16 %v3192, %v3190
        %v3539 = vpack.c.b16 %v3193, %v3191
        %v3540 = vpack.c.b16 %v3196, %v3194
        %v3541 = vpack.c.b16 %v3197, %v3195
        %v3542 = vpack.c.b16 %v3200, %v3198
        %v3543 = vpack.c.b16 %v3201, %v3199
        %v3544 = vpack.c.b16 %v3204, %v3202
        %v3545 = vpack.c.b16 %v3205, %v3203
        %v3546 = vpack.c.b16 %v3208, %v3206
        %v3547 = vpack.c.b16 %v3209, %v3207
        %v3548 = vpack.c.b16 %v3212, %v3210
        %v3549 = vpack.c.b16 %v3213, %v3211
        %v3550 = vpack.c.b16 %v3216, %v3214
        %v3551 = vpack.c.b16 %v3217, %v3215
        %v3552 = vpack.c.b16 %v3220, %v3218
        %v3553 = vpack.c.b16 %v3221, %v3219
        %v3554 = vpack.c.b16 %v3224, %v3222
        %v3555 = vpack.c.b16 %v3225, %v3223
        %v3556 = vpack.c.b16 %v3228, %v3226
        %v3557 = vpack.c.b16 %v3229, %v3227
        %v3558 = vpack.c.b16 %v3232, %v3230
        %v3559 = vpack.c.b16 %v3233, %v3231
        %v3560 = vpack.c.b16 %v3236, %v3234
        %v3561 = vpack.c.b16 %v3237, %v3235
        %v3562 = vpack.c.b16 %v3240, %v3238
        %v3563 = vpack.c.b16 %v3241, %v3239
        %v3564 = vpack.c.b16 %v3244, %v3242
        %v3565 = vpack.c.b16 %v3245, %v3243
        %v3566 = vpack.c.b16 %v3248, %v3246
        %v3567 = vpack.c.b16 %v3249, %v3247
        %v3568 = vpack.c.b16 %v3252, %v3250
        %v3569 = vpack.c.b16 %v3253, %v3251
        %v3570 = vpack.c.b16 %v3256, %v3254
        %v3571 = vpack.c.b16 %v3257, %v3255
        %v3572 = vpack.c.b16 %v3260, %v3258
        %v3573 = vpack.c.b16 %v3261, %v3259
        %v3574 = vpack.c.b16 %v3264, %v3262
        %v3575 = vpack.c.b16 %v3265, %v3263
        %v3576 = vpack.c.b16 %v3268, %v3266
        %v3577 = vpack.c.b16 %v3269, %v3267
        %v3578 = vpack.c.b16 %v3272, %v3270
        %v3579 = vpack.c.b16 %v3273, %v3271
        %v3580 = vpack.c.b16 %v3276, %v3274
        %v3581 = vpack.c.b16 %v3277, %v3275
        %v3582 = vpack.c.b16 %v3280, %v3278
        %v3583 = vpack.c.b16 %v3281, %v3279
        %v3584 = vpack.c.b16 %v3284, %v3282
        %v3585 = vpack.c.b16 %v3285, %v3283
        %v3586 = vpack.c.b16 %v3288, %v3286
        %v3587 = vpack.c.b16 %v3289, %v3287
        %v3588 = vpack.c.b16 %v3292, %v3290
        %v3589 = vpack.c.b16 %v3293, %v3291
        %v3590 = vpack.c.b16 %v3296, %v3294
        %v3591 = vpack.c.b16 %v3297, %v3295
        %v3592 = vpack.c.b16 %v3300, %v3298
        %v3593 = vpack.c.b16 %v3301, %v3299
        %v3594 = vpack.c.b16 %v3304, %v3302
        %v3595 = vpack.c.b16 %v3305, %v3303
        %v3596 = vpack.c.b16 %v3308, %v3306
        %v3597 = vpack.c.b16 %v3309, %v3307
        %v3598 = vpack.c.b16 %v3312, %v3310
        %v3599 = vpack.c.b16 %v3313, %v3311
        %v3600 = vpack.c.b16 %v3316, %v3314
        %v3601 = vpack.c.b16 %v3317, %v3315
        %v3602 = vpack.c.b16 %v3320, %v3318
        %v3603 = vpack.c.b16 %v3321, %v3319
        %v3604 = vpack.c.b16 %v3324, %v3322
        %v3605 = vpack.c.b16 %v3325, %v3323
        %v3606 = vpack.c.b16 %v3328, %v3326
        %v3607 = vpack.c.b16 %v3329, %v3327
        %v3608 = vpack.c.b16 %v3332, %v3330
        %v3609 = vpack.c.b16 %v3333, %v3331
        %v3610 = vpack.c.b16 %v3336, %v3334
        %v3611 = vpack.c.b16 %v3337, %v3335
        %v3612 = vpack.c.b16 %v3340, %v3338
        %v3613 = vpack.c.b16 %v3341, %v3339
        %v3614 = vpack.c.b16 %v3344, %v3342
        %v3615 = vpack.c.b16 %v3345, %v3343
        %v3616 = vpack.c.b16 %v3348, %v3346
        %v3617 = vpack.c.b16 %v3349, %v3347
        %v3618 = vpack.c.b16 %v3352, %v3350
        %v3619 = vpack.c.b16 %v3353, %v3351
        %v3620 = vpack.c.b16 %v3356, %v3354
        %v3621 = vpack.c.b16 %v3357, %v3355
        %v3622 = vpack.c.b16 %v3360, %v3358
        %v3623 = vpack.c.b16 %v3361, %v3359
        %v3624 = vpack.c.b16 %v3364, %v3362
        %v3625 = vpack.c.b16 %v3365, %v3363
        %v3626 = vpack.c.b16 %v3368, %v3366
        %v3627 = vpack.c.b16 %v3369, %v3367
        %v3628 = vpack.c.b16 %v3372, %v3370
        %v3629 = vpack.c.b16 %v3373, %v3371
        %3886 = vmatpush.bf16.msra.mxu0 %v3388
        %3887 = vmatpush.bf16.msra.mxu0 %v3386
        %3888 = vmatpush.bf16.msra.mxu0 %v3384
        %3889 = vmatpush.bf16.msra.mxu0 %v3382
        %3890 = vmatpush.bf16.msra.mxu0 %v3380
        %3891 = vmatpush.bf16.msra.mxu0 %v3378
        %3892 = vmatpush.bf16.msra.mxu0 %v3376
        %3893 = vmatpush.bf16.msra.mxu0 %v3374
        %3894 = vmatmul.bf16.gmra.mxu0 %v2572
        %v3895 = vpop.f32.mrf.mxu0
        %v3896 = vadd.f32 %v2566, %v3895
        %v3897 = vpop.f32.mrf.mxu0
        %3898 = vdwg.mxu0
        %3899 = vmatpush.bf16.msra.mxu0 %v3404
        %3900 = vmatpush.bf16.msra.mxu0 %v3402
        %3901 = vmatpush.bf16.msra.mxu0 %v3400
        %3902 = vmatpush.bf16.msra.mxu0 %v3398
        %3903 = vmatpush.bf16.msra.mxu0 %v3396
        %3904 = vmatpush.bf16.msra.mxu0 %v3394
        %3905 = vmatpush.bf16.msra.mxu0 %v3392
        %3906 = vmatpush.bf16.msra.mxu0 %v3390
        %3907 = vmatmul.bf16.gmra.mxu0 %v2573
        %v3908 = vpop.f32.mrf.mxu0
        %v3909 = vadd.f32 %v3896, %v3908
        %v3910 = vpop.f32.mrf.mxu0
        %3911 = vdwg.mxu0
        %3912 = vmatpush.bf16.msra.mxu0 %v3420
        %3913 = vmatpush.bf16.msra.mxu0 %v3418
        %3914 = vmatpush.bf16.msra.mxu0 %v3416
        %3915 = vmatpush.bf16.msra.mxu0 %v3414
        %3916 = vmatpush.bf16.msra.mxu0 %v3412
        %3917 = vmatpush.bf16.msra.mxu0 %v3410
        %3918 = vmatpush.bf16.msra.mxu0 %v3408
        %3919 = vmatpush.bf16.msra.mxu0 %v3406
        %3920 = vmatmul.bf16.gmra.mxu0 %v2574
        %v3921 = vpop.f32.mrf.mxu0
        %v3922 = vadd.f32 %v3909, %v3921
        %v3923 = vpop.f32.mrf.mxu0
        %3924 = vdwg.mxu0
        %3925 = vmatpush.bf16.msra.mxu0 %v3436
        %3926 = vmatpush.bf16.msra.mxu0 %v3434
        %3927 = vmatpush.bf16.msra.mxu0 %v3432
        %3928 = vmatpush.bf16.msra.mxu0 %v3430
        %3929 = vmatpush.bf16.msra.mxu0 %v3428
        %3930 = vmatpush.bf16.msra.mxu0 %v3426
        %3931 = vmatpush.bf16.msra.mxu0 %v3424
        %3932 = vmatpush.bf16.msra.mxu0 %v3422
        %3933 = vmatmul.bf16.gmra.mxu0 %v2575
        %v3934 = vpop.f32.mrf.mxu0
        %v3935 = vadd.f32 %v3922, %v3934
        %v3936 = vpop.f32.mrf.mxu0
        %3937 = vdwg.mxu0
        %3938 = vmatpush.bf16.msra.mxu0 %v3452
        %3939 = vmatpush.bf16.msra.mxu0 %v3450
        %3940 = vmatpush.bf16.msra.mxu0 %v3448
        %3941 = vmatpush.bf16.msra.mxu0 %v3446
        %3942 = vmatpush.bf16.msra.mxu0 %v3444
        %3943 = vmatpush.bf16.msra.mxu0 %v3442
        %3944 = vmatpush.bf16.msra.mxu0 %v3440
        %3945 = vmatpush.bf16.msra.mxu0 %v3438
        %3946 = vmatmul.bf16.gmra.mxu0 %v2576
        %v3947 = vpop.f32.mrf.mxu0
        %v3948 = vadd.f32 %v3935, %v3947
        %v3949 = vpop.f32.mrf.mxu0
        %3950 = vdwg.mxu0
        %3951 = vmatpush.bf16.msra.mxu0 %v3468
        %3952 = vmatpush.bf16.msra.mxu0 %v3466
        %3953 = vmatpush.bf16.msra.mxu0 %v3464
        %3954 = vmatpush.bf16.msra.mxu0 %v3462
        %3955 = vmatpush.bf16.msra.mxu0 %v3460
        %3956 = vmatpush.bf16.msra.mxu0 %v3458
        %3957 = vmatpush.bf16.msra.mxu0 %v3456
        %3958 = vmatpush.bf16.msra.mxu0 %v3454
        %3959 = vmatmul.bf16.gmra.mxu0 %v2577
        %v3960 = vpop.f32.mrf.mxu0
        %v3961 = vadd.f32 %v3948, %v3960
        %v3962 = vpop.f32.mrf.mxu0
        %3963 = vdwg.mxu0
        %3964 = vmatpush.bf16.msra.mxu0 %v3484
        %3965 = vmatpush.bf16.msra.mxu0 %v3482
        %3966 = vmatpush.bf16.msra.mxu0 %v3480
        %3967 = vmatpush.bf16.msra.mxu0 %v3478
        %3968 = vmatpush.bf16.msra.mxu0 %v3476
        %3969 = vmatpush.bf16.msra.mxu0 %v3474
        %3970 = vmatpush.bf16.msra.mxu0 %v3472
        %3971 = vmatpush.bf16.msra.mxu0 %v3470
        %3972 = vmatmul.bf16.gmra.mxu0 %v2578
        %v3973 = vpop.f32.mrf.mxu0
        %v3974 = vadd.f32 %v3961, %v3973
        %v3975 = vpop.f32.mrf.mxu0
        %3976 = vdwg.mxu0
        %3977 = vmatpush.bf16.msra.mxu0 %v3500
        %3978 = vmatpush.bf16.msra.mxu0 %v3498
        %3979 = vmatpush.bf16.msra.mxu0 %v3496
        %3980 = vmatpush.bf16.msra.mxu0 %v3494
        %3981 = vmatpush.bf16.msra.mxu0 %v3492
        %3982 = vmatpush.bf16.msra.mxu0 %v3490
        %3983 = vmatpush.bf16.msra.mxu0 %v3488
        %3984 = vmatpush.bf16.msra.mxu0 %v3486
        %3985 = vmatmul.bf16.gmra.mxu0 %v2579
        %v3986 = vpop.f32.mrf.mxu0
        %v3987 = vadd.f32 %v3974, %v3986
        %v3988 = vpop.f32.mrf.mxu0
        %3989 = vdwg.mxu0
        %3990 = vmatpush.bf16.msra.mxu0 %v3516
        %3991 = vmatpush.bf16.msra.mxu0 %v3514
        %3992 = vmatpush.bf16.msra.mxu0 %v3512
        %3993 = vmatpush.bf16.msra.mxu0 %v3510
        %3994 = vmatpush.bf16.msra.mxu0 %v3508
        %3995 = vmatpush.bf16.msra.mxu0 %v3506
        %3996 = vmatpush.bf16.msra.mxu0 %v3504
        %3997 = vmatpush.bf16.msra.mxu0 %v3502
        %3998 = vmatmul.bf16.gmra.mxu0 %v2582
        %v3999 = vpop.f32.mrf.mxu0
        %v4000 = vadd.f32 %v3987, %v3999
        %v4001 = vpop.f32.mrf.mxu0
        %4002 = vdwg.mxu0
        %4003 = vmatpush.bf16.msra.mxu0 %v3532
        %4004 = vmatpush.bf16.msra.mxu0 %v3530
        %4005 = vmatpush.bf16.msra.mxu0 %v3528
        %4006 = vmatpush.bf16.msra.mxu0 %v3526
        %4007 = vmatpush.bf16.msra.mxu0 %v3524
        %4008 = vmatpush.bf16.msra.mxu0 %v3522
        %4009 = vmatpush.bf16.msra.mxu0 %v3520
        %4010 = vmatpush.bf16.msra.mxu0 %v3518
        %4011 = vmatmul.bf16.gmra.mxu0 %v2583
        %v4012 = vpop.f32.mrf.mxu0
        %v4013 = vadd.f32 %v4000, %v4012
        %v4014 = vpop.f32.mrf.mxu0
        %4015 = vdwg.mxu0
        %4016 = vmatpush.bf16.msra.mxu0 %v3548
        %4017 = vmatpush.bf16.msra.mxu0 %v3546
        %4018 = vmatpush.bf16.msra.mxu0 %v3544
        %4019 = vmatpush.bf16.msra.mxu0 %v3542
        %4020 = vmatpush.bf16.msra.mxu0 %v3540
        %4021 = vmatpush.bf16.msra.mxu0 %v3538
        %4022 = vmatpush.bf16.msra.mxu0 %v3536
        %4023 = vmatpush.bf16.msra.mxu0 %v3534
        %4024 = vmatmul.bf16.gmra.mxu0 %v2584
        %v4025 = vpop.f32.mrf.mxu0
        %v4026 = vadd.f32 %v4013, %v4025
        %v4027 = vpop.f32.mrf.mxu0
        %4028 = vdwg.mxu0
        %4029 = vmatpush.bf16.msra.mxu0 %v3564
        %4030 = vmatpush.bf16.msra.mxu0 %v3562
        %4031 = vmatpush.bf16.msra.mxu0 %v3560
        %4032 = vmatpush.bf16.msra.mxu0 %v3558
        %4033 = vmatpush.bf16.msra.mxu0 %v3556
        %4034 = vmatpush.bf16.msra.mxu0 %v3554
        %4035 = vmatpush.bf16.msra.mxu0 %v3552
        %4036 = vmatpush.bf16.msra.mxu0 %v3550
        %4037 = vmatmul.bf16.gmra.mxu0 %v2585
        %v4038 = vpop.f32.mrf.mxu0
        %v4039 = vadd.f32 %v4026, %v4038
        %v4040 = vpop.f32.mrf.mxu0
        %4041 = vdwg.mxu0
        %4042 = vmatpush.bf16.msra.mxu0 %v3580
        %4043 = vmatpush.bf16.msra.mxu0 %v3578
        %4044 = vmatpush.bf16.msra.mxu0 %v3576
        %4045 = vmatpush.bf16.msra.mxu0 %v3574
        %4046 = vmatpush.bf16.msra.mxu0 %v3572
        %4047 = vmatpush.bf16.msra.mxu0 %v3570
        %4048 = vmatpush.bf16.msra.mxu0 %v3568
        %4049 = vmatpush.bf16.msra.mxu0 %v3566
        %4050 = vmatmul.bf16.gmra.mxu0 %v2586
        %v4051 = vpop.f32.mrf.mxu0
        %v4052 = vadd.f32 %v4039, %v4051
        %v4053 = vpop.f32.mrf.mxu0
        %4054 = vdwg.mxu0
        %4055 = vmatpush.bf16.msra.mxu0 %v3596
        %4056 = vmatpush.bf16.msra.mxu0 %v3594
        %4057 = vmatpush.bf16.msra.mxu0 %v3592
        %4058 = vmatpush.bf16.msra.mxu0 %v3590
        %4059 = vmatpush.bf16.msra.mxu0 %v3588
        %4060 = vmatpush.bf16.msra.mxu0 %v3586
        %4061 = vmatpush.bf16.msra.mxu0 %v3584
        %4062 = vmatpush.bf16.msra.mxu0 %v3582
        %4063 = vmatmul.bf16.gmra.mxu0 %v2587
        %v4064 = vpop.f32.mrf.mxu0
        %v4065 = vadd.f32 %v4052, %v4064
        %v4066 = vpop.f32.mrf.mxu0
        %4067 = vdwg.mxu0
        %4068 = vmatpush.bf16.msra.mxu0 %v3612
        %4069 = vmatpush.bf16.msra.mxu0 %v3610
        %4070 = vmatpush.bf16.msra.mxu0 %v3608
        %4071 = vmatpush.bf16.msra.mxu0 %v3606
        %4072 = vmatpush.bf16.msra.mxu0 %v3604
        %4073 = vmatpush.bf16.msra.mxu0 %v3602
        %4074 = vmatpush.bf16.msra.mxu0 %v3600
        %4075 = vmatpush.bf16.msra.mxu0 %v3598
        %4076 = vmatmul.bf16.gmra.mxu0 %v2588
        %v4077 = vpop.f32.mrf.mxu0
        %v4078 = vadd.f32 %v4065, %v4077
        %v4079 = vpop.f32.mrf.mxu0
        %4080 = vdwg.mxu0
        %4081 = vmatpush.bf16.msra.mxu0 %v3628
        %4082 = vmatpush.bf16.msra.mxu0 %v3626
        %4083 = vmatpush.bf16.msra.mxu0 %v3624
        %4084 = vmatpush.bf16.msra.mxu0 %v3622
        %4085 = vmatpush.bf16.msra.mxu0 %v3620
        %4086 = vmatpush.bf16.msra.mxu0 %v3618
        %4087 = vmatpush.bf16.msra.mxu0 %v3616
        %4088 = vmatpush.bf16.msra.mxu0 %v3614
        %4089 = vmatmul.bf16.gmra.mxu0 %v2589
        %v4090 = vpop.f32.mrf.mxu0
        %v4091 = vadd.f32 %v4078, %v4090
        %v4092 = vpop.f32.mrf.mxu0
        %4093 = vdwg.mxu0
        %4094 = vmatpush.bf16.msra.mxu0 %v3389
        %4095 = vmatpush.bf16.msra.mxu0 %v3387
        %4096 = vmatpush.bf16.msra.mxu0 %v3385
        %4097 = vmatpush.bf16.msra.mxu0 %v3383
        %4098 = vmatpush.bf16.msra.mxu0 %v3381
        %4099 = vmatpush.bf16.msra.mxu0 %v3379
        %4100 = vmatpush.bf16.msra.mxu0 %v3377
        %4101 = vmatpush.bf16.msra.mxu0 %v3375
        %4102 = vmatmul.bf16.gmra.mxu0 %v2572
        %v4103 = vpop.f32.mrf.mxu0
        %v4104 = vadd.f32 %v2567, %v4103
        %v4105 = vpop.f32.mrf.mxu0
        %4106 = vdwg.mxu0
        %4107 = vmatpush.bf16.msra.mxu0 %v3405
        %4108 = vmatpush.bf16.msra.mxu0 %v3403
        %4109 = vmatpush.bf16.msra.mxu0 %v3401
        %4110 = vmatpush.bf16.msra.mxu0 %v3399
        %4111 = vmatpush.bf16.msra.mxu0 %v3397
        %4112 = vmatpush.bf16.msra.mxu0 %v3395
        %4113 = vmatpush.bf16.msra.mxu0 %v3393
        %4114 = vmatpush.bf16.msra.mxu0 %v3391
        %4115 = vmatmul.bf16.gmra.mxu0 %v2573
        %v4116 = vpop.f32.mrf.mxu0
        %v4117 = vadd.f32 %v4104, %v4116
        %v4118 = vpop.f32.mrf.mxu0
        %4119 = vdwg.mxu0
        %4120 = vmatpush.bf16.msra.mxu0 %v3421
        %4121 = vmatpush.bf16.msra.mxu0 %v3419
        %4122 = vmatpush.bf16.msra.mxu0 %v3417
        %4123 = vmatpush.bf16.msra.mxu0 %v3415
        %4124 = vmatpush.bf16.msra.mxu0 %v3413
        %4125 = vmatpush.bf16.msra.mxu0 %v3411
        %4126 = vmatpush.bf16.msra.mxu0 %v3409
        %4127 = vmatpush.bf16.msra.mxu0 %v3407
        %4128 = vmatmul.bf16.gmra.mxu0 %v2574
        %v4129 = vpop.f32.mrf.mxu0
        %v4130 = vadd.f32 %v4117, %v4129
        %v4131 = vpop.f32.mrf.mxu0
        %4132 = vdwg.mxu0
        %4133 = vmatpush.bf16.msra.mxu0 %v3437
        %4134 = vmatpush.bf16.msra.mxu0 %v3435
        %4135 = vmatpush.bf16.msra.mxu0 %v3433
        %4136 = vmatpush.bf16.msra.mxu0 %v3431
        %4137 = vmatpush.bf16.msra.mxu0 %v3429
        %4138 = vmatpush.bf16.msra.mxu0 %v3427
        %4139 = vmatpush.bf16.msra.mxu0 %v3425
        %4140 = vmatpush.bf16.msra.mxu0 %v3423
        %4141 = vmatmul.bf16.gmra.mxu0 %v2575
        %v4142 = vpop.f32.mrf.mxu0
        %v4143 = vadd.f32 %v4130, %v4142
        %v4144 = vpop.f32.mrf.mxu0
        %4145 = vdwg.mxu0
        %4146 = vmatpush.bf16.msra.mxu0 %v3453
        %4147 = vmatpush.bf16.msra.mxu0 %v3451
        %4148 = vmatpush.bf16.msra.mxu0 %v3449
        %4149 = vmatpush.bf16.msra.mxu0 %v3447
        %4150 = vmatpush.bf16.msra.mxu0 %v3445
        %4151 = vmatpush.bf16.msra.mxu0 %v3443
        %4152 = vmatpush.bf16.msra.mxu0 %v3441
        %4153 = vmatpush.bf16.msra.mxu0 %v3439
        %4154 = vmatmul.bf16.gmra.mxu0 %v2576
        %v4155 = vpop.f32.mrf.mxu0
        %v4156 = vadd.f32 %v4143, %v4155
        %v4157 = vpop.f32.mrf.mxu0
        %4158 = vdwg.mxu0
        %4159 = vmatpush.bf16.msra.mxu0 %v3469
        %4160 = vmatpush.bf16.msra.mxu0 %v3467
        %4161 = vmatpush.bf16.msra.mxu0 %v3465
        %4162 = vmatpush.bf16.msra.mxu0 %v3463
        %4163 = vmatpush.bf16.msra.mxu0 %v3461
        %4164 = vmatpush.bf16.msra.mxu0 %v3459
        %4165 = vmatpush.bf16.msra.mxu0 %v3457
        %4166 = vmatpush.bf16.msra.mxu0 %v3455
        %4167 = vmatmul.bf16.gmra.mxu0 %v2577
        %v4168 = vpop.f32.mrf.mxu0
        %v4169 = vadd.f32 %v4156, %v4168
        %v4170 = vpop.f32.mrf.mxu0
        %4171 = vdwg.mxu0
        %4172 = vmatpush.bf16.msra.mxu0 %v3485
        %4173 = vmatpush.bf16.msra.mxu0 %v3483
        %4174 = vmatpush.bf16.msra.mxu0 %v3481
        %4175 = vmatpush.bf16.msra.mxu0 %v3479
        %4176 = vmatpush.bf16.msra.mxu0 %v3477
        %4177 = vmatpush.bf16.msra.mxu0 %v3475
        %4178 = vmatpush.bf16.msra.mxu0 %v3473
        %4179 = vmatpush.bf16.msra.mxu0 %v3471
        %4180 = vmatmul.bf16.gmra.mxu0 %v2578
        %v4181 = vpop.f32.mrf.mxu0
        %v4182 = vadd.f32 %v4169, %v4181
        %v4183 = vpop.f32.mrf.mxu0
        %4184 = vdwg.mxu0
        %4185 = vmatpush.bf16.msra.mxu0 %v3501
        %4186 = vmatpush.bf16.msra.mxu0 %v3499
        %4187 = vmatpush.bf16.msra.mxu0 %v3497
        %4188 = vmatpush.bf16.msra.mxu0 %v3495
        %4189 = vmatpush.bf16.msra.mxu0 %v3493
        %4190 = vmatpush.bf16.msra.mxu0 %v3491
        %4191 = vmatpush.bf16.msra.mxu0 %v3489
        %4192 = vmatpush.bf16.msra.mxu0 %v3487
        %4193 = vmatmul.bf16.gmra.mxu0 %v2579
        %v4194 = vpop.f32.mrf.mxu0
        %v4195 = vadd.f32 %v4182, %v4194
        %v4196 = vpop.f32.mrf.mxu0
        %4197 = vdwg.mxu0
        %4198 = vmatpush.bf16.msra.mxu0 %v3517
        %4199 = vmatpush.bf16.msra.mxu0 %v3515
        %4200 = vmatpush.bf16.msra.mxu0 %v3513
        %4201 = vmatpush.bf16.msra.mxu0 %v3511
        %4202 = vmatpush.bf16.msra.mxu0 %v3509
        %4203 = vmatpush.bf16.msra.mxu0 %v3507
        %4204 = vmatpush.bf16.msra.mxu0 %v3505
        %4205 = vmatpush.bf16.msra.mxu0 %v3503
        %4206 = vmatmul.bf16.gmra.mxu0 %v2582
        %v4207 = vpop.f32.mrf.mxu0
        %v4208 = vadd.f32 %v4195, %v4207
        %v4209 = vpop.f32.mrf.mxu0
        %4210 = vdwg.mxu0
        %4211 = vmatpush.bf16.msra.mxu0 %v3533
        %4212 = vmatpush.bf16.msra.mxu0 %v3531
        %4213 = vmatpush.bf16.msra.mxu0 %v3529
        %4214 = vmatpush.bf16.msra.mxu0 %v3527
        %4215 = vmatpush.bf16.msra.mxu0 %v3525
        %4216 = vmatpush.bf16.msra.mxu0 %v3523
        %4217 = vmatpush.bf16.msra.mxu0 %v3521
        %4218 = vmatpush.bf16.msra.mxu0 %v3519
        %4219 = vmatmul.bf16.gmra.mxu0 %v2583
        %v4220 = vpop.f32.mrf.mxu0
        %v4221 = vadd.f32 %v4208, %v4220
        %v4222 = vpop.f32.mrf.mxu0
        %4223 = vdwg.mxu0
        %4224 = vmatpush.bf16.msra.mxu0 %v3549
        %4225 = vmatpush.bf16.msra.mxu0 %v3547
        %4226 = vmatpush.bf16.msra.mxu0 %v3545
        %4227 = vmatpush.bf16.msra.mxu0 %v3543
        %4228 = vmatpush.bf16.msra.mxu0 %v3541
        %4229 = vmatpush.bf16.msra.mxu0 %v3539
        %4230 = vmatpush.bf16.msra.mxu0 %v3537
        %4231 = vmatpush.bf16.msra.mxu0 %v3535
        %4232 = vmatmul.bf16.gmra.mxu0 %v2584
        %v4233 = vpop.f32.mrf.mxu0
        %v4234 = vadd.f32 %v4221, %v4233
        %v4235 = vpop.f32.mrf.mxu0
        %4236 = vdwg.mxu0
        %4237 = vmatpush.bf16.msra.mxu0 %v3565
        %4238 = vmatpush.bf16.msra.mxu0 %v3563
        %4239 = vmatpush.bf16.msra.mxu0 %v3561
        %4240 = vmatpush.bf16.msra.mxu0 %v3559
        %4241 = vmatpush.bf16.msra.mxu0 %v3557
        %4242 = vmatpush.bf16.msra.mxu0 %v3555
        %4243 = vmatpush.bf16.msra.mxu0 %v3553
        %4244 = vmatpush.bf16.msra.mxu0 %v3551
        %4245 = vmatmul.bf16.gmra.mxu0 %v2585
        %v4246 = vpop.f32.mrf.mxu0
        %v4247 = vadd.f32 %v4234, %v4246
        %v4248 = vpop.f32.mrf.mxu0
        %4249 = vdwg.mxu0
        %4250 = vmatpush.bf16.msra.mxu0 %v3581
        %4251 = vmatpush.bf16.msra.mxu0 %v3579
        %4252 = vmatpush.bf16.msra.mxu0 %v3577
        %4253 = vmatpush.bf16.msra.mxu0 %v3575
        %4254 = vmatpush.bf16.msra.mxu0 %v3573
        %4255 = vmatpush.bf16.msra.mxu0 %v3571
        %4256 = vmatpush.bf16.msra.mxu0 %v3569
        %4257 = vmatpush.bf16.msra.mxu0 %v3567
        %4258 = vmatmul.bf16.gmra.mxu0 %v2586
        %v4259 = vpop.f32.mrf.mxu0
        %v4260 = vadd.f32 %v4247, %v4259
        %v4261 = vpop.f32.mrf.mxu0
        %4262 = vdwg.mxu0
        %4263 = vmatpush.bf16.msra.mxu0 %v3597
        %4264 = vmatpush.bf16.msra.mxu0 %v3595
        %4265 = vmatpush.bf16.msra.mxu0 %v3593
        %4266 = vmatpush.bf16.msra.mxu0 %v3591
        %4267 = vmatpush.bf16.msra.mxu0 %v3589
        %4268 = vmatpush.bf16.msra.mxu0 %v3587
        %4269 = vmatpush.bf16.msra.mxu0 %v3585
        %4270 = vmatpush.bf16.msra.mxu0 %v3583
        %4271 = vmatmul.bf16.gmra.mxu0 %v2587
        %v4272 = vpop.f32.mrf.mxu0
        %v4273 = vadd.f32 %v4260, %v4272
        %v4274 = vpop.f32.mrf.mxu0
        %4275 = vdwg.mxu0
        %4276 = vmatpush.bf16.msra.mxu0 %v3613
        %4277 = vmatpush.bf16.msra.mxu0 %v3611
        %4278 = vmatpush.bf16.msra.mxu0 %v3609
        %4279 = vmatpush.bf16.msra.mxu0 %v3607
        %4280 = vmatpush.bf16.msra.mxu0 %v3605
        %4281 = vmatpush.bf16.msra.mxu0 %v3603
        %4282 = vmatpush.bf16.msra.mxu0 %v3601
        %4283 = vmatpush.bf16.msra.mxu0 %v3599
        %4284 = vmatmul.bf16.gmra.mxu0 %v2588
        %v4285 = vpop.f32.mrf.mxu0
        %v4286 = vadd.f32 %v4273, %v4285
        %v4287 = vpop.f32.mrf.mxu0
        %4288 = vdwg.mxu0
        %4289 = vmatpush.bf16.msra.mxu0 %v3629
        %4290 = vmatpush.bf16.msra.mxu0 %v3627
        %4291 = vmatpush.bf16.msra.mxu0 %v3625
        %4292 = vmatpush.bf16.msra.mxu0 %v3623
        %4293 = vmatpush.bf16.msra.mxu0 %v3621
        %4294 = vmatpush.bf16.msra.mxu0 %v3619
        %4295 = vmatpush.bf16.msra.mxu0 %v3617
        %4296 = vmatpush.bf16.msra.mxu0 %v3615
        %4297 = vmatmul.bf16.gmra.mxu0 %v2589
        %v4298 = vpop.f32.mrf.mxu0
        %v4299 = vadd.f32 %v4286, %v4298
        %v4300 = vpop.f32.mrf.mxu0
        %4301 = vdwg.mxu0
        %v4302 = vmax.f32 %v4091, 0.0
        %v4303 = vmax.f32 %v4299, 0.0
        %v4304 = vpack.c.bf16 %v4303, %v4302
        %v4306 = vrot.slane %v4304, 3
        %vm4307 = vcmask 1040384
        %v4310 = vsel %vm4307, %v4304, %v4306
        %4312 = vst [vmem:[%s2304] sm:$0x3] %v4310
        %s4313 = smul.u32 2, %s14
        %p4314 = scmp.lt.s32.totalorder %s4313, 7
        %s4315 = scalar_select %p4314, %s4313, 7
        %s4316 = scalar_lea.vmem %s3, %s4315
        // Predicated region
        $region85: #{mynet_forward.8} parent=79 // pred_check
          %p4317 = pneg %p105
        $region86: #{mynet_forward.8} parent=79 // pred_check_branch
          %4319 = sbr.rel (%p4317) target = $region88
        $region87: #{mynet_forward.8} parent=79 // pred_region
          %s4320 = smul.u32 2, %s14
        $region88: #{mynet_forward.8} parent=79 // pred_fallthru
          _
      $region80: #{mynet_forward.8} parent=5 // pred_fallthru
        _
      %p4321 = scmp.le.s32.totalorder 2, %s9
      // Predicated region
      $region89: #{mynet_forward.8} parent=5 // pred_check
        %p4322 = pneg %p4321
      $region90: #{mynet_forward.8} parent=5 // pred_check_branch
        %4324 = sbr.rel (%p4322) target = $region92
      $region91: #{mynet_forward.8} parent=5 // pred_region
        %s4325 = ssub.s32 %s9, 2
        // Predicated region
        $region93: #{mynet_forward.8} parent=91 // pred_check
          %p4326 = pneg %p111
        $region94: #{mynet_forward.8} parent=91 // pred_check_branch
          %4328 = sbr.rel (%p4326) target = $region96
        $region95: #{mynet_forward.8} parent=91 // pred_region
          %s4329 = smul.u32 2, %s15
          %p4330 = scmp.lt.s32.totalorder %s4329, 7
          %s4331 = scalar_select %p4330, %s4329, 7
          %s4332 = scalar_lea.vmem %s3, %s4331
        $region96: #{mynet_forward.8} parent=91 // pred_fallthru
          _
      $region92: #{mynet_forward.8} parent=5 // pred_fallthru
        _
    $region6: #{mynet_forward.8} parent=1 // loop_footer
      %s13 = sadd.s32 1, %s9
    $region7: #{mynet_forward.8} parent=1 // loop_footer_branch
      %8 = sbr.rel target = $region3
    $region8: #{mynet_forward.8} parent=1 // loop_exit
      _

// kernel: mynet_forward.9
$region0: #{mynet_forward.9}
  #allocation0 [shape = 'u32[]', space=smem, size = 0x4, offset = 0x4, fixed_abs, tag = 'smem constant byte address 0x4 - core index']
  #allocation1 [shape = 'u32[72,128]{1,0:T(1,128)}', space=vmem, size = 0x9000, scoped, tag = 'internal scratch']
  %s0 = inlined_call_operand.vmem [shape: bf16[2,1024], index: 0, kind: input, shape index: {}]
  %s1 = inlined_call_operand.vmem [shape: bf16[1024,256], index: 1, kind: input, shape index: {}]
  %s2 = inlined_call_operand.vmem [shape: f32[1,256], index: 2, kind: input, shape index: {}]
  %s3 = inlined_call_operand.vmem [shape: bf16[256,10], index: 3, kind: input, shape index: {}]
  %s4 = inlined_call_operand.vmem [shape: f32[1,10], index: 4, kind: input, shape index: {}]
  %s5 = inlined_call_operand.hbm [shape: f32[2,10], index: 5, kind: output, shape index: {}]
  %s6 = sld [smem:[#allocation0]]
  $region30: #{mynet_forward.9} parent=0
    _
  %s8 = ssub.s32 1, %s6
  %s9 = scalar_select 0, %s8, %s6
  $region1: #{mynet_forward.9} parent=0
    #allocation2 [shape = 'u8[1024]{0}', space=vmem, size = 0x400, scoped, tag = 'output window, operand 0, single buffered']
    #allocation3 [shape = 's32[1]{0}', space=sflag, size = 0x4, scoped, tag = 'scoped memory for mynet_forward.9']
    %10 = vsyncpa [#allocation3], 0
    // Predicated region
    $region2: #{mynet_forward.9} parent=1 // pred_check
      _
    $region3: #{mynet_forward.9} parent=1 // pred_check_branch
      %12 = sbr.rel (0) target = $region5
    $region4: #{mynet_forward.9} parent=1 // pred_region
      _
    $region5: #{mynet_forward.9} parent=1 // pred_fallthru
      _
    // Predicated region
    $region6: #{mynet_forward.9} parent=1 // pred_check
      _
    $region7: #{mynet_forward.9} parent=1 // pred_check_branch
      %14 = sbr.rel (0) target = $region9
    $region8: #{mynet_forward.9} parent=1 // pred_region
      _
    $region9: #{mynet_forward.9} parent=1 // pred_fallthru
      _
    // Predicated region
    $region10: #{mynet_forward.9} parent=1 // pred_check
      _
    $region11: #{mynet_forward.9} parent=1 // pred_check_branch
      %16 = sbr.rel (0) target = $region13
    $region12: #{mynet_forward.9} parent=1 // pred_region
      _
    $region13: #{mynet_forward.9} parent=1 // pred_fallthru
      _
    // Predicated region
    $region14: #{mynet_forward.9} parent=1 // pred_check
      _
    $region15: #{mynet_forward.9} parent=1 // pred_check_branch
      %18 = sbr.rel (0) target = $region17
    $region16: #{mynet_forward.9} parent=1 // pred_region
      _
    $region17: #{mynet_forward.9} parent=1 // pred_fallthru
      _
    // Predicated region
    $region18: #{mynet_forward.9} parent=1 // pred_check
      _
    $region19: #{mynet_forward.9} parent=1 // pred_check_branch
      %20 = sbr.rel (0) target = $region21
    $region20: #{mynet_forward.9} parent=1 // pred_region
      _
    $region21: #{mynet_forward.9} parent=1 // pred_fallthru
      _
    %v21 = vld [vmem:[%s0] sm:$0xff]
    %v22 = vld [vmem:[%s1] sm:$0xff]
    %v23 = vld [vmem:[%s1 + $0x8] sm:$0xff]
    %v24 = vld [vmem:[%s1 + $0x10] sm:$0xff]
    %v25 = vld [vmem:[%s1 + $0x18] sm:$0xff]
    %v26 = vld [vmem:[%s1 + $0x20] sm:$0xff]
    %v27 = vld [vmem:[%s1 + $0x28] sm:$0xff]
    %v28 = vld [vmem:[%s1 + $0x30] sm:$0xff]
    %v29 = vld [vmem:[%s1 + $0x38] sm:$0xff]
    %v30 = vld [vmem:[%s1 + $0x40] sm:$0xff]
    %v31 = vld [vmem:[%s1 + $0x48] sm:$0xff]
    %v32 = vld [vmem:[%s1 + $0x50] sm:$0xff]
    %v33 = vld [vmem:[%s1 + $0x58] sm:$0xff]
    %v34 = vld [vmem:[%s1 + $0x60] sm:$0xff]
    %v35 = vld [vmem:[%s1 + $0x68] sm:$0xff]
    %v36 = vld [vmem:[%s1 + $0x70] sm:$0xff]
    %v37 = vld [vmem:[%s1 + $0x78] sm:$0xff]
    %v38 = vld [vmem:[%s1 + $0x80] sm:$0xff]
    %v39 = vld [vmem:[%s1 + $0x88] sm:$0xff]
    %v40 = vld [vmem:[%s1 + $0x90] sm:$0xff]
    %v41 = vld [vmem:[%s1 + $0x98] sm:$0xff]
    %v42 = vld [vmem:[%s1 + $0xa0] sm:$0xff]
    %v43 = vld [vmem:[%s1 + $0xa8] sm:$0xff]
    %v44 = vld [vmem:[%s1 + $0xb0] sm:$0xff]
    %v45 = vld [vmem:[%s1 + $0xb8] sm:$0xff]
    %v46 = vld [vmem:[%s1 + $0xc0] sm:$0xff]
    %v47 = vld [vmem:[%s1 + $0xc8] sm:$0xff]
    %v48 = vld [vmem:[%s1 + $0xd0] sm:$0xff]
    %v49 = vld [vmem:[%s1 + $0xd8] sm:$0xff]
    %v50 = vld [vmem:[%s1 + $0xe0] sm:$0xff]
    %v51 = vld [vmem:[%s1 + $0xe8] sm:$0xff]
    %v52 = vld [vmem:[%s1 + $0xf0] sm:$0xff]
    %v53 = vld [vmem:[%s1 + $0xf8] sm:$0xff]
    %v54 = vld [vmem:[%s1 + $0x100] sm:$0xff]
    %v55 = vld [vmem:[%s1 + $0x108] sm:$0xff]
    %v56 = vld [vmem:[%s1 + $0x110] sm:$0xff]
    %v57 = vld [vmem:[%s1 + $0x118] sm:$0xff]
    %v58 = vld [vmem:[%s1 + $0x120] sm:$0xff]
    %v59 = vld [vmem:[%s1 + $0x128] sm:$0xff]
    %v60 = vld [vmem:[%s1 + $0x130] sm:$0xff]
    %v61 = vld [vmem:[%s1 + $0x138] sm:$0xff]
    %v62 = vld [vmem:[%s1 + $0x140] sm:$0xff]
    %v63 = vld [vmem:[%s1 + $0x148] sm:$0xff]
    %v64 = vld [vmem:[%s1 + $0x150] sm:$0xff]
    %v65 = vld [vmem:[%s1 + $0x158] sm:$0xff]
    %v66 = vld [vmem:[%s1 + $0x160] sm:$0xff]
    %v67 = vld [vmem:[%s1 + $0x168] sm:$0xff]
    %v68 = vld [vmem:[%s1 + $0x170] sm:$0xff]
    %v69 = vld [vmem:[%s1 + $0x178] sm:$0xff]
    %v70 = vld [vmem:[%s1 + $0x180] sm:$0xff]
    %v71 = vld [vmem:[%s1 + $0x188] sm:$0xff]
    %v72 = vld [vmem:[%s1 + $0x190] sm:$0xff]
    %v73 = vld [vmem:[%s1 + $0x198] sm:$0xff]
    %v74 = vld [vmem:[%s1 + $0x1a0] sm:$0xff]
    %v75 = vld [vmem:[%s1 + $0x1a8] sm:$0xff]
    %v76 = vld [vmem:[%s1 + $0x1b0] sm:$0xff]
    %v77 = vld [vmem:[%s1 + $0x1b8] sm:$0xff]
    %v78 = vld [vmem:[%s1 + $0x1c0] sm:$0xff]
    %v79 = vld [vmem:[%s1 + $0x1c8] sm:$0xff]
    %v80 = vld [vmem:[%s1 + $0x1d0] sm:$0xff]
    %v81 = vld [vmem:[%s1 + $0x1d8] sm:$0xff]
    %v82 = vld [vmem:[%s1 + $0x1e0] sm:$0xff]
    %v83 = vld [vmem:[%s1 + $0x1e8] sm:$0xff]
    %v84 = vld [vmem:[%s1 + $0x1f0] sm:$0xff]
    %v85 = vld [vmem:[%s1 + $0x1f8] sm:$0xff]
    %v86 = vld [vmem:[%s1 + $0x200] sm:$0xff]
    %v87 = vld [vmem:[%s1 + $0x208] sm:$0xff]
    %v88 = vld [vmem:[%s1 + $0x210] sm:$0xff]
    %v89 = vld [vmem:[%s1 + $0x218] sm:$0xff]
    %v90 = vld [vmem:[%s1 + $0x220] sm:$0xff]
    %v91 = vld [vmem:[%s1 + $0x228] sm:$0xff]
    %v92 = vld [vmem:[%s1 + $0x230] sm:$0xff]
    %v93 = vld [vmem:[%s1 + $0x238] sm:$0xff]
    %v94 = vld [vmem:[%s1 + $0x240] sm:$0xff]
    %v95 = vld [vmem:[%s1 + $0x248] sm:$0xff]
    %v96 = vld [vmem:[%s1 + $0x250] sm:$0xff]
    %v97 = vld [vmem:[%s1 + $0x258] sm:$0xff]
    %v98 = vld [vmem:[%s1 + $0x260] sm:$0xff]
    %v99 = vld [vmem:[%s1 + $0x268] sm:$0xff]
    %v100 = vld [vmem:[%s1 + $0x270] sm:$0xff]
    %v101 = vld [vmem:[%s1 + $0x278] sm:$0xff]
    %v102 = vld [vmem:[%s1 + $0x280] sm:$0xff]
    %v103 = vld [vmem:[%s1 + $0x288] sm:$0xff]
    %v104 = vld [vmem:[%s1 + $0x290] sm:$0xff]
    %v105 = vld [vmem:[%s1 + $0x298] sm:$0xff]
    %v106 = vld [vmem:[%s1 + $0x2a0] sm:$0xff]
    %v107 = vld [vmem:[%s1 + $0x2a8] sm:$0xff]
    %v108 = vld [vmem:[%s1 + $0x2b0] sm:$0xff]
    %v109 = vld [vmem:[%s1 + $0x2b8] sm:$0xff]
    %v110 = vld [vmem:[%s1 + $0x2c0] sm:$0xff]
    %v111 = vld [vmem:[%s1 + $0x2c8] sm:$0xff]
    %v112 = vld [vmem:[%s1 + $0x2d0] sm:$0xff]
    %v113 = vld [vmem:[%s1 + $0x2d8] sm:$0xff]
    %v114 = vld [vmem:[%s1 + $0x2e0] sm:$0xff]
    %v115 = vld [vmem:[%s1 + $0x2e8] sm:$0xff]
    %v116 = vld [vmem:[%s1 + $0x2f0] sm:$0xff]
    %v117 = vld [vmem:[%s1 + $0x2f8] sm:$0xff]
    %v118 = vld [vmem:[%s1 + $0x300] sm:$0xff]
    %v119 = vld [vmem:[%s1 + $0x308] sm:$0xff]
    %v120 = vld [vmem:[%s1 + $0x310] sm:$0xff]
    %v121 = vld [vmem:[%s1 + $0x318] sm:$0xff]
    %v122 = vld [vmem:[%s1 + $0x320] sm:$0xff]
    %v123 = vld [vmem:[%s1 + $0x328] sm:$0xff]
    %v124 = vld [vmem:[%s1 + $0x330] sm:$0xff]
    %v125 = vld [vmem:[%s1 + $0x338] sm:$0xff]
    %v126 = vld [vmem:[%s1 + $0x340] sm:$0xff]
    %v127 = vld [vmem:[%s1 + $0x348] sm:$0xff]
    %v128 = vld [vmem:[%s1 + $0x350] sm:$0xff]
    %v129 = vld [vmem:[%s1 + $0x358] sm:$0xff]
    %v130 = vld [vmem:[%s1 + $0x360] sm:$0xff]
    %v131 = vld [vmem:[%s1 + $0x368] sm:$0xff]
    %v132 = vld [vmem:[%s1 + $0x370] sm:$0xff]
    %v133 = vld [vmem:[%s1 + $0x378] sm:$0xff]
    %v134 = vld [vmem:[%s1 + $0x380] sm:$0xff]
    %v135 = vld [vmem:[%s1 + $0x388] sm:$0xff]
    %v136 = vld [vmem:[%s1 + $0x390] sm:$0xff]
    %v137 = vld [vmem:[%s1 + $0x398] sm:$0xff]
    %v138 = vld [vmem:[%s1 + $0x3a0] sm:$0xff]
    %v139 = vld [vmem:[%s1 + $0x3a8] sm:$0xff]
    %v140 = vld [vmem:[%s1 + $0x3b0] sm:$0xff]
    %v141 = vld [vmem:[%s1 + $0x3b8] sm:$0xff]
    %v142 = vld [vmem:[%s1 + $0x3c0] sm:$0xff]
    %v143 = vld [vmem:[%s1 + $0x3c8] sm:$0xff]
    %v144 = vld [vmem:[%s1 + $0x3d0] sm:$0xff]
    %v145 = vld [vmem:[%s1 + $0x3d8] sm:$0xff]
    %v146 = vld [vmem:[%s1 + $0x3e0] sm:$0xff]
    %v147 = vld [vmem:[%s1 + $0x3e8] sm:$0xff]
    %v148 = vld [vmem:[%s1 + $0x3f0] sm:$0xff]
    %v149 = vld [vmem:[%s1 + $0x3f8] sm:$0xff]
    %v150 = vld [vmem:[%s2] sm:$0x3]
    %v152 = vperm.slane %v150, 0
    %v153 = vperm.slane %v150, 1
    %157 = vst [vmem:[#allocation1] ss:$9 sm:$0xff] %v21
    %v158 = vld [vmem:[#allocation1] sm:$0xff]
    %v159 = vld [vmem:[#allocation1 + $0x9] sm:$0xff]
    %v160 = vld [vmem:[#allocation1 + $0x12] sm:$0xff]
    %v161 = vld [vmem:[#allocation1 + $0x1b] sm:$0xff]
    %v162 = vld [vmem:[#allocation1 + $0x24] sm:$0xff]
    %v163 = vld [vmem:[#allocation1 + $0x2d] sm:$0xff]
    %v164 = vld [vmem:[#allocation1 + $0x36] sm:$0xff]
    %v165 = vld [vmem:[#allocation1 + $0x3f] sm:$0xff]
    %v302 = vunpack.c.l.b16 %v22
    %v303 = vunpack.c.h.b16 %v22
    %v304 = vunpack.c.l.b16 %v23
    %v305 = vunpack.c.h.b16 %v23
    %v306 = vunpack.c.l.b16 %v24
    %v307 = vunpack.c.h.b16 %v24
    %v308 = vunpack.c.l.b16 %v25
    %v309 = vunpack.c.h.b16 %v25
    %v310 = vunpack.c.l.b16 %v26
    %v311 = vunpack.c.h.b16 %v26
    %v312 = vunpack.c.l.b16 %v27
    %v313 = vunpack.c.h.b16 %v27
    %v314 = vunpack.c.l.b16 %v28
    %v315 = vunpack.c.h.b16 %v28
    %v316 = vunpack.c.l.b16 %v29
    %v317 = vunpack.c.h.b16 %v29
    %v318 = vunpack.c.l.b16 %v30
    %v319 = vunpack.c.h.b16 %v30
    %v320 = vunpack.c.l.b16 %v31
    %v321 = vunpack.c.h.b16 %v31
    %v322 = vunpack.c.l.b16 %v32
    %v323 = vunpack.c.h.b16 %v32
    %v324 = vunpack.c.l.b16 %v33
    %v325 = vunpack.c.h.b16 %v33
    %v326 = vunpack.c.l.b16 %v34
    %v327 = vunpack.c.h.b16 %v34
    %v328 = vunpack.c.l.b16 %v35
    %v329 = vunpack.c.h.b16 %v35
    %v330 = vunpack.c.l.b16 %v36
    %v331 = vunpack.c.h.b16 %v36
    %v332 = vunpack.c.l.b16 %v37
    %v333 = vunpack.c.h.b16 %v37
    %v334 = vunpack.c.l.b16 %v38
    %v335 = vunpack.c.h.b16 %v38
    %v336 = vunpack.c.l.b16 %v39
    %v337 = vunpack.c.h.b16 %v39
    %v338 = vunpack.c.l.b16 %v40
    %v339 = vunpack.c.h.b16 %v40
    %v340 = vunpack.c.l.b16 %v41
    %v341 = vunpack.c.h.b16 %v41
    %v342 = vunpack.c.l.b16 %v42
    %v343 = vunpack.c.h.b16 %v42
    %v344 = vunpack.c.l.b16 %v43
    %v345 = vunpack.c.h.b16 %v43
    %v346 = vunpack.c.l.b16 %v44
    %v347 = vunpack.c.h.b16 %v44
    %v348 = vunpack.c.l.b16 %v45
    %v349 = vunpack.c.h.b16 %v45
    %v350 = vunpack.c.l.b16 %v46
    %v351 = vunpack.c.h.b16 %v46
    %v352 = vunpack.c.l.b16 %v47
    %v353 = vunpack.c.h.b16 %v47
    %v354 = vunpack.c.l.b16 %v48
    %v355 = vunpack.c.h.b16 %v48
    %v356 = vunpack.c.l.b16 %v49
    %v357 = vunpack.c.h.b16 %v49
    %v358 = vunpack.c.l.b16 %v50
    %v359 = vunpack.c.h.b16 %v50
    %v360 = vunpack.c.l.b16 %v51
    %v361 = vunpack.c.h.b16 %v51
    %v362 = vunpack.c.l.b16 %v52
    %v363 = vunpack.c.h.b16 %v52
    %v364 = vunpack.c.l.b16 %v53
    %v365 = vunpack.c.h.b16 %v53
    %v366 = vunpack.c.l.b16 %v54
    %v367 = vunpack.c.h.b16 %v54
    %v368 = vunpack.c.l.b16 %v55
    %v369 = vunpack.c.h.b16 %v55
    %v370 = vunpack.c.l.b16 %v56
    %v371 = vunpack.c.h.b16 %v56
    %v372 = vunpack.c.l.b16 %v57
    %v373 = vunpack.c.h.b16 %v57
    %v374 = vunpack.c.l.b16 %v58
    %v375 = vunpack.c.h.b16 %v58
    %v376 = vunpack.c.l.b16 %v59
    %v377 = vunpack.c.h.b16 %v59
    %v378 = vunpack.c.l.b16 %v60
    %v379 = vunpack.c.h.b16 %v60
    %v380 = vunpack.c.l.b16 %v61
    %v381 = vunpack.c.h.b16 %v61
    %v382 = vunpack.c.l.b16 %v62
    %v383 = vunpack.c.h.b16 %v62
    %v384 = vunpack.c.l.b16 %v63
    %v385 = vunpack.c.h.b16 %v63
    %v386 = vunpack.c.l.b16 %v64
    %v387 = vunpack.c.h.b16 %v64
    %v388 = vunpack.c.l.b16 %v65
    %v389 = vunpack.c.h.b16 %v65
    %v390 = vunpack.c.l.b16 %v66
    %v391 = vunpack.c.h.b16 %v66
    %v392 = vunpack.c.l.b16 %v67
    %v393 = vunpack.c.h.b16 %v67
    %v394 = vunpack.c.l.b16 %v68
    %v395 = vunpack.c.h.b16 %v68
    %v396 = vunpack.c.l.b16 %v69
    %v397 = vunpack.c.h.b16 %v69
    %v398 = vunpack.c.l.b16 %v70
    %v399 = vunpack.c.h.b16 %v70
    %v400 = vunpack.c.l.b16 %v71
    %v401 = vunpack.c.h.b16 %v71
    %v402 = vunpack.c.l.b16 %v72
    %v403 = vunpack.c.h.b16 %v72
    %v404 = vunpack.c.l.b16 %v73
    %v405 = vunpack.c.h.b16 %v73
    %v406 = vunpack.c.l.b16 %v74
    %v407 = vunpack.c.h.b16 %v74
    %v408 = vunpack.c.l.b16 %v75
    %v409 = vunpack.c.h.b16 %v75
    %v410 = vunpack.c.l.b16 %v76
    %v411 = vunpack.c.h.b16 %v76
    %v412 = vunpack.c.l.b16 %v77
    %v413 = vunpack.c.h.b16 %v77
    %v414 = vunpack.c.l.b16 %v78
    %v415 = vunpack.c.h.b16 %v78
    %v416 = vunpack.c.l.b16 %v79
    %v417 = vunpack.c.h.b16 %v79
    %v418 = vunpack.c.l.b16 %v80
    %v419 = vunpack.c.h.b16 %v80
    %v420 = vunpack.c.l.b16 %v81
    %v421 = vunpack.c.h.b16 %v81
    %v422 = vunpack.c.l.b16 %v82
    %v423 = vunpack.c.h.b16 %v82
    %v424 = vunpack.c.l.b16 %v83
    %v425 = vunpack.c.h.b16 %v83
    %v426 = vunpack.c.l.b16 %v84
    %v427 = vunpack.c.h.b16 %v84
    %v428 = vunpack.c.l.b16 %v85
    %v429 = vunpack.c.h.b16 %v85
    %v430 = vunpack.c.l.b16 %v86
    %v431 = vunpack.c.h.b16 %v86
    %v432 = vunpack.c.l.b16 %v87
    %v433 = vunpack.c.h.b16 %v87
    %v434 = vunpack.c.l.b16 %v88
    %v435 = vunpack.c.h.b16 %v88
    %v436 = vunpack.c.l.b16 %v89
    %v437 = vunpack.c.h.b16 %v89
    %v438 = vunpack.c.l.b16 %v90
    %v439 = vunpack.c.h.b16 %v90
    %v440 = vunpack.c.l.b16 %v91
    %v441 = vunpack.c.h.b16 %v91
    %v442 = vunpack.c.l.b16 %v92
    %v443 = vunpack.c.h.b16 %v92
    %v444 = vunpack.c.l.b16 %v93
    %v445 = vunpack.c.h.b16 %v93
    %v446 = vunpack.c.l.b16 %v94
    %v447 = vunpack.c.h.b16 %v94
    %v448 = vunpack.c.l.b16 %v95
    %v449 = vunpack.c.h.b16 %v95
    %v450 = vunpack.c.l.b16 %v96
    %v451 = vunpack.c.h.b16 %v96
    %v452 = vunpack.c.l.b16 %v97
    %v453 = vunpack.c.h.b16 %v97
    %v454 = vunpack.c.l.b16 %v98
    %v455 = vunpack.c.h.b16 %v98
    %v456 = vunpack.c.l.b16 %v99
    %v457 = vunpack.c.h.b16 %v99
    %v458 = vunpack.c.l.b16 %v100
    %v459 = vunpack.c.h.b16 %v100
    %v460 = vunpack.c.l.b16 %v101
    %v461 = vunpack.c.h.b16 %v101
    %v462 = vunpack.c.l.b16 %v102
    %v463 = vunpack.c.h.b16 %v102
    %v464 = vunpack.c.l.b16 %v103
    %v465 = vunpack.c.h.b16 %v103
    %v466 = vunpack.c.l.b16 %v104
    %v467 = vunpack.c.h.b16 %v104
    %v468 = vunpack.c.l.b16 %v105
    %v469 = vunpack.c.h.b16 %v105
    %v470 = vunpack.c.l.b16 %v106
    %v471 = vunpack.c.h.b16 %v106
    %v472 = vunpack.c.l.b16 %v107
    %v473 = vunpack.c.h.b16 %v107
    %v474 = vunpack.c.l.b16 %v108
    %v475 = vunpack.c.h.b16 %v108
    %v476 = vunpack.c.l.b16 %v109
    %v477 = vunpack.c.h.b16 %v109
    %v478 = vunpack.c.l.b16 %v110
    %v479 = vunpack.c.h.b16 %v110
    %v480 = vunpack.c.l.b16 %v111
    %v481 = vunpack.c.h.b16 %v111
    %v482 = vunpack.c.l.b16 %v112
    %v483 = vunpack.c.h.b16 %v112
    %v484 = vunpack.c.l.b16 %v113
    %v485 = vunpack.c.h.b16 %v113
    %v486 = vunpack.c.l.b16 %v114
    %v487 = vunpack.c.h.b16 %v114
    %v488 = vunpack.c.l.b16 %v115
    %v489 = vunpack.c.h.b16 %v115
    %v490 = vunpack.c.l.b16 %v116
    %v491 = vunpack.c.h.b16 %v116
    %v492 = vunpack.c.l.b16 %v117
    %v493 = vunpack.c.h.b16 %v117
    %v494 = vunpack.c.l.b16 %v118
    %v495 = vunpack.c.h.b16 %v118
    %v496 = vunpack.c.l.b16 %v119
    %v497 = vunpack.c.h.b16 %v119
    %v498 = vunpack.c.l.b16 %v120
    %v499 = vunpack.c.h.b16 %v120
    %v500 = vunpack.c.l.b16 %v121
    %v501 = vunpack.c.h.b16 %v121
    %v502 = vunpack.c.l.b16 %v122
    %v503 = vunpack.c.h.b16 %v122
    %v504 = vunpack.c.l.b16 %v123
    %v505 = vunpack.c.h.b16 %v123
    %v506 = vunpack.c.l.b16 %v124
    %v507 = vunpack.c.h.b16 %v124
    %v508 = vunpack.c.l.b16 %v125
    %v509 = vunpack.c.h.b16 %v125
    %v510 = vunpack.c.l.b16 %v126
    %v511 = vunpack.c.h.b16 %v126
    %v512 = vunpack.c.l.b16 %v127
    %v513 = vunpack.c.h.b16 %v127
    %v514 = vunpack.c.l.b16 %v128
    %v515 = vunpack.c.h.b16 %v128
    %v516 = vunpack.c.l.b16 %v129
    %v517 = vunpack.c.h.b16 %v129
    %v518 = vunpack.c.l.b16 %v130
    %v519 = vunpack.c.h.b16 %v130
    %v520 = vunpack.c.l.b16 %v131
    %v521 = vunpack.c.h.b16 %v131
    %v522 = vunpack.c.l.b16 %v132
    %v523 = vunpack.c.h.b16 %v132
    %v524 = vunpack.c.l.b16 %v133
    %v525 = vunpack.c.h.b16 %v133
    %v526 = vunpack.c.l.b16 %v134
    %v527 = vunpack.c.h.b16 %v134
    %v528 = vunpack.c.l.b16 %v135
    %v529 = vunpack.c.h.b16 %v135
    %v530 = vunpack.c.l.b16 %v136
    %v531 = vunpack.c.h.b16 %v136
    %v532 = vunpack.c.l.b16 %v137
    %v533 = vunpack.c.h.b16 %v137
    %v534 = vunpack.c.l.b16 %v138
    %v535 = vunpack.c.h.b16 %v138
    %v536 = vunpack.c.l.b16 %v139
    %v537 = vunpack.c.h.b16 %v139
    %v538 = vunpack.c.l.b16 %v140
    %v539 = vunpack.c.h.b16 %v140
    %v540 = vunpack.c.l.b16 %v141
    %v541 = vunpack.c.h.b16 %v141
    %v542 = vunpack.c.l.b16 %v142
    %v543 = vunpack.c.h.b16 %v142
    %v544 = vunpack.c.l.b16 %v143
    %v545 = vunpack.c.h.b16 %v143
    %v546 = vunpack.c.l.b16 %v144
    %v547 = vunpack.c.h.b16 %v144
    %v548 = vunpack.c.l.b16 %v145
    %v549 = vunpack.c.h.b16 %v145
    %v550 = vunpack.c.l.b16 %v146
    %v551 = vunpack.c.h.b16 %v146
    %v552 = vunpack.c.l.b16 %v147
    %v553 = vunpack.c.h.b16 %v147
    %v554 = vunpack.c.l.b16 %v148
    %v555 = vunpack.c.h.b16 %v148
    %v556 = vunpack.c.l.b16 %v149
    %v557 = vunpack.c.h.b16 %v149
    %v558 = vpack.c.b16 %v304, %v302
    %v559 = vpack.c.b16 %v305, %v303
    %v560 = vpack.c.b16 %v308, %v306
    %v561 = vpack.c.b16 %v309, %v307
    %v562 = vpack.c.b16 %v312, %v310
    %v563 = vpack.c.b16 %v313, %v311
    %v564 = vpack.c.b16 %v316, %v314
    %v565 = vpack.c.b16 %v317, %v315
    %v566 = vpack.c.b16 %v320, %v318
    %v567 = vpack.c.b16 %v321, %v319
    %v568 = vpack.c.b16 %v324, %v322
    %v569 = vpack.c.b16 %v325, %v323
    %v570 = vpack.c.b16 %v328, %v326
    %v571 = vpack.c.b16 %v329, %v327
    %v572 = vpack.c.b16 %v332, %v330
    %v573 = vpack.c.b16 %v333, %v331
    %v574 = vpack.c.b16 %v336, %v334
    %v575 = vpack.c.b16 %v337, %v335
    %v576 = vpack.c.b16 %v340, %v338
    %v577 = vpack.c.b16 %v341, %v339
    %v578 = vpack.c.b16 %v344, %v342
    %v579 = vpack.c.b16 %v345, %v343
    %v580 = vpack.c.b16 %v348, %v346
    %v581 = vpack.c.b16 %v349, %v347
    %v582 = vpack.c.b16 %v352, %v350
    %v583 = vpack.c.b16 %v353, %v351
    %v584 = vpack.c.b16 %v356, %v354
    %v585 = vpack.c.b16 %v357, %v355
    %v586 = vpack.c.b16 %v360, %v358
    %v587 = vpack.c.b16 %v361, %v359
    %v588 = vpack.c.b16 %v364, %v362
    %v589 = vpack.c.b16 %v365, %v363
    %v590 = vpack.c.b16 %v368, %v366
    %v591 = vpack.c.b16 %v369, %v367
    %v592 = vpack.c.b16 %v372, %v370
    %v593 = vpack.c.b16 %v373, %v371
    %v594 = vpack.c.b16 %v376, %v374
    %v595 = vpack.c.b16 %v377, %v375
    %v596 = vpack.c.b16 %v380, %v378
    %v597 = vpack.c.b16 %v381, %v379
    %v598 = vpack.c.b16 %v384, %v382
    %v599 = vpack.c.b16 %v385, %v383
    %v600 = vpack.c.b16 %v388, %v386
    %v601 = vpack.c.b16 %v389, %v387
    %v602 = vpack.c.b16 %v392, %v390
    %v603 = vpack.c.b16 %v393, %v391
    %v604 = vpack.c.b16 %v396, %v394
    %v605 = vpack.c.b16 %v397, %v395
    %v606 = vpack.c.b16 %v400, %v398
    %v607 = vpack.c.b16 %v401, %v399
    %v608 = vpack.c.b16 %v404, %v402
    %v609 = vpack.c.b16 %v405, %v403
    %v610 = vpack.c.b16 %v408, %v406
    %v611 = vpack.c.b16 %v409, %v407
    %v612 = vpack.c.b16 %v412, %v410
    %v613 = vpack.c.b16 %v413, %v411
    %v614 = vpack.c.b16 %v416, %v414
    %v615 = vpack.c.b16 %v417, %v415
    %v616 = vpack.c.b16 %v420, %v418
    %v617 = vpack.c.b16 %v421, %v419
    %v618 = vpack.c.b16 %v424, %v422
    %v619 = vpack.c.b16 %v425, %v423
    %v620 = vpack.c.b16 %v428, %v426
    %v621 = vpack.c.b16 %v429, %v427
    %v622 = vpack.c.b16 %v432, %v430
    %v623 = vpack.c.b16 %v433, %v431
    %v624 = vpack.c.b16 %v436, %v434
    %v625 = vpack.c.b16 %v437, %v435
    %v626 = vpack.c.b16 %v440, %v438
    %v627 = vpack.c.b16 %v441, %v439
    %v628 = vpack.c.b16 %v444, %v442
    %v629 = vpack.c.b16 %v445, %v443
    %v630 = vpack.c.b16 %v448, %v446
    %v631 = vpack.c.b16 %v449, %v447
    %v632 = vpack.c.b16 %v452, %v450
    %v633 = vpack.c.b16 %v453, %v451
    %v634 = vpack.c.b16 %v456, %v454
    %v635 = vpack.c.b16 %v457, %v455
    %v636 = vpack.c.b16 %v460, %v458
    %v637 = vpack.c.b16 %v461, %v459
    %v638 = vpack.c.b16 %v464, %v462
    %v639 = vpack.c.b16 %v465, %v463
    %v640 = vpack.c.b16 %v468, %v466
    %v641 = vpack.c.b16 %v469, %v467
    %v642 = vpack.c.b16 %v472, %v470
    %v643 = vpack.c.b16 %v473, %v471
    %v644 = vpack.c.b16 %v476, %v474
    %v645 = vpack.c.b16 %v477, %v475
    %v646 = vpack.c.b16 %v480, %v478
    %v647 = vpack.c.b16 %v481, %v479
    %v648 = vpack.c.b16 %v484, %v482
    %v649 = vpack.c.b16 %v485, %v483
    %v650 = vpack.c.b16 %v488, %v486
    %v651 = vpack.c.b16 %v489, %v487
    %v652 = vpack.c.b16 %v492, %v490
    %v653 = vpack.c.b16 %v493, %v491
    %v654 = vpack.c.b16 %v496, %v494
    %v655 = vpack.c.b16 %v497, %v495
    %v656 = vpack.c.b16 %v500, %v498
    %v657 = vpack.c.b16 %v501, %v499
    %v658 = vpack.c.b16 %v504, %v502
    %v659 = vpack.c.b16 %v505, %v503
    %v660 = vpack.c.b16 %v508, %v506
    %v661 = vpack.c.b16 %v509, %v507
    %v662 = vpack.c.b16 %v512, %v510
    %v663 = vpack.c.b16 %v513, %v511
    %v664 = vpack.c.b16 %v516, %v514
    %v665 = vpack.c.b16 %v517, %v515
    %v666 = vpack.c.b16 %v520, %v518
    %v667 = vpack.c.b16 %v521, %v519
    %v668 = vpack.c.b16 %v524, %v522
    %v669 = vpack.c.b16 %v525, %v523
    %v670 = vpack.c.b16 %v528, %v526
    %v671 = vpack.c.b16 %v529, %v527
    %v672 = vpack.c.b16 %v532, %v530
    %v673 = vpack.c.b16 %v533, %v531
    %v674 = vpack.c.b16 %v536, %v534
    %v675 = vpack.c.b16 %v537, %v535
    %v676 = vpack.c.b16 %v540, %v538
    %v677 = vpack.c.b16 %v541, %v539
    %v678 = vpack.c.b16 %v544, %v542
    %v679 = vpack.c.b16 %v545, %v543
    %v680 = vpack.c.b16 %v548, %v546
    %v681 = vpack.c.b16 %v549, %v547
    %v682 = vpack.c.b16 %v552, %v550
    %v683 = vpack.c.b16 %v553, %v551
    %v684 = vpack.c.b16 %v556, %v554
    %v685 = vpack.c.b16 %v557, %v555
    %814 = vmatpush.bf16.msra.mxu0 %v572
    %815 = vmatpush.bf16.msra.mxu0 %v570
    %816 = vmatpush.bf16.msra.mxu0 %v568
    %817 = vmatpush.bf16.msra.mxu0 %v566
    %818 = vmatpush.bf16.msra.mxu0 %v564
    %819 = vmatpush.bf16.msra.mxu0 %v562
    %820 = vmatpush.bf16.msra.mxu0 %v560
    %821 = vmatpush.bf16.msra.mxu0 %v558
    %822 = vmatmul.bf16.gmra.mxu0 %v158
    %v823 = vpop.f32.mrf.mxu0
    %v824 = vadd.f32 %v152, %v823
    %v825 = vpop.f32.mrf.mxu0
    %826 = vdwg.mxu0
    %827 = vmatpush.bf16.msra.mxu0 %v588
    %828 = vmatpush.bf16.msra.mxu0 %v586
    %829 = vmatpush.bf16.msra.mxu0 %v584
    %830 = vmatpush.bf16.msra.mxu0 %v582
    %831 = vmatpush.bf16.msra.mxu0 %v580
    %832 = vmatpush.bf16.msra.mxu0 %v578
    %833 = vmatpush.bf16.msra.mxu0 %v576
    %834 = vmatpush.bf16.msra.mxu0 %v574
    %835 = vmatmul.bf16.gmra.mxu0 %v159
    %v836 = vpop.f32.mrf.mxu0
    %v837 = vadd.f32 %v824, %v836
    %v838 = vpop.f32.mrf.mxu0
    %839 = vdwg.mxu0
    %840 = vmatpush.bf16.msra.mxu0 %v604
    %841 = vmatpush.bf16.msra.mxu0 %v602
    %842 = vmatpush.bf16.msra.mxu0 %v600
    %843 = vmatpush.bf16.msra.mxu0 %v598
    %844 = vmatpush.bf16.msra.mxu0 %v596
    %845 = vmatpush.bf16.msra.mxu0 %v594
    %846 = vmatpush.bf16.msra.mxu0 %v592
    %847 = vmatpush.bf16.msra.mxu0 %v590
    %848 = vmatmul.bf16.gmra.mxu0 %v160
    %v849 = vpop.f32.mrf.mxu0
    %v850 = vadd.f32 %v837, %v849
    %v851 = vpop.f32.mrf.mxu0
    %852 = vdwg.mxu0
    %853 = vmatpush.bf16.msra.mxu0 %v620
    %854 = vmatpush.bf16.msra.mxu0 %v618
    %855 = vmatpush.bf16.msra.mxu0 %v616
    %856 = vmatpush.bf16.msra.mxu0 %v614
    %857 = vmatpush.bf16.msra.mxu0 %v612
    %858 = vmatpush.bf16.msra.mxu0 %v610
    %859 = vmatpush.bf16.msra.mxu0 %v608
    %860 = vmatpush.bf16.msra.mxu0 %v606
    %861 = vmatmul.bf16.gmra.mxu0 %v161
    %v862 = vpop.f32.mrf.mxu0
    %v863 = vadd.f32 %v850, %v862
    %v864 = vpop.f32.mrf.mxu0
    %865 = vdwg.mxu0
    %866 = vmatpush.bf16.msra.mxu0 %v636
    %867 = vmatpush.bf16.msra.mxu0 %v634
    %868 = vmatpush.bf16.msra.mxu0 %v632
    %869 = vmatpush.bf16.msra.mxu0 %v630
    %870 = vmatpush.bf16.msra.mxu0 %v628
    %871 = vmatpush.bf16.msra.mxu0 %v626
    %872 = vmatpush.bf16.msra.mxu0 %v624
    %873 = vmatpush.bf16.msra.mxu0 %v622
    %874 = vmatmul.bf16.gmra.mxu0 %v162
    %v875 = vpop.f32.mrf.mxu0
    %v876 = vadd.f32 %v863, %v875
    %v877 = vpop.f32.mrf.mxu0
    %878 = vdwg.mxu0
    %879 = vmatpush.bf16.msra.mxu0 %v652
    %880 = vmatpush.bf16.msra.mxu0 %v650
    %881 = vmatpush.bf16.msra.mxu0 %v648
    %882 = vmatpush.bf16.msra.mxu0 %v646
    %883 = vmatpush.bf16.msra.mxu0 %v644
    %884 = vmatpush.bf16.msra.mxu0 %v642
    %885 = vmatpush.bf16.msra.mxu0 %v640
    %886 = vmatpush.bf16.msra.mxu0 %v638
    %887 = vmatmul.bf16.gmra.mxu0 %v163
    %v888 = vpop.f32.mrf.mxu0
    %v889 = vadd.f32 %v876, %v888
    %v890 = vpop.f32.mrf.mxu0
    %891 = vdwg.mxu0
    %892 = vmatpush.bf16.msra.mxu0 %v668
    %893 = vmatpush.bf16.msra.mxu0 %v666
    %894 = vmatpush.bf16.msra.mxu0 %v664
    %895 = vmatpush.bf16.msra.mxu0 %v662
    %896 = vmatpush.bf16.msra.mxu0 %v660
    %897 = vmatpush.bf16.msra.mxu0 %v658
    %898 = vmatpush.bf16.msra.mxu0 %v656
    %899 = vmatpush.bf16.msra.mxu0 %v654
    %900 = vmatmul.bf16.gmra.mxu0 %v164
    %v901 = vpop.f32.mrf.mxu0
    %v902 = vadd.f32 %v889, %v901
    %v903 = vpop.f32.mrf.mxu0
    %904 = vdwg.mxu0
    %905 = vmatpush.bf16.msra.mxu0 %v684
    %906 = vmatpush.bf16.msra.mxu0 %v682
    %907 = vmatpush.bf16.msra.mxu0 %v680
    %908 = vmatpush.bf16.msra.mxu0 %v678
    %909 = vmatpush.bf16.msra.mxu0 %v676
    %910 = vmatpush.bf16.msra.mxu0 %v674
    %911 = vmatpush.bf16.msra.mxu0 %v672
    %912 = vmatpush.bf16.msra.mxu0 %v670
    %913 = vmatmul.bf16.gmra.mxu0 %v165
    %v914 = vpop.f32.mrf.mxu0
    %v915 = vadd.f32 %v902, %v914
    %v916 = vpop.f32.mrf.mxu0
    %917 = vdwg.mxu0
    %918 = vmatpush.bf16.msra.mxu0 %v573
    %919 = vmatpush.bf16.msra.mxu0 %v571
    %920 = vmatpush.bf16.msra.mxu0 %v569
    %921 = vmatpush.bf16.msra.mxu0 %v567
    %922 = vmatpush.bf16.msra.mxu0 %v565
    %923 = vmatpush.bf16.msra.mxu0 %v563
    %924 = vmatpush.bf16.msra.mxu0 %v561
    %925 = vmatpush.bf16.msra.mxu0 %v559
    %926 = vmatmul.bf16.gmra.mxu0 %v158
    %v927 = vpop.f32.mrf.mxu0
    %v928 = vadd.f32 %v153, %v927
    %v929 = vpop.f32.mrf.mxu0
    %930 = vdwg.mxu0
    %931 = vmatpush.bf16.msra.mxu0 %v589
    %932 = vmatpush.bf16.msra.mxu0 %v587
    %933 = vmatpush.bf16.msra.mxu0 %v585
    %934 = vmatpush.bf16.msra.mxu0 %v583
    %935 = vmatpush.bf16.msra.mxu0 %v581
    %936 = vmatpush.bf16.msra.mxu0 %v579
    %937 = vmatpush.bf16.msra.mxu0 %v577
    %938 = vmatpush.bf16.msra.mxu0 %v575
    %939 = vmatmul.bf16.gmra.mxu0 %v159
    %v940 = vpop.f32.mrf.mxu0
    %v941 = vadd.f32 %v928, %v940
    %v942 = vpop.f32.mrf.mxu0
    %943 = vdwg.mxu0
    %944 = vmatpush.bf16.msra.mxu0 %v605
    %945 = vmatpush.bf16.msra.mxu0 %v603
    %946 = vmatpush.bf16.msra.mxu0 %v601
    %947 = vmatpush.bf16.msra.mxu0 %v599
    %948 = vmatpush.bf16.msra.mxu0 %v597
    %949 = vmatpush.bf16.msra.mxu0 %v595
    %950 = vmatpush.bf16.msra.mxu0 %v593
    %951 = vmatpush.bf16.msra.mxu0 %v591
    %952 = vmatmul.bf16.gmra.mxu0 %v160
    %v953 = vpop.f32.mrf.mxu0
    %v954 = vadd.f32 %v941, %v953
    %v955 = vpop.f32.mrf.mxu0
    %956 = vdwg.mxu0
    %957 = vmatpush.bf16.msra.mxu0 %v621
    %958 = vmatpush.bf16.msra.mxu0 %v619
    %959 = vmatpush.bf16.msra.mxu0 %v617
    %960 = vmatpush.bf16.msra.mxu0 %v615
    %961 = vmatpush.bf16.msra.mxu0 %v613
    %962 = vmatpush.bf16.msra.mxu0 %v611
    %963 = vmatpush.bf16.msra.mxu0 %v609
    %964 = vmatpush.bf16.msra.mxu0 %v607
    %965 = vmatmul.bf16.gmra.mxu0 %v161
    %v966 = vpop.f32.mrf.mxu0
    %v967 = vadd.f32 %v954, %v966
    %v968 = vpop.f32.mrf.mxu0
    %969 = vdwg.mxu0
    %970 = vmatpush.bf16.msra.mxu0 %v637
    %971 = vmatpush.bf16.msra.mxu0 %v635
    %972 = vmatpush.bf16.msra.mxu0 %v633
    %973 = vmatpush.bf16.msra.mxu0 %v631
    %974 = vmatpush.bf16.msra.mxu0 %v629
    %975 = vmatpush.bf16.msra.mxu0 %v627
    %976 = vmatpush.bf16.msra.mxu0 %v625
    %977 = vmatpush.bf16.msra.mxu0 %v623
    %978 = vmatmul.bf16.gmra.mxu0 %v162
    %v979 = vpop.f32.mrf.mxu0
    %v980 = vadd.f32 %v967, %v979
    %v981 = vpop.f32.mrf.mxu0
    %982 = vdwg.mxu0
    %983 = vmatpush.bf16.msra.mxu0 %v653
    %984 = vmatpush.bf16.msra.mxu0 %v651
    %985 = vmatpush.bf16.msra.mxu0 %v649
    %986 = vmatpush.bf16.msra.mxu0 %v647
    %987 = vmatpush.bf16.msra.mxu0 %v645
    %988 = vmatpush.bf16.msra.mxu0 %v643
    %989 = vmatpush.bf16.msra.mxu0 %v641
    %990 = vmatpush.bf16.msra.mxu0 %v639
    %991 = vmatmul.bf16.gmra.mxu0 %v163
    %v992 = vpop.f32.mrf.mxu0
    %v993 = vadd.f32 %v980, %v992
    %v994 = vpop.f32.mrf.mxu0
    %995 = vdwg.mxu0
    %996 = vmatpush.bf16.msra.mxu0 %v669
    %997 = vmatpush.bf16.msra.mxu0 %v667
    %998 = vmatpush.bf16.msra.mxu0 %v665
    %999 = vmatpush.bf16.msra.mxu0 %v663
    %1000 = vmatpush.bf16.msra.mxu0 %v661
    %1001 = vmatpush.bf16.msra.mxu0 %v659
    %1002 = vmatpush.bf16.msra.mxu0 %v657
    %1003 = vmatpush.bf16.msra.mxu0 %v655
    %1004 = vmatmul.bf16.gmra.mxu0 %v164
    %v1005 = vpop.f32.mrf.mxu0
    %v1006 = vadd.f32 %v993, %v1005
    %v1007 = vpop.f32.mrf.mxu0
    %1008 = vdwg.mxu0
    %1009 = vmatpush.bf16.msra.mxu0 %v685
    %1010 = vmatpush.bf16.msra.mxu0 %v683
    %1011 = vmatpush.bf16.msra.mxu0 %v681
    %1012 = vmatpush.bf16.msra.mxu0 %v679
    %1013 = vmatpush.bf16.msra.mxu0 %v677
    %1014 = vmatpush.bf16.msra.mxu0 %v675
    %1015 = vmatpush.bf16.msra.mxu0 %v673
    %1016 = vmatpush.bf16.msra.mxu0 %v671
    %1017 = vmatmul.bf16.gmra.mxu0 %v165
    %v1018 = vpop.f32.mrf.mxu0
    %v1019 = vadd.f32 %v1006, %v1018
    %v1020 = vpop.f32.mrf.mxu0
    %1021 = vdwg.mxu0
    %v1022 = vmax.f32 %v915, 0.0
    %v1023 = vmax.f32 %v1019, 0.0
    %v1024 = vpack.c.bf16 %v1022, %v1022
    %v1025 = vpack.c.bf16 %v1023, %v1023
    %v1026 = vld [vmem:[%s3] sm:$0xf]
    %v1027 = vld [vmem:[%s3 + $0x4] sm:$0xf]
    %v1028 = vld [vmem:[%s3 + $0x8] sm:$0xf]
    %v1029 = vld [vmem:[%s3 + $0xc] sm:$0xf]
    %v1030 = vld [vmem:[%s3 + $0x10] sm:$0xf]
    %v1031 = vld [vmem:[%s3 + $0x14] sm:$0xf]
    %v1032 = vld [vmem:[%s3 + $0x18] sm:$0xf]
    %v1033 = vld [vmem:[%s3 + $0x1c] sm:$0xf]
    %v1034 = vld [vmem:[%s3 + $0x20] sm:$0xf]
    %v1035 = vld [vmem:[%s3 + $0x24] sm:$0xf]
    %v1036 = vld [vmem:[%s3 + $0x28] sm:$0xf]
    %v1037 = vld [vmem:[%s3 + $0x2c] sm:$0xf]
    %v1038 = vld [vmem:[%s3 + $0x30] sm:$0xf]
    %v1039 = vld [vmem:[%s3 + $0x34] sm:$0xf]
    %v1040 = vld [vmem:[%s3 + $0x38] sm:$0xf]
    %v1041 = vld [vmem:[%s3 + $0x3c] sm:$0xf]
    %v1042 = vld [vmem:[%s3 + $0x40] sm:$0xf]
    %v1043 = vld [vmem:[%s3 + $0x44] sm:$0xf]
    %v1044 = vld [vmem:[%s3 + $0x48] sm:$0xf]
    %v1045 = vld [vmem:[%s3 + $0x4c] sm:$0xf]
    %v1046 = vld [vmem:[%s3 + $0x50] sm:$0xf]
    %v1047 = vld [vmem:[%s3 + $0x54] sm:$0xf]
    %v1048 = vld [vmem:[%s3 + $0x58] sm:$0xf]
    %v1049 = vld [vmem:[%s3 + $0x5c] sm:$0xf]
    %v1050 = vld [vmem:[%s3 + $0x60] sm:$0xf]
    %v1051 = vld [vmem:[%s3 + $0x64] sm:$0xf]
    %v1052 = vld [vmem:[%s3 + $0x68] sm:$0xf]
    %v1053 = vld [vmem:[%s3 + $0x6c] sm:$0xf]
    %v1054 = vld [vmem:[%s3 + $0x70] sm:$0xf]
    %v1055 = vld [vmem:[%s3 + $0x74] sm:$0xf]
    %v1056 = vld [vmem:[%s3 + $0x78] sm:$0xf]
    %v1057 = vld [vmem:[%s3 + $0x7c] sm:$0xf]
    %v1058 = vld [vmem:[%s4] sm:$0x1]
    %v1060 = vperm.slane %v1058, 0
    %v1094 = vunpack.c.l.b16 %v1026
    %v1095 = vunpack.c.l.b16 %v1027
    %v1096 = vunpack.c.l.b16 %v1028
    %v1097 = vunpack.c.l.b16 %v1029
    %v1098 = vunpack.c.l.b16 %v1030
    %v1099 = vunpack.c.l.b16 %v1031
    %v1100 = vunpack.c.l.b16 %v1032
    %v1101 = vunpack.c.l.b16 %v1033
    %v1102 = vunpack.c.l.b16 %v1034
    %v1103 = vunpack.c.l.b16 %v1035
    %v1104 = vunpack.c.l.b16 %v1036
    %v1105 = vunpack.c.l.b16 %v1037
    %v1106 = vunpack.c.l.b16 %v1038
    %v1107 = vunpack.c.l.b16 %v1039
    %v1108 = vunpack.c.l.b16 %v1040
    %v1109 = vunpack.c.l.b16 %v1041
    %v1110 = vunpack.c.l.b16 %v1042
    %v1111 = vunpack.c.l.b16 %v1043
    %v1112 = vunpack.c.l.b16 %v1044
    %v1113 = vunpack.c.l.b16 %v1045
    %v1114 = vunpack.c.l.b16 %v1046
    %v1115 = vunpack.c.l.b16 %v1047
    %v1116 = vunpack.c.l.b16 %v1048
    %v1117 = vunpack.c.l.b16 %v1049
    %v1118 = vunpack.c.l.b16 %v1050
    %v1119 = vunpack.c.l.b16 %v1051
    %v1120 = vunpack.c.l.b16 %v1052
    %v1121 = vunpack.c.l.b16 %v1053
    %v1122 = vunpack.c.l.b16 %v1054
    %v1123 = vunpack.c.l.b16 %v1055
    %v1124 = vunpack.c.l.b16 %v1056
    %v1125 = vunpack.c.l.b16 %v1057
    %v1126 = vpack.c.b16 %v1095, %v1094
    %v1127 = vpack.c.b16 %v1097, %v1096
    %v1128 = vpack.c.b16 %v1099, %v1098
    %v1129 = vpack.c.b16 %v1101, %v1100
    %v1130 = vpack.c.b16 %v1103, %v1102
    %v1131 = vpack.c.b16 %v1105, %v1104
    %v1132 = vpack.c.b16 %v1107, %v1106
    %v1133 = vpack.c.b16 %v1109, %v1108
    %v1134 = vpack.c.b16 %v1111, %v1110
    %v1135 = vpack.c.b16 %v1113, %v1112
    %v1136 = vpack.c.b16 %v1115, %v1114
    %v1137 = vpack.c.b16 %v1117, %v1116
    %v1138 = vpack.c.b16 %v1119, %v1118
    %v1139 = vpack.c.b16 %v1121, %v1120
    %v1140 = vpack.c.b16 %v1123, %v1122
    %v1141 = vpack.c.b16 %v1125, %v1124
    %1158 = vmatpush.bf16.msra.mxu0 %v1133
    %1159 = vmatpush.bf16.msra.mxu0 %v1132
    %1160 = vmatpush.bf16.msra.mxu0 %v1131
    %1161 = vmatpush.bf16.msra.mxu0 %v1130
    %1162 = vmatpush.bf16.msra.mxu0 %v1129
    %1163 = vmatpush.bf16.msra.mxu0 %v1128
    %1164 = vmatpush.bf16.msra.mxu0 %v1127
    %1165 = vmatpush.bf16.msra.mxu0 %v1126
    %1166 = vmatmul.bf16.gmra.mxu0 %v1024
    %v1167 = vpop.f32.mrf.mxu0
    %v1168 = vadd.f32 %v1060, %v1167
    %v1169 = vpop.f32.mrf.mxu0
    %1170 = vdwg.mxu0
    %1171 = vmatpush.bf16.msra.mxu0 %v1141
    %1172 = vmatpush.bf16.msra.mxu0 %v1140
    %1173 = vmatpush.bf16.msra.mxu0 %v1139
    %1174 = vmatpush.bf16.msra.mxu0 %v1138
    %1175 = vmatpush.bf16.msra.mxu0 %v1137
    %1176 = vmatpush.bf16.msra.mxu0 %v1136
    %1177 = vmatpush.bf16.msra.mxu0 %v1135
    %1178 = vmatpush.bf16.msra.mxu0 %v1134
    %1179 = vmatmul.bf16.gmra.mxu0 %v1025
    %v1180 = vpop.f32.mrf.mxu0
    %v1181 = vadd.f32 %v1168, %v1180
    %v1182 = vpop.f32.mrf.mxu0
    %1183 = vdwg.mxu0
    %vm1184 = vcmask 74752
    %1185 = vst.msk [vmem:[#allocation2] sm:$0x3] %vm1184, %v1181
    // Predicated region
    $region22: #{mynet_forward.9} parent=1 // pred_check
      _
    $region23: #{mynet_forward.9} parent=1 // pred_check_branch
      %1187 = sbr.rel (0) target = $region25
    $region24: #{mynet_forward.9} parent=1 // pred_region
      %1189 = vsyncadd [#allocation3], 0
      %s1191 = sshll.u32 [#allocation2], 4
      %s1192 = int_to_ptr.vmem [resolvable:$true] %s1191
      %s1193 = sshll.u32 %s5, 4
      %s1194 = int_to_ptr.hbm [resolvable:$true] %s1193
      %1196 = dma.vmem_to_hbm [thread:$0]  %s1192, 32, %s1194, [#allocation3]
    $region25: #{mynet_forward.9} parent=1 // pred_fallthru
      _
    // Predicated region
    $region26: #{mynet_forward.9} parent=1 // pred_check
      _
    $region27: #{mynet_forward.9} parent=1 // pred_check_branch
      %1198 = sbr.rel (0) target = $region29
    $region28: #{mynet_forward.9} parent=1 // pred_region
      %1200 = dma.done [#allocation3], 32
    $region29: #{mynet_forward.9} parent=1 // pred_fallthru
      _
    %1201 = vsyncpa [#allocation3], 1

</llo_original>
